<compile_context>
chip_gen: v7x
topology: tpu7x:2x2x1
jax: 0.10.0
libtpu: 0.0.40
codegen_flags: <defaults>
</compile_context>

<pallas_src>
import jax
import jax.numpy as jnp
from jax.experimental import pallas as pl
from jax.experimental.pallas import tpu as pltpu

# ---- synthetic tiny causal-LM config (replaces the HF checkpoint) ----------
VOCAB = 64
D = 32            # hidden size == self.outdim
H = 4             # attention heads
HD = D // H
DFF = 4 * D
N_LAYERS = 2
MAX_POS = 16
PAD_ID = 0        # tokenizer.pad_token_id
LN_EPS = 1e-5
NC = 2            # batch chunks == grid steps (parallel axis -> 2 TCs on v7x)
NEG = -1e30
# TODO(synk): pretrained HF weight loading / AutoTokenizer has no Pallas
# equivalent; weights are deterministic synthetic params of the same structure.


def _gelu_new(x):
    # GPT-2 "gelu_new" (tanh approximation)
    return 0.5 * x * (1.0 + jnp.tanh(0.7978845608028654 * (x + 0.044715 * x * x * x)))


def _layer_norm(x, g, b):
    mu = jnp.mean(x, axis=-1, keepdims=True)
    var = jnp.mean((x - mu) ** 2, axis=-1, keepdims=True)
    return (x - mu) * jax.lax.rsqrt(var + LN_EPS) * g + b


def make_kernel(BC, L):
    """One grid step == one batch chunk.  Both layers and all heads are fully
    unrolled inside a single invocation; hidden state stays a 2-D (BC*L, D)
    value the whole time (no (B,L,D)<->(B*L,D) reshapes around the dots)."""
    N = BC * L
    scale = 1.0 / float(HD) ** 0.5

    def kernel(x_ref, bias_ref, gather_ref,
               ln1_g, ln1_b, w_q, b_q, w_k, b_k, w_v, b_v, w_oh, b_o,
               ln2_g, ln2_b, w_fc, b_fc, w_pr, b_pr, lnf_g, lnf_b,
               out_ref):
        h = x_ref[...]                      # (N, D) float32
        bias = bias_ref[...]                # (BC, L, L) additive mask, precomputed

        for l in range(N_LAYERS):           # layers unrolled (no per-layer grid)
            # ---------------- attention block ----------------
            x1 = _layer_norm(h, ln1_g[l], ln1_b[l])
            attn = jnp.zeros((N, D), jnp.float32)
            for hh in range(H):             # heads unrolled; weights pre-split per head
                # per-head weights live on leading axes -> no lane-axis slicing
                qh = jnp.dot(x1, w_q[l, hh], preferred_element_type=jnp.float32) + b_q[l, hh]
                kh = jnp.dot(x1, w_k[l, hh], preferred_element_type=jnp.float32) + b_k[l, hh]
                vh = jnp.dot(x1, w_v[l, hh], preferred_element_type=jnp.float32) + b_v[l, hh]
                q3 = qh.reshape(BC, L, HD)
                k3 = kh.reshape(BC, L, HD)
                v3 = vh.reshape(BC, L, HD)
                s = jnp.einsum('bld,bmd->blm', q3, k3,
                               preferred_element_type=jnp.float32) * scale + bias
                s = s - jnp.max(s, axis=-1, keepdims=True)
                p = jnp.exp(s)
                p = p * pl.reciprocal(jnp.sum(p, axis=-1, keepdims=True), approx=True)
                ctx = jnp.einsum('blm,bmd->bld', p, v3,
                                 preferred_element_type=jnp.float32)   # (BC, L, HD)
                # accumulate the output projection per head: == concat(ctx) @ W_o
                attn = attn + jnp.dot(ctx.reshape(N, HD), w_oh[l, hh],
                                      preferred_element_type=jnp.float32)
            h = h + attn + b_o[l]

            # ---------------- MLP block ----------------------
            x2 = _layer_norm(h, ln2_g[l], ln2_b[l])
            f = _gelu_new(jnp.dot(x2, w_fc[l], preferred_element_type=jnp.float32) + b_fc[l])
            h = h + jnp.dot(f, w_pr[l], preferred_element_type=jnp.float32) + b_pr[l]

        # gather the last non-pad row per batch element (one-hot matmul) and
        # apply ln_f only to those rows -> emit just (BC, D)
        g = jnp.dot(gather_ref[...], h, preferred_element_type=jnp.float32)
        out_ref[...] = _layer_norm(g, lnf_g[...], lnf_b[...])

    return kernel


def run_transformer(x, bias, gather, kp):
    """x: (NC, BC*L, D), bias: (NC, BC, L, L), gather: (NC, BC, BC*L)."""
    _, N, _ = x.shape
    BC = gather.shape[1]
    L = bias.shape[-1]
    kernel = make_kernel(BC, L)

    weight_names = ['ln1_g', 'ln1_b', 'w_q', 'b_q', 'w_k', 'b_k', 'w_v', 'b_v',
                    'w_oh', 'b_o', 'ln2_g', 'ln2_b', 'w_fc', 'b_fc',
                    'w_proj', 'b_proj', 'lnf_g', 'lnf_b']
    weights = [kp[nm] for nm in weight_names]

    def full_spec(arr):
        nd = arr.ndim
        return pl.BlockSpec(arr.shape, lambda i, _nd=nd: (0,) * _nd)

    in_specs = (
        [pl.BlockSpec((None, N, D), lambda i: (i, 0, 0)),       # embeddings chunk
         pl.BlockSpec((None, BC, L, L), lambda i: (i, 0, 0, 0)),  # attention bias
         pl.BlockSpec((None, BC, N), lambda i: (i, 0, 0))]        # gather one-hot
        + [full_spec(w) for w in weights])                        # shared weights

    return pl.pallas_call(
        kernel,
        out_shape=jax.ShapeDtypeStruct((NC, BC, D), jnp.float32),
        grid_spec=pltpu.PrefetchScalarGridSpec(
            num_scalar_prefetch=0,
            grid=(NC,),
            in_specs=in_specs,
            out_specs=pl.BlockSpec((None, BC, D), lambda i: (i, 0, 0)),
        ),
        compiler_params=pltpu.CompilerParams(dimension_semantics=("parallel",)),
    )(x, bias, gather, *weights)


def hfllm_forward(features, params):
    """Mirrors HFLLM.forward semantics.  Fully jittable: the data-dependent
    truncation of the original (a perf-only optimization) is replaced by a
    static sequence length + key-padding mask, which yields identical outputs."""
    batch_dim = features.shape[:-1]
    feats = features.reshape(-1, features.shape[-1]).astype(jnp.int32)   # (Bf, L)
    Bf, L = feats.shape
    mask = feats != PAD_ID
    flipped = mask[:, ::-1].astype(jnp.int32)
    last_ones = L - jnp.argmax(flipped, axis=1)
    idx = last_ones - 1                                   # last non-pad position

    # pad flattened batch to NC * BC so the grid splits evenly (pad rows = all PAD)
    BC = -(-Bf // NC)
    Bp = NC * BC
    pad_rows = Bp - Bf
    feats_p = jnp.pad(feats, ((0, pad_rows), (0, 0)), constant_values=PAD_ID)
    mask_p = jnp.pad(mask, ((0, pad_rows), (0, 0)), constant_values=False)
    idx_p = jnp.pad(idx, (0, pad_rows), constant_values=0)

    # embeddings (glue)
    tok = jnp.take(params['wte'], feats_p, axis=0)        # (Bp, L, D)
    pos = params['wpe'][:L][None, :, :]                   # (1, L, D)
    x = (tok + pos).astype(jnp.float32).reshape(NC, BC * L, D)

    # additive attention bias (causal AND key-not-pad), computed once
    col = jnp.arange(L)[None, :]
    row = jnp.arange(L)[:, None]
    causal = col <= row
    allow = causal[None, :, :] & mask_p[:, None, :]
    bias = jnp.where(allow, 0.0, NEG).astype(jnp.float32).reshape(NC, BC, L, L)

    # one-hot gather matrix: per chunk, row b picks hidden row b*L + idx[b]
    pos_oh = jax.nn.one_hot(idx_p, L, dtype=jnp.float32).reshape(NC, BC, 1, L)
    batch_oh = jnp.eye(BC, dtype=jnp.float32)[None, :, :, None]          # (1,BC,BC,1)
    gather = (batch_oh * pos_oh).reshape(NC, BC, BC * L)

    # pre-split attention weights per head (one-time XLA ops, outside the kernel)
    kp = {
        'ln1_g': params['ln1_g'], 'ln1_b': params['ln1_b'],
        'w_q': params['w_q'].reshape(N_LAYERS, D, H, HD).transpose(0, 2, 1, 3),
        'b_q': params['b_q'].reshape(N_LAYERS, 1, H, HD).transpose(0, 2, 1, 3),
        'w_k': params['w_k'].reshape(N_LAYERS, D, H, HD).transpose(0, 2, 1, 3),
        'b_k': params['b_k'].reshape(N_LAYERS, 1, H, HD).transpose(0, 2, 1, 3),
        'w_v': params['w_v'].reshape(N_LAYERS, D, H, HD).transpose(0, 2, 1, 3),
        'b_v': params['b_v'].reshape(N_LAYERS, 1, H, HD).transpose(0, 2, 1, 3),
        'w_oh': params['w_o'].reshape(N_LAYERS, H, HD, D),
        'b_o': params['b_o'],
        'ln2_g': params['ln2_g'], 'ln2_b': params['ln2_b'],
        'w_fc': params['w_fc'], 'b_fc': params['b_fc'],
        'w_proj': params['w_proj'], 'b_proj': params['b_proj'],
        'lnf_g': params['lnf_g'], 'lnf_b': params['lnf_b'],
    }

    last_hidden = run_transformer(x, bias, gather, kp)    # (NC, BC, D)
    out = last_hidden.reshape(Bp, D)[:Bf]
    return out.reshape(*batch_dim, D).astype(jnp.float32)


def init_params(key):
    ks = jax.random.split(key, 8)

    def n(k, shape, s=0.02):
        return (s * jax.random.normal(k, shape)).astype(jnp.float32)

    # q/k/v stored separately == thirds of the GPT-2 c_attn (D, 3D) weight
    return {
        'wte': n(ks[0], (VOCAB, D)),
        'wpe': n(ks[1], (MAX_POS, D)),
        'ln1_g': jnp.ones((N_LAYERS, 1, D), jnp.float32),
        'ln1_b': jnp.zeros((N_LAYERS, 1, D), jnp.float32),
        'w_q': n(ks[2], (N_LAYERS, D, D)),
        'w_k': n(ks[3], (N_LAYERS, D, D)),
        'w_v': n(ks[4], (N_LAYERS, D, D)),
        'b_q': jnp.zeros((N_LAYERS, 1, D), jnp.float32),
        'b_k': jnp.zeros((N_LAYERS, 1, D), jnp.float32),
        'b_v': jnp.zeros((N_LAYERS, 1, D), jnp.float32),
        'w_o': n(ks[5], (N_LAYERS, D, D)),
        'b_o': jnp.zeros((N_LAYERS, 1, D), jnp.float32),
        'ln2_g': jnp.ones((N_LAYERS, 1, D), jnp.float32),
        'ln2_b': jnp.zeros((N_LAYERS, 1, D), jnp.float32),
        'w_fc': n(ks[6], (N_LAYERS, D, DFF)),
        'b_fc': jnp.zeros((N_LAYERS, 1, DFF), jnp.float32),
        'w_proj': n(ks[7], (N_LAYERS, DFF, D)),
        'b_proj': jnp.zeros((N_LAYERS, 1, D), jnp.float32),
        'lnf_g': jnp.ones((1, D), jnp.float32),
        'lnf_b': jnp.zeros((1, D), jnp.float32),
    }


if __name__ == "__main__":
    key = jax.random.PRNGKey(0)
    pkey, dkey = jax.random.split(key)
    params = init_params(pkey)

    batch_dim = (2, 3)
    L = 8
    lengths = jnp.array([[3, 5, 6], [4, 2, 6]], dtype=jnp.int32)
    toks = jax.random.randint(dkey, batch_dim + (L,), 1, VOCAB, dtype=jnp.int32)
    pos = jnp.arange(L, dtype=jnp.int32)
    valid = pos[None, None, :] < lengths[:, :, None]
    features = jnp.where(valid, toks, PAD_ID)          # (2, 3, 8) int32 token ids

    fwd = jax.jit(hfllm_forward)                        # now jittable (no host sync)
    out = fwd(features, params)
    jax.block_until_ready(out)
    assert out.shape == batch_dim + (D,), out.shape
    assert out.dtype == jnp.float32
    assert bool(jnp.all(jnp.isfinite(out)))
    print("KERNEL_OK")
</pallas_src>

<mosaic_0001>
module attributes {stable_mosaic.version = 11 : i64} {
  func.func @kernel(%arg0: i32, %arg1: memref<1x24x32xf32, #tpu.memory_space<vmem>>, %arg2: memref<1x3x8x8xf32, #tpu.memory_space<vmem>>, %arg3: memref<1x3x24xf32, #tpu.memory_space<vmem>>, %arg4: memref<2x1x32xf32, #tpu.memory_space<vmem>>, %arg5: memref<2x1x32xf32, #tpu.memory_space<vmem>>, %arg6: memref<2x4x32x8xf32, #tpu.memory_space<vmem>>, %arg7: memref<2x4x1x8xf32, #tpu.memory_space<vmem>>, %arg8: memref<2x4x32x8xf32, #tpu.memory_space<vmem>>, %arg9: memref<2x4x1x8xf32, #tpu.memory_space<vmem>>, %arg10: memref<2x4x32x8xf32, #tpu.memory_space<vmem>>, %arg11: memref<2x4x1x8xf32, #tpu.memory_space<vmem>>, %arg12: memref<2x4x8x32xf32, #tpu.memory_space<vmem>>, %arg13: memref<2x1x32xf32, #tpu.memory_space<vmem>>, %arg14: memref<2x1x32xf32, #tpu.memory_space<vmem>>, %arg15: memref<2x1x32xf32, #tpu.memory_space<vmem>>, %arg16: memref<2x32x128xf32, #tpu.memory_space<vmem>>, %arg17: memref<2x1x128xf32, #tpu.memory_space<vmem>>, %arg18: memref<2x128x32xf32, #tpu.memory_space<vmem>>, %arg19: memref<2x1x32xf32, #tpu.memory_space<vmem>>, %arg20: memref<1x32xf32, #tpu.memory_space<vmem>>, %arg21: memref<1x32xf32, #tpu.memory_space<vmem>>, %arg22: memref<1x3x32xf32, #tpu.memory_space<vmem>>) attributes {dimension_semantics = [#tpu.dimension_semantics<parallel>], iteration_bounds = array<i64: 2>, scalar_prefetch = 0 : i64, scratch_operands = 0 : i64, tpu.core_type = #tpu.core_type<tc>, window_params = [{transform_indices = @transform_0, window_bounds = array<i64: 1, 24, 32>}, {transform_indices = @transform_1, window_bounds = array<i64: 1, 3, 8, 8>}, {transform_indices = @transform_2, window_bounds = array<i64: 1, 3, 24>}, {pipeline_mode = #tpu.pipeline_mode<synchronous>, transform_indices = @transform_3, window_bounds = array<i64: 2, 1, 32>}, {pipeline_mode = #tpu.pipeline_mode<synchronous>, transform_indices = @transform_4, window_bounds = array<i64: 2, 1, 32>}, {pipeline_mode = #tpu.pipeline_mode<synchronous>, transform_indices = @transform_5, window_bounds = array<i64: 2, 4, 32, 8>}, {pipeline_mode = #tpu.pipeline_mode<synchronous>, transform_indices = @transform_6, window_bounds = array<i64: 2, 4, 1, 8>}, {pipeline_mode = #tpu.pipeline_mode<synchronous>, transform_indices = @transform_7, window_bounds = array<i64: 2, 4, 32, 8>}, {pipeline_mode = #tpu.pipeline_mode<synchronous>, transform_indices = @transform_8, window_bounds = array<i64: 2, 4, 1, 8>}, {pipeline_mode = #tpu.pipeline_mode<synchronous>, transform_indices = @transform_9, window_bounds = array<i64: 2, 4, 32, 8>}, {pipeline_mode = #tpu.pipeline_mode<synchronous>, transform_indices = @transform_10, window_bounds = array<i64: 2, 4, 1, 8>}, {pipeline_mode = #tpu.pipeline_mode<synchronous>, transform_indices = @transform_11, window_bounds = array<i64: 2, 4, 8, 32>}, {pipeline_mode = #tpu.pipeline_mode<synchronous>, transform_indices = @transform_12, window_bounds = array<i64: 2, 1, 32>}, {pipeline_mode = #tpu.pipeline_mode<synchronous>, transform_indices = @transform_13, window_bounds = array<i64: 2, 1, 32>}, {pipeline_mode = #tpu.pipeline_mode<synchronous>, transform_indices = @transform_14, window_bounds = array<i64: 2, 1, 32>}, {pipeline_mode = #tpu.pipeline_mode<synchronous>, transform_indices = @transform_15, window_bounds = array<i64: 2, 32, 128>}, {pipeline_mode = #tpu.pipeline_mode<synchronous>, transform_indices = @transform_16, window_bounds = array<i64: 2, 1, 128>}, {pipeline_mode = #tpu.pipeline_mode<synchronous>, transform_indices = @transform_17, window_bounds = array<i64: 2, 128, 32>}, {pipeline_mode = #tpu.pipeline_mode<synchronous>, transform_indices = @transform_18, window_bounds = array<i64: 2, 1, 32>}, {pipeline_mode = #tpu.pipeline_mode<synchronous>, transform_indices = @transform_19, window_bounds = array<i64: 1, 32>}, {pipeline_mode = #tpu.pipeline_mode<synchronous>, transform_indices = @transform_20, window_bounds = array<i64: 1, 32>}, {transform_indices = @transform_21, window_bounds = array<i64: 1, 3, 32>}]} {
    %c0 = arith.constant 0 : index
    %c0_0 = arith.constant 0 : index
    %c0_1 = arith.constant 0 : index
    %0 = vector.load %arg1[%c0, %c0_0, %c0_1] : memref<1x24x32xf32, #tpu.memory_space<vmem>>, vector<1x24x32xf32>
    %1 = vector.shape_cast %0 : vector<1x24x32xf32> to vector<24x32xf32>
    %c0_2 = arith.constant 0 : index
    %c0_3 = arith.constant 0 : index
    %c0_4 = arith.constant 0 : index
    %c0_5 = arith.constant 0 : index
    %2 = vector.load %arg2[%c0_2, %c0_3, %c0_4, %c0_5] : memref<1x3x8x8xf32, #tpu.memory_space<vmem>>, vector<1x3x8x8xf32>
    %3 = vector.shape_cast %2 : vector<1x3x8x8xf32> to vector<3x8x8xf32>
    %c0_6 = arith.constant 0 : index
    %c0_7 = arith.constant 0 : index
    %c0_8 = arith.constant 0 : index
    %4 = vector.load %arg4[%c0_6, %c0_7, %c0_8] : memref<2x1x32xf32, #tpu.memory_space<vmem>>, vector<1x1x32xf32>
    %5 = vector.shape_cast %4 : vector<1x1x32xf32> to vector<1x32xf32>
    %c0_9 = arith.constant 0 : index
    %c0_10 = arith.constant 0 : index
    %c0_11 = arith.constant 0 : index
    %6 = vector.load %arg5[%c0_9, %c0_10, %c0_11] : memref<2x1x32xf32, #tpu.memory_space<vmem>>, vector<1x1x32xf32>
    %7 = vector.shape_cast %6 : vector<1x1x32xf32> to vector<1x32xf32>
    %cst = arith.constant dense<0.000000e+00> : vector<24xf32>
    %8 = vector.multi_reduction <add>, %1, %cst [1] : vector<24x32xf32> to vector<24xf32>
    %9 = vector.shape_cast %8 : vector<24xf32> to vector<24x1xf32>
    %cst_12 = arith.constant 3.200000e+01 : f32
    %10 = vector.broadcast %cst_12 : f32 to vector<24x1xf32>
    %11 = arith.divf %9, %10 : vector<24x1xf32>
    %12 = vector.broadcast %11 : vector<24x1xf32> to vector<24x32xf32>
    %13 = arith.subf %1, %12 : vector<24x32xf32>
    %14 = arith.mulf %13, %13 : vector<24x32xf32>
    %cst_13 = arith.constant dense<0.000000e+00> : vector<24xf32>
    %15 = vector.multi_reduction <add>, %14, %cst_13 [1] : vector<24x32xf32> to vector<24xf32>
    %16 = vector.shape_cast %15 : vector<24xf32> to vector<24x1xf32>
    %cst_14 = arith.constant 3.200000e+01 : f32
    %17 = vector.broadcast %cst_14 : f32 to vector<24x1xf32>
    %18 = arith.divf %16, %17 : vector<24x1xf32>
    %19 = vector.broadcast %11 : vector<24x1xf32> to vector<24x32xf32>
    %20 = arith.subf %1, %19 : vector<24x32xf32>
    %cst_15 = arith.constant 9.99999974E-6 : f32
    %21 = vector.broadcast %cst_15 : f32 to vector<24x1xf32>
    %22 = arith.addf %18, %21 : vector<24x1xf32>
    %23 = math.rsqrt %22 : vector<24x1xf32>
    %24 = vector.broadcast %23 : vector<24x1xf32> to vector<24x32xf32>
    %25 = arith.mulf %20, %24 : vector<24x32xf32>
    %26 = vector.broadcast %5 : vector<1x32xf32> to vector<24x32xf32>
    %27 = arith.mulf %25, %26 : vector<24x32xf32>
    %28 = vector.broadcast %7 : vector<1x32xf32> to vector<24x32xf32>
    %29 = arith.addf %27, %28 : vector<24x32xf32>
    %cst_16 = arith.constant 0.000000e+00 : f32
    %30 = vector.broadcast %cst_16 : f32 to vector<24x32xf32>
    %c0_17 = arith.constant 0 : index
    %c0_18 = arith.constant 0 : index
    %c0_19 = arith.constant 0 : index
    %c0_20 = arith.constant 0 : index
    %31 = vector.load %arg6[%c0_17, %c0_18, %c0_19, %c0_20] : memref<2x4x32x8xf32, #tpu.memory_space<vmem>>, vector<1x1x32x8xf32>
    %32 = vector.shape_cast %31 : vector<1x1x32x8xf32> to vector<32x8xf32>
    %cst_21 = arith.constant dense<0.000000e+00> : vector<24x8xf32>
    %33 = tpu.matmul %29, %32, %cst_21 {dimension_numbers = #tpu.dot_dimension_numbers<[1], [0], [0], [1], [0, 0, 1, 1], [], []>} : vector<24x32xf32>, vector<32x8xf32>, vector<24x8xf32> -> vector<24x8xf32>
    %c0_22 = arith.constant 0 : index
    %c0_23 = arith.constant 0 : index
    %c0_24 = arith.constant 0 : index
    %c0_25 = arith.constant 0 : index
    %34 = vector.load %arg7[%c0_22, %c0_23, %c0_24, %c0_25] : memref<2x4x1x8xf32, #tpu.memory_space<vmem>>, vector<1x1x1x8xf32>
    %35 = vector.shape_cast %34 : vector<1x1x1x8xf32> to vector<1x8xf32>
    %36 = vector.broadcast %35 : vector<1x8xf32> to vector<24x8xf32>
    %37 = arith.addf %33, %36 : vector<24x8xf32>
    %c0_26 = arith.constant 0 : index
    %c0_27 = arith.constant 0 : index
    %c0_28 = arith.constant 0 : index
    %c0_29 = arith.constant 0 : index
    %38 = vector.load %arg8[%c0_26, %c0_27, %c0_28, %c0_29] : memref<2x4x32x8xf32, #tpu.memory_space<vmem>>, vector<1x1x32x8xf32>
    %39 = vector.shape_cast %38 : vector<1x1x32x8xf32> to vector<32x8xf32>
    %cst_30 = arith.constant dense<0.000000e+00> : vector<24x8xf32>
    %40 = tpu.matmul %29, %39, %cst_30 {dimension_numbers = #tpu.dot_dimension_numbers<[1], [0], [0], [1], [0, 0, 1, 1], [], []>} : vector<24x32xf32>, vector<32x8xf32>, vector<24x8xf32> -> vector<24x8xf32>
    %c0_31 = arith.constant 0 : index
    %c0_32 = arith.constant 0 : index
    %c0_33 = arith.constant 0 : index
    %c0_34 = arith.constant 0 : index
    %41 = vector.load %arg9[%c0_31, %c0_32, %c0_33, %c0_34] : memref<2x4x1x8xf32, #tpu.memory_space<vmem>>, vector<1x1x1x8xf32>
    %42 = vector.shape_cast %41 : vector<1x1x1x8xf32> to vector<1x8xf32>
    %43 = vector.broadcast %42 : vector<1x8xf32> to vector<24x8xf32>
    %44 = arith.addf %40, %43 : vector<24x8xf32>
    %c0_35 = arith.constant 0 : index
    %c0_36 = arith.constant 0 : index
    %c0_37 = arith.constant 0 : index
    %c0_38 = arith.constant 0 : index
    %45 = vector.load %arg10[%c0_35, %c0_36, %c0_37, %c0_38] : memref<2x4x32x8xf32, #tpu.memory_space<vmem>>, vector<1x1x32x8xf32>
    %46 = vector.shape_cast %45 : vector<1x1x32x8xf32> to vector<32x8xf32>
    %cst_39 = arith.constant dense<0.000000e+00> : vector<24x8xf32>
    %47 = tpu.matmul %29, %46, %cst_39 {dimension_numbers = #tpu.dot_dimension_numbers<[1], [0], [0], [1], [0, 0, 1, 1], [], []>} : vector<24x32xf32>, vector<32x8xf32>, vector<24x8xf32> -> vector<24x8xf32>
    %c0_40 = arith.constant 0 : index
    %c0_41 = arith.constant 0 : index
    %c0_42 = arith.constant 0 : index
    %c0_43 = arith.constant 0 : index
    %48 = vector.load %arg11[%c0_40, %c0_41, %c0_42, %c0_43] : memref<2x4x1x8xf32, #tpu.memory_space<vmem>>, vector<1x1x1x8xf32>
    %49 = vector.shape_cast %48 : vector<1x1x1x8xf32> to vector<1x8xf32>
    %50 = vector.broadcast %49 : vector<1x8xf32> to vector<24x8xf32>
    %51 = arith.addf %47, %50 : vector<24x8xf32>
    %52 = vector.shape_cast %37 : vector<24x8xf32> to vector<3x8x8xf32>
    %53 = vector.shape_cast %44 : vector<24x8xf32> to vector<3x8x8xf32>
    %54 = vector.shape_cast %51 : vector<24x8xf32> to vector<3x8x8xf32>
    "tpu.trace_start"() <{level = 10 : i32, message = "bld,bmd->blm"}> : () -> ()
    %cst_44 = arith.constant dense<0.000000e+00> : vector<3x8x8xf32>
    %55 = tpu.matmul %52, %53, %cst_44 {dimension_numbers = #tpu.dot_dimension_numbers<[2], [2], [1], [1], [0, 0, 0, 1, 1, 1], [0], [0]>} : vector<3x8x8xf32>, vector<3x8x8xf32>, vector<3x8x8xf32> -> vector<3x8x8xf32>
    "tpu.trace_stop"() : () -> ()
    %cst_45 = arith.constant 0.353553385 : f32
    %56 = vector.broadcast %cst_45 : f32 to vector<3x8x8xf32>
    %57 = arith.mulf %55, %56 : vector<3x8x8xf32>
    %58 = arith.addf %57, %3 : vector<3x8x8xf32>
    %cst_46 = arith.constant dense<0xFF800000> : vector<3x8xf32>
    %59 = vector.multi_reduction <maximumf>, %58, %cst_46 [2] : vector<3x8x8xf32> to vector<3x8xf32>
    %60 = vector.shape_cast %59 : vector<3x8xf32> to vector<3x8x1xf32>
    %61 = vector.broadcast %60 : vector<3x8x1xf32> to vector<3x8x8xf32>
    %62 = arith.subf %58, %61 : vector<3x8x8xf32>
    %63 = math.exp %62 : vector<3x8x8xf32>
    %cst_47 = arith.constant dense<0.000000e+00> : vector<3x8xf32>
    %64 = vector.multi_reduction <add>, %63, %cst_47 [2] : vector<3x8x8xf32> to vector<3x8xf32>
    %65 = vector.shape_cast %64 : vector<3x8xf32> to vector<3x8x1xf32>
    %66 = tpu.reciprocal %65 {approx = true} : vector<3x8x1xf32> -> vector<3x8x1xf32>
    %67 = vector.broadcast %66 : vector<3x8x1xf32> to vector<3x8x8xf32>
    %68 = arith.mulf %63, %67 : vector<3x8x8xf32>
    "tpu.trace_start"() <{level = 10 : i32, message = "blm,bmd->bld"}> : () -> ()
    %cst_48 = arith.constant dense<0.000000e+00> : vector<3x8x8xf32>
    %69 = tpu.matmul %68, %54, %cst_48 {dimension_numbers = #tpu.dot_dimension_numbers<[2], [1], [1], [2], [0, 0, 0, 1, 1, 2], [0], [0]>} : vector<3x8x8xf32>, vector<3x8x8xf32>, vector<3x8x8xf32> -> vector<3x8x8xf32>
    "tpu.trace_stop"() : () -> ()
    %70 = vector.shape_cast %69 : vector<3x8x8xf32> to vector<24x8xf32>
    %c0_49 = arith.constant 0 : index
    %c0_50 = arith.constant 0 : index
    %c0_51 = arith.constant 0 : index
    %c0_52 = arith.constant 0 : index
    %71 = vector.load %arg12[%c0_49, %c0_50, %c0_51, %c0_52] : memref<2x4x8x32xf32, #tpu.memory_space<vmem>>, vector<1x1x8x32xf32>
    %72 = vector.shape_cast %71 : vector<1x1x8x32xf32> to vector<8x32xf32>
    %cst_53 = arith.constant dense<0.000000e+00> : vector<24x32xf32>
    %73 = tpu.matmul %70, %72, %cst_53 {dimension_numbers = #tpu.dot_dimension_numbers<[1], [0], [0], [1], [0, 0, 1, 1], [], []>} : vector<24x8xf32>, vector<8x32xf32>, vector<24x32xf32> -> vector<24x32xf32>
    %74 = arith.addf %30, %73 : vector<24x32xf32>
    %c0_54 = arith.constant 0 : index
    %c1 = arith.constant 1 : index
    %c0_55 = arith.constant 0 : index
    %c0_56 = arith.constant 0 : index
    %75 = vector.load %arg6[%c0_54, %c1, %c0_55, %c0_56] : memref<2x4x32x8xf32, #tpu.memory_space<vmem>>, vector<1x1x32x8xf32>
    %76 = vector.shape_cast %75 : vector<1x1x32x8xf32> to vector<32x8xf32>
    %cst_57 = arith.constant dense<0.000000e+00> : vector<24x8xf32>
    %77 = tpu.matmul %29, %76, %cst_57 {dimension_numbers = #tpu.dot_dimension_numbers<[1], [0], [0], [1], [0, 0, 1, 1], [], []>} : vector<24x32xf32>, vector<32x8xf32>, vector<24x8xf32> -> vector<24x8xf32>
    %c0_58 = arith.constant 0 : index
    %c1_59 = arith.constant 1 : index
    %c0_60 = arith.constant 0 : index
    %c0_61 = arith.constant 0 : index
    %78 = vector.load %arg7[%c0_58, %c1_59, %c0_60, %c0_61] : memref<2x4x1x8xf32, #tpu.memory_space<vmem>>, vector<1x1x1x8xf32>
    %79 = vector.shape_cast %78 : vector<1x1x1x8xf32> to vector<1x8xf32>
    %80 = vector.broadcast %79 : vector<1x8xf32> to vector<24x8xf32>
    %81 = arith.addf %77, %80 : vector<24x8xf32>
    %c0_62 = arith.constant 0 : index
    %c1_63 = arith.constant 1 : index
    %c0_64 = arith.constant 0 : index
    %c0_65 = arith.constant 0 : index
    %82 = vector.load %arg8[%c0_62, %c1_63, %c0_64, %c0_65] : memref<2x4x32x8xf32, #tpu.memory_space<vmem>>, vector<1x1x32x8xf32>
    %83 = vector.shape_cast %82 : vector<1x1x32x8xf32> to vector<32x8xf32>
    %cst_66 = arith.constant dense<0.000000e+00> : vector<24x8xf32>
    %84 = tpu.matmul %29, %83, %cst_66 {dimension_numbers = #tpu.dot_dimension_numbers<[1], [0], [0], [1], [0, 0, 1, 1], [], []>} : vector<24x32xf32>, vector<32x8xf32>, vector<24x8xf32> -> vector<24x8xf32>
    %c0_67 = arith.constant 0 : index
    %c1_68 = arith.constant 1 : index
    %c0_69 = arith.constant 0 : index
    %c0_70 = arith.constant 0 : index
    %85 = vector.load %arg9[%c0_67, %c1_68, %c0_69, %c0_70] : memref<2x4x1x8xf32, #tpu.memory_space<vmem>>, vector<1x1x1x8xf32>
    %86 = vector.shape_cast %85 : vector<1x1x1x8xf32> to vector<1x8xf32>
    %87 = vector.broadcast %86 : vector<1x8xf32> to vector<24x8xf32>
    %88 = arith.addf %84, %87 : vector<24x8xf32>
    %c0_71 = arith.constant 0 : index
    %c1_72 = arith.constant 1 : index
    %c0_73 = arith.constant 0 : index
    %c0_74 = arith.constant 0 : index
    %89 = vector.load %arg10[%c0_71, %c1_72, %c0_73, %c0_74] : memref<2x4x32x8xf32, #tpu.memory_space<vmem>>, vector<1x1x32x8xf32>
    %90 = vector.shape_cast %89 : vector<1x1x32x8xf32> to vector<32x8xf32>
    %cst_75 = arith.constant dense<0.000000e+00> : vector<24x8xf32>
    %91 = tpu.matmul %29, %90, %cst_75 {dimension_numbers = #tpu.dot_dimension_numbers<[1], [0], [0], [1], [0, 0, 1, 1], [], []>} : vector<24x32xf32>, vector<32x8xf32>, vector<24x8xf32> -> vector<24x8xf32>
    %c0_76 = arith.constant 0 : index
    %c1_77 = arith.constant 1 : index
    %c0_78 = arith.constant 0 : index
    %c0_79 = arith.constant 0 : index
    %92 = vector.load %arg11[%c0_76, %c1_77, %c0_78, %c0_79] : memref<2x4x1x8xf32, #tpu.memory_space<vmem>>, vector<1x1x1x8xf32>
    %93 = vector.shape_cast %92 : vector<1x1x1x8xf32> to vector<1x8xf32>
    %94 = vector.broadcast %93 : vector<1x8xf32> to vector<24x8xf32>
    %95 = arith.addf %91, %94 : vector<24x8xf32>
    %96 = vector.shape_cast %81 : vector<24x8xf32> to vector<3x8x8xf32>
    %97 = vector.shape_cast %88 : vector<24x8xf32> to vector<3x8x8xf32>
    %98 = vector.shape_cast %95 : vector<24x8xf32> to vector<3x8x8xf32>
    "tpu.trace_start"() <{level = 10 : i32, message = "bld,bmd->blm"}> : () -> ()
    %cst_80 = arith.constant dense<0.000000e+00> : vector<3x8x8xf32>
    %99 = tpu.matmul %96, %97, %cst_80 {dimension_numbers = #tpu.dot_dimension_numbers<[2], [2], [1], [1], [0, 0, 0, 1, 1, 1], [0], [0]>} : vector<3x8x8xf32>, vector<3x8x8xf32>, vector<3x8x8xf32> -> vector<3x8x8xf32>
    "tpu.trace_stop"() : () -> ()
    %cst_81 = arith.constant 0.353553385 : f32
    %100 = vector.broadcast %cst_81 : f32 to vector<3x8x8xf32>
    %101 = arith.mulf %99, %100 : vector<3x8x8xf32>
    %102 = arith.addf %101, %3 : vector<3x8x8xf32>
    %cst_82 = arith.constant dense<0xFF800000> : vector<3x8xf32>
    %103 = vector.multi_reduction <maximumf>, %102, %cst_82 [2] : vector<3x8x8xf32> to vector<3x8xf32>
    %104 = vector.shape_cast %103 : vector<3x8xf32> to vector<3x8x1xf32>
    %105 = vector.broadcast %104 : vector<3x8x1xf32> to vector<3x8x8xf32>
    %106 = arith.subf %102, %105 : vector<3x8x8xf32>
    %107 = math.exp %106 : vector<3x8x8xf32>
    %cst_83 = arith.constant dense<0.000000e+00> : vector<3x8xf32>
    %108 = vector.multi_reduction <add>, %107, %cst_83 [2] : vector<3x8x8xf32> to vector<3x8xf32>
    %109 = vector.shape_cast %108 : vector<3x8xf32> to vector<3x8x1xf32>
    %110 = tpu.reciprocal %109 {approx = true} : vector<3x8x1xf32> -> vector<3x8x1xf32>
    %111 = vector.broadcast %110 : vector<3x8x1xf32> to vector<3x8x8xf32>
    %112 = arith.mulf %107, %111 : vector<3x8x8xf32>
    "tpu.trace_start"() <{level = 10 : i32, message = "blm,bmd->bld"}> : () -> ()
    %cst_84 = arith.constant dense<0.000000e+00> : vector<3x8x8xf32>
    %113 = tpu.matmul %112, %98, %cst_84 {dimension_numbers = #tpu.dot_dimension_numbers<[2], [1], [1], [2], [0, 0, 0, 1, 1, 2], [0], [0]>} : vector<3x8x8xf32>, vector<3x8x8xf32>, vector<3x8x8xf32> -> vector<3x8x8xf32>
    "tpu.trace_stop"() : () -> ()
    %114 = vector.shape_cast %113 : vector<3x8x8xf32> to vector<24x8xf32>
    %c0_85 = arith.constant 0 : index
    %c1_86 = arith.constant 1 : index
    %c0_87 = arith.constant 0 : index
    %c0_88 = arith.constant 0 : index
    %115 = vector.load %arg12[%c0_85, %c1_86, %c0_87, %c0_88] : memref<2x4x8x32xf32, #tpu.memory_space<vmem>>, vector<1x1x8x32xf32>
    %116 = vector.shape_cast %115 : vector<1x1x8x32xf32> to vector<8x32xf32>
    %cst_89 = arith.constant dense<0.000000e+00> : vector<24x32xf32>
    %117 = tpu.matmul %114, %116, %cst_89 {dimension_numbers = #tpu.dot_dimension_numbers<[1], [0], [0], [1], [0, 0, 1, 1], [], []>} : vector<24x8xf32>, vector<8x32xf32>, vector<24x32xf32> -> vector<24x32xf32>
    %118 = arith.addf %74, %117 : vector<24x32xf32>
    %c0_90 = arith.constant 0 : index
    %c2 = arith.constant 2 : index
    %c0_91 = arith.constant 0 : index
    %c0_92 = arith.constant 0 : index
    %119 = vector.load %arg6[%c0_90, %c2, %c0_91, %c0_92] : memref<2x4x32x8xf32, #tpu.memory_space<vmem>>, vector<1x1x32x8xf32>
    %120 = vector.shape_cast %119 : vector<1x1x32x8xf32> to vector<32x8xf32>
    %cst_93 = arith.constant dense<0.000000e+00> : vector<24x8xf32>
    %121 = tpu.matmul %29, %120, %cst_93 {dimension_numbers = #tpu.dot_dimension_numbers<[1], [0], [0], [1], [0, 0, 1, 1], [], []>} : vector<24x32xf32>, vector<32x8xf32>, vector<24x8xf32> -> vector<24x8xf32>
    %c0_94 = arith.constant 0 : index
    %c2_95 = arith.constant 2 : index
    %c0_96 = arith.constant 0 : index
    %c0_97 = arith.constant 0 : index
    %122 = vector.load %arg7[%c0_94, %c2_95, %c0_96, %c0_97] : memref<2x4x1x8xf32, #tpu.memory_space<vmem>>, vector<1x1x1x8xf32>
    %123 = vector.shape_cast %122 : vector<1x1x1x8xf32> to vector<1x8xf32>
    %124 = vector.broadcast %123 : vector<1x8xf32> to vector<24x8xf32>
    %125 = arith.addf %121, %124 : vector<24x8xf32>
    %c0_98 = arith.constant 0 : index
    %c2_99 = arith.constant 2 : index
    %c0_100 = arith.constant 0 : index
    %c0_101 = arith.constant 0 : index
    %126 = vector.load %arg8[%c0_98, %c2_99, %c0_100, %c0_101] : memref<2x4x32x8xf32, #tpu.memory_space<vmem>>, vector<1x1x32x8xf32>
    %127 = vector.shape_cast %126 : vector<1x1x32x8xf32> to vector<32x8xf32>
    %cst_102 = arith.constant dense<0.000000e+00> : vector<24x8xf32>
    %128 = tpu.matmul %29, %127, %cst_102 {dimension_numbers = #tpu.dot_dimension_numbers<[1], [0], [0], [1], [0, 0, 1, 1], [], []>} : vector<24x32xf32>, vector<32x8xf32>, vector<24x8xf32> -> vector<24x8xf32>
    %c0_103 = arith.constant 0 : index
    %c2_104 = arith.constant 2 : index
    %c0_105 = arith.constant 0 : index
    %c0_106 = arith.constant 0 : index
    %129 = vector.load %arg9[%c0_103, %c2_104, %c0_105, %c0_106] : memref<2x4x1x8xf32, #tpu.memory_space<vmem>>, vector<1x1x1x8xf32>
    %130 = vector.shape_cast %129 : vector<1x1x1x8xf32> to vector<1x8xf32>
    %131 = vector.broadcast %130 : vector<1x8xf32> to vector<24x8xf32>
    %132 = arith.addf %128, %131 : vector<24x8xf32>
    %c0_107 = arith.constant 0 : index
    %c2_108 = arith.constant 2 : index
    %c0_109 = arith.constant 0 : index
    %c0_110 = arith.constant 0 : index
    %133 = vector.load %arg10[%c0_107, %c2_108, %c0_109, %c0_110] : memref<2x4x32x8xf32, #tpu.memory_space<vmem>>, vector<1x1x32x8xf32>
    %134 = vector.shape_cast %133 : vector<1x1x32x8xf32> to vector<32x8xf32>
    %cst_111 = arith.constant dense<0.000000e+00> : vector<24x8xf32>
    %135 = tpu.matmul %29, %134, %cst_111 {dimension_numbers = #tpu.dot_dimension_numbers<[1], [0], [0], [1], [0, 0, 1, 1], [], []>} : vector<24x32xf32>, vector<32x8xf32>, vector<24x8xf32> -> vector<24x8xf32>
    %c0_112 = arith.constant 0 : index
    %c2_113 = arith.constant 2 : index
    %c0_114 = arith.constant 0 : index
    %c0_115 = arith.constant 0 : index
    %136 = vector.load %arg11[%c0_112, %c2_113, %c0_114, %c0_115] : memref<2x4x1x8xf32, #tpu.memory_space<vmem>>, vector<1x1x1x8xf32>
    %137 = vector.shape_cast %136 : vector<1x1x1x8xf32> to vector<1x8xf32>
    %138 = vector.broadcast %137 : vector<1x8xf32> to vector<24x8xf32>
    %139 = arith.addf %135, %138 : vector<24x8xf32>
    %140 = vector.shape_cast %125 : vector<24x8xf32> to vector<3x8x8xf32>
    %141 = vector.shape_cast %132 : vector<24x8xf32> to vector<3x8x8xf32>
    %142 = vector.shape_cast %139 : vector<24x8xf32> to vector<3x8x8xf32>
    "tpu.trace_start"() <{level = 10 : i32, message = "bld,bmd->blm"}> : () -> ()
    %cst_116 = arith.constant dense<0.000000e+00> : vector<3x8x8xf32>
    %143 = tpu.matmul %140, %141, %cst_116 {dimension_numbers = #tpu.dot_dimension_numbers<[2], [2], [1], [1], [0, 0, 0, 1, 1, 1], [0], [0]>} : vector<3x8x8xf32>, vector<3x8x8xf32>, vector<3x8x8xf32> -> vector<3x8x8xf32>
    "tpu.trace_stop"() : () -> ()
    %cst_117 = arith.constant 0.353553385 : f32
    %144 = vector.broadcast %cst_117 : f32 to vector<3x8x8xf32>
    %145 = arith.mulf %143, %144 : vector<3x8x8xf32>
    %146 = arith.addf %145, %3 : vector<3x8x8xf32>
    %cst_118 = arith.constant dense<0xFF800000> : vector<3x8xf32>
    %147 = vector.multi_reduction <maximumf>, %146, %cst_118 [2] : vector<3x8x8xf32> to vector<3x8xf32>
    %148 = vector.shape_cast %147 : vector<3x8xf32> to vector<3x8x1xf32>
    %149 = vector.broadcast %148 : vector<3x8x1xf32> to vector<3x8x8xf32>
    %150 = arith.subf %146, %149 : vector<3x8x8xf32>
    %151 = math.exp %150 : vector<3x8x8xf32>
    %cst_119 = arith.constant dense<0.000000e+00> : vector<3x8xf32>
    %152 = vector.multi_reduction <add>, %151, %cst_119 [2] : vector<3x8x8xf32> to vector<3x8xf32>
    %153 = vector.shape_cast %152 : vector<3x8xf32> to vector<3x8x1xf32>
    %154 = tpu.reciprocal %153 {approx = true} : vector<3x8x1xf32> -> vector<3x8x1xf32>
    %155 = vector.broadcast %154 : vector<3x8x1xf32> to vector<3x8x8xf32>
    %156 = arith.mulf %151, %155 : vector<3x8x8xf32>
    "tpu.trace_start"() <{level = 10 : i32, message = "blm,bmd->bld"}> : () -> ()
    %cst_120 = arith.constant dense<0.000000e+00> : vector<3x8x8xf32>
    %157 = tpu.matmul %156, %142, %cst_120 {dimension_numbers = #tpu.dot_dimension_numbers<[2], [1], [1], [2], [0, 0, 0, 1, 1, 2], [0], [0]>} : vector<3x8x8xf32>, vector<3x8x8xf32>, vector<3x8x8xf32> -> vector<3x8x8xf32>
    "tpu.trace_stop"() : () -> ()
    %158 = vector.shape_cast %157 : vector<3x8x8xf32> to vector<24x8xf32>
    %c0_121 = arith.constant 0 : index
    %c2_122 = arith.constant 2 : index
    %c0_123 = arith.constant 0 : index
    %c0_124 = arith.constant 0 : index
    %159 = vector.load %arg12[%c0_121, %c2_122, %c0_123, %c0_124] : memref<2x4x8x32xf32, #tpu.memory_space<vmem>>, vector<1x1x8x32xf32>
    %160 = vector.shape_cast %159 : vector<1x1x8x32xf32> to vector<8x32xf32>
    %cst_125 = arith.constant dense<0.000000e+00> : vector<24x32xf32>
    %161 = tpu.matmul %158, %160, %cst_125 {dimension_numbers = #tpu.dot_dimension_numbers<[1], [0], [0], [1], [0, 0, 1, 1], [], []>} : vector<24x8xf32>, vector<8x32xf32>, vector<24x32xf32> -> vector<24x32xf32>
    %162 = arith.addf %118, %161 : vector<24x32xf32>
    %c0_126 = arith.constant 0 : index
    %c3 = arith.constant 3 : index
    %c0_127 = arith.constant 0 : index
    %c0_128 = arith.constant 0 : index
    %163 = vector.load %arg6[%c0_126, %c3, %c0_127, %c0_128] : memref<2x4x32x8xf32, #tpu.memory_space<vmem>>, vector<1x1x32x8xf32>
    %164 = vector.shape_cast %163 : vector<1x1x32x8xf32> to vector<32x8xf32>
    %cst_129 = arith.constant dense<0.000000e+00> : vector<24x8xf32>
    %165 = tpu.matmul %29, %164, %cst_129 {dimension_numbers = #tpu.dot_dimension_numbers<[1], [0], [0], [1], [0, 0, 1, 1], [], []>} : vector<24x32xf32>, vector<32x8xf32>, vector<24x8xf32> -> vector<24x8xf32>
    %c0_130 = arith.constant 0 : index
    %c3_131 = arith.constant 3 : index
    %c0_132 = arith.constant 0 : index
    %c0_133 = arith.constant 0 : index
    %166 = vector.load %arg7[%c0_130, %c3_131, %c0_132, %c0_133] : memref<2x4x1x8xf32, #tpu.memory_space<vmem>>, vector<1x1x1x8xf32>
    %167 = vector.shape_cast %166 : vector<1x1x1x8xf32> to vector<1x8xf32>
    %168 = vector.broadcast %167 : vector<1x8xf32> to vector<24x8xf32>
    %169 = arith.addf %165, %168 : vector<24x8xf32>
    %c0_134 = arith.constant 0 : index
    %c3_135 = arith.constant 3 : index
    %c0_136 = arith.constant 0 : index
    %c0_137 = arith.constant 0 : index
    %170 = vector.load %arg8[%c0_134, %c3_135, %c0_136, %c0_137] : memref<2x4x32x8xf32, #tpu.memory_space<vmem>>, vector<1x1x32x8xf32>
    %171 = vector.shape_cast %170 : vector<1x1x32x8xf32> to vector<32x8xf32>
    %cst_138 = arith.constant dense<0.000000e+00> : vector<24x8xf32>
    %172 = tpu.matmul %29, %171, %cst_138 {dimension_numbers = #tpu.dot_dimension_numbers<[1], [0], [0], [1], [0, 0, 1, 1], [], []>} : vector<24x32xf32>, vector<32x8xf32>, vector<24x8xf32> -> vector<24x8xf32>
    %c0_139 = arith.constant 0 : index
    %c3_140 = arith.constant 3 : index
    %c0_141 = arith.constant 0 : index
    %c0_142 = arith.constant 0 : index
    %173 = vector.load %arg9[%c0_139, %c3_140, %c0_141, %c0_142] : memref<2x4x1x8xf32, #tpu.memory_space<vmem>>, vector<1x1x1x8xf32>
    %174 = vector.shape_cast %173 : vector<1x1x1x8xf32> to vector<1x8xf32>
    %175 = vector.broadcast %174 : vector<1x8xf32> to vector<24x8xf32>
    %176 = arith.addf %172, %175 : vector<24x8xf32>
    %c0_143 = arith.constant 0 : index
    %c3_144 = arith.constant 3 : index
    %c0_145 = arith.constant 0 : index
    %c0_146 = arith.constant 0 : index
    %177 = vector.load %arg10[%c0_143, %c3_144, %c0_145, %c0_146] : memref<2x4x32x8xf32, #tpu.memory_space<vmem>>, vector<1x1x32x8xf32>
    %178 = vector.shape_cast %177 : vector<1x1x32x8xf32> to vector<32x8xf32>
    %cst_147 = arith.constant dense<0.000000e+00> : vector<24x8xf32>
    %179 = tpu.matmul %29, %178, %cst_147 {dimension_numbers = #tpu.dot_dimension_numbers<[1], [0], [0], [1], [0, 0, 1, 1], [], []>} : vector<24x32xf32>, vector<32x8xf32>, vector<24x8xf32> -> vector<24x8xf32>
    %c0_148 = arith.constant 0 : index
    %c3_149 = arith.constant 3 : index
    %c0_150 = arith.constant 0 : index
    %c0_151 = arith.constant 0 : index
    %180 = vector.load %arg11[%c0_148, %c3_149, %c0_150, %c0_151] : memref<2x4x1x8xf32, #tpu.memory_space<vmem>>, vector<1x1x1x8xf32>
    %181 = vector.shape_cast %180 : vector<1x1x1x8xf32> to vector<1x8xf32>
    %182 = vector.broadcast %181 : vector<1x8xf32> to vector<24x8xf32>
    %183 = arith.addf %179, %182 : vector<24x8xf32>
    %184 = vector.shape_cast %169 : vector<24x8xf32> to vector<3x8x8xf32>
    %185 = vector.shape_cast %176 : vector<24x8xf32> to vector<3x8x8xf32>
    %186 = vector.shape_cast %183 : vector<24x8xf32> to vector<3x8x8xf32>
    "tpu.trace_start"() <{level = 10 : i32, message = "bld,bmd->blm"}> : () -> ()
    %cst_152 = arith.constant dense<0.000000e+00> : vector<3x8x8xf32>
    %187 = tpu.matmul %184, %185, %cst_152 {dimension_numbers = #tpu.dot_dimension_numbers<[2], [2], [1], [1], [0, 0, 0, 1, 1, 1], [0], [0]>} : vector<3x8x8xf32>, vector<3x8x8xf32>, vector<3x8x8xf32> -> vector<3x8x8xf32>
    "tpu.trace_stop"() : () -> ()
    %cst_153 = arith.constant 0.353553385 : f32
    %188 = vector.broadcast %cst_153 : f32 to vector<3x8x8xf32>
    %189 = arith.mulf %187, %188 : vector<3x8x8xf32>
    %190 = arith.addf %189, %3 : vector<3x8x8xf32>
    %cst_154 = arith.constant dense<0xFF800000> : vector<3x8xf32>
    %191 = vector.multi_reduction <maximumf>, %190, %cst_154 [2] : vector<3x8x8xf32> to vector<3x8xf32>
    %192 = vector.shape_cast %191 : vector<3x8xf32> to vector<3x8x1xf32>
    %193 = vector.broadcast %192 : vector<3x8x1xf32> to vector<3x8x8xf32>
    %194 = arith.subf %190, %193 : vector<3x8x8xf32>
    %195 = math.exp %194 : vector<3x8x8xf32>
    %cst_155 = arith.constant dense<0.000000e+00> : vector<3x8xf32>
    %196 = vector.multi_reduction <add>, %195, %cst_155 [2] : vector<3x8x8xf32> to vector<3x8xf32>
    %197 = vector.shape_cast %196 : vector<3x8xf32> to vector<3x8x1xf32>
    %198 = tpu.reciprocal %197 {approx = true} : vector<3x8x1xf32> -> vector<3x8x1xf32>
    %199 = vector.broadcast %198 : vector<3x8x1xf32> to vector<3x8x8xf32>
    %200 = arith.mulf %195, %199 : vector<3x8x8xf32>
    "tpu.trace_start"() <{level = 10 : i32, message = "blm,bmd->bld"}> : () -> ()
    %cst_156 = arith.constant dense<0.000000e+00> : vector<3x8x8xf32>
    %201 = tpu.matmul %200, %186, %cst_156 {dimension_numbers = #tpu.dot_dimension_numbers<[2], [1], [1], [2], [0, 0, 0, 1, 1, 2], [0], [0]>} : vector<3x8x8xf32>, vector<3x8x8xf32>, vector<3x8x8xf32> -> vector<3x8x8xf32>
    "tpu.trace_stop"() : () -> ()
    %202 = vector.shape_cast %201 : vector<3x8x8xf32> to vector<24x8xf32>
    %c0_157 = arith.constant 0 : index
    %c3_158 = arith.constant 3 : index
    %c0_159 = arith.constant 0 : index
    %c0_160 = arith.constant 0 : index
    %203 = vector.load %arg12[%c0_157, %c3_158, %c0_159, %c0_160] : memref<2x4x8x32xf32, #tpu.memory_space<vmem>>, vector<1x1x8x32xf32>
    %204 = vector.shape_cast %203 : vector<1x1x8x32xf32> to vector<8x32xf32>
    %cst_161 = arith.constant dense<0.000000e+00> : vector<24x32xf32>
    %205 = tpu.matmul %202, %204, %cst_161 {dimension_numbers = #tpu.dot_dimension_numbers<[1], [0], [0], [1], [0, 0, 1, 1], [], []>} : vector<24x8xf32>, vector<8x32xf32>, vector<24x32xf32> -> vector<24x32xf32>
    %206 = arith.addf %162, %205 : vector<24x32xf32>
    %207 = arith.addf %1, %206 : vector<24x32xf32>
    %c0_162 = arith.constant 0 : index
    %c0_163 = arith.constant 0 : index
    %c0_164 = arith.constant 0 : index
    %208 = vector.load %arg13[%c0_162, %c0_163, %c0_164] : memref<2x1x32xf32, #tpu.memory_space<vmem>>, vector<1x1x32xf32>
    %209 = vector.shape_cast %208 : vector<1x1x32xf32> to vector<1x32xf32>
    %210 = vector.broadcast %209 : vector<1x32xf32> to vector<24x32xf32>
    %211 = arith.addf %207, %210 : vector<24x32xf32>
    %c0_165 = arith.constant 0 : index
    %c0_166 = arith.constant 0 : index
    %c0_167 = arith.constant 0 : index
    %212 = vector.load %arg14[%c0_165, %c0_166, %c0_167] : memref<2x1x32xf32, #tpu.memory_space<vmem>>, vector<1x1x32xf32>
    %213 = vector.shape_cast %212 : vector<1x1x32xf32> to vector<1x32xf32>
    %c0_168 = arith.constant 0 : index
    %c0_169 = arith.constant 0 : index
    %c0_170 = arith.constant 0 : index
    %214 = vector.load %arg15[%c0_168, %c0_169, %c0_170] : memref<2x1x32xf32, #tpu.memory_space<vmem>>, vector<1x1x32xf32>
    %215 = vector.shape_cast %214 : vector<1x1x32xf32> to vector<1x32xf32>
    %cst_171 = arith.constant dense<0.000000e+00> : vector<24xf32>
    %216 = vector.multi_reduction <add>, %211, %cst_171 [1] : vector<24x32xf32> to vector<24xf32>
    %217 = vector.shape_cast %216 : vector<24xf32> to vector<24x1xf32>
    %cst_172 = arith.constant 3.200000e+01 : f32
    %218 = vector.broadcast %cst_172 : f32 to vector<24x1xf32>
    %219 = arith.divf %217, %218 : vector<24x1xf32>
    %220 = vector.broadcast %219 : vector<24x1xf32> to vector<24x32xf32>
    %221 = arith.subf %211, %220 : vector<24x32xf32>
    %222 = arith.mulf %221, %221 : vector<24x32xf32>
    %cst_173 = arith.constant dense<0.000000e+00> : vector<24xf32>
    %223 = vector.multi_reduction <add>, %222, %cst_173 [1] : vector<24x32xf32> to vector<24xf32>
    %224 = vector.shape_cast %223 : vector<24xf32> to vector<24x1xf32>
    %cst_174 = arith.constant 3.200000e+01 : f32
    %225 = vector.broadcast %cst_174 : f32 to vector<24x1xf32>
    %226 = arith.divf %224, %225 : vector<24x1xf32>
    %227 = vector.broadcast %219 : vector<24x1xf32> to vector<24x32xf32>
    %228 = arith.subf %211, %227 : vector<24x32xf32>
    %cst_175 = arith.constant 9.99999974E-6 : f32
    %229 = vector.broadcast %cst_175 : f32 to vector<24x1xf32>
    %230 = arith.addf %226, %229 : vector<24x1xf32>
    %231 = math.rsqrt %230 : vector<24x1xf32>
    %232 = vector.broadcast %231 : vector<24x1xf32> to vector<24x32xf32>
    %233 = arith.mulf %228, %232 : vector<24x32xf32>
    %234 = vector.broadcast %213 : vector<1x32xf32> to vector<24x32xf32>
    %235 = arith.mulf %233, %234 : vector<24x32xf32>
    %236 = vector.broadcast %215 : vector<1x32xf32> to vector<24x32xf32>
    %237 = arith.addf %235, %236 : vector<24x32xf32>
    %c0_176 = arith.constant 0 : index
    %c0_177 = arith.constant 0 : index
    %c0_178 = arith.constant 0 : index
    %238 = vector.load %arg16[%c0_176, %c0_177, %c0_178] : memref<2x32x128xf32, #tpu.memory_space<vmem>>, vector<1x32x128xf32>
    %239 = vector.shape_cast %238 : vector<1x32x128xf32> to vector<32x128xf32>
    %cst_179 = arith.constant dense<0.000000e+00> : vector<24x128xf32>
    %240 = tpu.matmul %237, %239, %cst_179 {dimension_numbers = #tpu.dot_dimension_numbers<[1], [0], [0], [1], [0, 0, 1, 1], [], []>} : vector<24x32xf32>, vector<32x128xf32>, vector<24x128xf32> -> vector<24x128xf32>
    %c0_180 = arith.constant 0 : index
    %c0_181 = arith.constant 0 : index
    %c0_182 = arith.constant 0 : index
    %241 = vector.load %arg17[%c0_180, %c0_181, %c0_182] : memref<2x1x128xf32, #tpu.memory_space<vmem>>, vector<1x1x128xf32>
    %242 = vector.shape_cast %241 : vector<1x1x128xf32> to vector<1x128xf32>
    %243 = vector.broadcast %242 : vector<1x128xf32> to vector<24x128xf32>
    %244 = arith.addf %240, %243 : vector<24x128xf32>
    %cst_183 = arith.constant 5.000000e-01 : f32
    %245 = vector.broadcast %cst_183 : f32 to vector<24x128xf32>
    %246 = arith.mulf %245, %244 : vector<24x128xf32>
    %cst_184 = arith.constant 4.471500e-02 : f32
    %247 = vector.broadcast %cst_184 : f32 to vector<24x128xf32>
    %248 = arith.mulf %247, %244 : vector<24x128xf32>
    %249 = arith.mulf %248, %244 : vector<24x128xf32>
    %250 = arith.mulf %249, %244 : vector<24x128xf32>
    %251 = arith.addf %244, %250 : vector<24x128xf32>
    %cst_185 = arith.constant 0.797884583 : f32
    %252 = vector.broadcast %cst_185 : f32 to vector<24x128xf32>
    %253 = arith.mulf %252, %251 : vector<24x128xf32>
    %254 = math.tanh %253 : vector<24x128xf32>
    %cst_186 = arith.constant 1.000000e+00 : f32
    %255 = vector.broadcast %cst_186 : f32 to vector<24x128xf32>
    %256 = arith.addf %255, %254 : vector<24x128xf32>
    %257 = arith.mulf %246, %256 : vector<24x128xf32>
    %c0_187 = arith.constant 0 : index
    %c0_188 = arith.constant 0 : index
    %c0_189 = arith.constant 0 : index
    %258 = vector.load %arg18[%c0_187, %c0_188, %c0_189] : memref<2x128x32xf32, #tpu.memory_space<vmem>>, vector<1x128x32xf32>
    %259 = vector.shape_cast %258 : vector<1x128x32xf32> to vector<128x32xf32>
    %cst_190 = arith.constant dense<0.000000e+00> : vector<24x32xf32>
    %260 = tpu.matmul %257, %259, %cst_190 {dimension_numbers = #tpu.dot_dimension_numbers<[1], [0], [0], [1], [0, 0, 1, 1], [], []>} : vector<24x128xf32>, vector<128x32xf32>, vector<24x32xf32> -> vector<24x32xf32>
    %261 = arith.addf %211, %260 : vector<24x32xf32>
    %c0_191 = arith.constant 0 : index
    %c0_192 = arith.constant 0 : index
    %c0_193 = arith.constant 0 : index
    %262 = vector.load %arg19[%c0_191, %c0_192, %c0_193] : memref<2x1x32xf32, #tpu.memory_space<vmem>>, vector<1x1x32xf32>
    %263 = vector.shape_cast %262 : vector<1x1x32xf32> to vector<1x32xf32>
    %264 = vector.broadcast %263 : vector<1x32xf32> to vector<24x32xf32>
    %265 = arith.addf %261, %264 : vector<24x32xf32>
    %c1_194 = arith.constant 1 : index
    %c0_195 = arith.constant 0 : index
    %c0_196 = arith.constant 0 : index
    %266 = vector.load %arg4[%c1_194, %c0_195, %c0_196] : memref<2x1x32xf32, #tpu.memory_space<vmem>>, vector<1x1x32xf32>
    %267 = vector.shape_cast %266 : vector<1x1x32xf32> to vector<1x32xf32>
    %c1_197 = arith.constant 1 : index
    %c0_198 = arith.constant 0 : index
    %c0_199 = arith.constant 0 : index
    %268 = vector.load %arg5[%c1_197, %c0_198, %c0_199] : memref<2x1x32xf32, #tpu.memory_space<vmem>>, vector<1x1x32xf32>
    %269 = vector.shape_cast %268 : vector<1x1x32xf32> to vector<1x32xf32>
    %cst_200 = arith.constant dense<0.000000e+00> : vector<24xf32>
    %270 = vector.multi_reduction <add>, %265, %cst_200 [1] : vector<24x32xf32> to vector<24xf32>
    %271 = vector.shape_cast %270 : vector<24xf32> to vector<24x1xf32>
    %cst_201 = arith.constant 3.200000e+01 : f32
    %272 = vector.broadcast %cst_201 : f32 to vector<24x1xf32>
    %273 = arith.divf %271, %272 : vector<24x1xf32>
    %274 = vector.broadcast %273 : vector<24x1xf32> to vector<24x32xf32>
    %275 = arith.subf %265, %274 : vector<24x32xf32>
    %276 = arith.mulf %275, %275 : vector<24x32xf32>
    %cst_202 = arith.constant dense<0.000000e+00> : vector<24xf32>
    %277 = vector.multi_reduction <add>, %276, %cst_202 [1] : vector<24x32xf32> to vector<24xf32>
    %278 = vector.shape_cast %277 : vector<24xf32> to vector<24x1xf32>
    %cst_203 = arith.constant 3.200000e+01 : f32
    %279 = vector.broadcast %cst_203 : f32 to vector<24x1xf32>
    %280 = arith.divf %278, %279 : vector<24x1xf32>
    %281 = vector.broadcast %273 : vector<24x1xf32> to vector<24x32xf32>
    %282 = arith.subf %265, %281 : vector<24x32xf32>
    %cst_204 = arith.constant 9.99999974E-6 : f32
    %283 = vector.broadcast %cst_204 : f32 to vector<24x1xf32>
    %284 = arith.addf %280, %283 : vector<24x1xf32>
    %285 = math.rsqrt %284 : vector<24x1xf32>
    %286 = vector.broadcast %285 : vector<24x1xf32> to vector<24x32xf32>
    %287 = arith.mulf %282, %286 : vector<24x32xf32>
    %288 = vector.broadcast %267 : vector<1x32xf32> to vector<24x32xf32>
    %289 = arith.mulf %287, %288 : vector<24x32xf32>
    %290 = vector.broadcast %269 : vector<1x32xf32> to vector<24x32xf32>
    %291 = arith.addf %289, %290 : vector<24x32xf32>
    %cst_205 = arith.constant 0.000000e+00 : f32
    %292 = vector.broadcast %cst_205 : f32 to vector<24x32xf32>
    %c1_206 = arith.constant 1 : index
    %c0_207 = arith.constant 0 : index
    %c0_208 = arith.constant 0 : index
    %c0_209 = arith.constant 0 : index
    %293 = vector.load %arg6[%c1_206, %c0_207, %c0_208, %c0_209] : memref<2x4x32x8xf32, #tpu.memory_space<vmem>>, vector<1x1x32x8xf32>
    %294 = vector.shape_cast %293 : vector<1x1x32x8xf32> to vector<32x8xf32>
    %cst_210 = arith.constant dense<0.000000e+00> : vector<24x8xf32>
    %295 = tpu.matmul %291, %294, %cst_210 {dimension_numbers = #tpu.dot_dimension_numbers<[1], [0], [0], [1], [0, 0, 1, 1], [], []>} : vector<24x32xf32>, vector<32x8xf32>, vector<24x8xf32> -> vector<24x8xf32>
    %c1_211 = arith.constant 1 : index
    %c0_212 = arith.constant 0 : index
    %c0_213 = arith.constant 0 : index
    %c0_214 = arith.constant 0 : index
    %296 = vector.load %arg7[%c1_211, %c0_212, %c0_213, %c0_214] : memref<2x4x1x8xf32, #tpu.memory_space<vmem>>, vector<1x1x1x8xf32>
    %297 = vector.shape_cast %296 : vector<1x1x1x8xf32> to vector<1x8xf32>
    %298 = vector.broadcast %297 : vector<1x8xf32> to vector<24x8xf32>
    %299 = arith.addf %295, %298 : vector<24x8xf32>
    %c1_215 = arith.constant 1 : index
    %c0_216 = arith.constant 0 : index
    %c0_217 = arith.constant 0 : index
    %c0_218 = arith.constant 0 : index
    %300 = vector.load %arg8[%c1_215, %c0_216, %c0_217, %c0_218] : memref<2x4x32x8xf32, #tpu.memory_space<vmem>>, vector<1x1x32x8xf32>
    %301 = vector.shape_cast %300 : vector<1x1x32x8xf32> to vector<32x8xf32>
    %cst_219 = arith.constant dense<0.000000e+00> : vector<24x8xf32>
    %302 = tpu.matmul %291, %301, %cst_219 {dimension_numbers = #tpu.dot_dimension_numbers<[1], [0], [0], [1], [0, 0, 1, 1], [], []>} : vector<24x32xf32>, vector<32x8xf32>, vector<24x8xf32> -> vector<24x8xf32>
    %c1_220 = arith.constant 1 : index
    %c0_221 = arith.constant 0 : index
    %c0_222 = arith.constant 0 : index
    %c0_223 = arith.constant 0 : index
    %303 = vector.load %arg9[%c1_220, %c0_221, %c0_222, %c0_223] : memref<2x4x1x8xf32, #tpu.memory_space<vmem>>, vector<1x1x1x8xf32>
    %304 = vector.shape_cast %303 : vector<1x1x1x8xf32> to vector<1x8xf32>
    %305 = vector.broadcast %304 : vector<1x8xf32> to vector<24x8xf32>
    %306 = arith.addf %302, %305 : vector<24x8xf32>
    %c1_224 = arith.constant 1 : index
    %c0_225 = arith.constant 0 : index
    %c0_226 = arith.constant 0 : index
    %c0_227 = arith.constant 0 : index
    %307 = vector.load %arg10[%c1_224, %c0_225, %c0_226, %c0_227] : memref<2x4x32x8xf32, #tpu.memory_space<vmem>>, vector<1x1x32x8xf32>
    %308 = vector.shape_cast %307 : vector<1x1x32x8xf32> to vector<32x8xf32>
    %cst_228 = arith.constant dense<0.000000e+00> : vector<24x8xf32>
    %309 = tpu.matmul %291, %308, %cst_228 {dimension_numbers = #tpu.dot_dimension_numbers<[1], [0], [0], [1], [0, 0, 1, 1], [], []>} : vector<24x32xf32>, vector<32x8xf32>, vector<24x8xf32> -> vector<24x8xf32>
    %c1_229 = arith.constant 1 : index
    %c0_230 = arith.constant 0 : index
    %c0_231 = arith.constant 0 : index
    %c0_232 = arith.constant 0 : index
    %310 = vector.load %arg11[%c1_229, %c0_230, %c0_231, %c0_232] : memref<2x4x1x8xf32, #tpu.memory_space<vmem>>, vector<1x1x1x8xf32>
    %311 = vector.shape_cast %310 : vector<1x1x1x8xf32> to vector<1x8xf32>
    %312 = vector.broadcast %311 : vector<1x8xf32> to vector<24x8xf32>
    %313 = arith.addf %309, %312 : vector<24x8xf32>
    %314 = vector.shape_cast %299 : vector<24x8xf32> to vector<3x8x8xf32>
    %315 = vector.shape_cast %306 : vector<24x8xf32> to vector<3x8x8xf32>
    %316 = vector.shape_cast %313 : vector<24x8xf32> to vector<3x8x8xf32>
    "tpu.trace_start"() <{level = 10 : i32, message = "bld,bmd->blm"}> : () -> ()
    %cst_233 = arith.constant dense<0.000000e+00> : vector<3x8x8xf32>
    %317 = tpu.matmul %314, %315, %cst_233 {dimension_numbers = #tpu.dot_dimension_numbers<[2], [2], [1], [1], [0, 0, 0, 1, 1, 1], [0], [0]>} : vector<3x8x8xf32>, vector<3x8x8xf32>, vector<3x8x8xf32> -> vector<3x8x8xf32>
    "tpu.trace_stop"() : () -> ()
    %cst_234 = arith.constant 0.353553385 : f32
    %318 = vector.broadcast %cst_234 : f32 to vector<3x8x8xf32>
    %319 = arith.mulf %317, %318 : vector<3x8x8xf32>
    %320 = arith.addf %319, %3 : vector<3x8x8xf32>
    %cst_235 = arith.constant dense<0xFF800000> : vector<3x8xf32>
    %321 = vector.multi_reduction <maximumf>, %320, %cst_235 [2] : vector<3x8x8xf32> to vector<3x8xf32>
    %322 = vector.shape_cast %321 : vector<3x8xf32> to vector<3x8x1xf32>
    %323 = vector.broadcast %322 : vector<3x8x1xf32> to vector<3x8x8xf32>
    %324 = arith.subf %320, %323 : vector<3x8x8xf32>
    %325 = math.exp %324 : vector<3x8x8xf32>
    %cst_236 = arith.constant dense<0.000000e+00> : vector<3x8xf32>
    %326 = vector.multi_reduction <add>, %325, %cst_236 [2] : vector<3x8x8xf32> to vector<3x8xf32>
    %327 = vector.shape_cast %326 : vector<3x8xf32> to vector<3x8x1xf32>
    %328 = tpu.reciprocal %327 {approx = true} : vector<3x8x1xf32> -> vector<3x8x1xf32>
    %329 = vector.broadcast %328 : vector<3x8x1xf32> to vector<3x8x8xf32>
    %330 = arith.mulf %325, %329 : vector<3x8x8xf32>
    "tpu.trace_start"() <{level = 10 : i32, message = "blm,bmd->bld"}> : () -> ()
    %cst_237 = arith.constant dense<0.000000e+00> : vector<3x8x8xf32>
    %331 = tpu.matmul %330, %316, %cst_237 {dimension_numbers = #tpu.dot_dimension_numbers<[2], [1], [1], [2], [0, 0, 0, 1, 1, 2], [0], [0]>} : vector<3x8x8xf32>, vector<3x8x8xf32>, vector<3x8x8xf32> -> vector<3x8x8xf32>
    "tpu.trace_stop"() : () -> ()
    %332 = vector.shape_cast %331 : vector<3x8x8xf32> to vector<24x8xf32>
    %c1_238 = arith.constant 1 : index
    %c0_239 = arith.constant 0 : index
    %c0_240 = arith.constant 0 : index
    %c0_241 = arith.constant 0 : index
    %333 = vector.load %arg12[%c1_238, %c0_239, %c0_240, %c0_241] : memref<2x4x8x32xf32, #tpu.memory_space<vmem>>, vector<1x1x8x32xf32>
    %334 = vector.shape_cast %333 : vector<1x1x8x32xf32> to vector<8x32xf32>
    %cst_242 = arith.constant dense<0.000000e+00> : vector<24x32xf32>
    %335 = tpu.matmul %332, %334, %cst_242 {dimension_numbers = #tpu.dot_dimension_numbers<[1], [0], [0], [1], [0, 0, 1, 1], [], []>} : vector<24x8xf32>, vector<8x32xf32>, vector<24x32xf32> -> vector<24x32xf32>
    %336 = arith.addf %292, %335 : vector<24x32xf32>
    %c1_243 = arith.constant 1 : index
    %c1_244 = arith.constant 1 : index
    %c0_245 = arith.constant 0 : index
    %c0_246 = arith.constant 0 : index
    %337 = vector.load %arg6[%c1_243, %c1_244, %c0_245, %c0_246] : memref<2x4x32x8xf32, #tpu.memory_space<vmem>>, vector<1x1x32x8xf32>
    %338 = vector.shape_cast %337 : vector<1x1x32x8xf32> to vector<32x8xf32>
    %cst_247 = arith.constant dense<0.000000e+00> : vector<24x8xf32>
    %339 = tpu.matmul %291, %338, %cst_247 {dimension_numbers = #tpu.dot_dimension_numbers<[1], [0], [0], [1], [0, 0, 1, 1], [], []>} : vector<24x32xf32>, vector<32x8xf32>, vector<24x8xf32> -> vector<24x8xf32>
    %c1_248 = arith.constant 1 : index
    %c1_249 = arith.constant 1 : index
    %c0_250 = arith.constant 0 : index
    %c0_251 = arith.constant 0 : index
    %340 = vector.load %arg7[%c1_248, %c1_249, %c0_250, %c0_251] : memref<2x4x1x8xf32, #tpu.memory_space<vmem>>, vector<1x1x1x8xf32>
    %341 = vector.shape_cast %340 : vector<1x1x1x8xf32> to vector<1x8xf32>
    %342 = vector.broadcast %341 : vector<1x8xf32> to vector<24x8xf32>
    %343 = arith.addf %339, %342 : vector<24x8xf32>
    %c1_252 = arith.constant 1 : index
    %c1_253 = arith.constant 1 : index
    %c0_254 = arith.constant 0 : index
    %c0_255 = arith.constant 0 : index
    %344 = vector.load %arg8[%c1_252, %c1_253, %c0_254, %c0_255] : memref<2x4x32x8xf32, #tpu.memory_space<vmem>>, vector<1x1x32x8xf32>
    %345 = vector.shape_cast %344 : vector<1x1x32x8xf32> to vector<32x8xf32>
    %cst_256 = arith.constant dense<0.000000e+00> : vector<24x8xf32>
    %346 = tpu.matmul %291, %345, %cst_256 {dimension_numbers = #tpu.dot_dimension_numbers<[1], [0], [0], [1], [0, 0, 1, 1], [], []>} : vector<24x32xf32>, vector<32x8xf32>, vector<24x8xf32> -> vector<24x8xf32>
    %c1_257 = arith.constant 1 : index
    %c1_258 = arith.constant 1 : index
    %c0_259 = arith.constant 0 : index
    %c0_260 = arith.constant 0 : index
    %347 = vector.load %arg9[%c1_257, %c1_258, %c0_259, %c0_260] : memref<2x4x1x8xf32, #tpu.memory_space<vmem>>, vector<1x1x1x8xf32>
    %348 = vector.shape_cast %347 : vector<1x1x1x8xf32> to vector<1x8xf32>
    %349 = vector.broadcast %348 : vector<1x8xf32> to vector<24x8xf32>
    %350 = arith.addf %346, %349 : vector<24x8xf32>
    %c1_261 = arith.constant 1 : index
    %c1_262 = arith.constant 1 : index
    %c0_263 = arith.constant 0 : index
    %c0_264 = arith.constant 0 : index
    %351 = vector.load %arg10[%c1_261, %c1_262, %c0_263, %c0_264] : memref<2x4x32x8xf32, #tpu.memory_space<vmem>>, vector<1x1x32x8xf32>
    %352 = vector.shape_cast %351 : vector<1x1x32x8xf32> to vector<32x8xf32>
    %cst_265 = arith.constant dense<0.000000e+00> : vector<24x8xf32>
    %353 = tpu.matmul %291, %352, %cst_265 {dimension_numbers = #tpu.dot_dimension_numbers<[1], [0], [0], [1], [0, 0, 1, 1], [], []>} : vector<24x32xf32>, vector<32x8xf32>, vector<24x8xf32> -> vector<24x8xf32>
    %c1_266 = arith.constant 1 : index
    %c1_267 = arith.constant 1 : index
    %c0_268 = arith.constant 0 : index
    %c0_269 = arith.constant 0 : index
    %354 = vector.load %arg11[%c1_266, %c1_267, %c0_268, %c0_269] : memref<2x4x1x8xf32, #tpu.memory_space<vmem>>, vector<1x1x1x8xf32>
    %355 = vector.shape_cast %354 : vector<1x1x1x8xf32> to vector<1x8xf32>
    %356 = vector.broadcast %355 : vector<1x8xf32> to vector<24x8xf32>
    %357 = arith.addf %353, %356 : vector<24x8xf32>
    %358 = vector.shape_cast %343 : vector<24x8xf32> to vector<3x8x8xf32>
    %359 = vector.shape_cast %350 : vector<24x8xf32> to vector<3x8x8xf32>
    %360 = vector.shape_cast %357 : vector<24x8xf32> to vector<3x8x8xf32>
    "tpu.trace_start"() <{level = 10 : i32, message = "bld,bmd->blm"}> : () -> ()
    %cst_270 = arith.constant dense<0.000000e+00> : vector<3x8x8xf32>
    %361 = tpu.matmul %358, %359, %cst_270 {dimension_numbers = #tpu.dot_dimension_numbers<[2], [2], [1], [1], [0, 0, 0, 1, 1, 1], [0], [0]>} : vector<3x8x8xf32>, vector<3x8x8xf32>, vector<3x8x8xf32> -> vector<3x8x8xf32>
    "tpu.trace_stop"() : () -> ()
    %cst_271 = arith.constant 0.353553385 : f32
    %362 = vector.broadcast %cst_271 : f32 to vector<3x8x8xf32>
    %363 = arith.mulf %361, %362 : vector<3x8x8xf32>
    %364 = arith.addf %363, %3 : vector<3x8x8xf32>
    %cst_272 = arith.constant dense<0xFF800000> : vector<3x8xf32>
    %365 = vector.multi_reduction <maximumf>, %364, %cst_272 [2] : vector<3x8x8xf32> to vector<3x8xf32>
    %366 = vector.shape_cast %365 : vector<3x8xf32> to vector<3x8x1xf32>
    %367 = vector.broadcast %366 : vector<3x8x1xf32> to vector<3x8x8xf32>
    %368 = arith.subf %364, %367 : vector<3x8x8xf32>
    %369 = math.exp %368 : vector<3x8x8xf32>
    %cst_273 = arith.constant dense<0.000000e+00> : vector<3x8xf32>
    %370 = vector.multi_reduction <add>, %369, %cst_273 [2] : vector<3x8x8xf32> to vector<3x8xf32>
    %371 = vector.shape_cast %370 : vector<3x8xf32> to vector<3x8x1xf32>
    %372 = tpu.reciprocal %371 {approx = true} : vector<3x8x1xf32> -> vector<3x8x1xf32>
    %373 = vector.broadcast %372 : vector<3x8x1xf32> to vector<3x8x8xf32>
    %374 = arith.mulf %369, %373 : vector<3x8x8xf32>
    "tpu.trace_start"() <{level = 10 : i32, message = "blm,bmd->bld"}> : () -> ()
    %cst_274 = arith.constant dense<0.000000e+00> : vector<3x8x8xf32>
    %375 = tpu.matmul %374, %360, %cst_274 {dimension_numbers = #tpu.dot_dimension_numbers<[2], [1], [1], [2], [0, 0, 0, 1, 1, 2], [0], [0]>} : vector<3x8x8xf32>, vector<3x8x8xf32>, vector<3x8x8xf32> -> vector<3x8x8xf32>
    "tpu.trace_stop"() : () -> ()
    %376 = vector.shape_cast %375 : vector<3x8x8xf32> to vector<24x8xf32>
    %c1_275 = arith.constant 1 : index
    %c1_276 = arith.constant 1 : index
    %c0_277 = arith.constant 0 : index
    %c0_278 = arith.constant 0 : index
    %377 = vector.load %arg12[%c1_275, %c1_276, %c0_277, %c0_278] : memref<2x4x8x32xf32, #tpu.memory_space<vmem>>, vector<1x1x8x32xf32>
    %378 = vector.shape_cast %377 : vector<1x1x8x32xf32> to vector<8x32xf32>
    %cst_279 = arith.constant dense<0.000000e+00> : vector<24x32xf32>
    %379 = tpu.matmul %376, %378, %cst_279 {dimension_numbers = #tpu.dot_dimension_numbers<[1], [0], [0], [1], [0, 0, 1, 1], [], []>} : vector<24x8xf32>, vector<8x32xf32>, vector<24x32xf32> -> vector<24x32xf32>
    %380 = arith.addf %336, %379 : vector<24x32xf32>
    %c1_280 = arith.constant 1 : index
    %c2_281 = arith.constant 2 : index
    %c0_282 = arith.constant 0 : index
    %c0_283 = arith.constant 0 : index
    %381 = vector.load %arg6[%c1_280, %c2_281, %c0_282, %c0_283] : memref<2x4x32x8xf32, #tpu.memory_space<vmem>>, vector<1x1x32x8xf32>
    %382 = vector.shape_cast %381 : vector<1x1x32x8xf32> to vector<32x8xf32>
    %cst_284 = arith.constant dense<0.000000e+00> : vector<24x8xf32>
    %383 = tpu.matmul %291, %382, %cst_284 {dimension_numbers = #tpu.dot_dimension_numbers<[1], [0], [0], [1], [0, 0, 1, 1], [], []>} : vector<24x32xf32>, vector<32x8xf32>, vector<24x8xf32> -> vector<24x8xf32>
    %c1_285 = arith.constant 1 : index
    %c2_286 = arith.constant 2 : index
    %c0_287 = arith.constant 0 : index
    %c0_288 = arith.constant 0 : index
    %384 = vector.load %arg7[%c1_285, %c2_286, %c0_287, %c0_288] : memref<2x4x1x8xf32, #tpu.memory_space<vmem>>, vector<1x1x1x8xf32>
    %385 = vector.shape_cast %384 : vector<1x1x1x8xf32> to vector<1x8xf32>
    %386 = vector.broadcast %385 : vector<1x8xf32> to vector<24x8xf32>
    %387 = arith.addf %383, %386 : vector<24x8xf32>
    %c1_289 = arith.constant 1 : index
    %c2_290 = arith.constant 2 : index
    %c0_291 = arith.constant 0 : index
    %c0_292 = arith.constant 0 : index
    %388 = vector.load %arg8[%c1_289, %c2_290, %c0_291, %c0_292] : memref<2x4x32x8xf32, #tpu.memory_space<vmem>>, vector<1x1x32x8xf32>
    %389 = vector.shape_cast %388 : vector<1x1x32x8xf32> to vector<32x8xf32>
    %cst_293 = arith.constant dense<0.000000e+00> : vector<24x8xf32>
    %390 = tpu.matmul %291, %389, %cst_293 {dimension_numbers = #tpu.dot_dimension_numbers<[1], [0], [0], [1], [0, 0, 1, 1], [], []>} : vector<24x32xf32>, vector<32x8xf32>, vector<24x8xf32> -> vector<24x8xf32>
    %c1_294 = arith.constant 1 : index
    %c2_295 = arith.constant 2 : index
    %c0_296 = arith.constant 0 : index
    %c0_297 = arith.constant 0 : index
    %391 = vector.load %arg9[%c1_294, %c2_295, %c0_296, %c0_297] : memref<2x4x1x8xf32, #tpu.memory_space<vmem>>, vector<1x1x1x8xf32>
    %392 = vector.shape_cast %391 : vector<1x1x1x8xf32> to vector<1x8xf32>
    %393 = vector.broadcast %392 : vector<1x8xf32> to vector<24x8xf32>
    %394 = arith.addf %390, %393 : vector<24x8xf32>
    %c1_298 = arith.constant 1 : index
    %c2_299 = arith.constant 2 : index
    %c0_300 = arith.constant 0 : index
    %c0_301 = arith.constant 0 : index
    %395 = vector.load %arg10[%c1_298, %c2_299, %c0_300, %c0_301] : memref<2x4x32x8xf32, #tpu.memory_space<vmem>>, vector<1x1x32x8xf32>
    %396 = vector.shape_cast %395 : vector<1x1x32x8xf32> to vector<32x8xf32>
    %cst_302 = arith.constant dense<0.000000e+00> : vector<24x8xf32>
    %397 = tpu.matmul %291, %396, %cst_302 {dimension_numbers = #tpu.dot_dimension_numbers<[1], [0], [0], [1], [0, 0, 1, 1], [], []>} : vector<24x32xf32>, vector<32x8xf32>, vector<24x8xf32> -> vector<24x8xf32>
    %c1_303 = arith.constant 1 : index
    %c2_304 = arith.constant 2 : index
    %c0_305 = arith.constant 0 : index
    %c0_306 = arith.constant 0 : index
    %398 = vector.load %arg11[%c1_303, %c2_304, %c0_305, %c0_306] : memref<2x4x1x8xf32, #tpu.memory_space<vmem>>, vector<1x1x1x8xf32>
    %399 = vector.shape_cast %398 : vector<1x1x1x8xf32> to vector<1x8xf32>
    %400 = vector.broadcast %399 : vector<1x8xf32> to vector<24x8xf32>
    %401 = arith.addf %397, %400 : vector<24x8xf32>
    %402 = vector.shape_cast %387 : vector<24x8xf32> to vector<3x8x8xf32>
    %403 = vector.shape_cast %394 : vector<24x8xf32> to vector<3x8x8xf32>
    %404 = vector.shape_cast %401 : vector<24x8xf32> to vector<3x8x8xf32>
    "tpu.trace_start"() <{level = 10 : i32, message = "bld,bmd->blm"}> : () -> ()
    %cst_307 = arith.constant dense<0.000000e+00> : vector<3x8x8xf32>
    %405 = tpu.matmul %402, %403, %cst_307 {dimension_numbers = #tpu.dot_dimension_numbers<[2], [2], [1], [1], [0, 0, 0, 1, 1, 1], [0], [0]>} : vector<3x8x8xf32>, vector<3x8x8xf32>, vector<3x8x8xf32> -> vector<3x8x8xf32>
    "tpu.trace_stop"() : () -> ()
    %cst_308 = arith.constant 0.353553385 : f32
    %406 = vector.broadcast %cst_308 : f32 to vector<3x8x8xf32>
    %407 = arith.mulf %405, %406 : vector<3x8x8xf32>
    %408 = arith.addf %407, %3 : vector<3x8x8xf32>
    %cst_309 = arith.constant dense<0xFF800000> : vector<3x8xf32>
    %409 = vector.multi_reduction <maximumf>, %408, %cst_309 [2] : vector<3x8x8xf32> to vector<3x8xf32>
    %410 = vector.shape_cast %409 : vector<3x8xf32> to vector<3x8x1xf32>
    %411 = vector.broadcast %410 : vector<3x8x1xf32> to vector<3x8x8xf32>
    %412 = arith.subf %408, %411 : vector<3x8x8xf32>
    %413 = math.exp %412 : vector<3x8x8xf32>
    %cst_310 = arith.constant dense<0.000000e+00> : vector<3x8xf32>
    %414 = vector.multi_reduction <add>, %413, %cst_310 [2] : vector<3x8x8xf32> to vector<3x8xf32>
    %415 = vector.shape_cast %414 : vector<3x8xf32> to vector<3x8x1xf32>
    %416 = tpu.reciprocal %415 {approx = true} : vector<3x8x1xf32> -> vector<3x8x1xf32>
    %417 = vector.broadcast %416 : vector<3x8x1xf32> to vector<3x8x8xf32>
    %418 = arith.mulf %413, %417 : vector<3x8x8xf32>
    "tpu.trace_start"() <{level = 10 : i32, message = "blm,bmd->bld"}> : () -> ()
    %cst_311 = arith.constant dense<0.000000e+00> : vector<3x8x8xf32>
    %419 = tpu.matmul %418, %404, %cst_311 {dimension_numbers = #tpu.dot_dimension_numbers<[2], [1], [1], [2], [0, 0, 0, 1, 1, 2], [0], [0]>} : vector<3x8x8xf32>, vector<3x8x8xf32>, vector<3x8x8xf32> -> vector<3x8x8xf32>
    "tpu.trace_stop"() : () -> ()
    %420 = vector.shape_cast %419 : vector<3x8x8xf32> to vector<24x8xf32>
    %c1_312 = arith.constant 1 : index
    %c2_313 = arith.constant 2 : index
    %c0_314 = arith.constant 0 : index
    %c0_315 = arith.constant 0 : index
    %421 = vector.load %arg12[%c1_312, %c2_313, %c0_314, %c0_315] : memref<2x4x8x32xf32, #tpu.memory_space<vmem>>, vector<1x1x8x32xf32>
    %422 = vector.shape_cast %421 : vector<1x1x8x32xf32> to vector<8x32xf32>
    %cst_316 = arith.constant dense<0.000000e+00> : vector<24x32xf32>
    %423 = tpu.matmul %420, %422, %cst_316 {dimension_numbers = #tpu.dot_dimension_numbers<[1], [0], [0], [1], [0, 0, 1, 1], [], []>} : vector<24x8xf32>, vector<8x32xf32>, vector<24x32xf32> -> vector<24x32xf32>
    %424 = arith.addf %380, %423 : vector<24x32xf32>
    %c1_317 = arith.constant 1 : index
    %c3_318 = arith.constant 3 : index
    %c0_319 = arith.constant 0 : index
    %c0_320 = arith.constant 0 : index
    %425 = vector.load %arg6[%c1_317, %c3_318, %c0_319, %c0_320] : memref<2x4x32x8xf32, #tpu.memory_space<vmem>>, vector<1x1x32x8xf32>
    %426 = vector.shape_cast %425 : vector<1x1x32x8xf32> to vector<32x8xf32>
    %cst_321 = arith.constant dense<0.000000e+00> : vector<24x8xf32>
    %427 = tpu.matmul %291, %426, %cst_321 {dimension_numbers = #tpu.dot_dimension_numbers<[1], [0], [0], [1], [0, 0, 1, 1], [], []>} : vector<24x32xf32>, vector<32x8xf32>, vector<24x8xf32> -> vector<24x8xf32>
    %c1_322 = arith.constant 1 : index
    %c3_323 = arith.constant 3 : index
    %c0_324 = arith.constant 0 : index
    %c0_325 = arith.constant 0 : index
    %428 = vector.load %arg7[%c1_322, %c3_323, %c0_324, %c0_325] : memref<2x4x1x8xf32, #tpu.memory_space<vmem>>, vector<1x1x1x8xf32>
    %429 = vector.shape_cast %428 : vector<1x1x1x8xf32> to vector<1x8xf32>
    %430 = vector.broadcast %429 : vector<1x8xf32> to vector<24x8xf32>
    %431 = arith.addf %427, %430 : vector<24x8xf32>
    %c1_326 = arith.constant 1 : index
    %c3_327 = arith.constant 3 : index
    %c0_328 = arith.constant 0 : index
    %c0_329 = arith.constant 0 : index
    %432 = vector.load %arg8[%c1_326, %c3_327, %c0_328, %c0_329] : memref<2x4x32x8xf32, #tpu.memory_space<vmem>>, vector<1x1x32x8xf32>
    %433 = vector.shape_cast %432 : vector<1x1x32x8xf32> to vector<32x8xf32>
    %cst_330 = arith.constant dense<0.000000e+00> : vector<24x8xf32>
    %434 = tpu.matmul %291, %433, %cst_330 {dimension_numbers = #tpu.dot_dimension_numbers<[1], [0], [0], [1], [0, 0, 1, 1], [], []>} : vector<24x32xf32>, vector<32x8xf32>, vector<24x8xf32> -> vector<24x8xf32>
    %c1_331 = arith.constant 1 : index
    %c3_332 = arith.constant 3 : index
    %c0_333 = arith.constant 0 : index
    %c0_334 = arith.constant 0 : index
    %435 = vector.load %arg9[%c1_331, %c3_332, %c0_333, %c0_334] : memref<2x4x1x8xf32, #tpu.memory_space<vmem>>, vector<1x1x1x8xf32>
    %436 = vector.shape_cast %435 : vector<1x1x1x8xf32> to vector<1x8xf32>
    %437 = vector.broadcast %436 : vector<1x8xf32> to vector<24x8xf32>
    %438 = arith.addf %434, %437 : vector<24x8xf32>
    %c1_335 = arith.constant 1 : index
    %c3_336 = arith.constant 3 : index
    %c0_337 = arith.constant 0 : index
    %c0_338 = arith.constant 0 : index
    %439 = vector.load %arg10[%c1_335, %c3_336, %c0_337, %c0_338] : memref<2x4x32x8xf32, #tpu.memory_space<vmem>>, vector<1x1x32x8xf32>
    %440 = vector.shape_cast %439 : vector<1x1x32x8xf32> to vector<32x8xf32>
    %cst_339 = arith.constant dense<0.000000e+00> : vector<24x8xf32>
    %441 = tpu.matmul %291, %440, %cst_339 {dimension_numbers = #tpu.dot_dimension_numbers<[1], [0], [0], [1], [0, 0, 1, 1], [], []>} : vector<24x32xf32>, vector<32x8xf32>, vector<24x8xf32> -> vector<24x8xf32>
    %c1_340 = arith.constant 1 : index
    %c3_341 = arith.constant 3 : index
    %c0_342 = arith.constant 0 : index
    %c0_343 = arith.constant 0 : index
    %442 = vector.load %arg11[%c1_340, %c3_341, %c0_342, %c0_343] : memref<2x4x1x8xf32, #tpu.memory_space<vmem>>, vector<1x1x1x8xf32>
    %443 = vector.shape_cast %442 : vector<1x1x1x8xf32> to vector<1x8xf32>
    %444 = vector.broadcast %443 : vector<1x8xf32> to vector<24x8xf32>
    %445 = arith.addf %441, %444 : vector<24x8xf32>
    %446 = vector.shape_cast %431 : vector<24x8xf32> to vector<3x8x8xf32>
    %447 = vector.shape_cast %438 : vector<24x8xf32> to vector<3x8x8xf32>
    %448 = vector.shape_cast %445 : vector<24x8xf32> to vector<3x8x8xf32>
    "tpu.trace_start"() <{level = 10 : i32, message = "bld,bmd->blm"}> : () -> ()
    %cst_344 = arith.constant dense<0.000000e+00> : vector<3x8x8xf32>
    %449 = tpu.matmul %446, %447, %cst_344 {dimension_numbers = #tpu.dot_dimension_numbers<[2], [2], [1], [1], [0, 0, 0, 1, 1, 1], [0], [0]>} : vector<3x8x8xf32>, vector<3x8x8xf32>, vector<3x8x8xf32> -> vector<3x8x8xf32>
    "tpu.trace_stop"() : () -> ()
    %cst_345 = arith.constant 0.353553385 : f32
    %450 = vector.broadcast %cst_345 : f32 to vector<3x8x8xf32>
    %451 = arith.mulf %449, %450 : vector<3x8x8xf32>
    %452 = arith.addf %451, %3 : vector<3x8x8xf32>
    %cst_346 = arith.constant dense<0xFF800000> : vector<3x8xf32>
    %453 = vector.multi_reduction <maximumf>, %452, %cst_346 [2] : vector<3x8x8xf32> to vector<3x8xf32>
    %454 = vector.shape_cast %453 : vector<3x8xf32> to vector<3x8x1xf32>
    %455 = vector.broadcast %454 : vector<3x8x1xf32> to vector<3x8x8xf32>
    %456 = arith.subf %452, %455 : vector<3x8x8xf32>
    %457 = math.exp %456 : vector<3x8x8xf32>
    %cst_347 = arith.constant dense<0.000000e+00> : vector<3x8xf32>
    %458 = vector.multi_reduction <add>, %457, %cst_347 [2] : vector<3x8x8xf32> to vector<3x8xf32>
    %459 = vector.shape_cast %458 : vector<3x8xf32> to vector<3x8x1xf32>
    %460 = tpu.reciprocal %459 {approx = true} : vector<3x8x1xf32> -> vector<3x8x1xf32>
    %461 = vector.broadcast %460 : vector<3x8x1xf32> to vector<3x8x8xf32>
    %462 = arith.mulf %457, %461 : vector<3x8x8xf32>
    "tpu.trace_start"() <{level = 10 : i32, message = "blm,bmd->bld"}> : () -> ()
    %cst_348 = arith.constant dense<0.000000e+00> : vector<3x8x8xf32>
    %463 = tpu.matmul %462, %448, %cst_348 {dimension_numbers = #tpu.dot_dimension_numbers<[2], [1], [1], [2], [0, 0, 0, 1, 1, 2], [0], [0]>} : vector<3x8x8xf32>, vector<3x8x8xf32>, vector<3x8x8xf32> -> vector<3x8x8xf32>
    "tpu.trace_stop"() : () -> ()
    %464 = vector.shape_cast %463 : vector<3x8x8xf32> to vector<24x8xf32>
    %c1_349 = arith.constant 1 : index
    %c3_350 = arith.constant 3 : index
    %c0_351 = arith.constant 0 : index
    %c0_352 = arith.constant 0 : index
    %465 = vector.load %arg12[%c1_349, %c3_350, %c0_351, %c0_352] : memref<2x4x8x32xf32, #tpu.memory_space<vmem>>, vector<1x1x8x32xf32>
    %466 = vector.shape_cast %465 : vector<1x1x8x32xf32> to vector<8x32xf32>
    %cst_353 = arith.constant dense<0.000000e+00> : vector<24x32xf32>
    %467 = tpu.matmul %464, %466, %cst_353 {dimension_numbers = #tpu.dot_dimension_numbers<[1], [0], [0], [1], [0, 0, 1, 1], [], []>} : vector<24x8xf32>, vector<8x32xf32>, vector<24x32xf32> -> vector<24x32xf32>
    %468 = arith.addf %424, %467 : vector<24x32xf32>
    %469 = arith.addf %265, %468 : vector<24x32xf32>
    %c1_354 = arith.constant 1 : index
    %c0_355 = arith.constant 0 : index
    %c0_356 = arith.constant 0 : index
    %470 = vector.load %arg13[%c1_354, %c0_355, %c0_356] : memref<2x1x32xf32, #tpu.memory_space<vmem>>, vector<1x1x32xf32>
    %471 = vector.shape_cast %470 : vector<1x1x32xf32> to vector<1x32xf32>
    %472 = vector.broadcast %471 : vector<1x32xf32> to vector<24x32xf32>
    %473 = arith.addf %469, %472 : vector<24x32xf32>
    %c1_357 = arith.constant 1 : index
    %c0_358 = arith.constant 0 : index
    %c0_359 = arith.constant 0 : index
    %474 = vector.load %arg14[%c1_357, %c0_358, %c0_359] : memref<2x1x32xf32, #tpu.memory_space<vmem>>, vector<1x1x32xf32>
    %475 = vector.shape_cast %474 : vector<1x1x32xf32> to vector<1x32xf32>
    %c1_360 = arith.constant 1 : index
    %c0_361 = arith.constant 0 : index
    %c0_362 = arith.constant 0 : index
    %476 = vector.load %arg15[%c1_360, %c0_361, %c0_362] : memref<2x1x32xf32, #tpu.memory_space<vmem>>, vector<1x1x32xf32>
    %477 = vector.shape_cast %476 : vector<1x1x32xf32> to vector<1x32xf32>
    %cst_363 = arith.constant dense<0.000000e+00> : vector<24xf32>
    %478 = vector.multi_reduction <add>, %473, %cst_363 [1] : vector<24x32xf32> to vector<24xf32>
    %479 = vector.shape_cast %478 : vector<24xf32> to vector<24x1xf32>
    %cst_364 = arith.constant 3.200000e+01 : f32
    %480 = vector.broadcast %cst_364 : f32 to vector<24x1xf32>
    %481 = arith.divf %479, %480 : vector<24x1xf32>
    %482 = vector.broadcast %481 : vector<24x1xf32> to vector<24x32xf32>
    %483 = arith.subf %473, %482 : vector<24x32xf32>
    %484 = arith.mulf %483, %483 : vector<24x32xf32>
    %cst_365 = arith.constant dense<0.000000e+00> : vector<24xf32>
    %485 = vector.multi_reduction <add>, %484, %cst_365 [1] : vector<24x32xf32> to vector<24xf32>
    %486 = vector.shape_cast %485 : vector<24xf32> to vector<24x1xf32>
    %cst_366 = arith.constant 3.200000e+01 : f32
    %487 = vector.broadcast %cst_366 : f32 to vector<24x1xf32>
    %488 = arith.divf %486, %487 : vector<24x1xf32>
    %489 = vector.broadcast %481 : vector<24x1xf32> to vector<24x32xf32>
    %490 = arith.subf %473, %489 : vector<24x32xf32>
    %cst_367 = arith.constant 9.99999974E-6 : f32
    %491 = vector.broadcast %cst_367 : f32 to vector<24x1xf32>
    %492 = arith.addf %488, %491 : vector<24x1xf32>
    %493 = math.rsqrt %492 : vector<24x1xf32>
    %494 = vector.broadcast %493 : vector<24x1xf32> to vector<24x32xf32>
    %495 = arith.mulf %490, %494 : vector<24x32xf32>
    %496 = vector.broadcast %475 : vector<1x32xf32> to vector<24x32xf32>
    %497 = arith.mulf %495, %496 : vector<24x32xf32>
    %498 = vector.broadcast %477 : vector<1x32xf32> to vector<24x32xf32>
    %499 = arith.addf %497, %498 : vector<24x32xf32>
    %c1_368 = arith.constant 1 : index
    %c0_369 = arith.constant 0 : index
    %c0_370 = arith.constant 0 : index
    %500 = vector.load %arg16[%c1_368, %c0_369, %c0_370] : memref<2x32x128xf32, #tpu.memory_space<vmem>>, vector<1x32x128xf32>
    %501 = vector.shape_cast %500 : vector<1x32x128xf32> to vector<32x128xf32>
    %cst_371 = arith.constant dense<0.000000e+00> : vector<24x128xf32>
    %502 = tpu.matmul %499, %501, %cst_371 {dimension_numbers = #tpu.dot_dimension_numbers<[1], [0], [0], [1], [0, 0, 1, 1], [], []>} : vector<24x32xf32>, vector<32x128xf32>, vector<24x128xf32> -> vector<24x128xf32>
    %c1_372 = arith.constant 1 : index
    %c0_373 = arith.constant 0 : index
    %c0_374 = arith.constant 0 : index
    %503 = vector.load %arg17[%c1_372, %c0_373, %c0_374] : memref<2x1x128xf32, #tpu.memory_space<vmem>>, vector<1x1x128xf32>
    %504 = vector.shape_cast %503 : vector<1x1x128xf32> to vector<1x128xf32>
    %505 = vector.broadcast %504 : vector<1x128xf32> to vector<24x128xf32>
    %506 = arith.addf %502, %505 : vector<24x128xf32>
    %cst_375 = arith.constant 5.000000e-01 : f32
    %507 = vector.broadcast %cst_375 : f32 to vector<24x128xf32>
    %508 = arith.mulf %507, %506 : vector<24x128xf32>
    %cst_376 = arith.constant 4.471500e-02 : f32
    %509 = vector.broadcast %cst_376 : f32 to vector<24x128xf32>
    %510 = arith.mulf %509, %506 : vector<24x128xf32>
    %511 = arith.mulf %510, %506 : vector<24x128xf32>
    %512 = arith.mulf %511, %506 : vector<24x128xf32>
    %513 = arith.addf %506, %512 : vector<24x128xf32>
    %cst_377 = arith.constant 0.797884583 : f32
    %514 = vector.broadcast %cst_377 : f32 to vector<24x128xf32>
    %515 = arith.mulf %514, %513 : vector<24x128xf32>
    %516 = math.tanh %515 : vector<24x128xf32>
    %cst_378 = arith.constant 1.000000e+00 : f32
    %517 = vector.broadcast %cst_378 : f32 to vector<24x128xf32>
    %518 = arith.addf %517, %516 : vector<24x128xf32>
    %519 = arith.mulf %508, %518 : vector<24x128xf32>
    %c1_379 = arith.constant 1 : index
    %c0_380 = arith.constant 0 : index
    %c0_381 = arith.constant 0 : index
    %520 = vector.load %arg18[%c1_379, %c0_380, %c0_381] : memref<2x128x32xf32, #tpu.memory_space<vmem>>, vector<1x128x32xf32>
    %521 = vector.shape_cast %520 : vector<1x128x32xf32> to vector<128x32xf32>
    %cst_382 = arith.constant dense<0.000000e+00> : vector<24x32xf32>
    %522 = tpu.matmul %519, %521, %cst_382 {dimension_numbers = #tpu.dot_dimension_numbers<[1], [0], [0], [1], [0, 0, 1, 1], [], []>} : vector<24x128xf32>, vector<128x32xf32>, vector<24x32xf32> -> vector<24x32xf32>
    %523 = arith.addf %473, %522 : vector<24x32xf32>
    %c1_383 = arith.constant 1 : index
    %c0_384 = arith.constant 0 : index
    %c0_385 = arith.constant 0 : index
    %524 = vector.load %arg19[%c1_383, %c0_384, %c0_385] : memref<2x1x32xf32, #tpu.memory_space<vmem>>, vector<1x1x32xf32>
    %525 = vector.shape_cast %524 : vector<1x1x32xf32> to vector<1x32xf32>
    %526 = vector.broadcast %525 : vector<1x32xf32> to vector<24x32xf32>
    %527 = arith.addf %523, %526 : vector<24x32xf32>
    %c0_386 = arith.constant 0 : index
    %c0_387 = arith.constant 0 : index
    %c0_388 = arith.constant 0 : index
    %528 = vector.load %arg3[%c0_386, %c0_387, %c0_388] : memref<1x3x24xf32, #tpu.memory_space<vmem>>, vector<1x3x24xf32>
    %529 = vector.shape_cast %528 : vector<1x3x24xf32> to vector<3x24xf32>
    %cst_389 = arith.constant dense<0.000000e+00> : vector<3x32xf32>
    %530 = tpu.matmul %529, %527, %cst_389 {dimension_numbers = #tpu.dot_dimension_numbers<[1], [0], [0], [1], [0, 0, 1, 1], [], []>} : vector<3x24xf32>, vector<24x32xf32>, vector<3x32xf32> -> vector<3x32xf32>
    %c0_390 = arith.constant 0 : index
    %c0_391 = arith.constant 0 : index
    %531 = vector.load %arg20[%c0_390, %c0_391] : memref<1x32xf32, #tpu.memory_space<vmem>>, vector<1x32xf32>
    %c0_392 = arith.constant 0 : index
    %c0_393 = arith.constant 0 : index
    %532 = vector.load %arg21[%c0_392, %c0_393] : memref<1x32xf32, #tpu.memory_space<vmem>>, vector<1x32xf32>
    %cst_394 = arith.constant dense<0.000000e+00> : vector<3xf32>
    %533 = vector.multi_reduction <add>, %530, %cst_394 [1] : vector<3x32xf32> to vector<3xf32>
    %534 = vector.shape_cast %533 : vector<3xf32> to vector<3x1xf32>
    %cst_395 = arith.constant 3.200000e+01 : f32
    %535 = vector.broadcast %cst_395 : f32 to vector<3x1xf32>
    %536 = arith.divf %534, %535 : vector<3x1xf32>
    %537 = vector.broadcast %536 : vector<3x1xf32> to vector<3x32xf32>
    %538 = arith.subf %530, %537 : vector<3x32xf32>
    %539 = arith.mulf %538, %538 : vector<3x32xf32>
    %cst_396 = arith.constant dense<0.000000e+00> : vector<3xf32>
    %540 = vector.multi_reduction <add>, %539, %cst_396 [1] : vector<3x32xf32> to vector<3xf32>
    %541 = vector.shape_cast %540 : vector<3xf32> to vector<3x1xf32>
    %cst_397 = arith.constant 3.200000e+01 : f32
    %542 = vector.broadcast %cst_397 : f32 to vector<3x1xf32>
    %543 = arith.divf %541, %542 : vector<3x1xf32>
    %544 = vector.broadcast %536 : vector<3x1xf32> to vector<3x32xf32>
    %545 = arith.subf %530, %544 : vector<3x32xf32>
    %cst_398 = arith.constant 9.99999974E-6 : f32
    %546 = vector.broadcast %cst_398 : f32 to vector<3x1xf32>
    %547 = arith.addf %543, %546 : vector<3x1xf32>
    %548 = math.rsqrt %547 : vector<3x1xf32>
    %549 = vector.broadcast %548 : vector<3x1xf32> to vector<3x32xf32>
    %550 = arith.mulf %545, %549 : vector<3x32xf32>
    %551 = vector.broadcast %531 : vector<1x32xf32> to vector<3x32xf32>
    %552 = arith.mulf %550, %551 : vector<3x32xf32>
    %553 = vector.broadcast %532 : vector<1x32xf32> to vector<3x32xf32>
    %554 = arith.addf %552, %553 : vector<3x32xf32>
    %c0_399 = arith.constant 0 : index
    %c0_400 = arith.constant 0 : index
    %c0_401 = arith.constant 0 : index
    %555 = vector.load %arg22[%c0_399, %c0_400, %c0_401] : memref<1x3x32xf32, #tpu.memory_space<vmem>>, vector<1x3x32xf32>
    %556 = vector.shape_cast %555 : vector<1x3x32xf32> to vector<3x32xf32>
    %557 = vector.shape_cast %554 : vector<3x32xf32> to vector<1x3x32xf32>
    tpu.vector_store %arg22[%c0_399, %c0_400, %c0_401], %557 {strides = array<i32>} : memref<1x3x32xf32, #tpu.memory_space<vmem>>, vector<1x3x32xf32>,
    return
  }
  func.func @transform_0(%arg0: i32) -> (i32, i32, i32) {
    %c0_i32 = arith.constant 0 : i32
    %c0_i32_0 = arith.constant 0 : i32
    %c0_i32_1 = arith.constant 0 : i32
    return %arg0, %c0_i32, %c0_i32_0 : i32, i32, i32
  }
  func.func @transform_1(%arg0: i32) -> (i32, i32, i32, i32) {
    %c0_i32 = arith.constant 0 : i32
    %c0_i32_0 = arith.constant 0 : i32
    %c0_i32_1 = arith.constant 0 : i32
    %c0_i32_2 = arith.constant 0 : i32
    return %arg0, %c0_i32, %c0_i32_0, %c0_i32_1 : i32, i32, i32, i32
  }
  func.func @transform_2(%arg0: i32) -> (i32, i32, i32) {
    %c0_i32 = arith.constant 0 : i32
    %c0_i32_0 = arith.constant 0 : i32
    %c0_i32_1 = arith.constant 0 : i32
    return %arg0, %c0_i32, %c0_i32_0 : i32, i32, i32
  }
  func.func @transform_3(%arg0: i32) -> (i32, i32, i32) {
    %c0_i32 = arith.constant 0 : i32
    %c0_i32_0 = arith.constant 0 : i32
    %c0_i32_1 = arith.constant 0 : i32
    %c0_i32_2 = arith.constant 0 : i32
    return %c0_i32, %c0_i32_0, %c0_i32_1 : i32, i32, i32
  }
  func.func @transform_4(%arg0: i32) -> (i32, i32, i32) {
    %c0_i32 = arith.constant 0 : i32
    %c0_i32_0 = arith.constant 0 : i32
    %c0_i32_1 = arith.constant 0 : i32
    %c0_i32_2 = arith.constant 0 : i32
    return %c0_i32, %c0_i32_0, %c0_i32_1 : i32, i32, i32
  }
  func.func @transform_5(%arg0: i32) -> (i32, i32, i32, i32) {
    %c0_i32 = arith.constant 0 : i32
    %c0_i32_0 = arith.constant 0 : i32
    %c0_i32_1 = arith.constant 0 : i32
    %c0_i32_2 = arith.constant 0 : i32
    %c0_i32_3 = arith.constant 0 : i32
    return %c0_i32, %c0_i32_0, %c0_i32_1, %c0_i32_2 : i32, i32, i32, i32
  }
  func.func @transform_6(%arg0: i32) -> (i32, i32, i32, i32) {
    %c0_i32 = arith.constant 0 : i32
    %c0_i32_0 = arith.constant 0 : i32
    %c0_i32_1 = arith.constant 0 : i32
    %c0_i32_2 = arith.constant 0 : i32
    %c0_i32_3 = arith.constant 0 : i32
    return %c0_i32, %c0_i32_0, %c0_i32_1, %c0_i32_2 : i32, i32, i32, i32
  }
  func.func @transform_7(%arg0: i32) -> (i32, i32, i32, i32) {
    %c0_i32 = arith.constant 0 : i32
    %c0_i32_0 = arith.constant 0 : i32
    %c0_i32_1 = arith.constant 0 : i32
    %c0_i32_2 = arith.constant 0 : i32
    %c0_i32_3 = arith.constant 0 : i32
    return %c0_i32, %c0_i32_0, %c0_i32_1, %c0_i32_2 : i32, i32, i32, i32
  }
  func.func @transform_8(%arg0: i32) -> (i32, i32, i32, i32) {
    %c0_i32 = arith.constant 0 : i32
    %c0_i32_0 = arith.constant 0 : i32
    %c0_i32_1 = arith.constant 0 : i32
    %c0_i32_2 = arith.constant 0 : i32
    %c0_i32_3 = arith.constant 0 : i32
    return %c0_i32, %c0_i32_0, %c0_i32_1, %c0_i32_2 : i32, i32, i32, i32
  }
  func.func @transform_9(%arg0: i32) -> (i32, i32, i32, i32) {
    %c0_i32 = arith.constant 0 : i32
    %c0_i32_0 = arith.constant 0 : i32
    %c0_i32_1 = arith.constant 0 : i32
    %c0_i32_2 = arith.constant 0 : i32
    %c0_i32_3 = arith.constant 0 : i32
    return %c0_i32, %c0_i32_0, %c0_i32_1, %c0_i32_2 : i32, i32, i32, i32
  }
  func.func @transform_10(%arg0: i32) -> (i32, i32, i32, i32) {
    %c0_i32 = arith.constant 0 : i32
    %c0_i32_0 = arith.constant 0 : i32
    %c0_i32_1 = arith.constant 0 : i32
    %c0_i32_2 = arith.constant 0 : i32
    %c0_i32_3 = arith.constant 0 : i32
    return %c0_i32, %c0_i32_0, %c0_i32_1, %c0_i32_2 : i32, i32, i32, i32
  }
  func.func @transform_11(%arg0: i32) -> (i32, i32, i32, i32) {
    %c0_i32 = arith.constant 0 : i32
    %c0_i32_0 = arith.constant 0 : i32
    %c0_i32_1 = arith.constant 0 : i32
    %c0_i32_2 = arith.constant 0 : i32
    %c0_i32_3 = arith.constant 0 : i32
    return %c0_i32, %c0_i32_0, %c0_i32_1, %c0_i32_2 : i32, i32, i32, i32
  }
  func.func @transform_12(%arg0: i32) -> (i32, i32, i32) {
    %c0_i32 = arith.constant 0 : i32
    %c0_i32_0 = arith.constant 0 : i32
    %c0_i32_1 = arith.constant 0 : i32
    %c0_i32_2 = arith.constant 0 : i32
    return %c0_i32, %c0_i32_0, %c0_i32_1 : i32, i32, i32
  }
  func.func @transform_13(%arg0: i32) -> (i32, i32, i32) {
    %c0_i32 = arith.constant 0 : i32
    %c0_i32_0 = arith.constant 0 : i32
    %c0_i32_1 = arith.constant 0 : i32
    %c0_i32_2 = arith.constant 0 : i32
    return %c0_i32, %c0_i32_0, %c0_i32_1 : i32, i32, i32
  }
  func.func @transform_14(%arg0: i32) -> (i32, i32, i32) {
    %c0_i32 = arith.constant 0 : i32
    %c0_i32_0 = arith.constant 0 : i32
    %c0_i32_1 = arith.constant 0 : i32
    %c0_i32_2 = arith.constant 0 : i32
    return %c0_i32, %c0_i32_0, %c0_i32_1 : i32, i32, i32
  }
  func.func @transform_15(%arg0: i32) -> (i32, i32, i32) {
    %c0_i32 = arith.constant 0 : i32
    %c0_i32_0 = arith.constant 0 : i32
    %c0_i32_1 = arith.constant 0 : i32
    %c0_i32_2 = arith.constant 0 : i32
    return %c0_i32, %c0_i32_0, %c0_i32_1 : i32, i32, i32
  }
  func.func @transform_16(%arg0: i32) -> (i32, i32, i32) {
    %c0_i32 = arith.constant 0 : i32
    %c0_i32_0 = arith.constant 0 : i32
    %c0_i32_1 = arith.constant 0 : i32
    %c0_i32_2 = arith.constant 0 : i32
    return %c0_i32, %c0_i32_0, %c0_i32_1 : i32, i32, i32
  }
  func.func @transform_17(%arg0: i32) -> (i32, i32, i32) {
    %c0_i32 = arith.constant 0 : i32
    %c0_i32_0 = arith.constant 0 : i32
    %c0_i32_1 = arith.constant 0 : i32
    %c0_i32_2 = arith.constant 0 : i32
    return %c0_i32, %c0_i32_0, %c0_i32_1 : i32, i32, i32
  }
  func.func @transform_18(%arg0: i32) -> (i32, i32, i32) {
    %c0_i32 = arith.constant 0 : i32
    %c0_i32_0 = arith.constant 0 : i32
    %c0_i32_1 = arith.constant 0 : i32
    %c0_i32_2 = arith.constant 0 : i32
    return %c0_i32, %c0_i32_0, %c0_i32_1 : i32, i32, i32
  }
  func.func @transform_19(%arg0: i32) -> (i32, i32) {
    %c0_i32 = arith.constant 0 : i32
    %c0_i32_0 = arith.constant 0 : i32
    %c0_i32_1 = arith.constant 0 : i32
    return %c0_i32, %c0_i32_0 : i32, i32
  }
  func.func @transform_20(%arg0: i32) -> (i32, i32) {
    %c0_i32 = arith.constant 0 : i32
    %c0_i32_0 = arith.constant 0 : i32
    %c0_i32_1 = arith.constant 0 : i32
    return %c0_i32, %c0_i32_0 : i32, i32
  }
  func.func @transform_21(%arg0: i32) -> (i32, i32, i32) {
    %c0_i32 = arith.constant 0 : i32
    %c0_i32_0 = arith.constant 0 : i32
    %c0_i32_1 = arith.constant 0 : i32
    return %arg0, %c0_i32, %c0_i32_0 : i32, i32, i32
  }
}

</mosaic_0001>

<llo_original>
// kernel: hfllm_forward.1
$region0: #{hfllm_forward.1}
  #allocation0 [shape = 'u32[]', space=smem, size = 0x4, offset = 0x4, fixed_abs, tag = 'smem constant byte address 0x4 - core index']
  #allocation1 [shape = 'u32[144,128]{1,0:T(1,128)}', space=vmem, size = 0x12000, scoped, tag = 'internal scratch']
  %s0 = inlined_call_operand.vmem [shape: f32[2,24,32], index: 0, kind: input, shape index: {}]
  %s1 = inlined_call_operand.vmem [shape: f32[2,3,8,8], index: 1, kind: input, shape index: {}]
  %s2 = inlined_call_operand.vmem [shape: f32[2,3,24], index: 2, kind: input, shape index: {}]
  %s3 = inlined_call_operand.vmem [shape: f32[2,1,32], index: 3, kind: input, shape index: {}]
  %s4 = inlined_call_operand.vmem [shape: f32[2,1,32], index: 4, kind: input, shape index: {}]
  %s5 = inlined_call_operand.vmem [shape: f32[2,4,32,8], index: 5, kind: input, shape index: {}]
  %s6 = inlined_call_operand.vmem [shape: f32[2,4,1,8], index: 6, kind: input, shape index: {}]
  %s7 = inlined_call_operand.vmem [shape: f32[2,4,32,8], index: 7, kind: input, shape index: {}]
  %s8 = inlined_call_operand.vmem [shape: f32[2,4,1,8], index: 8, kind: input, shape index: {}]
  %s9 = inlined_call_operand.vmem [shape: f32[2,4,32,8], index: 9, kind: input, shape index: {}]
  %s10 = inlined_call_operand.vmem [shape: f32[2,4,1,8], index: 10, kind: input, shape index: {}]
  %s11 = inlined_call_operand.vmem [shape: f32[2,4,8,32], index: 11, kind: input, shape index: {}]
  %s12 = inlined_call_operand.vmem [shape: f32[2,1,32], index: 12, kind: input, shape index: {}]
  %s13 = inlined_call_operand.vmem [shape: f32[2,1,32], index: 13, kind: input, shape index: {}]
  %s14 = inlined_call_operand.vmem [shape: f32[2,1,32], index: 14, kind: input, shape index: {}]
  %s15 = inlined_call_operand.vmem [shape: f32[2,32,128], index: 15, kind: input, shape index: {}]
  %s16 = inlined_call_operand.vmem [shape: f32[2,1,128], index: 16, kind: input, shape index: {}]
  %s17 = inlined_call_operand.vmem [shape: f32[2,128,32], index: 17, kind: input, shape index: {}]
  %s18 = inlined_call_operand.vmem [shape: f32[2,1,32], index: 18, kind: input, shape index: {}]
  %s19 = inlined_call_operand.vmem [shape: f32[1,32], index: 19, kind: input, shape index: {}]
  %s20 = inlined_call_operand.vmem [shape: f32[1,32], index: 20, kind: input, shape index: {}]
  %s21 = inlined_call_operand.vmem [shape: f32[2,3,32], index: 21, kind: output, shape index: {}]
  %s22 = sld [smem:[#allocation0]]
  $region117: #{hfllm_forward.1} parent=0
    _
  %s24 = ssub.s32 1, %s22
  %s25 = scalar_select 0, %s24, %s22
  loop: start=0, step=1, limit=4
  $region2: #{hfllm_forward.1} parent=0 // loop_pre_header
    _
  $region3: #{hfllm_forward.1} parent=0 // loop_header
    %s27 = sphi 0, %s31
    %p28 = scmp.ge.s32.totalorder %s27, 4
    %s37 = sphi 0, %s39
    %s40 = sphi 0, %s37
    %s41 = sphi 0, %s40
    %s57 = sphi 0, %s41
    %s63 = sphi 0, %s65
    %s66 = sphi 0, %s63
    %s67 = sphi 0, %s66
    %s83 = sphi 0, %s67
    %s89 = sphi 0, %s91
    %s92 = sphi 0, %s89
    %s93 = sphi 0, %s92
    %s109 = sphi 0, %s93
    %s113 = sphi 0, %s113
    %s115 = sphi 0, %s113
    %s116 = sphi 0, %s115
    %s130 = sphi 0, %s116
    %s134 = sphi 0, %s134
    %s136 = sphi 0, %s134
    %s137 = sphi 0, %s136
    %s151 = sphi 0, %s137
    %s155 = sphi 0, %s155
    %s157 = sphi 0, %s155
    %s158 = sphi 0, %s157
    %s172 = sphi 0, %s158
    %s176 = sphi 0, %s176
    %s178 = sphi 0, %s176
    %s179 = sphi 0, %s178
    %s193 = sphi 0, %s179
    %s197 = sphi 0, %s197
    %s199 = sphi 0, %s197
    %s200 = sphi 0, %s199
    %s214 = sphi 0, %s200
    %s218 = sphi 0, %s218
    %s220 = sphi 0, %s218
    %s221 = sphi 0, %s220
    %s235 = sphi 0, %s221
    %s239 = sphi 0, %s239
    %s241 = sphi 0, %s239
    %s242 = sphi 0, %s241
    %s256 = sphi 0, %s242
    %s260 = sphi 0, %s260
    %s262 = sphi 0, %s260
    %s263 = sphi 0, %s262
    %s277 = sphi 0, %s263
    %s281 = sphi 0, %s281
    %s283 = sphi 0, %s281
    %s284 = sphi 0, %s283
    %s298 = sphi 0, %s284
    %s302 = sphi 0, %s302
    %s304 = sphi 0, %s302
    %s305 = sphi 0, %s304
    %s319 = sphi 0, %s305
    %s323 = sphi 0, %s323
    %s325 = sphi 0, %s323
    %s326 = sphi 0, %s325
    %s340 = sphi 0, %s326
    %s344 = sphi 0, %s344
    %s346 = sphi 0, %s344
    %s347 = sphi 0, %s346
    %s361 = sphi 0, %s347
    %s365 = sphi 0, %s365
    %s367 = sphi 0, %s365
    %s368 = sphi 0, %s367
    %s382 = sphi 0, %s368
    %s386 = sphi 0, %s386
    %s388 = sphi 0, %s386
    %s389 = sphi 0, %s388
    %s403 = sphi 0, %s389
    %s407 = sphi 0, %s407
    %s409 = sphi 0, %s407
    %s410 = sphi 0, %s409
    %s424 = sphi 0, %s410
    %s428 = sphi 0, %s428
    %s430 = sphi 0, %s428
    %s431 = sphi 0, %s430
    %s445 = sphi 0, %s431
    %s449 = sphi 0, %s449
    %s451 = sphi 0, %s449
    %s452 = sphi 0, %s451
    %s466 = sphi 0, %s452
    %s470 = sphi 0, %s470
    %s472 = sphi 0, %s470
    %s473 = sphi 0, %s472
    %s487 = sphi 0, %s473
    %s493 = sphi 0, %s495
    %s496 = sphi 0, %s493
    %s497 = sphi 0, %s496
    %s513 = sphi 0, %s497
  $region4: #{hfllm_forward.1} parent=0 // loop_header_branch
    %30 = sbr.rel (%p28) target = $region8
  $region5: #{hfllm_forward.1} parent=0 // loop_body
    %s32 = ssub.s32 %s27, 1
    %s33 = ssub.s32 %s27, 2
    %s34 = sadd.s32 %s27, 1
    %s35 = ssub.s32 %s27, %s34
    %p36 = scmp.eq.s32.totalorder %s35, 0
    %s38 = sadd.s32 %s37, 1
    %s39 = scalar_select %p36, %s37, %s38
    %p42 = pneg %p36
    %p43 = scmp.eq.s32.totalorder %s27, 1
    %p44 = por %p42, %p43
    %p45 = scmp.ne.s32.totalorder %s37, %s40
    %p46 = scmp.eq.s32.totalorder %s27, 0
    %p47 = por %p45, %p46
    %p48 = scmp.ne.s32.totalorder %s37, %s40
    %p49 = scmp.eq.s32.totalorder %s32, 1
    %p50 = por %p48, %p49
    %p51 = scmp.ne.s32.totalorder %s40, %s41
    %p52 = scmp.eq.s32.totalorder %s32, 0
    %p53 = por %p51, %p52
    %p54 = scmp.ne.s32.totalorder %s40, %s41
    %p55 = scmp.eq.s32.totalorder %s33, 1
    %p56 = por %p54, %p55
    %p58 = scmp.ne.s32.totalorder %s41, %s57
    %p59 = scmp.eq.s32.totalorder %s33, 0
    %p60 = por %p58, %p59
    %s61 = ssub.s32 %s27, %s34
    %p62 = scmp.eq.s32.totalorder %s61, 0
    %s64 = sadd.s32 %s63, 1
    %s65 = scalar_select %p62, %s63, %s64
    %p68 = pneg %p62
    %p69 = scmp.eq.s32.totalorder %s27, 1
    %p70 = por %p68, %p69
    %p71 = scmp.ne.s32.totalorder %s63, %s66
    %p72 = scmp.eq.s32.totalorder %s27, 0
    %p73 = por %p71, %p72
    %p74 = scmp.ne.s32.totalorder %s63, %s66
    %p75 = scmp.eq.s32.totalorder %s32, 1
    %p76 = por %p74, %p75
    %p77 = scmp.ne.s32.totalorder %s66, %s67
    %p78 = scmp.eq.s32.totalorder %s32, 0
    %p79 = por %p77, %p78
    %p80 = scmp.ne.s32.totalorder %s66, %s67
    %p81 = scmp.eq.s32.totalorder %s33, 1
    %p82 = por %p80, %p81
    %p84 = scmp.ne.s32.totalorder %s67, %s83
    %p85 = scmp.eq.s32.totalorder %s33, 0
    %p86 = por %p84, %p85
    %s87 = ssub.s32 %s27, %s34
    %p88 = scmp.eq.s32.totalorder %s87, 0
    %s90 = sadd.s32 %s89, 1
    %s91 = scalar_select %p88, %s89, %s90
    %p94 = pneg %p88
    %p95 = scmp.eq.s32.totalorder %s27, 1
    %p96 = por %p94, %p95
    %p97 = scmp.ne.s32.totalorder %s89, %s92
    %p98 = scmp.eq.s32.totalorder %s27, 0
    %p99 = por %p97, %p98
    %p100 = scmp.ne.s32.totalorder %s89, %s92
    %p101 = scmp.eq.s32.totalorder %s32, 1
    %p102 = por %p100, %p101
    %p103 = scmp.ne.s32.totalorder %s92, %s93
    %p104 = scmp.eq.s32.totalorder %s32, 0
    %p105 = por %p103, %p104
    %p106 = scmp.ne.s32.totalorder %s92, %s93
    %p107 = scmp.eq.s32.totalorder %s33, 1
    %p108 = por %p106, %p107
    %p110 = scmp.ne.s32.totalorder %s93, %s109
    %p111 = scmp.eq.s32.totalorder %s33, 0
    %p112 = por %p110, %p111
    %s114 = sadd.s32 %s113, 1
    %p117 = scmp.eq.s32.totalorder %s27, 1
    %p118 = scmp.ne.s32.totalorder %s113, %s115
    %p119 = scmp.eq.s32.totalorder %s27, 0
    %p120 = por %p118, %p119
    %p121 = scmp.ne.s32.totalorder %s113, %s115
    %p122 = scmp.eq.s32.totalorder %s32, 1
    %p123 = por %p121, %p122
    %p124 = scmp.ne.s32.totalorder %s115, %s116
    %p125 = scmp.eq.s32.totalorder %s32, 0
    %p126 = por %p124, %p125
    %p127 = scmp.ne.s32.totalorder %s115, %s116
    %p128 = scmp.eq.s32.totalorder %s33, 1
    %p129 = por %p127, %p128
    %p131 = scmp.ne.s32.totalorder %s116, %s130
    %p132 = scmp.eq.s32.totalorder %s33, 0
    %p133 = por %p131, %p132
    %s135 = sadd.s32 %s134, 1
    %p138 = scmp.eq.s32.totalorder %s27, 1
    %p139 = scmp.ne.s32.totalorder %s134, %s136
    %p140 = scmp.eq.s32.totalorder %s27, 0
    %p141 = por %p139, %p140
    %p142 = scmp.ne.s32.totalorder %s134, %s136
    %p143 = scmp.eq.s32.totalorder %s32, 1
    %p144 = por %p142, %p143
    %p145 = scmp.ne.s32.totalorder %s136, %s137
    %p146 = scmp.eq.s32.totalorder %s32, 0
    %p147 = por %p145, %p146
    %p148 = scmp.ne.s32.totalorder %s136, %s137
    %p149 = scmp.eq.s32.totalorder %s33, 1
    %p150 = por %p148, %p149
    %p152 = scmp.ne.s32.totalorder %s137, %s151
    %p153 = scmp.eq.s32.totalorder %s33, 0
    %p154 = por %p152, %p153
    %s156 = sadd.s32 %s155, 1
    %p159 = scmp.eq.s32.totalorder %s27, 1
    %p160 = scmp.ne.s32.totalorder %s155, %s157
    %p161 = scmp.eq.s32.totalorder %s27, 0
    %p162 = por %p160, %p161
    %p163 = scmp.ne.s32.totalorder %s155, %s157
    %p164 = scmp.eq.s32.totalorder %s32, 1
    %p165 = por %p163, %p164
    %p166 = scmp.ne.s32.totalorder %s157, %s158
    %p167 = scmp.eq.s32.totalorder %s32, 0
    %p168 = por %p166, %p167
    %p169 = scmp.ne.s32.totalorder %s157, %s158
    %p170 = scmp.eq.s32.totalorder %s33, 1
    %p171 = por %p169, %p170
    %p173 = scmp.ne.s32.totalorder %s158, %s172
    %p174 = scmp.eq.s32.totalorder %s33, 0
    %p175 = por %p173, %p174
    %s177 = sadd.s32 %s176, 1
    %p180 = scmp.eq.s32.totalorder %s27, 1
    %p181 = scmp.ne.s32.totalorder %s176, %s178
    %p182 = scmp.eq.s32.totalorder %s27, 0
    %p183 = por %p181, %p182
    %p184 = scmp.ne.s32.totalorder %s176, %s178
    %p185 = scmp.eq.s32.totalorder %s32, 1
    %p186 = por %p184, %p185
    %p187 = scmp.ne.s32.totalorder %s178, %s179
    %p188 = scmp.eq.s32.totalorder %s32, 0
    %p189 = por %p187, %p188
    %p190 = scmp.ne.s32.totalorder %s178, %s179
    %p191 = scmp.eq.s32.totalorder %s33, 1
    %p192 = por %p190, %p191
    %p194 = scmp.ne.s32.totalorder %s179, %s193
    %p195 = scmp.eq.s32.totalorder %s33, 0
    %p196 = por %p194, %p195
    %s198 = sadd.s32 %s197, 1
    %p201 = scmp.eq.s32.totalorder %s27, 1
    %p202 = scmp.ne.s32.totalorder %s197, %s199
    %p203 = scmp.eq.s32.totalorder %s27, 0
    %p204 = por %p202, %p203
    %p205 = scmp.ne.s32.totalorder %s197, %s199
    %p206 = scmp.eq.s32.totalorder %s32, 1
    %p207 = por %p205, %p206
    %p208 = scmp.ne.s32.totalorder %s199, %s200
    %p209 = scmp.eq.s32.totalorder %s32, 0
    %p210 = por %p208, %p209
    %p211 = scmp.ne.s32.totalorder %s199, %s200
    %p212 = scmp.eq.s32.totalorder %s33, 1
    %p213 = por %p211, %p212
    %p215 = scmp.ne.s32.totalorder %s200, %s214
    %p216 = scmp.eq.s32.totalorder %s33, 0
    %p217 = por %p215, %p216
    %s219 = sadd.s32 %s218, 1
    %p222 = scmp.eq.s32.totalorder %s27, 1
    %p223 = scmp.ne.s32.totalorder %s218, %s220
    %p224 = scmp.eq.s32.totalorder %s27, 0
    %p225 = por %p223, %p224
    %p226 = scmp.ne.s32.totalorder %s218, %s220
    %p227 = scmp.eq.s32.totalorder %s32, 1
    %p228 = por %p226, %p227
    %p229 = scmp.ne.s32.totalorder %s220, %s221
    %p230 = scmp.eq.s32.totalorder %s32, 0
    %p231 = por %p229, %p230
    %p232 = scmp.ne.s32.totalorder %s220, %s221
    %p233 = scmp.eq.s32.totalorder %s33, 1
    %p234 = por %p232, %p233
    %p236 = scmp.ne.s32.totalorder %s221, %s235
    %p237 = scmp.eq.s32.totalorder %s33, 0
    %p238 = por %p236, %p237
    %s240 = sadd.s32 %s239, 1
    %p243 = scmp.eq.s32.totalorder %s27, 1
    %p244 = scmp.ne.s32.totalorder %s239, %s241
    %p245 = scmp.eq.s32.totalorder %s27, 0
    %p246 = por %p244, %p245
    %p247 = scmp.ne.s32.totalorder %s239, %s241
    %p248 = scmp.eq.s32.totalorder %s32, 1
    %p249 = por %p247, %p248
    %p250 = scmp.ne.s32.totalorder %s241, %s242
    %p251 = scmp.eq.s32.totalorder %s32, 0
    %p252 = por %p250, %p251
    %p253 = scmp.ne.s32.totalorder %s241, %s242
    %p254 = scmp.eq.s32.totalorder %s33, 1
    %p255 = por %p253, %p254
    %p257 = scmp.ne.s32.totalorder %s242, %s256
    %p258 = scmp.eq.s32.totalorder %s33, 0
    %p259 = por %p257, %p258
    %s261 = sadd.s32 %s260, 1
    %p264 = scmp.eq.s32.totalorder %s27, 1
    %p265 = scmp.ne.s32.totalorder %s260, %s262
    %p266 = scmp.eq.s32.totalorder %s27, 0
    %p267 = por %p265, %p266
    %p268 = scmp.ne.s32.totalorder %s260, %s262
    %p269 = scmp.eq.s32.totalorder %s32, 1
    %p270 = por %p268, %p269
    %p271 = scmp.ne.s32.totalorder %s262, %s263
    %p272 = scmp.eq.s32.totalorder %s32, 0
    %p273 = por %p271, %p272
    %p274 = scmp.ne.s32.totalorder %s262, %s263
    %p275 = scmp.eq.s32.totalorder %s33, 1
    %p276 = por %p274, %p275
    %p278 = scmp.ne.s32.totalorder %s263, %s277
    %p279 = scmp.eq.s32.totalorder %s33, 0
    %p280 = por %p278, %p279
    %s282 = sadd.s32 %s281, 1
    %p285 = scmp.eq.s32.totalorder %s27, 1
    %p286 = scmp.ne.s32.totalorder %s281, %s283
    %p287 = scmp.eq.s32.totalorder %s27, 0
    %p288 = por %p286, %p287
    %p289 = scmp.ne.s32.totalorder %s281, %s283
    %p290 = scmp.eq.s32.totalorder %s32, 1
    %p291 = por %p289, %p290
    %p292 = scmp.ne.s32.totalorder %s283, %s284
    %p293 = scmp.eq.s32.totalorder %s32, 0
    %p294 = por %p292, %p293
    %p295 = scmp.ne.s32.totalorder %s283, %s284
    %p296 = scmp.eq.s32.totalorder %s33, 1
    %p297 = por %p295, %p296
    %p299 = scmp.ne.s32.totalorder %s284, %s298
    %p300 = scmp.eq.s32.totalorder %s33, 0
    %p301 = por %p299, %p300
    %s303 = sadd.s32 %s302, 1
    %p306 = scmp.eq.s32.totalorder %s27, 1
    %p307 = scmp.ne.s32.totalorder %s302, %s304
    %p308 = scmp.eq.s32.totalorder %s27, 0
    %p309 = por %p307, %p308
    %p310 = scmp.ne.s32.totalorder %s302, %s304
    %p311 = scmp.eq.s32.totalorder %s32, 1
    %p312 = por %p310, %p311
    %p313 = scmp.ne.s32.totalorder %s304, %s305
    %p314 = scmp.eq.s32.totalorder %s32, 0
    %p315 = por %p313, %p314
    %p316 = scmp.ne.s32.totalorder %s304, %s305
    %p317 = scmp.eq.s32.totalorder %s33, 1
    %p318 = por %p316, %p317
    %p320 = scmp.ne.s32.totalorder %s305, %s319
    %p321 = scmp.eq.s32.totalorder %s33, 0
    %p322 = por %p320, %p321
    %s324 = sadd.s32 %s323, 1
    %p327 = scmp.eq.s32.totalorder %s27, 1
    %p328 = scmp.ne.s32.totalorder %s323, %s325
    %p329 = scmp.eq.s32.totalorder %s27, 0
    %p330 = por %p328, %p329
    %p331 = scmp.ne.s32.totalorder %s323, %s325
    %p332 = scmp.eq.s32.totalorder %s32, 1
    %p333 = por %p331, %p332
    %p334 = scmp.ne.s32.totalorder %s325, %s326
    %p335 = scmp.eq.s32.totalorder %s32, 0
    %p336 = por %p334, %p335
    %p337 = scmp.ne.s32.totalorder %s325, %s326
    %p338 = scmp.eq.s32.totalorder %s33, 1
    %p339 = por %p337, %p338
    %p341 = scmp.ne.s32.totalorder %s326, %s340
    %p342 = scmp.eq.s32.totalorder %s33, 0
    %p343 = por %p341, %p342
    %s345 = sadd.s32 %s344, 1
    %p348 = scmp.eq.s32.totalorder %s27, 1
    %p349 = scmp.ne.s32.totalorder %s344, %s346
    %p350 = scmp.eq.s32.totalorder %s27, 0
    %p351 = por %p349, %p350
    %p352 = scmp.ne.s32.totalorder %s344, %s346
    %p353 = scmp.eq.s32.totalorder %s32, 1
    %p354 = por %p352, %p353
    %p355 = scmp.ne.s32.totalorder %s346, %s347
    %p356 = scmp.eq.s32.totalorder %s32, 0
    %p357 = por %p355, %p356
    %p358 = scmp.ne.s32.totalorder %s346, %s347
    %p359 = scmp.eq.s32.totalorder %s33, 1
    %p360 = por %p358, %p359
    %p362 = scmp.ne.s32.totalorder %s347, %s361
    %p363 = scmp.eq.s32.totalorder %s33, 0
    %p364 = por %p362, %p363
    %s366 = sadd.s32 %s365, 1
    %p369 = scmp.eq.s32.totalorder %s27, 1
    %p370 = scmp.ne.s32.totalorder %s365, %s367
    %p371 = scmp.eq.s32.totalorder %s27, 0
    %p372 = por %p370, %p371
    %p373 = scmp.ne.s32.totalorder %s365, %s367
    %p374 = scmp.eq.s32.totalorder %s32, 1
    %p375 = por %p373, %p374
    %p376 = scmp.ne.s32.totalorder %s367, %s368
    %p377 = scmp.eq.s32.totalorder %s32, 0
    %p378 = por %p376, %p377
    %p379 = scmp.ne.s32.totalorder %s367, %s368
    %p380 = scmp.eq.s32.totalorder %s33, 1
    %p381 = por %p379, %p380
    %p383 = scmp.ne.s32.totalorder %s368, %s382
    %p384 = scmp.eq.s32.totalorder %s33, 0
    %p385 = por %p383, %p384
    %s387 = sadd.s32 %s386, 1
    %p390 = scmp.eq.s32.totalorder %s27, 1
    %p391 = scmp.ne.s32.totalorder %s386, %s388
    %p392 = scmp.eq.s32.totalorder %s27, 0
    %p393 = por %p391, %p392
    %p394 = scmp.ne.s32.totalorder %s386, %s388
    %p395 = scmp.eq.s32.totalorder %s32, 1
    %p396 = por %p394, %p395
    %p397 = scmp.ne.s32.totalorder %s388, %s389
    %p398 = scmp.eq.s32.totalorder %s32, 0
    %p399 = por %p397, %p398
    %p400 = scmp.ne.s32.totalorder %s388, %s389
    %p401 = scmp.eq.s32.totalorder %s33, 1
    %p402 = por %p400, %p401
    %p404 = scmp.ne.s32.totalorder %s389, %s403
    %p405 = scmp.eq.s32.totalorder %s33, 0
    %p406 = por %p404, %p405
    %s408 = sadd.s32 %s407, 1
    %p411 = scmp.eq.s32.totalorder %s27, 1
    %p412 = scmp.ne.s32.totalorder %s407, %s409
    %p413 = scmp.eq.s32.totalorder %s27, 0
    %p414 = por %p412, %p413
    %p415 = scmp.ne.s32.totalorder %s407, %s409
    %p416 = scmp.eq.s32.totalorder %s32, 1
    %p417 = por %p415, %p416
    %p418 = scmp.ne.s32.totalorder %s409, %s410
    %p419 = scmp.eq.s32.totalorder %s32, 0
    %p420 = por %p418, %p419
    %p421 = scmp.ne.s32.totalorder %s409, %s410
    %p422 = scmp.eq.s32.totalorder %s33, 1
    %p423 = por %p421, %p422
    %p425 = scmp.ne.s32.totalorder %s410, %s424
    %p426 = scmp.eq.s32.totalorder %s33, 0
    %p427 = por %p425, %p426
    %s429 = sadd.s32 %s428, 1
    %p432 = scmp.eq.s32.totalorder %s27, 1
    %p433 = scmp.ne.s32.totalorder %s428, %s430
    %p434 = scmp.eq.s32.totalorder %s27, 0
    %p435 = por %p433, %p434
    %p436 = scmp.ne.s32.totalorder %s428, %s430
    %p437 = scmp.eq.s32.totalorder %s32, 1
    %p438 = por %p436, %p437
    %p439 = scmp.ne.s32.totalorder %s430, %s431
    %p440 = scmp.eq.s32.totalorder %s32, 0
    %p441 = por %p439, %p440
    %p442 = scmp.ne.s32.totalorder %s430, %s431
    %p443 = scmp.eq.s32.totalorder %s33, 1
    %p444 = por %p442, %p443
    %p446 = scmp.ne.s32.totalorder %s431, %s445
    %p447 = scmp.eq.s32.totalorder %s33, 0
    %p448 = por %p446, %p447
    %s450 = sadd.s32 %s449, 1
    %p453 = scmp.eq.s32.totalorder %s27, 1
    %p454 = scmp.ne.s32.totalorder %s449, %s451
    %p455 = scmp.eq.s32.totalorder %s27, 0
    %p456 = por %p454, %p455
    %p457 = scmp.ne.s32.totalorder %s449, %s451
    %p458 = scmp.eq.s32.totalorder %s32, 1
    %p459 = por %p457, %p458
    %p460 = scmp.ne.s32.totalorder %s451, %s452
    %p461 = scmp.eq.s32.totalorder %s32, 0
    %p462 = por %p460, %p461
    %p463 = scmp.ne.s32.totalorder %s451, %s452
    %p464 = scmp.eq.s32.totalorder %s33, 1
    %p465 = por %p463, %p464
    %p467 = scmp.ne.s32.totalorder %s452, %s466
    %p468 = scmp.eq.s32.totalorder %s33, 0
    %p469 = por %p467, %p468
    %s471 = sadd.s32 %s470, 1
    %p474 = scmp.eq.s32.totalorder %s27, 1
    %p475 = scmp.ne.s32.totalorder %s470, %s472
    %p476 = scmp.eq.s32.totalorder %s27, 0
    %p477 = por %p475, %p476
    %p478 = scmp.ne.s32.totalorder %s470, %s472
    %p479 = scmp.eq.s32.totalorder %s32, 1
    %p480 = por %p478, %p479
    %p481 = scmp.ne.s32.totalorder %s472, %s473
    %p482 = scmp.eq.s32.totalorder %s32, 0
    %p483 = por %p481, %p482
    %p484 = scmp.ne.s32.totalorder %s472, %s473
    %p485 = scmp.eq.s32.totalorder %s33, 1
    %p486 = por %p484, %p485
    %p488 = scmp.ne.s32.totalorder %s473, %s487
    %p489 = scmp.eq.s32.totalorder %s33, 0
    %p490 = por %p488, %p489
    %s491 = ssub.s32 %s27, %s34
    %p492 = scmp.eq.s32.totalorder %s491, 0
    %s494 = sadd.s32 %s493, 1
    %s495 = scalar_select %p492, %s493, %s494
    %p498 = pneg %p492
    %p499 = scmp.eq.s32.totalorder %s27, 1
    %p500 = por %p498, %p499
    %p501 = scmp.ne.s32.totalorder %s493, %s496
    %p502 = scmp.eq.s32.totalorder %s27, 0
    %p503 = por %p501, %p502
    %p504 = scmp.ne.s32.totalorder %s493, %s496
    %p505 = scmp.eq.s32.totalorder %s32, 1
    %p506 = por %p504, %p505
    %p507 = scmp.ne.s32.totalorder %s496, %s497
    %p508 = scmp.eq.s32.totalorder %s32, 0
    %p509 = por %p507, %p508
    %p510 = scmp.ne.s32.totalorder %s496, %s497
    %p511 = scmp.eq.s32.totalorder %s33, 1
    %p512 = por %p510, %p511
    %p514 = scmp.ne.s32.totalorder %s497, %s513
    %p515 = scmp.eq.s32.totalorder %s33, 0
    %p516 = por %p514, %p515
    %p517 = scmp.le.s32.totalorder 1, %s27
    %p518 = scmp.lt.s32.totalorder %s27, 3
    %p519 = pnand %p517, %p518
    %p520 = pneg %p519
    // Predicated region
    $region9: #{hfllm_forward.1} parent=5 // pred_check
      _
    $region10: #{hfllm_forward.1} parent=5 // pred_check_branch
      %522 = sbr.rel (%p519) target = $region12
    $region11: #{hfllm_forward.1} parent=5 // pred_region
      %s523 = ssub.s32 %s27, 1
      // Predicated region
      $region13: #{hfllm_forward.1} parent=11 // pred_check
        %p524 = pneg %p126
      $region14: #{hfllm_forward.1} parent=11 // pred_check_branch
        %526 = sbr.rel (%p524) target = $region16
      $region15: #{hfllm_forward.1} parent=11 // pred_region
        _
      $region16: #{hfllm_forward.1} parent=11 // pred_fallthru
        _
      // Predicated region
      $region17: #{hfllm_forward.1} parent=11 // pred_check
        %p527 = pneg %p147
      $region18: #{hfllm_forward.1} parent=11 // pred_check_branch
        %529 = sbr.rel (%p527) target = $region20
      $region19: #{hfllm_forward.1} parent=11 // pred_region
        _
      $region20: #{hfllm_forward.1} parent=11 // pred_fallthru
        _
      // Predicated region
      $region21: #{hfllm_forward.1} parent=11 // pred_check
        %p530 = pneg %p168
      $region22: #{hfllm_forward.1} parent=11 // pred_check_branch
        %532 = sbr.rel (%p530) target = $region24
      $region23: #{hfllm_forward.1} parent=11 // pred_region
        _
      $region24: #{hfllm_forward.1} parent=11 // pred_fallthru
        _
      // Predicated region
      $region25: #{hfllm_forward.1} parent=11 // pred_check
        %p533 = pneg %p189
      $region26: #{hfllm_forward.1} parent=11 // pred_check_branch
        %535 = sbr.rel (%p533) target = $region28
      $region27: #{hfllm_forward.1} parent=11 // pred_region
        _
      $region28: #{hfllm_forward.1} parent=11 // pred_fallthru
        _
      // Predicated region
      $region29: #{hfllm_forward.1} parent=11 // pred_check
        %p536 = pneg %p210
      $region30: #{hfllm_forward.1} parent=11 // pred_check_branch
        %538 = sbr.rel (%p536) target = $region32
      $region31: #{hfllm_forward.1} parent=11 // pred_region
        _
      $region32: #{hfllm_forward.1} parent=11 // pred_fallthru
        _
      // Predicated region
      $region33: #{hfllm_forward.1} parent=11 // pred_check
        %p539 = pneg %p231
      $region34: #{hfllm_forward.1} parent=11 // pred_check_branch
        %541 = sbr.rel (%p539) target = $region36
      $region35: #{hfllm_forward.1} parent=11 // pred_region
        _
      $region36: #{hfllm_forward.1} parent=11 // pred_fallthru
        _
      // Predicated region
      $region37: #{hfllm_forward.1} parent=11 // pred_check
        %p542 = pneg %p252
      $region38: #{hfllm_forward.1} parent=11 // pred_check_branch
        %544 = sbr.rel (%p542) target = $region40
      $region39: #{hfllm_forward.1} parent=11 // pred_region
        _
      $region40: #{hfllm_forward.1} parent=11 // pred_fallthru
        _
      // Predicated region
      $region41: #{hfllm_forward.1} parent=11 // pred_check
        %p545 = pneg %p273
      $region42: #{hfllm_forward.1} parent=11 // pred_check_branch
        %547 = sbr.rel (%p545) target = $region44
      $region43: #{hfllm_forward.1} parent=11 // pred_region
        _
      $region44: #{hfllm_forward.1} parent=11 // pred_fallthru
        _
      // Predicated region
      $region45: #{hfllm_forward.1} parent=11 // pred_check
        %p548 = pneg %p294
      $region46: #{hfllm_forward.1} parent=11 // pred_check_branch
        %550 = sbr.rel (%p548) target = $region48
      $region47: #{hfllm_forward.1} parent=11 // pred_region
        _
      $region48: #{hfllm_forward.1} parent=11 // pred_fallthru
        _
      // Predicated region
      $region49: #{hfllm_forward.1} parent=11 // pred_check
        %p551 = pneg %p315
      $region50: #{hfllm_forward.1} parent=11 // pred_check_branch
        %553 = sbr.rel (%p551) target = $region52
      $region51: #{hfllm_forward.1} parent=11 // pred_region
        _
      $region52: #{hfllm_forward.1} parent=11 // pred_fallthru
        _
      // Predicated region
      $region53: #{hfllm_forward.1} parent=11 // pred_check
        %p554 = pneg %p336
      $region54: #{hfllm_forward.1} parent=11 // pred_check_branch
        %556 = sbr.rel (%p554) target = $region56
      $region55: #{hfllm_forward.1} parent=11 // pred_region
        _
      $region56: #{hfllm_forward.1} parent=11 // pred_fallthru
        _
      // Predicated region
      $region57: #{hfllm_forward.1} parent=11 // pred_check
        %p557 = pneg %p357
      $region58: #{hfllm_forward.1} parent=11 // pred_check_branch
        %559 = sbr.rel (%p557) target = $region60
      $region59: #{hfllm_forward.1} parent=11 // pred_region
        _
      $region60: #{hfllm_forward.1} parent=11 // pred_fallthru
        _
      // Predicated region
      $region61: #{hfllm_forward.1} parent=11 // pred_check
        %p560 = pneg %p378
      $region62: #{hfllm_forward.1} parent=11 // pred_check_branch
        %562 = sbr.rel (%p560) target = $region64
      $region63: #{hfllm_forward.1} parent=11 // pred_region
        _
      $region64: #{hfllm_forward.1} parent=11 // pred_fallthru
        _
      // Predicated region
      $region65: #{hfllm_forward.1} parent=11 // pred_check
        %p563 = pneg %p399
      $region66: #{hfllm_forward.1} parent=11 // pred_check_branch
        %565 = sbr.rel (%p563) target = $region68
      $region67: #{hfllm_forward.1} parent=11 // pred_region
        _
      $region68: #{hfllm_forward.1} parent=11 // pred_fallthru
        _
      // Predicated region
      $region69: #{hfllm_forward.1} parent=11 // pred_check
        %p566 = pneg %p420
      $region70: #{hfllm_forward.1} parent=11 // pred_check_branch
        %568 = sbr.rel (%p566) target = $region72
      $region71: #{hfllm_forward.1} parent=11 // pred_region
        _
      $region72: #{hfllm_forward.1} parent=11 // pred_fallthru
        _
      // Predicated region
      $region73: #{hfllm_forward.1} parent=11 // pred_check
        %p569 = pneg %p441
      $region74: #{hfllm_forward.1} parent=11 // pred_check_branch
        %571 = sbr.rel (%p569) target = $region76
      $region75: #{hfllm_forward.1} parent=11 // pred_region
        _
      $region76: #{hfllm_forward.1} parent=11 // pred_fallthru
        _
      // Predicated region
      $region77: #{hfllm_forward.1} parent=11 // pred_check
        %p572 = pneg %p462
      $region78: #{hfllm_forward.1} parent=11 // pred_check_branch
        %574 = sbr.rel (%p572) target = $region80
      $region79: #{hfllm_forward.1} parent=11 // pred_region
        _
      $region80: #{hfllm_forward.1} parent=11 // pred_fallthru
        _
      // Predicated region
      $region81: #{hfllm_forward.1} parent=11 // pred_check
        %p575 = pneg %p483
      $region82: #{hfllm_forward.1} parent=11 // pred_check_branch
        %577 = sbr.rel (%p575) target = $region84
      $region83: #{hfllm_forward.1} parent=11 // pred_region
        _
      $region84: #{hfllm_forward.1} parent=11 // pred_fallthru
        _
    $region12: #{hfllm_forward.1} parent=5 // pred_fallthru
      _
    %p578 = scmp.lt.s32.totalorder %s27, 2
    // Predicated region
    $region85: #{hfllm_forward.1} parent=5 // pred_check
      %p579 = pneg %p578
    $region86: #{hfllm_forward.1} parent=5 // pred_check_branch
      %581 = sbr.rel (%p579) target = $region88
    $region87: #{hfllm_forward.1} parent=5 // pred_region
      // Predicated region
      $region89: #{hfllm_forward.1} parent=87 // pred_check
        %p582 = pneg %p47
      $region90: #{hfllm_forward.1} parent=87 // pred_check_branch
        %584 = sbr.rel (%p582) target = $region92
      $region91: #{hfllm_forward.1} parent=87 // pred_region
        %p585 = scmp.lt.s32.totalorder %s27, 1
        %s586 = scalar_select %p585, %s27, 1
        %s587 = smul.addr %s586, 3
        %s588 = smul.addr %s587, 8
        %s589 = scalar_lea.vmem %s0, %s588
      $region92: #{hfllm_forward.1} parent=87 // pred_fallthru
        _
      // Predicated region
      $region93: #{hfllm_forward.1} parent=87 // pred_check
        %p590 = pneg %p73
      $region94: #{hfllm_forward.1} parent=87 // pred_check_branch
        %592 = sbr.rel (%p590) target = $region96
      $region95: #{hfllm_forward.1} parent=87 // pred_region
        %p593 = scmp.lt.s32.totalorder %s27, 1
        %s594 = scalar_select %p593, %s27, 1
        %s595 = smul.addr %s594, 3
        %s596 = smul.addr %s595, 8
        %s597 = scalar_lea.vmem %s1, %s596
      $region96: #{hfllm_forward.1} parent=87 // pred_fallthru
        _
      // Predicated region
      $region97: #{hfllm_forward.1} parent=87 // pred_check
        %p598 = pneg %p99
      $region98: #{hfllm_forward.1} parent=87 // pred_check_branch
        %600 = sbr.rel (%p598) target = $region100
      $region99: #{hfllm_forward.1} parent=87 // pred_region
        %p601 = scmp.lt.s32.totalorder %s27, 1
        %s602 = scalar_select %p601, %s27, 1
        %s603 = smul.addr %s602, 4
        %s604 = scalar_lea.vmem %s2, %s603
      $region100: #{hfllm_forward.1} parent=87 // pred_fallthru
        _
    $region88: #{hfllm_forward.1} parent=5 // pred_fallthru
      _
    %p605 = scmp.le.s32.totalorder 1, %s27
    %p606 = scmp.lt.s32.totalorder %s27, 3
    %p607 = pnand %p605, %p606
    %p608 = pneg %p607
    // Predicated region
    $region101: #{hfllm_forward.1} parent=5 // pred_check
      _
    $region102: #{hfllm_forward.1} parent=5 // pred_check_branch
      %610 = sbr.rel (%p607) target = $region104
    $region103: #{hfllm_forward.1} parent=5 // pred_region
      %s611 = ssub.s32 %s27, 1
      %p612 = scmp.lt.s32.totalorder %s32, 1
      %s613 = scalar_select %p612, %s32, 1
      %s614 = smul.addr %s613, 3
      %s615 = smul.addr %s614, 8
      %s616 = scalar_lea.vmem %s0, %s615
      %p617 = pneg %p53
      %p618 = pneg %p50
      %p619 = scmp.lt.s32.totalorder %s32, 1
      %s620 = scalar_select %p619, %s32, 1
      %s621 = smul.addr %s620, 3
      %s622 = smul.addr %s621, 8
      %s623 = scalar_lea.vmem %s1, %s622
      %p624 = pneg %p79
      %p625 = pneg %p76
      %p626 = scmp.lt.s32.totalorder %s32, 1
      %s627 = scalar_select %p626, %s32, 1
      %s628 = smul.addr %s627, 4
      %s629 = scalar_lea.vmem %s2, %s628
      %p630 = pneg %p105
      %p631 = pneg %p102
      %p632 = pneg %p126
      %p633 = pneg %p123
      %p634 = pneg %p147
      %p635 = pneg %p144
      %p636 = pneg %p168
      %p637 = pneg %p165
      %p638 = pneg %p189
      %p639 = pneg %p186
      %p640 = pneg %p210
      %p641 = pneg %p207
      %p642 = pneg %p231
      %p643 = pneg %p228
      %p644 = pneg %p252
      %p645 = pneg %p249
      %p646 = pneg %p273
      %p647 = pneg %p270
      %p648 = pneg %p294
      %p649 = pneg %p291
      %p650 = pneg %p315
      %p651 = pneg %p312
      %p652 = pneg %p336
      %p653 = pneg %p333
      %p654 = pneg %p357
      %p655 = pneg %p354
      %p656 = pneg %p378
      %p657 = pneg %p375
      %p658 = pneg %p399
      %p659 = pneg %p396
      %p660 = pneg %p420
      %p661 = pneg %p417
      %p662 = pneg %p441
      %p663 = pneg %p438
      %p664 = pneg %p462
      %p665 = pneg %p459
      %p666 = pneg %p483
      %p667 = pneg %p480
      %p668 = pneg %p509
      %p669 = pneg %p506
      %p670 = scmp.lt.s32.totalorder %s32, 1
      %s671 = scalar_select %p670, %s32, 1
      %s672 = smul.addr %s671, 4
      %s673 = scalar_lea.vmem %s21, %s672
      %p674 = scmp.lt.s32.totalorder %s32, 1
      %s675 = scalar_select %p674, %s32, 1
      %s676 = smul.addr %s675, 3
      %s677 = smul.addr %s676, 8
      %s678 = scalar_lea.vmem %s0, %s677
      %p679 = scmp.lt.s32.totalorder %s32, 1
      %s680 = scalar_select %p679, %s32, 1
      %s681 = smul.addr %s680, 3
      %s682 = smul.addr %s681, 8
      %s683 = scalar_lea.vmem %s1, %s682
      %p684 = scmp.lt.s32.totalorder %s32, 1
      %s685 = scalar_select %p684, %s32, 1
      %s686 = smul.addr %s685, 4
      %s687 = scalar_lea.vmem %s2, %s686
      %p688 = scmp.lt.s32.totalorder %s32, 1
      %s689 = scalar_select %p688, %s32, 1
      %s690 = smul.addr %s689, 4
      %s691 = scalar_lea.vmem %s21, %s690
      %v692 = vld [vmem:[%s678] sm:$0xff]
      %v693 = vld [vmem:[%s678 + $0x8] sm:$0xff]
      %v694 = vld [vmem:[%s678 + $0x10] sm:$0xff]
      %v695 = vld [vmem:[%s683] sm:$0xff]
      %v696 = vld [vmem:[%s683 + $0x8] sm:$0xff]
      %v697 = vld [vmem:[%s683 + $0x10] sm:$0xff]
      %v698 = vld [vmem:[%s3] sm:$0x1]
      %v699 = vld [vmem:[%s4] sm:$0x1]
      %vm700 = vcmask 261120
      %v701 = vsel %vm700, %v692, 0.0
      %702 = vadd.xlane.f32.xlu0 %v701
      %v703 = vpop.xlane.xlu0 %702
      %v704 = vsel %vm700, %v693, 0.0
      %705 = vadd.xlane.f32.xlu0 %v704
      %v706 = vpop.xlane.xlu0 %705
      %v707 = vsel %vm700, %v694, 0.0
      %708 = vadd.xlane.f32.xlu0 %v707
      %v709 = vpop.xlane.xlu0 %708
      %v710 = vrcp.pop 32.0
      %v711 = vmul.f32 %v703, %v710
      %v712 = vmul.f32 %v706, %v710
      %v713 = vmul.f32 %v709, %v710
      %v714 = vsub.f32 %v692, %v711
      %v715 = vsub.f32 %v693, %v712
      %v716 = vsub.f32 %v694, %v713
      %v717 = vmul.f32 %v714, %v714
      %v718 = vmul.f32 %v715, %v715
      %v719 = vmul.f32 %v716, %v716
      %v720 = vsel %vm700, %v717, 0.0
      %721 = vadd.xlane.f32.xlu0 %v720
      %v722 = vpop.xlane.xlu0 %721
      %v723 = vsel %vm700, %v718, 0.0
      %724 = vadd.xlane.f32.xlu0 %v723
      %v725 = vpop.xlane.xlu0 %724
      %v726 = vsel %vm700, %v719, 0.0
      %727 = vadd.xlane.f32.xlu0 %v726
      %v728 = vpop.xlane.xlu0 %727
      %v729 = vmul.f32 %v722, %v710
      %v730 = vmul.f32 %v725, %v710
      %v731 = vmul.f32 %v728, %v710
      %v732 = vadd.f32 %v729, 1e-05
      %v733 = vadd.f32 %v730, 1e-05
      %v734 = vadd.f32 %v731, 1e-05
      %v735 = vrsqrt.pop %v732
      %v736 = vrsqrt.pop %v733
      %v737 = vrsqrt.pop %v734
      %v738 = vmul.f32 %v714, %v735
      %v739 = vmul.f32 %v715, %v736
      %v740 = vmul.f32 %v716, %v737
      %v742 = vlaneseq
      %v743 = vshrl.u32 %v742, 7
      %v744 = vsub.s32 0, %v743
      %v745 = vrot.slane %v698, %v744
      %v747 = vmul.f32 %v738, %v745
      %v748 = vmul.f32 %v739, %v745
      %v749 = vmul.f32 %v740, %v745
      %v751 = vlaneseq
      %v752 = vshrl.u32 %v751, 7
      %v753 = vsub.s32 0, %v752
      %v754 = vrot.slane %v699, %v753
      %v756 = vadd.f32 %v747, %v754
      %v757 = vadd.f32 %v748, %v754
      %v758 = vadd.f32 %v749, %v754
      %v759 = vld [vmem:[%s5] sm:$0xff]
      %v760 = vld [vmem:[%s5 + $0x8] sm:$0xff]
      %v761 = vld [vmem:[%s5 + $0x10] sm:$0xff]
      %v762 = vld [vmem:[%s5 + $0x18] sm:$0xff]
      %v763 = vld [vmem:[%s6] sm:$0x1]
      %v765 = vlaneseq
      %v766 = vshrl.u32 %v765, 7
      %v767 = vsub.s32 0, %v766
      %v768 = vrot.slane %v763, %v767
      %v771 = vsel %vm700, %v756, 0
      %v774 = vsel %vm700, %v757, 0
      %v777 = vsel %vm700, %v758, 0
      %779 = vmatprep.subr.mxu0 0.0
      %780 = vmatpush1.msra.mxu0 %v759
      %781 = vmatprep.subr.mxu0 0.0
      %782 = vmatpush1.msra.mxu0 %v760
      %783 = vmatprep.subr.mxu0 0.0
      %784 = vmatpush1.msra.mxu0 %v761
      %785 = vmatprep.subr.mxu0 0.0
      %786 = vmatpush1.msra.mxu0 %v762
      %787 = vmatprep.subr.mxu0 0.0
      %788 = vmatpush1.msra.mxu0 0.0
      %789 = vmatprep.subr.mxu0 0.0
      %790 = vmatpush1.msra.mxu0 0.0
      %791 = vmatprep.subr.mxu0 0.0
      %792 = vmatpush1.msra.mxu0 0.0
      %793 = vmatprep.subr.mxu0 0.0
      %794 = vmatpush1.msra.mxu0 0.0
      %795 = vmatprep.subr.mxu0 0.0
      %796 = vmatpush1.msra.mxu0 0.0
      %797 = vmatprep.subr.mxu0 0.0
      %798 = vmatpush1.msra.mxu0 0.0
      %799 = vmatprep.subr.mxu0 0.0
      %800 = vmatpush1.msra.mxu0 0.0
      %801 = vmatprep.subr.mxu0 0.0
      %802 = vmatpush1.msra.mxu0 0.0
      %803 = vmatprep.subr.mxu0 0.0
      %804 = vmatpush1.msra.mxu0 0.0
      %805 = vmatprep.subr.mxu0 0.0
      %806 = vmatpush1.msra.mxu0 0.0
      %807 = vmatprep.subr.mxu0 0.0
      %808 = vmatpush1.msra.mxu0 0.0
      %809 = vmatprep.subr.mxu0 0.0
      %810 = vmatpush1.msra.mxu0 0.0
      %811 = vmatprep.subr.mxu0 0.0
      %812 = vmatpush1.msra.mxu0 0.0
      %813 = vmatprep.subr.mxu0 0.0
      %814 = vmatpush1.msra.mxu0 0.0
      %815 = vmatprep.subr.mxu0 0.0
      %816 = vmatpush1.msra.mxu0 0.0
      %817 = vmatprep.subr.mxu0 0.0
      %818 = vmatpush1.msra.mxu0 0.0
      %819 = vmatprep.subr.mxu0 0.0
      %820 = vmatpush1.msra.mxu0 0.0
      %821 = vmatprep.subr.mxu0 0.0
      %822 = vmatpush1.msra.mxu0 0.0
      %823 = vmatprep.subr.mxu0 0.0
      %824 = vmatpush1.msra.mxu0 0.0
      %825 = vmatprep.subr.mxu0 0.0
      %826 = vmatpush1.msra.mxu0 0.0
      %827 = vmatprep.subr.mxu0 0.0
      %828 = vmatpush1.msra.mxu0 0.0
      %829 = vmatprep.subr.mxu0 0.0
      %830 = vmatpush1.msra.mxu0 0.0
      %831 = vmatprep.subr.mxu0 0.0
      %832 = vmatpush1.msra.mxu0 0.0
      %833 = vmatprep.subr.mxu0 0.0
      %834 = vmatpush1.msra.mxu0 0.0
      %835 = vmatprep.subr.mxu0 0.0
      %836 = vmatpush1.msra.mxu0 0.0
      %837 = vmatprep.subr.mxu0 0.0
      %838 = vmatpush1.msra.mxu0 0.0
      %839 = vmatprep.subr.mxu0 0.0
      %840 = vmatpush1.msra.mxu0 0.0
      %841 = vmatprep.subr.mxu0 0.0
      %842 = vmatpush1.msra.mxu0 0.0
      %843 = vmatprep.mubr.f32.mxu0 0.0
      %844 = vmatmul.mubr.f32.gmra.mrb[0].mxu0 %v771
      %v845 = vpop.f32.mrb[0].mxu0
      %v846 = vadd.f32 %v768, %v845
      %v847 = vpop.f32.mrb[0].mxu0
      %848 = vmatprep.mubr.f32.mxu0 0.0
      %849 = vmatmul.mubr.f32.gmra.mrb[0].mxu0 %v774
      %v850 = vpop.f32.mrb[0].mxu0
      %v851 = vadd.f32 %v768, %v850
      %v852 = vpop.f32.mrb[0].mxu0
      %853 = vmatprep.mubr.f32.mxu0 0.0
      %854 = vmatmul.mubr.f32.gmra.mrb[0].mxu0 %v777
      %v855 = vpop.f32.mrb[0].mxu0
      %v856 = vadd.f32 %v768, %v855
      %v857 = vpop.f32.mrb[0].mxu0
      %858 = vdwg.mxu0
      %v859 = vld [vmem:[%s7] sm:$0xff]
      %v860 = vld [vmem:[%s7 + $0x8] sm:$0xff]
      %v861 = vld [vmem:[%s7 + $0x10] sm:$0xff]
      %v862 = vld [vmem:[%s7 + $0x18] sm:$0xff]
      %v863 = vld [vmem:[%s8] sm:$0x1]
      %v865 = vlaneseq
      %v866 = vshrl.u32 %v865, 7
      %v867 = vsub.s32 0, %v866
      %v868 = vrot.slane %v863, %v867
      %870 = vmatprep.subr.mxu0 0.0
      %871 = vmatpush1.msra.mxu0 %v859
      %872 = vmatprep.subr.mxu0 0.0
      %873 = vmatpush1.msra.mxu0 %v860
      %874 = vmatprep.subr.mxu0 0.0
      %875 = vmatpush1.msra.mxu0 %v861
      %876 = vmatprep.subr.mxu0 0.0
      %877 = vmatpush1.msra.mxu0 %v862
      %878 = vmatprep.subr.mxu0 0.0
      %879 = vmatpush1.msra.mxu0 0.0
      %880 = vmatprep.subr.mxu0 0.0
      %881 = vmatpush1.msra.mxu0 0.0
      %882 = vmatprep.subr.mxu0 0.0
      %883 = vmatpush1.msra.mxu0 0.0
      %884 = vmatprep.subr.mxu0 0.0
      %885 = vmatpush1.msra.mxu0 0.0
      %886 = vmatprep.subr.mxu0 0.0
      %887 = vmatpush1.msra.mxu0 0.0
      %888 = vmatprep.subr.mxu0 0.0
      %889 = vmatpush1.msra.mxu0 0.0
      %890 = vmatprep.subr.mxu0 0.0
      %891 = vmatpush1.msra.mxu0 0.0
      %892 = vmatprep.subr.mxu0 0.0
      %893 = vmatpush1.msra.mxu0 0.0
      %894 = vmatprep.subr.mxu0 0.0
      %895 = vmatpush1.msra.mxu0 0.0
      %896 = vmatprep.subr.mxu0 0.0
      %897 = vmatpush1.msra.mxu0 0.0
      %898 = vmatprep.subr.mxu0 0.0
      %899 = vmatpush1.msra.mxu0 0.0
      %900 = vmatprep.subr.mxu0 0.0
      %901 = vmatpush1.msra.mxu0 0.0
      %902 = vmatprep.subr.mxu0 0.0
      %903 = vmatpush1.msra.mxu0 0.0
      %904 = vmatprep.subr.mxu0 0.0
      %905 = vmatpush1.msra.mxu0 0.0
      %906 = vmatprep.subr.mxu0 0.0
      %907 = vmatpush1.msra.mxu0 0.0
      %908 = vmatprep.subr.mxu0 0.0
      %909 = vmatpush1.msra.mxu0 0.0
      %910 = vmatprep.subr.mxu0 0.0
      %911 = vmatpush1.msra.mxu0 0.0
      %912 = vmatprep.subr.mxu0 0.0
      %913 = vmatpush1.msra.mxu0 0.0
      %914 = vmatprep.subr.mxu0 0.0
      %915 = vmatpush1.msra.mxu0 0.0
      %916 = vmatprep.subr.mxu0 0.0
      %917 = vmatpush1.msra.mxu0 0.0
      %918 = vmatprep.subr.mxu0 0.0
      %919 = vmatpush1.msra.mxu0 0.0
      %920 = vmatprep.subr.mxu0 0.0
      %921 = vmatpush1.msra.mxu0 0.0
      %922 = vmatprep.subr.mxu0 0.0
      %923 = vmatpush1.msra.mxu0 0.0
      %924 = vmatprep.subr.mxu0 0.0
      %925 = vmatpush1.msra.mxu0 0.0
      %926 = vmatprep.subr.mxu0 0.0
      %927 = vmatpush1.msra.mxu0 0.0
      %928 = vmatprep.subr.mxu0 0.0
      %929 = vmatpush1.msra.mxu0 0.0
      %930 = vmatprep.subr.mxu0 0.0
      %931 = vmatpush1.msra.mxu0 0.0
      %932 = vmatprep.subr.mxu0 0.0
      %933 = vmatpush1.msra.mxu0 0.0
      %934 = vmatprep.mubr.f32.mxu0 0.0
      %935 = vmatmul.mubr.f32.gmra.mrb[0].mxu0 %v771
      %v936 = vpop.f32.mrb[0].mxu0
      %v937 = vadd.f32 %v868, %v936
      %v938 = vpop.f32.mrb[0].mxu0
      %939 = vmatprep.mubr.f32.mxu0 0.0
      %940 = vmatmul.mubr.f32.gmra.mrb[0].mxu0 %v774
      %v941 = vpop.f32.mrb[0].mxu0
      %v942 = vadd.f32 %v868, %v941
      %v943 = vpop.f32.mrb[0].mxu0
      %944 = vmatprep.mubr.f32.mxu0 0.0
      %945 = vmatmul.mubr.f32.gmra.mrb[0].mxu0 %v777
      %v946 = vpop.f32.mrb[0].mxu0
      %v947 = vadd.f32 %v868, %v946
      %v948 = vpop.f32.mrb[0].mxu0
      %949 = vdwg.mxu0
      %v950 = vld [vmem:[%s9] sm:$0xff]
      %v951 = vld [vmem:[%s9 + $0x8] sm:$0xff]
      %v952 = vld [vmem:[%s9 + $0x10] sm:$0xff]
      %v953 = vld [vmem:[%s9 + $0x18] sm:$0xff]
      %v954 = vld [vmem:[%s10] sm:$0x1]
      %v956 = vlaneseq
      %v957 = vshrl.u32 %v956, 7
      %v958 = vsub.s32 0, %v957
      %v959 = vrot.slane %v954, %v958
      %961 = vmatprep.subr.mxu0 0.0
      %962 = vmatpush1.msra.mxu0 %v950
      %963 = vmatprep.subr.mxu0 0.0
      %964 = vmatpush1.msra.mxu0 %v951
      %965 = vmatprep.subr.mxu0 0.0
      %966 = vmatpush1.msra.mxu0 %v952
      %967 = vmatprep.subr.mxu0 0.0
      %968 = vmatpush1.msra.mxu0 %v953
      %969 = vmatprep.subr.mxu0 0.0
      %970 = vmatpush1.msra.mxu0 0.0
      %971 = vmatprep.subr.mxu0 0.0
      %972 = vmatpush1.msra.mxu0 0.0
      %973 = vmatprep.subr.mxu0 0.0
      %974 = vmatpush1.msra.mxu0 0.0
      %975 = vmatprep.subr.mxu0 0.0
      %976 = vmatpush1.msra.mxu0 0.0
      %977 = vmatprep.subr.mxu0 0.0
      %978 = vmatpush1.msra.mxu0 0.0
      %979 = vmatprep.subr.mxu0 0.0
      %980 = vmatpush1.msra.mxu0 0.0
      %981 = vmatprep.subr.mxu0 0.0
      %982 = vmatpush1.msra.mxu0 0.0
      %983 = vmatprep.subr.mxu0 0.0
      %984 = vmatpush1.msra.mxu0 0.0
      %985 = vmatprep.subr.mxu0 0.0
      %986 = vmatpush1.msra.mxu0 0.0
      %987 = vmatprep.subr.mxu0 0.0
      %988 = vmatpush1.msra.mxu0 0.0
      %989 = vmatprep.subr.mxu0 0.0
      %990 = vmatpush1.msra.mxu0 0.0
      %991 = vmatprep.subr.mxu0 0.0
      %992 = vmatpush1.msra.mxu0 0.0
      %993 = vmatprep.subr.mxu0 0.0
      %994 = vmatpush1.msra.mxu0 0.0
      %995 = vmatprep.subr.mxu0 0.0
      %996 = vmatpush1.msra.mxu0 0.0
      %997 = vmatprep.subr.mxu0 0.0
      %998 = vmatpush1.msra.mxu0 0.0
      %999 = vmatprep.subr.mxu0 0.0
      %1000 = vmatpush1.msra.mxu0 0.0
      %1001 = vmatprep.subr.mxu0 0.0
      %1002 = vmatpush1.msra.mxu0 0.0
      %1003 = vmatprep.subr.mxu0 0.0
      %1004 = vmatpush1.msra.mxu0 0.0
      %1005 = vmatprep.subr.mxu0 0.0
      %1006 = vmatpush1.msra.mxu0 0.0
      %1007 = vmatprep.subr.mxu0 0.0
      %1008 = vmatpush1.msra.mxu0 0.0
      %1009 = vmatprep.subr.mxu0 0.0
      %1010 = vmatpush1.msra.mxu0 0.0
      %1011 = vmatprep.subr.mxu0 0.0
      %1012 = vmatpush1.msra.mxu0 0.0
      %1013 = vmatprep.subr.mxu0 0.0
      %1014 = vmatpush1.msra.mxu0 0.0
      %1015 = vmatprep.subr.mxu0 0.0
      %1016 = vmatpush1.msra.mxu0 0.0
      %1017 = vmatprep.subr.mxu0 0.0
      %1018 = vmatpush1.msra.mxu0 0.0
      %1019 = vmatprep.subr.mxu0 0.0
      %1020 = vmatpush1.msra.mxu0 0.0
      %1021 = vmatprep.subr.mxu0 0.0
      %1022 = vmatpush1.msra.mxu0 0.0
      %1023 = vmatprep.subr.mxu0 0.0
      %1024 = vmatpush1.msra.mxu0 0.0
      %1025 = vmatprep.mubr.f32.mxu0 0.0
      %1026 = vmatmul.mubr.f32.gmra.mrb[0].mxu0 %v771
      %v1027 = vpop.f32.mrb[0].mxu0
      %v1028 = vadd.f32 %v959, %v1027
      %v1029 = vpop.f32.mrb[0].mxu0
      %1030 = vmatprep.mubr.f32.mxu0 0.0
      %1031 = vmatmul.mubr.f32.gmra.mrb[0].mxu0 %v774
      %v1032 = vpop.f32.mrb[0].mxu0
      %v1033 = vadd.f32 %v959, %v1032
      %v1034 = vpop.f32.mrb[0].mxu0
      %1035 = vmatprep.mubr.f32.mxu0 0.0
      %1036 = vmatmul.mubr.f32.gmra.mrb[0].mxu0 %v777
      %v1037 = vpop.f32.mrb[0].mxu0
      %v1038 = vadd.f32 %v959, %v1037
      %v1039 = vpop.f32.mrb[0].mxu0
      %1040 = vdwg.mxu0
      %vm1041 = vcmask 64512
      %v1043 = vsel %vm1041, %v846, 0
      %v1046 = vsel %vm1041, %v937, 0
      %1048 = vmatprep.subr.mxu0 0.0
      %1049 = vmatpush1.xpose.msra.mxu0 %v1046
      %1050 = vmatprep.subr.mxu0 0.0
      %1051 = vmatpush1.xpose.msra.mxu0 0.0
      %1052 = vmatprep.subr.mxu0 0.0
      %1053 = vmatpush1.xpose.msra.mxu0 0.0
      %1054 = vmatprep.subr.mxu0 0.0
      %1055 = vmatpush1.xpose.msra.mxu0 0.0
      %1056 = vmatprep.subr.mxu0 0.0
      %1057 = vmatpush1.xpose.msra.mxu0 0.0
      %1058 = vmatprep.subr.mxu0 0.0
      %1059 = vmatpush1.xpose.msra.mxu0 0.0
      %1060 = vmatprep.subr.mxu0 0.0
      %1061 = vmatpush1.xpose.msra.mxu0 0.0
      %1062 = vmatprep.subr.mxu0 0.0
      %1063 = vmatpush1.xpose.msra.mxu0 0.0
      %1064 = vmatprep.subr.mxu0 0.0
      %1065 = vmatpush1.xpose.msra.mxu0 0.0
      %1066 = vmatprep.subr.mxu0 0.0
      %1067 = vmatpush1.xpose.msra.mxu0 0.0
      %1068 = vmatprep.subr.mxu0 0.0
      %1069 = vmatpush1.xpose.msra.mxu0 0.0
      %1070 = vmatprep.subr.mxu0 0.0
      %1071 = vmatpush1.xpose.msra.mxu0 0.0
      %1072 = vmatprep.subr.mxu0 0.0
      %1073 = vmatpush1.xpose.msra.mxu0 0.0
      %1074 = vmatprep.subr.mxu0 0.0
      %1075 = vmatpush1.xpose.msra.mxu0 0.0
      %1076 = vmatprep.subr.mxu0 0.0
      %1077 = vmatpush1.xpose.msra.mxu0 0.0
      %1078 = vmatprep.subr.mxu0 0.0
      %1079 = vmatpush1.xpose.msra.mxu0 0.0
      %1080 = vmatprep.subr.mxu0 0.0
      %1081 = vmatpush1.xpose.msra.mxu0 0.0
      %1082 = vmatprep.subr.mxu0 0.0
      %1083 = vmatpush1.xpose.msra.mxu0 0.0
      %1084 = vmatprep.subr.mxu0 0.0
      %1085 = vmatpush1.xpose.msra.mxu0 0.0
      %1086 = vmatprep.subr.mxu0 0.0
      %1087 = vmatpush1.xpose.msra.mxu0 0.0
      %1088 = vmatprep.subr.mxu0 0.0
      %1089 = vmatpush1.xpose.msra.mxu0 0.0
      %1090 = vmatprep.subr.mxu0 0.0
      %1091 = vmatpush1.xpose.msra.mxu0 0.0
      %1092 = vmatprep.subr.mxu0 0.0
      %1093 = vmatpush1.xpose.msra.mxu0 0.0
      %1094 = vmatprep.subr.mxu0 0.0
      %1095 = vmatpush1.xpose.msra.mxu0 0.0
      %1096 = vmatprep.subr.mxu0 0.0
      %1097 = vmatpush1.xpose.msra.mxu0 0.0
      %1098 = vmatprep.subr.mxu0 0.0
      %1099 = vmatpush1.xpose.msra.mxu0 0.0
      %1100 = vmatprep.subr.mxu0 0.0
      %1101 = vmatpush1.xpose.msra.mxu0 0.0
      %1102 = vmatprep.subr.mxu0 0.0
      %1103 = vmatpush1.xpose.msra.mxu0 0.0
      %1104 = vmatprep.subr.mxu0 0.0
      %1105 = vmatpush1.xpose.msra.mxu0 0.0
      %1106 = vmatprep.subr.mxu0 0.0
      %1107 = vmatpush1.xpose.msra.mxu0 0.0
      %1108 = vmatprep.subr.mxu0 0.0
      %1109 = vmatpush1.xpose.msra.mxu0 0.0
      %1110 = vmatprep.subr.mxu0 0.0
      %1111 = vmatpush1.xpose.msra.mxu0 0.0
      %1112 = vmatprep.mubr.f32.mxu0 0.0
      %1113 = vmatmul.mubr.f32.gmra.mrb[0].mxu0 %v1043
      %v1114 = vpop.f32.mrb[0].mxu0
      %v1115 = vadd.f32 0.0, %v1114
      %v1116 = vpop.f32.mrb[0].mxu0
      %1117 = vdwg.mxu0
      %v1119 = vsel %vm1041, %v851, 0
      %v1122 = vsel %vm1041, %v942, 0
      %1124 = vmatprep.subr.mxu0 0.0
      %1125 = vmatpush1.xpose.msra.mxu0 %v1122
      %1126 = vmatprep.subr.mxu0 0.0
      %1127 = vmatpush1.xpose.msra.mxu0 0.0
      %1128 = vmatprep.subr.mxu0 0.0
      %1129 = vmatpush1.xpose.msra.mxu0 0.0
      %1130 = vmatprep.subr.mxu0 0.0
      %1131 = vmatpush1.xpose.msra.mxu0 0.0
      %1132 = vmatprep.subr.mxu0 0.0
      %1133 = vmatpush1.xpose.msra.mxu0 0.0
      %1134 = vmatprep.subr.mxu0 0.0
      %1135 = vmatpush1.xpose.msra.mxu0 0.0
      %1136 = vmatprep.subr.mxu0 0.0
      %1137 = vmatpush1.xpose.msra.mxu0 0.0
      %1138 = vmatprep.subr.mxu0 0.0
      %1139 = vmatpush1.xpose.msra.mxu0 0.0
      %1140 = vmatprep.subr.mxu0 0.0
      %1141 = vmatpush1.xpose.msra.mxu0 0.0
      %1142 = vmatprep.subr.mxu0 0.0
      %1143 = vmatpush1.xpose.msra.mxu0 0.0
      %1144 = vmatprep.subr.mxu0 0.0
      %1145 = vmatpush1.xpose.msra.mxu0 0.0
      %1146 = vmatprep.subr.mxu0 0.0
      %1147 = vmatpush1.xpose.msra.mxu0 0.0
      %1148 = vmatprep.subr.mxu0 0.0
      %1149 = vmatpush1.xpose.msra.mxu0 0.0
      %1150 = vmatprep.subr.mxu0 0.0
      %1151 = vmatpush1.xpose.msra.mxu0 0.0
      %1152 = vmatprep.subr.mxu0 0.0
      %1153 = vmatpush1.xpose.msra.mxu0 0.0
      %1154 = vmatprep.subr.mxu0 0.0
      %1155 = vmatpush1.xpose.msra.mxu0 0.0
      %1156 = vmatprep.subr.mxu0 0.0
      %1157 = vmatpush1.xpose.msra.mxu0 0.0
      %1158 = vmatprep.subr.mxu0 0.0
      %1159 = vmatpush1.xpose.msra.mxu0 0.0
      %1160 = vmatprep.subr.mxu0 0.0
      %1161 = vmatpush1.xpose.msra.mxu0 0.0
      %1162 = vmatprep.subr.mxu0 0.0
      %1163 = vmatpush1.xpose.msra.mxu0 0.0
      %1164 = vmatprep.subr.mxu0 0.0
      %1165 = vmatpush1.xpose.msra.mxu0 0.0
      %1166 = vmatprep.subr.mxu0 0.0
      %1167 = vmatpush1.xpose.msra.mxu0 0.0
      %1168 = vmatprep.subr.mxu0 0.0
      %1169 = vmatpush1.xpose.msra.mxu0 0.0
      %1170 = vmatprep.subr.mxu0 0.0
      %1171 = vmatpush1.xpose.msra.mxu0 0.0
      %1172 = vmatprep.subr.mxu0 0.0
      %1173 = vmatpush1.xpose.msra.mxu0 0.0
      %1174 = vmatprep.subr.mxu0 0.0
      %1175 = vmatpush1.xpose.msra.mxu0 0.0
      %1176 = vmatprep.subr.mxu0 0.0
      %1177 = vmatpush1.xpose.msra.mxu0 0.0
      %1178 = vmatprep.subr.mxu0 0.0
      %1179 = vmatpush1.xpose.msra.mxu0 0.0
      %1180 = vmatprep.subr.mxu0 0.0
      %1181 = vmatpush1.xpose.msra.mxu0 0.0
      %1182 = vmatprep.subr.mxu0 0.0
      %1183 = vmatpush1.xpose.msra.mxu0 0.0
      %1184 = vmatprep.subr.mxu0 0.0
      %1185 = vmatpush1.xpose.msra.mxu0 0.0
      %1186 = vmatprep.subr.mxu0 0.0
      %1187 = vmatpush1.xpose.msra.mxu0 0.0
      %1188 = vmatprep.mubr.f32.mxu0 0.0
      %1189 = vmatmul.mubr.f32.gmra.mrb[0].mxu0 %v1119
      %v1190 = vpop.f32.mrb[0].mxu0
      %v1191 = vadd.f32 0.0, %v1190
      %v1192 = vpop.f32.mrb[0].mxu0
      %1193 = vdwg.mxu0
      %v1195 = vsel %vm1041, %v856, 0
      %v1198 = vsel %vm1041, %v947, 0
      %1200 = vmatprep.subr.mxu0 0.0
      %1201 = vmatpush1.xpose.msra.mxu0 %v1198
      %1202 = vmatprep.subr.mxu0 0.0
      %1203 = vmatpush1.xpose.msra.mxu0 0.0
      %1204 = vmatprep.subr.mxu0 0.0
      %1205 = vmatpush1.xpose.msra.mxu0 0.0
      %1206 = vmatprep.subr.mxu0 0.0
      %1207 = vmatpush1.xpose.msra.mxu0 0.0
      %1208 = vmatprep.subr.mxu0 0.0
      %1209 = vmatpush1.xpose.msra.mxu0 0.0
      %1210 = vmatprep.subr.mxu0 0.0
      %1211 = vmatpush1.xpose.msra.mxu0 0.0
      %1212 = vmatprep.subr.mxu0 0.0
      %1213 = vmatpush1.xpose.msra.mxu0 0.0
      %1214 = vmatprep.subr.mxu0 0.0
      %1215 = vmatpush1.xpose.msra.mxu0 0.0
      %1216 = vmatprep.subr.mxu0 0.0
      %1217 = vmatpush1.xpose.msra.mxu0 0.0
      %1218 = vmatprep.subr.mxu0 0.0
      %1219 = vmatpush1.xpose.msra.mxu0 0.0
      %1220 = vmatprep.subr.mxu0 0.0
      %1221 = vmatpush1.xpose.msra.mxu0 0.0
      %1222 = vmatprep.subr.mxu0 0.0
      %1223 = vmatpush1.xpose.msra.mxu0 0.0
      %1224 = vmatprep.subr.mxu0 0.0
      %1225 = vmatpush1.xpose.msra.mxu0 0.0
      %1226 = vmatprep.subr.mxu0 0.0
      %1227 = vmatpush1.xpose.msra.mxu0 0.0
      %1228 = vmatprep.subr.mxu0 0.0
      %1229 = vmatpush1.xpose.msra.mxu0 0.0
      %1230 = vmatprep.subr.mxu0 0.0
      %1231 = vmatpush1.xpose.msra.mxu0 0.0
      %1232 = vmatprep.subr.mxu0 0.0
      %1233 = vmatpush1.xpose.msra.mxu0 0.0
      %1234 = vmatprep.subr.mxu0 0.0
      %1235 = vmatpush1.xpose.msra.mxu0 0.0
      %1236 = vmatprep.subr.mxu0 0.0
      %1237 = vmatpush1.xpose.msra.mxu0 0.0
      %1238 = vmatprep.subr.mxu0 0.0
      %1239 = vmatpush1.xpose.msra.mxu0 0.0
      %1240 = vmatprep.subr.mxu0 0.0
      %1241 = vmatpush1.xpose.msra.mxu0 0.0
      %1242 = vmatprep.subr.mxu0 0.0
      %1243 = vmatpush1.xpose.msra.mxu0 0.0
      %1244 = vmatprep.subr.mxu0 0.0
      %1245 = vmatpush1.xpose.msra.mxu0 0.0
      %1246 = vmatprep.subr.mxu0 0.0
      %1247 = vmatpush1.xpose.msra.mxu0 0.0
      %1248 = vmatprep.subr.mxu0 0.0
      %1249 = vmatpush1.xpose.msra.mxu0 0.0
      %1250 = vmatprep.subr.mxu0 0.0
      %1251 = vmatpush1.xpose.msra.mxu0 0.0
      %1252 = vmatprep.subr.mxu0 0.0
      %1253 = vmatpush1.xpose.msra.mxu0 0.0
      %1254 = vmatprep.subr.mxu0 0.0
      %1255 = vmatpush1.xpose.msra.mxu0 0.0
      %1256 = vmatprep.subr.mxu0 0.0
      %1257 = vmatpush1.xpose.msra.mxu0 0.0
      %1258 = vmatprep.subr.mxu0 0.0
      %1259 = vmatpush1.xpose.msra.mxu0 0.0
      %1260 = vmatprep.subr.mxu0 0.0
      %1261 = vmatpush1.xpose.msra.mxu0 0.0
      %1262 = vmatprep.subr.mxu0 0.0
      %1263 = vmatpush1.xpose.msra.mxu0 0.0
      %1264 = vmatprep.mubr.f32.mxu0 0.0
      %1265 = vmatmul.mubr.f32.gmra.mrb[0].mxu0 %v1195
      %v1266 = vpop.f32.mrb[0].mxu0
      %v1267 = vadd.f32 0.0, %v1266
      %v1268 = vpop.f32.mrb[0].mxu0
      %1269 = vdwg.mxu0
      %v1270 = vmul.f32 %v1115, 0.35355338
      %v1271 = vmul.f32 %v1191, 0.35355338
      %v1272 = vmul.f32 %v1267, 0.35355338
      %v1273 = vadd.f32 %v1270, %v695
      %v1274 = vadd.f32 %v1271, %v696
      %v1275 = vadd.f32 %v1272, %v697
      %v1276 = vsel %vm1041, %v1273, -inf
      %1277 = vmax.xlane.f32.xlu0 %v1276
      %v1278 = vpop.xlane.xlu0 %1277
      %v1279 = vsel %vm1041, %v1274, -inf
      %1280 = vmax.xlane.f32.xlu0 %v1279
      %v1281 = vpop.xlane.xlu0 %1280
      %v1282 = vsel %vm1041, %v1275, -inf
      %1283 = vmax.xlane.f32.xlu0 %v1282
      %v1284 = vpop.xlane.xlu0 %1283
      %v1285 = vsub.f32 %v1273, %v1278
      %v1286 = vsub.f32 %v1274, %v1281
      %v1287 = vsub.f32 %v1275, %v1284
      %v1288 = vmul.f32 %v1285, 1.442695
      %v1289 = vpow.pop %v1288
      %v1290 = vmul.f32 %v1286, 1.442695
      %v1291 = vpow.pop %v1290
      %v1292 = vmul.f32 %v1287, 1.442695
      %v1293 = vpow.pop %v1292
      %v1294 = vsel %vm1041, %v1289, 0.0
      %1295 = vadd.xlane.f32.xlu0 %v1294
      %v1296 = vpop.xlane.xlu0 %1295
      %v1297 = vsel %vm1041, %v1291, 0.0
      %1298 = vadd.xlane.f32.xlu0 %v1297
      %v1299 = vpop.xlane.xlu0 %1298
      %v1300 = vsel %vm1041, %v1293, 0.0
      %1301 = vadd.xlane.f32.xlu0 %v1300
      %v1302 = vpop.xlane.xlu0 %1301
      %v1303 = vrcp.pop %v1296
      %v1304 = vrcp.pop %v1299
      %v1305 = vrcp.pop %v1302
      %v1306 = vmul.f32 %v1289, %v1303
      %v1307 = vmul.f32 %v1291, %v1304
      %v1308 = vmul.f32 %v1293, %v1305
      %v1310 = vsel %vm1041, %v1306, 0
      %1312 = vmatprep.subr.mxu0 0.0
      %1313 = vmatpush1.msra.mxu0 %v1028
      %1314 = vmatprep.subr.mxu0 0.0
      %1315 = vmatpush1.msra.mxu0 0.0
      %1316 = vmatprep.subr.mxu0 0.0
      %1317 = vmatpush1.msra.mxu0 0.0
      %1318 = vmatprep.subr.mxu0 0.0
      %1319 = vmatpush1.msra.mxu0 0.0
      %1320 = vmatprep.subr.mxu0 0.0
      %1321 = vmatpush1.msra.mxu0 0.0
      %1322 = vmatprep.subr.mxu0 0.0
      %1323 = vmatpush1.msra.mxu0 0.0
      %1324 = vmatprep.subr.mxu0 0.0
      %1325 = vmatpush1.msra.mxu0 0.0
      %1326 = vmatprep.subr.mxu0 0.0
      %1327 = vmatpush1.msra.mxu0 0.0
      %1328 = vmatprep.subr.mxu0 0.0
      %1329 = vmatpush1.msra.mxu0 0.0
      %1330 = vmatprep.subr.mxu0 0.0
      %1331 = vmatpush1.msra.mxu0 0.0
      %1332 = vmatprep.subr.mxu0 0.0
      %1333 = vmatpush1.msra.mxu0 0.0
      %1334 = vmatprep.subr.mxu0 0.0
      %1335 = vmatpush1.msra.mxu0 0.0
      %1336 = vmatprep.subr.mxu0 0.0
      %1337 = vmatpush1.msra.mxu0 0.0
      %1338 = vmatprep.subr.mxu0 0.0
      %1339 = vmatpush1.msra.mxu0 0.0
      %1340 = vmatprep.subr.mxu0 0.0
      %1341 = vmatpush1.msra.mxu0 0.0
      %1342 = vmatprep.subr.mxu0 0.0
      %1343 = vmatpush1.msra.mxu0 0.0
      %1344 = vmatprep.subr.mxu0 0.0
      %1345 = vmatpush1.msra.mxu0 0.0
      %1346 = vmatprep.subr.mxu0 0.0
      %1347 = vmatpush1.msra.mxu0 0.0
      %1348 = vmatprep.subr.mxu0 0.0
      %1349 = vmatpush1.msra.mxu0 0.0
      %1350 = vmatprep.subr.mxu0 0.0
      %1351 = vmatpush1.msra.mxu0 0.0
      %1352 = vmatprep.subr.mxu0 0.0
      %1353 = vmatpush1.msra.mxu0 0.0
      %1354 = vmatprep.subr.mxu0 0.0
      %1355 = vmatpush1.msra.mxu0 0.0
      %1356 = vmatprep.subr.mxu0 0.0
      %1357 = vmatpush1.msra.mxu0 0.0
      %1358 = vmatprep.subr.mxu0 0.0
      %1359 = vmatpush1.msra.mxu0 0.0
      %1360 = vmatprep.subr.mxu0 0.0
      %1361 = vmatpush1.msra.mxu0 0.0
      %1362 = vmatprep.subr.mxu0 0.0
      %1363 = vmatpush1.msra.mxu0 0.0
      %1364 = vmatprep.subr.mxu0 0.0
      %1365 = vmatpush1.msra.mxu0 0.0
      %1366 = vmatprep.subr.mxu0 0.0
      %1367 = vmatpush1.msra.mxu0 0.0
      %1368 = vmatprep.subr.mxu0 0.0
      %1369 = vmatpush1.msra.mxu0 0.0
      %1370 = vmatprep.subr.mxu0 0.0
      %1371 = vmatpush1.msra.mxu0 0.0
      %1372 = vmatprep.subr.mxu0 0.0
      %1373 = vmatpush1.msra.mxu0 0.0
      %1374 = vmatprep.subr.mxu0 0.0
      %1375 = vmatpush1.msra.mxu0 0.0
      %1376 = vmatprep.mubr.f32.mxu0 0.0
      %1377 = vmatmul.mubr.f32.gmra.mrb[0].mxu0 %v1310
      %v1378 = vpop.f32.mrb[0].mxu0
      %v1379 = vadd.f32 0.0, %v1378
      %v1380 = vpop.f32.mrb[0].mxu0
      %1381 = vdwg.mxu0
      %v1383 = vsel %vm1041, %v1307, 0
      %1385 = vmatprep.subr.mxu0 0.0
      %1386 = vmatpush1.msra.mxu0 %v1033
      %1387 = vmatprep.subr.mxu0 0.0
      %1388 = vmatpush1.msra.mxu0 0.0
      %1389 = vmatprep.subr.mxu0 0.0
      %1390 = vmatpush1.msra.mxu0 0.0
      %1391 = vmatprep.subr.mxu0 0.0
      %1392 = vmatpush1.msra.mxu0 0.0
      %1393 = vmatprep.subr.mxu0 0.0
      %1394 = vmatpush1.msra.mxu0 0.0
      %1395 = vmatprep.subr.mxu0 0.0
      %1396 = vmatpush1.msra.mxu0 0.0
      %1397 = vmatprep.subr.mxu0 0.0
      %1398 = vmatpush1.msra.mxu0 0.0
      %1399 = vmatprep.subr.mxu0 0.0
      %1400 = vmatpush1.msra.mxu0 0.0
      %1401 = vmatprep.subr.mxu0 0.0
      %1402 = vmatpush1.msra.mxu0 0.0
      %1403 = vmatprep.subr.mxu0 0.0
      %1404 = vmatpush1.msra.mxu0 0.0
      %1405 = vmatprep.subr.mxu0 0.0
      %1406 = vmatpush1.msra.mxu0 0.0
      %1407 = vmatprep.subr.mxu0 0.0
      %1408 = vmatpush1.msra.mxu0 0.0
      %1409 = vmatprep.subr.mxu0 0.0
      %1410 = vmatpush1.msra.mxu0 0.0
      %1411 = vmatprep.subr.mxu0 0.0
      %1412 = vmatpush1.msra.mxu0 0.0
      %1413 = vmatprep.subr.mxu0 0.0
      %1414 = vmatpush1.msra.mxu0 0.0
      %1415 = vmatprep.subr.mxu0 0.0
      %1416 = vmatpush1.msra.mxu0 0.0
      %1417 = vmatprep.subr.mxu0 0.0
      %1418 = vmatpush1.msra.mxu0 0.0
      %1419 = vmatprep.subr.mxu0 0.0
      %1420 = vmatpush1.msra.mxu0 0.0
      %1421 = vmatprep.subr.mxu0 0.0
      %1422 = vmatpush1.msra.mxu0 0.0
      %1423 = vmatprep.subr.mxu0 0.0
      %1424 = vmatpush1.msra.mxu0 0.0
      %1425 = vmatprep.subr.mxu0 0.0
      %1426 = vmatpush1.msra.mxu0 0.0
      %1427 = vmatprep.subr.mxu0 0.0
      %1428 = vmatpush1.msra.mxu0 0.0
      %1429 = vmatprep.subr.mxu0 0.0
      %1430 = vmatpush1.msra.mxu0 0.0
      %1431 = vmatprep.subr.mxu0 0.0
      %1432 = vmatpush1.msra.mxu0 0.0
      %1433 = vmatprep.subr.mxu0 0.0
      %1434 = vmatpush1.msra.mxu0 0.0
      %1435 = vmatprep.subr.mxu0 0.0
      %1436 = vmatpush1.msra.mxu0 0.0
      %1437 = vmatprep.subr.mxu0 0.0
      %1438 = vmatpush1.msra.mxu0 0.0
      %1439 = vmatprep.subr.mxu0 0.0
      %1440 = vmatpush1.msra.mxu0 0.0
      %1441 = vmatprep.subr.mxu0 0.0
      %1442 = vmatpush1.msra.mxu0 0.0
      %1443 = vmatprep.subr.mxu0 0.0
      %1444 = vmatpush1.msra.mxu0 0.0
      %1445 = vmatprep.subr.mxu0 0.0
      %1446 = vmatpush1.msra.mxu0 0.0
      %1447 = vmatprep.subr.mxu0 0.0
      %1448 = vmatpush1.msra.mxu0 0.0
      %1449 = vmatprep.mubr.f32.mxu0 0.0
      %1450 = vmatmul.mubr.f32.gmra.mrb[0].mxu0 %v1383
      %v1451 = vpop.f32.mrb[0].mxu0
      %v1452 = vadd.f32 0.0, %v1451
      %v1453 = vpop.f32.mrb[0].mxu0
      %1454 = vdwg.mxu0
      %v1456 = vsel %vm1041, %v1308, 0
      %1458 = vmatprep.subr.mxu0 0.0
      %1459 = vmatpush1.msra.mxu0 %v1038
      %1460 = vmatprep.subr.mxu0 0.0
      %1461 = vmatpush1.msra.mxu0 0.0
      %1462 = vmatprep.subr.mxu0 0.0
      %1463 = vmatpush1.msra.mxu0 0.0
      %1464 = vmatprep.subr.mxu0 0.0
      %1465 = vmatpush1.msra.mxu0 0.0
      %1466 = vmatprep.subr.mxu0 0.0
      %1467 = vmatpush1.msra.mxu0 0.0
      %1468 = vmatprep.subr.mxu0 0.0
      %1469 = vmatpush1.msra.mxu0 0.0
      %1470 = vmatprep.subr.mxu0 0.0
      %1471 = vmatpush1.msra.mxu0 0.0
      %1472 = vmatprep.subr.mxu0 0.0
      %1473 = vmatpush1.msra.mxu0 0.0
      %1474 = vmatprep.subr.mxu0 0.0
      %1475 = vmatpush1.msra.mxu0 0.0
      %1476 = vmatprep.subr.mxu0 0.0
      %1477 = vmatpush1.msra.mxu0 0.0
      %1478 = vmatprep.subr.mxu0 0.0
      %1479 = vmatpush1.msra.mxu0 0.0
      %1480 = vmatprep.subr.mxu0 0.0
      %1481 = vmatpush1.msra.mxu0 0.0
      %1482 = vmatprep.subr.mxu0 0.0
      %1483 = vmatpush1.msra.mxu0 0.0
      %1484 = vmatprep.subr.mxu0 0.0
      %1485 = vmatpush1.msra.mxu0 0.0
      %1486 = vmatprep.subr.mxu0 0.0
      %1487 = vmatpush1.msra.mxu0 0.0
      %1488 = vmatprep.subr.mxu0 0.0
      %1489 = vmatpush1.msra.mxu0 0.0
      %1490 = vmatprep.subr.mxu0 0.0
      %1491 = vmatpush1.msra.mxu0 0.0
      %1492 = vmatprep.subr.mxu0 0.0
      %1493 = vmatpush1.msra.mxu0 0.0
      %1494 = vmatprep.subr.mxu0 0.0
      %1495 = vmatpush1.msra.mxu0 0.0
      %1496 = vmatprep.subr.mxu0 0.0
      %1497 = vmatpush1.msra.mxu0 0.0
      %1498 = vmatprep.subr.mxu0 0.0
      %1499 = vmatpush1.msra.mxu0 0.0
      %1500 = vmatprep.subr.mxu0 0.0
      %1501 = vmatpush1.msra.mxu0 0.0
      %1502 = vmatprep.subr.mxu0 0.0
      %1503 = vmatpush1.msra.mxu0 0.0
      %1504 = vmatprep.subr.mxu0 0.0
      %1505 = vmatpush1.msra.mxu0 0.0
      %1506 = vmatprep.subr.mxu0 0.0
      %1507 = vmatpush1.msra.mxu0 0.0
      %1508 = vmatprep.subr.mxu0 0.0
      %1509 = vmatpush1.msra.mxu0 0.0
      %1510 = vmatprep.subr.mxu0 0.0
      %1511 = vmatpush1.msra.mxu0 0.0
      %1512 = vmatprep.subr.mxu0 0.0
      %1513 = vmatpush1.msra.mxu0 0.0
      %1514 = vmatprep.subr.mxu0 0.0
      %1515 = vmatpush1.msra.mxu0 0.0
      %1516 = vmatprep.subr.mxu0 0.0
      %1517 = vmatpush1.msra.mxu0 0.0
      %1518 = vmatprep.subr.mxu0 0.0
      %1519 = vmatpush1.msra.mxu0 0.0
      %1520 = vmatprep.subr.mxu0 0.0
      %1521 = vmatpush1.msra.mxu0 0.0
      %1522 = vmatprep.mubr.f32.mxu0 0.0
      %1523 = vmatmul.mubr.f32.gmra.mrb[0].mxu0 %v1456
      %v1524 = vpop.f32.mrb[0].mxu0
      %v1525 = vadd.f32 0.0, %v1524
      %v1526 = vpop.f32.mrb[0].mxu0
      %1527 = vdwg.mxu0
      %v1528 = vld [vmem:[%s11] sm:$0xff]
      %s1529 = scalar_lea.vmem %s5, 32
      %v1530 = vld [vmem:[%s1529] sm:$0xff]
      %v1531 = vld [vmem:[%s1529 + $0x8] sm:$0xff]
      %v1532 = vld [vmem:[%s1529 + $0x10] sm:$0xff]
      %v1533 = vld [vmem:[%s1529 + $0x18] sm:$0xff]
      %s1534 = scalar_lea.vmem %s6, 1
      %v1535 = vld [vmem:[%s1534] sm:$0x1]
      %v1537 = vlaneseq
      %v1538 = vshrl.u32 %v1537, 7
      %v1539 = vsub.s32 0, %v1538
      %v1540 = vrot.slane %v1535, %v1539
      %1542 = vmatprep.subr.mxu0 0.0
      %1543 = vmatpush1.msra.mxu0 %v1530
      %1544 = vmatprep.subr.mxu0 0.0
      %1545 = vmatpush1.msra.mxu0 %v1531
      %1546 = vmatprep.subr.mxu0 0.0
      %1547 = vmatpush1.msra.mxu0 %v1532
      %1548 = vmatprep.subr.mxu0 0.0
      %1549 = vmatpush1.msra.mxu0 %v1533
      %1550 = vmatprep.subr.mxu0 0.0
      %1551 = vmatpush1.msra.mxu0 0.0
      %1552 = vmatprep.subr.mxu0 0.0
      %1553 = vmatpush1.msra.mxu0 0.0
      %1554 = vmatprep.subr.mxu0 0.0
      %1555 = vmatpush1.msra.mxu0 0.0
      %1556 = vmatprep.subr.mxu0 0.0
      %1557 = vmatpush1.msra.mxu0 0.0
      %1558 = vmatprep.subr.mxu0 0.0
      %1559 = vmatpush1.msra.mxu0 0.0
      %1560 = vmatprep.subr.mxu0 0.0
      %1561 = vmatpush1.msra.mxu0 0.0
      %1562 = vmatprep.subr.mxu0 0.0
      %1563 = vmatpush1.msra.mxu0 0.0
      %1564 = vmatprep.subr.mxu0 0.0
      %1565 = vmatpush1.msra.mxu0 0.0
      %1566 = vmatprep.subr.mxu0 0.0
      %1567 = vmatpush1.msra.mxu0 0.0
      %1568 = vmatprep.subr.mxu0 0.0
      %1569 = vmatpush1.msra.mxu0 0.0
      %1570 = vmatprep.subr.mxu0 0.0
      %1571 = vmatpush1.msra.mxu0 0.0
      %1572 = vmatprep.subr.mxu0 0.0
      %1573 = vmatpush1.msra.mxu0 0.0
      %1574 = vmatprep.subr.mxu0 0.0
      %1575 = vmatpush1.msra.mxu0 0.0
      %1576 = vmatprep.subr.mxu0 0.0
      %1577 = vmatpush1.msra.mxu0 0.0
      %1578 = vmatprep.subr.mxu0 0.0
      %1579 = vmatpush1.msra.mxu0 0.0
      %1580 = vmatprep.subr.mxu0 0.0
      %1581 = vmatpush1.msra.mxu0 0.0
      %1582 = vmatprep.subr.mxu0 0.0
      %1583 = vmatpush1.msra.mxu0 0.0
      %1584 = vmatprep.subr.mxu0 0.0
      %1585 = vmatpush1.msra.mxu0 0.0
      %1586 = vmatprep.subr.mxu0 0.0
      %1587 = vmatpush1.msra.mxu0 0.0
      %1588 = vmatprep.subr.mxu0 0.0
      %1589 = vmatpush1.msra.mxu0 0.0
      %1590 = vmatprep.subr.mxu0 0.0
      %1591 = vmatpush1.msra.mxu0 0.0
      %1592 = vmatprep.subr.mxu0 0.0
      %1593 = vmatpush1.msra.mxu0 0.0
      %1594 = vmatprep.subr.mxu0 0.0
      %1595 = vmatpush1.msra.mxu0 0.0
      %1596 = vmatprep.subr.mxu0 0.0
      %1597 = vmatpush1.msra.mxu0 0.0
      %1598 = vmatprep.subr.mxu0 0.0
      %1599 = vmatpush1.msra.mxu0 0.0
      %1600 = vmatprep.subr.mxu0 0.0
      %1601 = vmatpush1.msra.mxu0 0.0
      %1602 = vmatprep.subr.mxu0 0.0
      %1603 = vmatpush1.msra.mxu0 0.0
      %1604 = vmatprep.subr.mxu0 0.0
      %1605 = vmatpush1.msra.mxu0 0.0
      %1606 = vmatprep.mubr.f32.mxu0 0.0
      %1607 = vmatmul.mubr.f32.gmra.mrb[0].mxu0 %v771
      %v1608 = vpop.f32.mrb[0].mxu0
      %v1609 = vadd.f32 %v1540, %v1608
      %v1610 = vpop.f32.mrb[0].mxu0
      %1611 = vmatprep.mubr.f32.mxu0 0.0
      %1612 = vmatmul.mubr.f32.gmra.mrb[0].mxu0 %v774
      %v1613 = vpop.f32.mrb[0].mxu0
      %v1614 = vadd.f32 %v1540, %v1613
      %v1615 = vpop.f32.mrb[0].mxu0
      %1616 = vmatprep.mubr.f32.mxu0 0.0
      %1617 = vmatmul.mubr.f32.gmra.mrb[0].mxu0 %v777
      %v1618 = vpop.f32.mrb[0].mxu0
      %v1619 = vadd.f32 %v1540, %v1618
      %v1620 = vpop.f32.mrb[0].mxu0
      %1621 = vdwg.mxu0
      %s1622 = scalar_lea.vmem %s7, 32
      %v1623 = vld [vmem:[%s1622] sm:$0xff]
      %v1624 = vld [vmem:[%s1622 + $0x8] sm:$0xff]
      %v1625 = vld [vmem:[%s1622 + $0x10] sm:$0xff]
      %v1626 = vld [vmem:[%s1622 + $0x18] sm:$0xff]
      %s1627 = scalar_lea.vmem %s8, 1
      %v1628 = vld [vmem:[%s1627] sm:$0x1]
      %v1630 = vlaneseq
      %v1631 = vshrl.u32 %v1630, 7
      %v1632 = vsub.s32 0, %v1631
      %v1633 = vrot.slane %v1628, %v1632
      %1635 = vmatprep.subr.mxu0 0.0
      %1636 = vmatpush1.msra.mxu0 %v1623
      %1637 = vmatprep.subr.mxu0 0.0
      %1638 = vmatpush1.msra.mxu0 %v1624
      %1639 = vmatprep.subr.mxu0 0.0
      %1640 = vmatpush1.msra.mxu0 %v1625
      %1641 = vmatprep.subr.mxu0 0.0
      %1642 = vmatpush1.msra.mxu0 %v1626
      %1643 = vmatprep.subr.mxu0 0.0
      %1644 = vmatpush1.msra.mxu0 0.0
      %1645 = vmatprep.subr.mxu0 0.0
      %1646 = vmatpush1.msra.mxu0 0.0
      %1647 = vmatprep.subr.mxu0 0.0
      %1648 = vmatpush1.msra.mxu0 0.0
      %1649 = vmatprep.subr.mxu0 0.0
      %1650 = vmatpush1.msra.mxu0 0.0
      %1651 = vmatprep.subr.mxu0 0.0
      %1652 = vmatpush1.msra.mxu0 0.0
      %1653 = vmatprep.subr.mxu0 0.0
      %1654 = vmatpush1.msra.mxu0 0.0
      %1655 = vmatprep.subr.mxu0 0.0
      %1656 = vmatpush1.msra.mxu0 0.0
      %1657 = vmatprep.subr.mxu0 0.0
      %1658 = vmatpush1.msra.mxu0 0.0
      %1659 = vmatprep.subr.mxu0 0.0
      %1660 = vmatpush1.msra.mxu0 0.0
      %1661 = vmatprep.subr.mxu0 0.0
      %1662 = vmatpush1.msra.mxu0 0.0
      %1663 = vmatprep.subr.mxu0 0.0
      %1664 = vmatpush1.msra.mxu0 0.0
      %1665 = vmatprep.subr.mxu0 0.0
      %1666 = vmatpush1.msra.mxu0 0.0
      %1667 = vmatprep.subr.mxu0 0.0
      %1668 = vmatpush1.msra.mxu0 0.0
      %1669 = vmatprep.subr.mxu0 0.0
      %1670 = vmatpush1.msra.mxu0 0.0
      %1671 = vmatprep.subr.mxu0 0.0
      %1672 = vmatpush1.msra.mxu0 0.0
      %1673 = vmatprep.subr.mxu0 0.0
      %1674 = vmatpush1.msra.mxu0 0.0
      %1675 = vmatprep.subr.mxu0 0.0
      %1676 = vmatpush1.msra.mxu0 0.0
      %1677 = vmatprep.subr.mxu0 0.0
      %1678 = vmatpush1.msra.mxu0 0.0
      %1679 = vmatprep.subr.mxu0 0.0
      %1680 = vmatpush1.msra.mxu0 0.0
      %1681 = vmatprep.subr.mxu0 0.0
      %1682 = vmatpush1.msra.mxu0 0.0
      %1683 = vmatprep.subr.mxu0 0.0
      %1684 = vmatpush1.msra.mxu0 0.0
      %1685 = vmatprep.subr.mxu0 0.0
      %1686 = vmatpush1.msra.mxu0 0.0
      %1687 = vmatprep.subr.mxu0 0.0
      %1688 = vmatpush1.msra.mxu0 0.0
      %1689 = vmatprep.subr.mxu0 0.0
      %1690 = vmatpush1.msra.mxu0 0.0
      %1691 = vmatprep.subr.mxu0 0.0
      %1692 = vmatpush1.msra.mxu0 0.0
      %1693 = vmatprep.subr.mxu0 0.0
      %1694 = vmatpush1.msra.mxu0 0.0
      %1695 = vmatprep.subr.mxu0 0.0
      %1696 = vmatpush1.msra.mxu0 0.0
      %1697 = vmatprep.subr.mxu0 0.0
      %1698 = vmatpush1.msra.mxu0 0.0
      %1699 = vmatprep.mubr.f32.mxu0 0.0
      %1700 = vmatmul.mubr.f32.gmra.mrb[0].mxu0 %v771
      %v1701 = vpop.f32.mrb[0].mxu0
      %v1702 = vadd.f32 %v1633, %v1701
      %v1703 = vpop.f32.mrb[0].mxu0
      %1704 = vmatprep.mubr.f32.mxu0 0.0
      %1705 = vmatmul.mubr.f32.gmra.mrb[0].mxu0 %v774
      %v1706 = vpop.f32.mrb[0].mxu0
      %v1707 = vadd.f32 %v1633, %v1706
      %v1708 = vpop.f32.mrb[0].mxu0
      %1709 = vmatprep.mubr.f32.mxu0 0.0
      %1710 = vmatmul.mubr.f32.gmra.mrb[0].mxu0 %v777
      %v1711 = vpop.f32.mrb[0].mxu0
      %v1712 = vadd.f32 %v1633, %v1711
      %v1713 = vpop.f32.mrb[0].mxu0
      %1714 = vdwg.mxu0
      %s1715 = scalar_lea.vmem %s9, 32
      %v1716 = vld [vmem:[%s1715] sm:$0xff]
      %v1717 = vld [vmem:[%s1715 + $0x8] sm:$0xff]
      %v1718 = vld [vmem:[%s1715 + $0x10] sm:$0xff]
      %v1719 = vld [vmem:[%s1715 + $0x18] sm:$0xff]
      %s1720 = scalar_lea.vmem %s10, 1
      %v1721 = vld [vmem:[%s1720] sm:$0x1]
      %v1723 = vlaneseq
      %v1724 = vshrl.u32 %v1723, 7
      %v1725 = vsub.s32 0, %v1724
      %v1726 = vrot.slane %v1721, %v1725
      %1728 = vmatprep.subr.mxu0 0.0
      %1729 = vmatpush1.msra.mxu0 %v1716
      %1730 = vmatprep.subr.mxu0 0.0
      %1731 = vmatpush1.msra.mxu0 %v1717
      %1732 = vmatprep.subr.mxu0 0.0
      %1733 = vmatpush1.msra.mxu0 %v1718
      %1734 = vmatprep.subr.mxu0 0.0
      %1735 = vmatpush1.msra.mxu0 %v1719
      %1736 = vmatprep.subr.mxu0 0.0
      %1737 = vmatpush1.msra.mxu0 0.0
      %1738 = vmatprep.subr.mxu0 0.0
      %1739 = vmatpush1.msra.mxu0 0.0
      %1740 = vmatprep.subr.mxu0 0.0
      %1741 = vmatpush1.msra.mxu0 0.0
      %1742 = vmatprep.subr.mxu0 0.0
      %1743 = vmatpush1.msra.mxu0 0.0
      %1744 = vmatprep.subr.mxu0 0.0
      %1745 = vmatpush1.msra.mxu0 0.0
      %1746 = vmatprep.subr.mxu0 0.0
      %1747 = vmatpush1.msra.mxu0 0.0
      %1748 = vmatprep.subr.mxu0 0.0
      %1749 = vmatpush1.msra.mxu0 0.0
      %1750 = vmatprep.subr.mxu0 0.0
      %1751 = vmatpush1.msra.mxu0 0.0
      %1752 = vmatprep.subr.mxu0 0.0
      %1753 = vmatpush1.msra.mxu0 0.0
      %1754 = vmatprep.subr.mxu0 0.0
      %1755 = vmatpush1.msra.mxu0 0.0
      %1756 = vmatprep.subr.mxu0 0.0
      %1757 = vmatpush1.msra.mxu0 0.0
      %1758 = vmatprep.subr.mxu0 0.0
      %1759 = vmatpush1.msra.mxu0 0.0
      %1760 = vmatprep.subr.mxu0 0.0
      %1761 = vmatpush1.msra.mxu0 0.0
      %1762 = vmatprep.subr.mxu0 0.0
      %1763 = vmatpush1.msra.mxu0 0.0
      %1764 = vmatprep.subr.mxu0 0.0
      %1765 = vmatpush1.msra.mxu0 0.0
      %1766 = vmatprep.subr.mxu0 0.0
      %1767 = vmatpush1.msra.mxu0 0.0
      %1768 = vmatprep.subr.mxu0 0.0
      %1769 = vmatpush1.msra.mxu0 0.0
      %1770 = vmatprep.subr.mxu0 0.0
      %1771 = vmatpush1.msra.mxu0 0.0
      %1772 = vmatprep.subr.mxu0 0.0
      %1773 = vmatpush1.msra.mxu0 0.0
      %1774 = vmatprep.subr.mxu0 0.0
      %1775 = vmatpush1.msra.mxu0 0.0
      %1776 = vmatprep.subr.mxu0 0.0
      %1777 = vmatpush1.msra.mxu0 0.0
      %1778 = vmatprep.subr.mxu0 0.0
      %1779 = vmatpush1.msra.mxu0 0.0
      %1780 = vmatprep.subr.mxu0 0.0
      %1781 = vmatpush1.msra.mxu0 0.0
      %1782 = vmatprep.subr.mxu0 0.0
      %1783 = vmatpush1.msra.mxu0 0.0
      %1784 = vmatprep.subr.mxu0 0.0
      %1785 = vmatpush1.msra.mxu0 0.0
      %1786 = vmatprep.subr.mxu0 0.0
      %1787 = vmatpush1.msra.mxu0 0.0
      %1788 = vmatprep.subr.mxu0 0.0
      %1789 = vmatpush1.msra.mxu0 0.0
      %1790 = vmatprep.subr.mxu0 0.0
      %1791 = vmatpush1.msra.mxu0 0.0
      %1792 = vmatprep.mubr.f32.mxu0 0.0
      %1793 = vmatmul.mubr.f32.gmra.mrb[0].mxu0 %v771
      %v1794 = vpop.f32.mrb[0].mxu0
      %v1795 = vadd.f32 %v1726, %v1794
      %v1796 = vpop.f32.mrb[0].mxu0
      %1797 = vmatprep.mubr.f32.mxu0 0.0
      %1798 = vmatmul.mubr.f32.gmra.mrb[0].mxu0 %v774
      %v1799 = vpop.f32.mrb[0].mxu0
      %v1800 = vadd.f32 %v1726, %v1799
      %v1801 = vpop.f32.mrb[0].mxu0
      %1802 = vmatprep.mubr.f32.mxu0 0.0
      %1803 = vmatmul.mubr.f32.gmra.mrb[0].mxu0 %v777
      %v1804 = vpop.f32.mrb[0].mxu0
      %v1805 = vadd.f32 %v1726, %v1804
      %v1806 = vpop.f32.mrb[0].mxu0
      %1807 = vdwg.mxu0
      %v1809 = vsel %vm1041, %v1609, 0
      %v1812 = vsel %vm1041, %v1702, 0
      %1814 = vmatprep.subr.mxu0 0.0
      %1815 = vmatpush1.xpose.msra.mxu0 %v1812
      %1816 = vmatprep.subr.mxu0 0.0
      %1817 = vmatpush1.xpose.msra.mxu0 0.0
      %1818 = vmatprep.subr.mxu0 0.0
      %1819 = vmatpush1.xpose.msra.mxu0 0.0
      %1820 = vmatprep.subr.mxu0 0.0
      %1821 = vmatpush1.xpose.msra.mxu0 0.0
      %1822 = vmatprep.subr.mxu0 0.0
      %1823 = vmatpush1.xpose.msra.mxu0 0.0
      %1824 = vmatprep.subr.mxu0 0.0
      %1825 = vmatpush1.xpose.msra.mxu0 0.0
      %1826 = vmatprep.subr.mxu0 0.0
      %1827 = vmatpush1.xpose.msra.mxu0 0.0
      %1828 = vmatprep.subr.mxu0 0.0
      %1829 = vmatpush1.xpose.msra.mxu0 0.0
      %1830 = vmatprep.subr.mxu0 0.0
      %1831 = vmatpush1.xpose.msra.mxu0 0.0
      %1832 = vmatprep.subr.mxu0 0.0
      %1833 = vmatpush1.xpose.msra.mxu0 0.0
      %1834 = vmatprep.subr.mxu0 0.0
      %1835 = vmatpush1.xpose.msra.mxu0 0.0
      %1836 = vmatprep.subr.mxu0 0.0
      %1837 = vmatpush1.xpose.msra.mxu0 0.0
      %1838 = vmatprep.subr.mxu0 0.0
      %1839 = vmatpush1.xpose.msra.mxu0 0.0
      %1840 = vmatprep.subr.mxu0 0.0
      %1841 = vmatpush1.xpose.msra.mxu0 0.0
      %1842 = vmatprep.subr.mxu0 0.0
      %1843 = vmatpush1.xpose.msra.mxu0 0.0
      %1844 = vmatprep.subr.mxu0 0.0
      %1845 = vmatpush1.xpose.msra.mxu0 0.0
      %1846 = vmatprep.subr.mxu0 0.0
      %1847 = vmatpush1.xpose.msra.mxu0 0.0
      %1848 = vmatprep.subr.mxu0 0.0
      %1849 = vmatpush1.xpose.msra.mxu0 0.0
      %1850 = vmatprep.subr.mxu0 0.0
      %1851 = vmatpush1.xpose.msra.mxu0 0.0
      %1852 = vmatprep.subr.mxu0 0.0
      %1853 = vmatpush1.xpose.msra.mxu0 0.0
      %1854 = vmatprep.subr.mxu0 0.0
      %1855 = vmatpush1.xpose.msra.mxu0 0.0
      %1856 = vmatprep.subr.mxu0 0.0
      %1857 = vmatpush1.xpose.msra.mxu0 0.0
      %1858 = vmatprep.subr.mxu0 0.0
      %1859 = vmatpush1.xpose.msra.mxu0 0.0
      %1860 = vmatprep.subr.mxu0 0.0
      %1861 = vmatpush1.xpose.msra.mxu0 0.0
      %1862 = vmatprep.subr.mxu0 0.0
      %1863 = vmatpush1.xpose.msra.mxu0 0.0
      %1864 = vmatprep.subr.mxu0 0.0
      %1865 = vmatpush1.xpose.msra.mxu0 0.0
      %1866 = vmatprep.subr.mxu0 0.0
      %1867 = vmatpush1.xpose.msra.mxu0 0.0
      %1868 = vmatprep.subr.mxu0 0.0
      %1869 = vmatpush1.xpose.msra.mxu0 0.0
      %1870 = vmatprep.subr.mxu0 0.0
      %1871 = vmatpush1.xpose.msra.mxu0 0.0
      %1872 = vmatprep.subr.mxu0 0.0
      %1873 = vmatpush1.xpose.msra.mxu0 0.0
      %1874 = vmatprep.subr.mxu0 0.0
      %1875 = vmatpush1.xpose.msra.mxu0 0.0
      %1876 = vmatprep.subr.mxu0 0.0
      %1877 = vmatpush1.xpose.msra.mxu0 0.0
      %1878 = vmatprep.mubr.f32.mxu0 0.0
      %1879 = vmatmul.mubr.f32.gmra.mrb[0].mxu0 %v1809
      %v1880 = vpop.f32.mrb[0].mxu0
      %v1881 = vadd.f32 0.0, %v1880
      %v1882 = vpop.f32.mrb[0].mxu0
      %1883 = vdwg.mxu0
      %v1885 = vsel %vm1041, %v1614, 0
      %v1888 = vsel %vm1041, %v1707, 0
      %1890 = vmatprep.subr.mxu0 0.0
      %1891 = vmatpush1.xpose.msra.mxu0 %v1888
      %1892 = vmatprep.subr.mxu0 0.0
      %1893 = vmatpush1.xpose.msra.mxu0 0.0
      %1894 = vmatprep.subr.mxu0 0.0
      %1895 = vmatpush1.xpose.msra.mxu0 0.0
      %1896 = vmatprep.subr.mxu0 0.0
      %1897 = vmatpush1.xpose.msra.mxu0 0.0
      %1898 = vmatprep.subr.mxu0 0.0
      %1899 = vmatpush1.xpose.msra.mxu0 0.0
      %1900 = vmatprep.subr.mxu0 0.0
      %1901 = vmatpush1.xpose.msra.mxu0 0.0
      %1902 = vmatprep.subr.mxu0 0.0
      %1903 = vmatpush1.xpose.msra.mxu0 0.0
      %1904 = vmatprep.subr.mxu0 0.0
      %1905 = vmatpush1.xpose.msra.mxu0 0.0
      %1906 = vmatprep.subr.mxu0 0.0
      %1907 = vmatpush1.xpose.msra.mxu0 0.0
      %1908 = vmatprep.subr.mxu0 0.0
      %1909 = vmatpush1.xpose.msra.mxu0 0.0
      %1910 = vmatprep.subr.mxu0 0.0
      %1911 = vmatpush1.xpose.msra.mxu0 0.0
      %1912 = vmatprep.subr.mxu0 0.0
      %1913 = vmatpush1.xpose.msra.mxu0 0.0
      %1914 = vmatprep.subr.mxu0 0.0
      %1915 = vmatpush1.xpose.msra.mxu0 0.0
      %1916 = vmatprep.subr.mxu0 0.0
      %1917 = vmatpush1.xpose.msra.mxu0 0.0
      %1918 = vmatprep.subr.mxu0 0.0
      %1919 = vmatpush1.xpose.msra.mxu0 0.0
      %1920 = vmatprep.subr.mxu0 0.0
      %1921 = vmatpush1.xpose.msra.mxu0 0.0
      %1922 = vmatprep.subr.mxu0 0.0
      %1923 = vmatpush1.xpose.msra.mxu0 0.0
      %1924 = vmatprep.subr.mxu0 0.0
      %1925 = vmatpush1.xpose.msra.mxu0 0.0
      %1926 = vmatprep.subr.mxu0 0.0
      %1927 = vmatpush1.xpose.msra.mxu0 0.0
      %1928 = vmatprep.subr.mxu0 0.0
      %1929 = vmatpush1.xpose.msra.mxu0 0.0
      %1930 = vmatprep.subr.mxu0 0.0
      %1931 = vmatpush1.xpose.msra.mxu0 0.0
      %1932 = vmatprep.subr.mxu0 0.0
      %1933 = vmatpush1.xpose.msra.mxu0 0.0
      %1934 = vmatprep.subr.mxu0 0.0
      %1935 = vmatpush1.xpose.msra.mxu0 0.0
      %1936 = vmatprep.subr.mxu0 0.0
      %1937 = vmatpush1.xpose.msra.mxu0 0.0
      %1938 = vmatprep.subr.mxu0 0.0
      %1939 = vmatpush1.xpose.msra.mxu0 0.0
      %1940 = vmatprep.subr.mxu0 0.0
      %1941 = vmatpush1.xpose.msra.mxu0 0.0
      %1942 = vmatprep.subr.mxu0 0.0
      %1943 = vmatpush1.xpose.msra.mxu0 0.0
      %1944 = vmatprep.subr.mxu0 0.0
      %1945 = vmatpush1.xpose.msra.mxu0 0.0
      %1946 = vmatprep.subr.mxu0 0.0
      %1947 = vmatpush1.xpose.msra.mxu0 0.0
      %1948 = vmatprep.subr.mxu0 0.0
      %1949 = vmatpush1.xpose.msra.mxu0 0.0
      %1950 = vmatprep.subr.mxu0 0.0
      %1951 = vmatpush1.xpose.msra.mxu0 0.0
      %1952 = vmatprep.subr.mxu0 0.0
      %1953 = vmatpush1.xpose.msra.mxu0 0.0
      %1954 = vmatprep.mubr.f32.mxu0 0.0
      %1955 = vmatmul.mubr.f32.gmra.mrb[0].mxu0 %v1885
      %v1956 = vpop.f32.mrb[0].mxu0
      %v1957 = vadd.f32 0.0, %v1956
      %v1958 = vpop.f32.mrb[0].mxu0
      %1959 = vdwg.mxu0
      %v1961 = vsel %vm1041, %v1619, 0
      %v1964 = vsel %vm1041, %v1712, 0
      %1966 = vmatprep.subr.mxu0 0.0
      %1967 = vmatpush1.xpose.msra.mxu0 %v1964
      %1968 = vmatprep.subr.mxu0 0.0
      %1969 = vmatpush1.xpose.msra.mxu0 0.0
      %1970 = vmatprep.subr.mxu0 0.0
      %1971 = vmatpush1.xpose.msra.mxu0 0.0
      %1972 = vmatprep.subr.mxu0 0.0
      %1973 = vmatpush1.xpose.msra.mxu0 0.0
      %1974 = vmatprep.subr.mxu0 0.0
      %1975 = vmatpush1.xpose.msra.mxu0 0.0
      %1976 = vmatprep.subr.mxu0 0.0
      %1977 = vmatpush1.xpose.msra.mxu0 0.0
      %1978 = vmatprep.subr.mxu0 0.0
      %1979 = vmatpush1.xpose.msra.mxu0 0.0
      %1980 = vmatprep.subr.mxu0 0.0
      %1981 = vmatpush1.xpose.msra.mxu0 0.0
      %1982 = vmatprep.subr.mxu0 0.0
      %1983 = vmatpush1.xpose.msra.mxu0 0.0
      %1984 = vmatprep.subr.mxu0 0.0
      %1985 = vmatpush1.xpose.msra.mxu0 0.0
      %1986 = vmatprep.subr.mxu0 0.0
      %1987 = vmatpush1.xpose.msra.mxu0 0.0
      %1988 = vmatprep.subr.mxu0 0.0
      %1989 = vmatpush1.xpose.msra.mxu0 0.0
      %1990 = vmatprep.subr.mxu0 0.0
      %1991 = vmatpush1.xpose.msra.mxu0 0.0
      %1992 = vmatprep.subr.mxu0 0.0
      %1993 = vmatpush1.xpose.msra.mxu0 0.0
      %1994 = vmatprep.subr.mxu0 0.0
      %1995 = vmatpush1.xpose.msra.mxu0 0.0
      %1996 = vmatprep.subr.mxu0 0.0
      %1997 = vmatpush1.xpose.msra.mxu0 0.0
      %1998 = vmatprep.subr.mxu0 0.0
      %1999 = vmatpush1.xpose.msra.mxu0 0.0
      %2000 = vmatprep.subr.mxu0 0.0
      %2001 = vmatpush1.xpose.msra.mxu0 0.0
      %2002 = vmatprep.subr.mxu0 0.0
      %2003 = vmatpush1.xpose.msra.mxu0 0.0
      %2004 = vmatprep.subr.mxu0 0.0
      %2005 = vmatpush1.xpose.msra.mxu0 0.0
      %2006 = vmatprep.subr.mxu0 0.0
      %2007 = vmatpush1.xpose.msra.mxu0 0.0
      %2008 = vmatprep.subr.mxu0 0.0
      %2009 = vmatpush1.xpose.msra.mxu0 0.0
      %2010 = vmatprep.subr.mxu0 0.0
      %2011 = vmatpush1.xpose.msra.mxu0 0.0
      %2012 = vmatprep.subr.mxu0 0.0
      %2013 = vmatpush1.xpose.msra.mxu0 0.0
      %2014 = vmatprep.subr.mxu0 0.0
      %2015 = vmatpush1.xpose.msra.mxu0 0.0
      %2016 = vmatprep.subr.mxu0 0.0
      %2017 = vmatpush1.xpose.msra.mxu0 0.0
      %2018 = vmatprep.subr.mxu0 0.0
      %2019 = vmatpush1.xpose.msra.mxu0 0.0
      %2020 = vmatprep.subr.mxu0 0.0
      %2021 = vmatpush1.xpose.msra.mxu0 0.0
      %2022 = vmatprep.subr.mxu0 0.0
      %2023 = vmatpush1.xpose.msra.mxu0 0.0
      %2024 = vmatprep.subr.mxu0 0.0
      %2025 = vmatpush1.xpose.msra.mxu0 0.0
      %2026 = vmatprep.subr.mxu0 0.0
      %2027 = vmatpush1.xpose.msra.mxu0 0.0
      %2028 = vmatprep.subr.mxu0 0.0
      %2029 = vmatpush1.xpose.msra.mxu0 0.0
      %2030 = vmatprep.mubr.f32.mxu0 0.0
      %2031 = vmatmul.mubr.f32.gmra.mrb[0].mxu0 %v1961
      %v2032 = vpop.f32.mrb[0].mxu0
      %v2033 = vadd.f32 0.0, %v2032
      %v2034 = vpop.f32.mrb[0].mxu0
      %2035 = vdwg.mxu0
      %v2036 = vmul.f32 %v1881, 0.35355338
      %v2037 = vmul.f32 %v1957, 0.35355338
      %v2038 = vmul.f32 %v2033, 0.35355338
      %v2039 = vadd.f32 %v2036, %v695
      %v2040 = vadd.f32 %v2037, %v696
      %v2041 = vadd.f32 %v2038, %v697
      %v2042 = vsel %vm1041, %v2039, -inf
      %2043 = vmax.xlane.f32.xlu0 %v2042
      %v2044 = vpop.xlane.xlu0 %2043
      %v2045 = vsel %vm1041, %v2040, -inf
      %2046 = vmax.xlane.f32.xlu0 %v2045
      %v2047 = vpop.xlane.xlu0 %2046
      %v2048 = vsel %vm1041, %v2041, -inf
      %2049 = vmax.xlane.f32.xlu0 %v2048
      %v2050 = vpop.xlane.xlu0 %2049
      %v2051 = vsub.f32 %v2039, %v2044
      %v2052 = vsub.f32 %v2040, %v2047
      %v2053 = vsub.f32 %v2041, %v2050
      %v2054 = vmul.f32 %v2051, 1.442695
      %v2055 = vpow.pop %v2054
      %v2056 = vmul.f32 %v2052, 1.442695
      %v2057 = vpow.pop %v2056
      %v2058 = vmul.f32 %v2053, 1.442695
      %v2059 = vpow.pop %v2058
      %v2060 = vsel %vm1041, %v2055, 0.0
      %2061 = vadd.xlane.f32.xlu0 %v2060
      %v2062 = vpop.xlane.xlu0 %2061
      %v2063 = vsel %vm1041, %v2057, 0.0
      %2064 = vadd.xlane.f32.xlu0 %v2063
      %v2065 = vpop.xlane.xlu0 %2064
      %v2066 = vsel %vm1041, %v2059, 0.0
      %2067 = vadd.xlane.f32.xlu0 %v2066
      %v2068 = vpop.xlane.xlu0 %2067
      %v2069 = vrcp.pop %v2062
      %v2070 = vrcp.pop %v2065
      %v2071 = vrcp.pop %v2068
      %v2072 = vmul.f32 %v2055, %v2069
      %v2073 = vmul.f32 %v2057, %v2070
      %v2074 = vmul.f32 %v2059, %v2071
      %v2076 = vsel %vm1041, %v2072, 0
      %2078 = vmatprep.subr.mxu0 0.0
      %2079 = vmatpush1.msra.mxu0 %v1795
      %2080 = vmatprep.subr.mxu0 0.0
      %2081 = vmatpush1.msra.mxu0 0.0
      %2082 = vmatprep.subr.mxu0 0.0
      %2083 = vmatpush1.msra.mxu0 0.0
      %2084 = vmatprep.subr.mxu0 0.0
      %2085 = vmatpush1.msra.mxu0 0.0
      %2086 = vmatprep.subr.mxu0 0.0
      %2087 = vmatpush1.msra.mxu0 0.0
      %2088 = vmatprep.subr.mxu0 0.0
      %2089 = vmatpush1.msra.mxu0 0.0
      %2090 = vmatprep.subr.mxu0 0.0
      %2091 = vmatpush1.msra.mxu0 0.0
      %2092 = vmatprep.subr.mxu0 0.0
      %2093 = vmatpush1.msra.mxu0 0.0
      %2094 = vmatprep.subr.mxu0 0.0
      %2095 = vmatpush1.msra.mxu0 0.0
      %2096 = vmatprep.subr.mxu0 0.0
      %2097 = vmatpush1.msra.mxu0 0.0
      %2098 = vmatprep.subr.mxu0 0.0
      %2099 = vmatpush1.msra.mxu0 0.0
      %2100 = vmatprep.subr.mxu0 0.0
      %2101 = vmatpush1.msra.mxu0 0.0
      %2102 = vmatprep.subr.mxu0 0.0
      %2103 = vmatpush1.msra.mxu0 0.0
      %2104 = vmatprep.subr.mxu0 0.0
      %2105 = vmatpush1.msra.mxu0 0.0
      %2106 = vmatprep.subr.mxu0 0.0
      %2107 = vmatpush1.msra.mxu0 0.0
      %2108 = vmatprep.subr.mxu0 0.0
      %2109 = vmatpush1.msra.mxu0 0.0
      %2110 = vmatprep.subr.mxu0 0.0
      %2111 = vmatpush1.msra.mxu0 0.0
      %2112 = vmatprep.subr.mxu0 0.0
      %2113 = vmatpush1.msra.mxu0 0.0
      %2114 = vmatprep.subr.mxu0 0.0
      %2115 = vmatpush1.msra.mxu0 0.0
      %2116 = vmatprep.subr.mxu0 0.0
      %2117 = vmatpush1.msra.mxu0 0.0
      %2118 = vmatprep.subr.mxu0 0.0
      %2119 = vmatpush1.msra.mxu0 0.0
      %2120 = vmatprep.subr.mxu0 0.0
      %2121 = vmatpush1.msra.mxu0 0.0
      %2122 = vmatprep.subr.mxu0 0.0
      %2123 = vmatpush1.msra.mxu0 0.0
      %2124 = vmatprep.subr.mxu0 0.0
      %2125 = vmatpush1.msra.mxu0 0.0
      %2126 = vmatprep.subr.mxu0 0.0
      %2127 = vmatpush1.msra.mxu0 0.0
      %2128 = vmatprep.subr.mxu0 0.0
      %2129 = vmatpush1.msra.mxu0 0.0
      %2130 = vmatprep.subr.mxu0 0.0
      %2131 = vmatpush1.msra.mxu0 0.0
      %2132 = vmatprep.subr.mxu0 0.0
      %2133 = vmatpush1.msra.mxu0 0.0
      %2134 = vmatprep.subr.mxu0 0.0
      %2135 = vmatpush1.msra.mxu0 0.0
      %2136 = vmatprep.subr.mxu0 0.0
      %2137 = vmatpush1.msra.mxu0 0.0
      %2138 = vmatprep.subr.mxu0 0.0
      %2139 = vmatpush1.msra.mxu0 0.0
      %2140 = vmatprep.subr.mxu0 0.0
      %2141 = vmatpush1.msra.mxu0 0.0
      %2142 = vmatprep.mubr.f32.mxu0 0.0
      %2143 = vmatmul.mubr.f32.gmra.mrb[0].mxu0 %v2076
      %v2144 = vpop.f32.mrb[0].mxu0
      %v2145 = vadd.f32 0.0, %v2144
      %v2146 = vpop.f32.mrb[0].mxu0
      %2147 = vdwg.mxu0
      %v2149 = vsel %vm1041, %v2073, 0
      %2151 = vmatprep.subr.mxu0 0.0
      %2152 = vmatpush1.msra.mxu0 %v1800
      %2153 = vmatprep.subr.mxu0 0.0
      %2154 = vmatpush1.msra.mxu0 0.0
      %2155 = vmatprep.subr.mxu0 0.0
      %2156 = vmatpush1.msra.mxu0 0.0
      %2157 = vmatprep.subr.mxu0 0.0
      %2158 = vmatpush1.msra.mxu0 0.0
      %2159 = vmatprep.subr.mxu0 0.0
      %2160 = vmatpush1.msra.mxu0 0.0
      %2161 = vmatprep.subr.mxu0 0.0
      %2162 = vmatpush1.msra.mxu0 0.0
      %2163 = vmatprep.subr.mxu0 0.0
      %2164 = vmatpush1.msra.mxu0 0.0
      %2165 = vmatprep.subr.mxu0 0.0
      %2166 = vmatpush1.msra.mxu0 0.0
      %2167 = vmatprep.subr.mxu0 0.0
      %2168 = vmatpush1.msra.mxu0 0.0
      %2169 = vmatprep.subr.mxu0 0.0
      %2170 = vmatpush1.msra.mxu0 0.0
      %2171 = vmatprep.subr.mxu0 0.0
      %2172 = vmatpush1.msra.mxu0 0.0
      %2173 = vmatprep.subr.mxu0 0.0
      %2174 = vmatpush1.msra.mxu0 0.0
      %2175 = vmatprep.subr.mxu0 0.0
      %2176 = vmatpush1.msra.mxu0 0.0
      %2177 = vmatprep.subr.mxu0 0.0
      %2178 = vmatpush1.msra.mxu0 0.0
      %2179 = vmatprep.subr.mxu0 0.0
      %2180 = vmatpush1.msra.mxu0 0.0
      %2181 = vmatprep.subr.mxu0 0.0
      %2182 = vmatpush1.msra.mxu0 0.0
      %2183 = vmatprep.subr.mxu0 0.0
      %2184 = vmatpush1.msra.mxu0 0.0
      %2185 = vmatprep.subr.mxu0 0.0
      %2186 = vmatpush1.msra.mxu0 0.0
      %2187 = vmatprep.subr.mxu0 0.0
      %2188 = vmatpush1.msra.mxu0 0.0
      %2189 = vmatprep.subr.mxu0 0.0
      %2190 = vmatpush1.msra.mxu0 0.0
      %2191 = vmatprep.subr.mxu0 0.0
      %2192 = vmatpush1.msra.mxu0 0.0
      %2193 = vmatprep.subr.mxu0 0.0
      %2194 = vmatpush1.msra.mxu0 0.0
      %2195 = vmatprep.subr.mxu0 0.0
      %2196 = vmatpush1.msra.mxu0 0.0
      %2197 = vmatprep.subr.mxu0 0.0
      %2198 = vmatpush1.msra.mxu0 0.0
      %2199 = vmatprep.subr.mxu0 0.0
      %2200 = vmatpush1.msra.mxu0 0.0
      %2201 = vmatprep.subr.mxu0 0.0
      %2202 = vmatpush1.msra.mxu0 0.0
      %2203 = vmatprep.subr.mxu0 0.0
      %2204 = vmatpush1.msra.mxu0 0.0
      %2205 = vmatprep.subr.mxu0 0.0
      %2206 = vmatpush1.msra.mxu0 0.0
      %2207 = vmatprep.subr.mxu0 0.0
      %2208 = vmatpush1.msra.mxu0 0.0
      %2209 = vmatprep.subr.mxu0 0.0
      %2210 = vmatpush1.msra.mxu0 0.0
      %2211 = vmatprep.subr.mxu0 0.0
      %2212 = vmatpush1.msra.mxu0 0.0
      %2213 = vmatprep.subr.mxu0 0.0
      %2214 = vmatpush1.msra.mxu0 0.0
      %2215 = vmatprep.mubr.f32.mxu0 0.0
      %2216 = vmatmul.mubr.f32.gmra.mrb[0].mxu0 %v2149
      %v2217 = vpop.f32.mrb[0].mxu0
      %v2218 = vadd.f32 0.0, %v2217
      %v2219 = vpop.f32.mrb[0].mxu0
      %2220 = vdwg.mxu0
      %v2222 = vsel %vm1041, %v2074, 0
      %2224 = vmatprep.subr.mxu0 0.0
      %2225 = vmatpush1.msra.mxu0 %v1805
      %2226 = vmatprep.subr.mxu0 0.0
      %2227 = vmatpush1.msra.mxu0 0.0
      %2228 = vmatprep.subr.mxu0 0.0
      %2229 = vmatpush1.msra.mxu0 0.0
      %2230 = vmatprep.subr.mxu0 0.0
      %2231 = vmatpush1.msra.mxu0 0.0
      %2232 = vmatprep.subr.mxu0 0.0
      %2233 = vmatpush1.msra.mxu0 0.0
      %2234 = vmatprep.subr.mxu0 0.0
      %2235 = vmatpush1.msra.mxu0 0.0
      %2236 = vmatprep.subr.mxu0 0.0
      %2237 = vmatpush1.msra.mxu0 0.0
      %2238 = vmatprep.subr.mxu0 0.0
      %2239 = vmatpush1.msra.mxu0 0.0
      %2240 = vmatprep.subr.mxu0 0.0
      %2241 = vmatpush1.msra.mxu0 0.0
      %2242 = vmatprep.subr.mxu0 0.0
      %2243 = vmatpush1.msra.mxu0 0.0
      %2244 = vmatprep.subr.mxu0 0.0
      %2245 = vmatpush1.msra.mxu0 0.0
      %2246 = vmatprep.subr.mxu0 0.0
      %2247 = vmatpush1.msra.mxu0 0.0
      %2248 = vmatprep.subr.mxu0 0.0
      %2249 = vmatpush1.msra.mxu0 0.0
      %2250 = vmatprep.subr.mxu0 0.0
      %2251 = vmatpush1.msra.mxu0 0.0
      %2252 = vmatprep.subr.mxu0 0.0
      %2253 = vmatpush1.msra.mxu0 0.0
      %2254 = vmatprep.subr.mxu0 0.0
      %2255 = vmatpush1.msra.mxu0 0.0
      %2256 = vmatprep.subr.mxu0 0.0
      %2257 = vmatpush1.msra.mxu0 0.0
      %2258 = vmatprep.subr.mxu0 0.0
      %2259 = vmatpush1.msra.mxu0 0.0
      %2260 = vmatprep.subr.mxu0 0.0
      %2261 = vmatpush1.msra.mxu0 0.0
      %2262 = vmatprep.subr.mxu0 0.0
      %2263 = vmatpush1.msra.mxu0 0.0
      %2264 = vmatprep.subr.mxu0 0.0
      %2265 = vmatpush1.msra.mxu0 0.0
      %2266 = vmatprep.subr.mxu0 0.0
      %2267 = vmatpush1.msra.mxu0 0.0
      %2268 = vmatprep.subr.mxu0 0.0
      %2269 = vmatpush1.msra.mxu0 0.0
      %2270 = vmatprep.subr.mxu0 0.0
      %2271 = vmatpush1.msra.mxu0 0.0
      %2272 = vmatprep.subr.mxu0 0.0
      %2273 = vmatpush1.msra.mxu0 0.0
      %2274 = vmatprep.subr.mxu0 0.0
      %2275 = vmatpush1.msra.mxu0 0.0
      %2276 = vmatprep.subr.mxu0 0.0
      %2277 = vmatpush1.msra.mxu0 0.0
      %2278 = vmatprep.subr.mxu0 0.0
      %2279 = vmatpush1.msra.mxu0 0.0
      %2280 = vmatprep.subr.mxu0 0.0
      %2281 = vmatpush1.msra.mxu0 0.0
      %2282 = vmatprep.subr.mxu0 0.0
      %2283 = vmatpush1.msra.mxu0 0.0
      %2284 = vmatprep.subr.mxu0 0.0
      %2285 = vmatpush1.msra.mxu0 0.0
      %2286 = vmatprep.subr.mxu0 0.0
      %2287 = vmatpush1.msra.mxu0 0.0
      %2288 = vmatprep.mubr.f32.mxu0 0.0
      %2289 = vmatmul.mubr.f32.gmra.mrb[0].mxu0 %v2222
      %v2290 = vpop.f32.mrb[0].mxu0
      %v2291 = vadd.f32 0.0, %v2290
      %v2292 = vpop.f32.mrb[0].mxu0
      %2293 = vdwg.mxu0
      %s2294 = scalar_lea.vmem %s11, 8
      %v2295 = vld [vmem:[%s2294] sm:$0xff]
      %v2297 = vsel %vm1041, %v2145, 0
      %v2300 = vsel %vm1041, %v2218, 0
      %v2303 = vsel %vm1041, %v2291, 0
      %2305 = vmatprep.subr.mxu0 0.0
      %2306 = vmatpush1.msra.mxu0 %v2295
      %2307 = vmatprep.subr.mxu0 0.0
      %2308 = vmatpush1.msra.mxu0 0.0
      %2309 = vmatprep.subr.mxu0 0.0
      %2310 = vmatpush1.msra.mxu0 0.0
      %2311 = vmatprep.subr.mxu0 0.0
      %2312 = vmatpush1.msra.mxu0 0.0
      %2313 = vmatprep.subr.mxu0 0.0
      %2314 = vmatpush1.msra.mxu0 0.0
      %2315 = vmatprep.subr.mxu0 0.0
      %2316 = vmatpush1.msra.mxu0 0.0
      %2317 = vmatprep.subr.mxu0 0.0
      %2318 = vmatpush1.msra.mxu0 0.0
      %2319 = vmatprep.subr.mxu0 0.0
      %2320 = vmatpush1.msra.mxu0 0.0
      %2321 = vmatprep.subr.mxu0 0.0
      %2322 = vmatpush1.msra.mxu0 0.0
      %2323 = vmatprep.subr.mxu0 0.0
      %2324 = vmatpush1.msra.mxu0 0.0
      %2325 = vmatprep.subr.mxu0 0.0
      %2326 = vmatpush1.msra.mxu0 0.0
      %2327 = vmatprep.subr.mxu0 0.0
      %2328 = vmatpush1.msra.mxu0 0.0
      %2329 = vmatprep.subr.mxu0 0.0
      %2330 = vmatpush1.msra.mxu0 0.0
      %2331 = vmatprep.subr.mxu0 0.0
      %2332 = vmatpush1.msra.mxu0 0.0
      %2333 = vmatprep.subr.mxu0 0.0
      %2334 = vmatpush1.msra.mxu0 0.0
      %2335 = vmatprep.subr.mxu0 0.0
      %2336 = vmatpush1.msra.mxu0 0.0
      %2337 = vmatprep.subr.mxu0 0.0
      %2338 = vmatpush1.msra.mxu0 0.0
      %2339 = vmatprep.subr.mxu0 0.0
      %2340 = vmatpush1.msra.mxu0 0.0
      %2341 = vmatprep.subr.mxu0 0.0
      %2342 = vmatpush1.msra.mxu0 0.0
      %2343 = vmatprep.subr.mxu0 0.0
      %2344 = vmatpush1.msra.mxu0 0.0
      %2345 = vmatprep.subr.mxu0 0.0
      %2346 = vmatpush1.msra.mxu0 0.0
      %2347 = vmatprep.subr.mxu0 0.0
      %2348 = vmatpush1.msra.mxu0 0.0
      %2349 = vmatprep.subr.mxu0 0.0
      %2350 = vmatpush1.msra.mxu0 0.0
      %2351 = vmatprep.subr.mxu0 0.0
      %2352 = vmatpush1.msra.mxu0 0.0
      %2353 = vmatprep.subr.mxu0 0.0
      %2354 = vmatpush1.msra.mxu0 0.0
      %2355 = vmatprep.subr.mxu0 0.0
      %2356 = vmatpush1.msra.mxu0 0.0
      %2357 = vmatprep.subr.mxu0 0.0
      %2358 = vmatpush1.msra.mxu0 0.0
      %2359 = vmatprep.subr.mxu0 0.0
      %2360 = vmatpush1.msra.mxu0 0.0
      %2361 = vmatprep.subr.mxu0 0.0
      %2362 = vmatpush1.msra.mxu0 0.0
      %2363 = vmatprep.subr.mxu0 0.0
      %2364 = vmatpush1.msra.mxu0 0.0
      %2365 = vmatprep.subr.mxu0 0.0
      %2366 = vmatpush1.msra.mxu0 0.0
      %2367 = vmatprep.subr.mxu0 0.0
      %2368 = vmatpush1.msra.mxu0 0.0
      %2369 = vmatprep.mubr.f32.mxu0 0.0
      %2370 = vmatmul.mubr.f32.gmra.mrb[0].mxu0 %v2297
      %v2371 = vpop.f32.mrb[0].mxu0
      %v2372 = vadd.f32 0.0, %v2371
      %v2373 = vpop.f32.mrb[0].mxu0
      %2374 = vmatprep.mubr.f32.mxu0 0.0
      %2375 = vmatmul.mubr.f32.gmra.mrb[0].mxu0 %v2300
      %v2376 = vpop.f32.mrb[0].mxu0
      %v2377 = vadd.f32 0.0, %v2376
      %v2378 = vpop.f32.mrb[0].mxu0
      %2379 = vmatprep.mubr.f32.mxu0 0.0
      %2380 = vmatmul.mubr.f32.gmra.mrb[0].mxu0 %v2303
      %v2381 = vpop.f32.mrb[0].mxu0
      %v2382 = vadd.f32 0.0, %v2381
      %v2383 = vpop.f32.mrb[0].mxu0
      %2384 = vdwg.mxu0
      %v2386 = vsel %vm1041, %v1379, 0
      %v2389 = vsel %vm1041, %v1452, 0
      %v2392 = vsel %vm1041, %v1525, 0
      %2394 = vmatprep.subr.mxu0 0.0
      %2395 = vmatpush1.msra.mxu0 %v1528
      %2396 = vmatprep.subr.mxu0 0.0
      %2397 = vmatpush1.msra.mxu0 0.0
      %2398 = vmatprep.subr.mxu0 0.0
      %2399 = vmatpush1.msra.mxu0 0.0
      %2400 = vmatprep.subr.mxu0 0.0
      %2401 = vmatpush1.msra.mxu0 0.0
      %2402 = vmatprep.subr.mxu0 0.0
      %2403 = vmatpush1.msra.mxu0 0.0
      %2404 = vmatprep.subr.mxu0 0.0
      %2405 = vmatpush1.msra.mxu0 0.0
      %2406 = vmatprep.subr.mxu0 0.0
      %2407 = vmatpush1.msra.mxu0 0.0
      %2408 = vmatprep.subr.mxu0 0.0
      %2409 = vmatpush1.msra.mxu0 0.0
      %2410 = vmatprep.subr.mxu0 0.0
      %2411 = vmatpush1.msra.mxu0 0.0
      %2412 = vmatprep.subr.mxu0 0.0
      %2413 = vmatpush1.msra.mxu0 0.0
      %2414 = vmatprep.subr.mxu0 0.0
      %2415 = vmatpush1.msra.mxu0 0.0
      %2416 = vmatprep.subr.mxu0 0.0
      %2417 = vmatpush1.msra.mxu0 0.0
      %2418 = vmatprep.subr.mxu0 0.0
      %2419 = vmatpush1.msra.mxu0 0.0
      %2420 = vmatprep.subr.mxu0 0.0
      %2421 = vmatpush1.msra.mxu0 0.0
      %2422 = vmatprep.subr.mxu0 0.0
      %2423 = vmatpush1.msra.mxu0 0.0
      %2424 = vmatprep.subr.mxu0 0.0
      %2425 = vmatpush1.msra.mxu0 0.0
      %2426 = vmatprep.subr.mxu0 0.0
      %2427 = vmatpush1.msra.mxu0 0.0
      %2428 = vmatprep.subr.mxu0 0.0
      %2429 = vmatpush1.msra.mxu0 0.0
      %2430 = vmatprep.subr.mxu0 0.0
      %2431 = vmatpush1.msra.mxu0 0.0
      %2432 = vmatprep.subr.mxu0 0.0
      %2433 = vmatpush1.msra.mxu0 0.0
      %2434 = vmatprep.subr.mxu0 0.0
      %2435 = vmatpush1.msra.mxu0 0.0
      %2436 = vmatprep.subr.mxu0 0.0
      %2437 = vmatpush1.msra.mxu0 0.0
      %2438 = vmatprep.subr.mxu0 0.0
      %2439 = vmatpush1.msra.mxu0 0.0
      %2440 = vmatprep.subr.mxu0 0.0
      %2441 = vmatpush1.msra.mxu0 0.0
      %2442 = vmatprep.subr.mxu0 0.0
      %2443 = vmatpush1.msra.mxu0 0.0
      %2444 = vmatprep.subr.mxu0 0.0
      %2445 = vmatpush1.msra.mxu0 0.0
      %2446 = vmatprep.subr.mxu0 0.0
      %2447 = vmatpush1.msra.mxu0 0.0
      %2448 = vmatprep.subr.mxu0 0.0
      %2449 = vmatpush1.msra.mxu0 0.0
      %2450 = vmatprep.subr.mxu0 0.0
      %2451 = vmatpush1.msra.mxu0 0.0
      %2452 = vmatprep.subr.mxu0 0.0
      %2453 = vmatpush1.msra.mxu0 0.0
      %2454 = vmatprep.subr.mxu0 0.0
      %2455 = vmatpush1.msra.mxu0 0.0
      %2456 = vmatprep.subr.mxu0 0.0
      %2457 = vmatpush1.msra.mxu0 0.0
      %2458 = vmatprep.mubr.f32.mxu0 0.0
      %2459 = vmatmul.mubr.f32.gmra.mrb[0].mxu0 %v2386
      %v2460 = vpop.f32.mrb[0].mxu0
      %v2461 = vadd.f32 %v2372, %v2460
      %v2462 = vpop.f32.mrb[0].mxu0
      %2463 = vmatprep.mubr.f32.mxu0 0.0
      %2464 = vmatmul.mubr.f32.gmra.mrb[0].mxu0 %v2389
      %v2465 = vpop.f32.mrb[0].mxu0
      %v2466 = vadd.f32 %v2377, %v2465
      %v2467 = vpop.f32.mrb[0].mxu0
      %2468 = vmatprep.mubr.f32.mxu0 0.0
      %2469 = vmatmul.mubr.f32.gmra.mrb[0].mxu0 %v2392
      %v2470 = vpop.f32.mrb[0].mxu0
      %v2471 = vadd.f32 %v2382, %v2470
      %v2472 = vpop.f32.mrb[0].mxu0
      %2473 = vdwg.mxu0
      %s2474 = scalar_lea.vmem %s5, 64
      %v2475 = vld [vmem:[%s2474] sm:$0xff]
      %v2476 = vld [vmem:[%s2474 + $0x8] sm:$0xff]
      %v2477 = vld [vmem:[%s2474 + $0x10] sm:$0xff]
      %v2478 = vld [vmem:[%s2474 + $0x18] sm:$0xff]
      %s2479 = scalar_lea.vmem %s6, 2
      %v2480 = vld [vmem:[%s2479] sm:$0x1]
      %v2482 = vlaneseq
      %v2483 = vshrl.u32 %v2482, 7
      %v2484 = vsub.s32 0, %v2483
      %v2485 = vrot.slane %v2480, %v2484
      %2487 = vmatprep.subr.mxu0 0.0
      %2488 = vmatpush1.msra.mxu0 %v2475
      %2489 = vmatprep.subr.mxu0 0.0
      %2490 = vmatpush1.msra.mxu0 %v2476
      %2491 = vmatprep.subr.mxu0 0.0
      %2492 = vmatpush1.msra.mxu0 %v2477
      %2493 = vmatprep.subr.mxu0 0.0
      %2494 = vmatpush1.msra.mxu0 %v2478
      %2495 = vmatprep.subr.mxu0 0.0
      %2496 = vmatpush1.msra.mxu0 0.0
      %2497 = vmatprep.subr.mxu0 0.0
      %2498 = vmatpush1.msra.mxu0 0.0
      %2499 = vmatprep.subr.mxu0 0.0
      %2500 = vmatpush1.msra.mxu0 0.0
      %2501 = vmatprep.subr.mxu0 0.0
      %2502 = vmatpush1.msra.mxu0 0.0
      %2503 = vmatprep.subr.mxu0 0.0
      %2504 = vmatpush1.msra.mxu0 0.0
      %2505 = vmatprep.subr.mxu0 0.0
      %2506 = vmatpush1.msra.mxu0 0.0
      %2507 = vmatprep.subr.mxu0 0.0
      %2508 = vmatpush1.msra.mxu0 0.0
      %2509 = vmatprep.subr.mxu0 0.0
      %2510 = vmatpush1.msra.mxu0 0.0
      %2511 = vmatprep.subr.mxu0 0.0
      %2512 = vmatpush1.msra.mxu0 0.0
      %2513 = vmatprep.subr.mxu0 0.0
      %2514 = vmatpush1.msra.mxu0 0.0
      %2515 = vmatprep.subr.mxu0 0.0
      %2516 = vmatpush1.msra.mxu0 0.0
      %2517 = vmatprep.subr.mxu0 0.0
      %2518 = vmatpush1.msra.mxu0 0.0
      %2519 = vmatprep.subr.mxu0 0.0
      %2520 = vmatpush1.msra.mxu0 0.0
      %2521 = vmatprep.subr.mxu0 0.0
      %2522 = vmatpush1.msra.mxu0 0.0
      %2523 = vmatprep.subr.mxu0 0.0
      %2524 = vmatpush1.msra.mxu0 0.0
      %2525 = vmatprep.subr.mxu0 0.0
      %2526 = vmatpush1.msra.mxu0 0.0
      %2527 = vmatprep.subr.mxu0 0.0
      %2528 = vmatpush1.msra.mxu0 0.0
      %2529 = vmatprep.subr.mxu0 0.0
      %2530 = vmatpush1.msra.mxu0 0.0
      %2531 = vmatprep.subr.mxu0 0.0
      %2532 = vmatpush1.msra.mxu0 0.0
      %2533 = vmatprep.subr.mxu0 0.0
      %2534 = vmatpush1.msra.mxu0 0.0
      %2535 = vmatprep.subr.mxu0 0.0
      %2536 = vmatpush1.msra.mxu0 0.0
      %2537 = vmatprep.subr.mxu0 0.0
      %2538 = vmatpush1.msra.mxu0 0.0
      %2539 = vmatprep.subr.mxu0 0.0
      %2540 = vmatpush1.msra.mxu0 0.0
      %2541 = vmatprep.subr.mxu0 0.0
      %2542 = vmatpush1.msra.mxu0 0.0
      %2543 = vmatprep.subr.mxu0 0.0
      %2544 = vmatpush1.msra.mxu0 0.0
      %2545 = vmatprep.subr.mxu0 0.0
      %2546 = vmatpush1.msra.mxu0 0.0
      %2547 = vmatprep.subr.mxu0 0.0
      %2548 = vmatpush1.msra.mxu0 0.0
      %2549 = vmatprep.subr.mxu0 0.0
      %2550 = vmatpush1.msra.mxu0 0.0
      %2551 = vmatprep.mubr.f32.mxu0 0.0
      %2552 = vmatmul.mubr.f32.gmra.mrb[0].mxu0 %v771
      %v2553 = vpop.f32.mrb[0].mxu0
      %v2554 = vadd.f32 %v2485, %v2553
      %v2555 = vpop.f32.mrb[0].mxu0
      %2556 = vmatprep.mubr.f32.mxu0 0.0
      %2557 = vmatmul.mubr.f32.gmra.mrb[0].mxu0 %v774
      %v2558 = vpop.f32.mrb[0].mxu0
      %v2559 = vadd.f32 %v2485, %v2558
      %v2560 = vpop.f32.mrb[0].mxu0
      %2561 = vmatprep.mubr.f32.mxu0 0.0
      %2562 = vmatmul.mubr.f32.gmra.mrb[0].mxu0 %v777
      %v2563 = vpop.f32.mrb[0].mxu0
      %v2564 = vadd.f32 %v2485, %v2563
      %v2565 = vpop.f32.mrb[0].mxu0
      %2566 = vdwg.mxu0
      %s2567 = scalar_lea.vmem %s7, 64
      %v2568 = vld [vmem:[%s2567] sm:$0xff]
      %v2569 = vld [vmem:[%s2567 + $0x8] sm:$0xff]
      %v2570 = vld [vmem:[%s2567 + $0x10] sm:$0xff]
      %v2571 = vld [vmem:[%s2567 + $0x18] sm:$0xff]
      %s2572 = scalar_lea.vmem %s8, 2
      %v2573 = vld [vmem:[%s2572] sm:$0x1]
      %v2575 = vlaneseq
      %v2576 = vshrl.u32 %v2575, 7
      %v2577 = vsub.s32 0, %v2576
      %v2578 = vrot.slane %v2573, %v2577
      %2580 = vmatprep.subr.mxu0 0.0
      %2581 = vmatpush1.msra.mxu0 %v2568
      %2582 = vmatprep.subr.mxu0 0.0
      %2583 = vmatpush1.msra.mxu0 %v2569
      %2584 = vmatprep.subr.mxu0 0.0
      %2585 = vmatpush1.msra.mxu0 %v2570
      %2586 = vmatprep.subr.mxu0 0.0
      %2587 = vmatpush1.msra.mxu0 %v2571
      %2588 = vmatprep.subr.mxu0 0.0
      %2589 = vmatpush1.msra.mxu0 0.0
      %2590 = vmatprep.subr.mxu0 0.0
      %2591 = vmatpush1.msra.mxu0 0.0
      %2592 = vmatprep.subr.mxu0 0.0
      %2593 = vmatpush1.msra.mxu0 0.0
      %2594 = vmatprep.subr.mxu0 0.0
      %2595 = vmatpush1.msra.mxu0 0.0
      %2596 = vmatprep.subr.mxu0 0.0
      %2597 = vmatpush1.msra.mxu0 0.0
      %2598 = vmatprep.subr.mxu0 0.0
      %2599 = vmatpush1.msra.mxu0 0.0
      %2600 = vmatprep.subr.mxu0 0.0
      %2601 = vmatpush1.msra.mxu0 0.0
      %2602 = vmatprep.subr.mxu0 0.0
      %2603 = vmatpush1.msra.mxu0 0.0
      %2604 = vmatprep.subr.mxu0 0.0
      %2605 = vmatpush1.msra.mxu0 0.0
      %2606 = vmatprep.subr.mxu0 0.0
      %2607 = vmatpush1.msra.mxu0 0.0
      %2608 = vmatprep.subr.mxu0 0.0
      %2609 = vmatpush1.msra.mxu0 0.0
      %2610 = vmatprep.subr.mxu0 0.0
      %2611 = vmatpush1.msra.mxu0 0.0
      %2612 = vmatprep.subr.mxu0 0.0
      %2613 = vmatpush1.msra.mxu0 0.0
      %2614 = vmatprep.subr.mxu0 0.0
      %2615 = vmatpush1.msra.mxu0 0.0
      %2616 = vmatprep.subr.mxu0 0.0
      %2617 = vmatpush1.msra.mxu0 0.0
      %2618 = vmatprep.subr.mxu0 0.0
      %2619 = vmatpush1.msra.mxu0 0.0
      %2620 = vmatprep.subr.mxu0 0.0
      %2621 = vmatpush1.msra.mxu0 0.0
      %2622 = vmatprep.subr.mxu0 0.0
      %2623 = vmatpush1.msra.mxu0 0.0
      %2624 = vmatprep.subr.mxu0 0.0
      %2625 = vmatpush1.msra.mxu0 0.0
      %2626 = vmatprep.subr.mxu0 0.0
      %2627 = vmatpush1.msra.mxu0 0.0
      %2628 = vmatprep.subr.mxu0 0.0
      %2629 = vmatpush1.msra.mxu0 0.0
      %2630 = vmatprep.subr.mxu0 0.0
      %2631 = vmatpush1.msra.mxu0 0.0
      %2632 = vmatprep.subr.mxu0 0.0
      %2633 = vmatpush1.msra.mxu0 0.0
      %2634 = vmatprep.subr.mxu0 0.0
      %2635 = vmatpush1.msra.mxu0 0.0
      %2636 = vmatprep.subr.mxu0 0.0
      %2637 = vmatpush1.msra.mxu0 0.0
      %2638 = vmatprep.subr.mxu0 0.0
      %2639 = vmatpush1.msra.mxu0 0.0
      %2640 = vmatprep.subr.mxu0 0.0
      %2641 = vmatpush1.msra.mxu0 0.0
      %2642 = vmatprep.subr.mxu0 0.0
      %2643 = vmatpush1.msra.mxu0 0.0
      %2644 = vmatprep.mubr.f32.mxu0 0.0
      %2645 = vmatmul.mubr.f32.gmra.mrb[0].mxu0 %v771
      %v2646 = vpop.f32.mrb[0].mxu0
      %v2647 = vadd.f32 %v2578, %v2646
      %v2648 = vpop.f32.mrb[0].mxu0
      %2649 = vmatprep.mubr.f32.mxu0 0.0
      %2650 = vmatmul.mubr.f32.gmra.mrb[0].mxu0 %v774
      %v2651 = vpop.f32.mrb[0].mxu0
      %v2652 = vadd.f32 %v2578, %v2651
      %v2653 = vpop.f32.mrb[0].mxu0
      %2654 = vmatprep.mubr.f32.mxu0 0.0
      %2655 = vmatmul.mubr.f32.gmra.mrb[0].mxu0 %v777
      %v2656 = vpop.f32.mrb[0].mxu0
      %v2657 = vadd.f32 %v2578, %v2656
      %v2658 = vpop.f32.mrb[0].mxu0
      %2659 = vdwg.mxu0
      %s2660 = scalar_lea.vmem %s9, 64
      %v2661 = vld [vmem:[%s2660] sm:$0xff]
      %v2662 = vld [vmem:[%s2660 + $0x8] sm:$0xff]
      %v2663 = vld [vmem:[%s2660 + $0x10] sm:$0xff]
      %v2664 = vld [vmem:[%s2660 + $0x18] sm:$0xff]
      %s2665 = scalar_lea.vmem %s10, 2
      %v2666 = vld [vmem:[%s2665] sm:$0x1]
      %v2668 = vlaneseq
      %v2669 = vshrl.u32 %v2668, 7
      %v2670 = vsub.s32 0, %v2669
      %v2671 = vrot.slane %v2666, %v2670
      %2673 = vmatprep.subr.mxu0 0.0
      %2674 = vmatpush1.msra.mxu0 %v2661
      %2675 = vmatprep.subr.mxu0 0.0
      %2676 = vmatpush1.msra.mxu0 %v2662
      %2677 = vmatprep.subr.mxu0 0.0
      %2678 = vmatpush1.msra.mxu0 %v2663
      %2679 = vmatprep.subr.mxu0 0.0
      %2680 = vmatpush1.msra.mxu0 %v2664
      %2681 = vmatprep.subr.mxu0 0.0
      %2682 = vmatpush1.msra.mxu0 0.0
      %2683 = vmatprep.subr.mxu0 0.0
      %2684 = vmatpush1.msra.mxu0 0.0
      %2685 = vmatprep.subr.mxu0 0.0
      %2686 = vmatpush1.msra.mxu0 0.0
      %2687 = vmatprep.subr.mxu0 0.0
      %2688 = vmatpush1.msra.mxu0 0.0
      %2689 = vmatprep.subr.mxu0 0.0
      %2690 = vmatpush1.msra.mxu0 0.0
      %2691 = vmatprep.subr.mxu0 0.0
      %2692 = vmatpush1.msra.mxu0 0.0
      %2693 = vmatprep.subr.mxu0 0.0
      %2694 = vmatpush1.msra.mxu0 0.0
      %2695 = vmatprep.subr.mxu0 0.0
      %2696 = vmatpush1.msra.mxu0 0.0
      %2697 = vmatprep.subr.mxu0 0.0
      %2698 = vmatpush1.msra.mxu0 0.0
      %2699 = vmatprep.subr.mxu0 0.0
      %2700 = vmatpush1.msra.mxu0 0.0
      %2701 = vmatprep.subr.mxu0 0.0
      %2702 = vmatpush1.msra.mxu0 0.0
      %2703 = vmatprep.subr.mxu0 0.0
      %2704 = vmatpush1.msra.mxu0 0.0
      %2705 = vmatprep.subr.mxu0 0.0
      %2706 = vmatpush1.msra.mxu0 0.0
      %2707 = vmatprep.subr.mxu0 0.0
      %2708 = vmatpush1.msra.mxu0 0.0
      %2709 = vmatprep.subr.mxu0 0.0
      %2710 = vmatpush1.msra.mxu0 0.0
      %2711 = vmatprep.subr.mxu0 0.0
      %2712 = vmatpush1.msra.mxu0 0.0
      %2713 = vmatprep.subr.mxu0 0.0
      %2714 = vmatpush1.msra.mxu0 0.0
      %2715 = vmatprep.subr.mxu0 0.0
      %2716 = vmatpush1.msra.mxu0 0.0
      %2717 = vmatprep.subr.mxu0 0.0
      %2718 = vmatpush1.msra.mxu0 0.0
      %2719 = vmatprep.subr.mxu0 0.0
      %2720 = vmatpush1.msra.mxu0 0.0
      %2721 = vmatprep.subr.mxu0 0.0
      %2722 = vmatpush1.msra.mxu0 0.0
      %2723 = vmatprep.subr.mxu0 0.0
      %2724 = vmatpush1.msra.mxu0 0.0
      %2725 = vmatprep.subr.mxu0 0.0
      %2726 = vmatpush1.msra.mxu0 0.0
      %2727 = vmatprep.subr.mxu0 0.0
      %2728 = vmatpush1.msra.mxu0 0.0
      %2729 = vmatprep.subr.mxu0 0.0
      %2730 = vmatpush1.msra.mxu0 0.0
      %2731 = vmatprep.subr.mxu0 0.0
      %2732 = vmatpush1.msra.mxu0 0.0
      %2733 = vmatprep.subr.mxu0 0.0
      %2734 = vmatpush1.msra.mxu0 0.0
      %2735 = vmatprep.subr.mxu0 0.0
      %2736 = vmatpush1.msra.mxu0 0.0
      %2737 = vmatprep.mubr.f32.mxu0 0.0
      %2738 = vmatmul.mubr.f32.gmra.mrb[0].mxu0 %v771
      %v2739 = vpop.f32.mrb[0].mxu0
      %v2740 = vadd.f32 %v2671, %v2739
      %v2741 = vpop.f32.mrb[0].mxu0
      %2742 = vmatprep.mubr.f32.mxu0 0.0
      %2743 = vmatmul.mubr.f32.gmra.mrb[0].mxu0 %v774
      %v2744 = vpop.f32.mrb[0].mxu0
      %v2745 = vadd.f32 %v2671, %v2744
      %v2746 = vpop.f32.mrb[0].mxu0
      %2747 = vmatprep.mubr.f32.mxu0 0.0
      %2748 = vmatmul.mubr.f32.gmra.mrb[0].mxu0 %v777
      %v2749 = vpop.f32.mrb[0].mxu0
      %v2750 = vadd.f32 %v2671, %v2749
      %v2751 = vpop.f32.mrb[0].mxu0
      %2752 = vdwg.mxu0
      %v2754 = vsel %vm1041, %v2554, 0
      %v2757 = vsel %vm1041, %v2647, 0
      %2759 = vmatprep.subr.mxu0 0.0
      %2760 = vmatpush1.xpose.msra.mxu0 %v2757
      %2761 = vmatprep.subr.mxu0 0.0
      %2762 = vmatpush1.xpose.msra.mxu0 0.0
      %2763 = vmatprep.subr.mxu0 0.0
      %2764 = vmatpush1.xpose.msra.mxu0 0.0
      %2765 = vmatprep.subr.mxu0 0.0
      %2766 = vmatpush1.xpose.msra.mxu0 0.0
      %2767 = vmatprep.subr.mxu0 0.0
      %2768 = vmatpush1.xpose.msra.mxu0 0.0
      %2769 = vmatprep.subr.mxu0 0.0
      %2770 = vmatpush1.xpose.msra.mxu0 0.0
      %2771 = vmatprep.subr.mxu0 0.0
      %2772 = vmatpush1.xpose.msra.mxu0 0.0
      %2773 = vmatprep.subr.mxu0 0.0
      %2774 = vmatpush1.xpose.msra.mxu0 0.0
      %2775 = vmatprep.subr.mxu0 0.0
      %2776 = vmatpush1.xpose.msra.mxu0 0.0
      %2777 = vmatprep.subr.mxu0 0.0
      %2778 = vmatpush1.xpose.msra.mxu0 0.0
      %2779 = vmatprep.subr.mxu0 0.0
      %2780 = vmatpush1.xpose.msra.mxu0 0.0
      %2781 = vmatprep.subr.mxu0 0.0
      %2782 = vmatpush1.xpose.msra.mxu0 0.0
      %2783 = vmatprep.subr.mxu0 0.0
      %2784 = vmatpush1.xpose.msra.mxu0 0.0
      %2785 = vmatprep.subr.mxu0 0.0
      %2786 = vmatpush1.xpose.msra.mxu0 0.0
      %2787 = vmatprep.subr.mxu0 0.0
      %2788 = vmatpush1.xpose.msra.mxu0 0.0
      %2789 = vmatprep.subr.mxu0 0.0
      %2790 = vmatpush1.xpose.msra.mxu0 0.0
      %2791 = vmatprep.subr.mxu0 0.0
      %2792 = vmatpush1.xpose.msra.mxu0 0.0
      %2793 = vmatprep.subr.mxu0 0.0
      %2794 = vmatpush1.xpose.msra.mxu0 0.0
      %2795 = vmatprep.subr.mxu0 0.0
      %2796 = vmatpush1.xpose.msra.mxu0 0.0
      %2797 = vmatprep.subr.mxu0 0.0
      %2798 = vmatpush1.xpose.msra.mxu0 0.0
      %2799 = vmatprep.subr.mxu0 0.0
      %2800 = vmatpush1.xpose.msra.mxu0 0.0
      %2801 = vmatprep.subr.mxu0 0.0
      %2802 = vmatpush1.xpose.msra.mxu0 0.0
      %2803 = vmatprep.subr.mxu0 0.0
      %2804 = vmatpush1.xpose.msra.mxu0 0.0
      %2805 = vmatprep.subr.mxu0 0.0
      %2806 = vmatpush1.xpose.msra.mxu0 0.0
      %2807 = vmatprep.subr.mxu0 0.0
      %2808 = vmatpush1.xpose.msra.mxu0 0.0
      %2809 = vmatprep.subr.mxu0 0.0
      %2810 = vmatpush1.xpose.msra.mxu0 0.0
      %2811 = vmatprep.subr.mxu0 0.0
      %2812 = vmatpush1.xpose.msra.mxu0 0.0
      %2813 = vmatprep.subr.mxu0 0.0
      %2814 = vmatpush1.xpose.msra.mxu0 0.0
      %2815 = vmatprep.subr.mxu0 0.0
      %2816 = vmatpush1.xpose.msra.mxu0 0.0
      %2817 = vmatprep.subr.mxu0 0.0
      %2818 = vmatpush1.xpose.msra.mxu0 0.0
      %2819 = vmatprep.subr.mxu0 0.0
      %2820 = vmatpush1.xpose.msra.mxu0 0.0
      %2821 = vmatprep.subr.mxu0 0.0
      %2822 = vmatpush1.xpose.msra.mxu0 0.0
      %2823 = vmatprep.mubr.f32.mxu0 0.0
      %2824 = vmatmul.mubr.f32.gmra.mrb[0].mxu0 %v2754
      %v2825 = vpop.f32.mrb[0].mxu0
      %v2826 = vadd.f32 0.0, %v2825
      %v2827 = vpop.f32.mrb[0].mxu0
      %2828 = vdwg.mxu0
      %v2830 = vsel %vm1041, %v2559, 0
      %v2833 = vsel %vm1041, %v2652, 0
      %2835 = vmatprep.subr.mxu0 0.0
      %2836 = vmatpush1.xpose.msra.mxu0 %v2833
      %2837 = vmatprep.subr.mxu0 0.0
      %2838 = vmatpush1.xpose.msra.mxu0 0.0
      %2839 = vmatprep.subr.mxu0 0.0
      %2840 = vmatpush1.xpose.msra.mxu0 0.0
      %2841 = vmatprep.subr.mxu0 0.0
      %2842 = vmatpush1.xpose.msra.mxu0 0.0
      %2843 = vmatprep.subr.mxu0 0.0
      %2844 = vmatpush1.xpose.msra.mxu0 0.0
      %2845 = vmatprep.subr.mxu0 0.0
      %2846 = vmatpush1.xpose.msra.mxu0 0.0
      %2847 = vmatprep.subr.mxu0 0.0
      %2848 = vmatpush1.xpose.msra.mxu0 0.0
      %2849 = vmatprep.subr.mxu0 0.0
      %2850 = vmatpush1.xpose.msra.mxu0 0.0
      %2851 = vmatprep.subr.mxu0 0.0
      %2852 = vmatpush1.xpose.msra.mxu0 0.0
      %2853 = vmatprep.subr.mxu0 0.0
      %2854 = vmatpush1.xpose.msra.mxu0 0.0
      %2855 = vmatprep.subr.mxu0 0.0
      %2856 = vmatpush1.xpose.msra.mxu0 0.0
      %2857 = vmatprep.subr.mxu0 0.0
      %2858 = vmatpush1.xpose.msra.mxu0 0.0
      %2859 = vmatprep.subr.mxu0 0.0
      %2860 = vmatpush1.xpose.msra.mxu0 0.0
      %2861 = vmatprep.subr.mxu0 0.0
      %2862 = vmatpush1.xpose.msra.mxu0 0.0
      %2863 = vmatprep.subr.mxu0 0.0
      %2864 = vmatpush1.xpose.msra.mxu0 0.0
      %2865 = vmatprep.subr.mxu0 0.0
      %2866 = vmatpush1.xpose.msra.mxu0 0.0
      %2867 = vmatprep.subr.mxu0 0.0
      %2868 = vmatpush1.xpose.msra.mxu0 0.0
      %2869 = vmatprep.subr.mxu0 0.0
      %2870 = vmatpush1.xpose.msra.mxu0 0.0
      %2871 = vmatprep.subr.mxu0 0.0
      %2872 = vmatpush1.xpose.msra.mxu0 0.0
      %2873 = vmatprep.subr.mxu0 0.0
      %2874 = vmatpush1.xpose.msra.mxu0 0.0
      %2875 = vmatprep.subr.mxu0 0.0
      %2876 = vmatpush1.xpose.msra.mxu0 0.0
      %2877 = vmatprep.subr.mxu0 0.0
      %2878 = vmatpush1.xpose.msra.mxu0 0.0
      %2879 = vmatprep.subr.mxu0 0.0
      %2880 = vmatpush1.xpose.msra.mxu0 0.0
      %2881 = vmatprep.subr.mxu0 0.0
      %2882 = vmatpush1.xpose.msra.mxu0 0.0
      %2883 = vmatprep.subr.mxu0 0.0
      %2884 = vmatpush1.xpose.msra.mxu0 0.0
      %2885 = vmatprep.subr.mxu0 0.0
      %2886 = vmatpush1.xpose.msra.mxu0 0.0
      %2887 = vmatprep.subr.mxu0 0.0
      %2888 = vmatpush1.xpose.msra.mxu0 0.0
      %2889 = vmatprep.subr.mxu0 0.0
      %2890 = vmatpush1.xpose.msra.mxu0 0.0
      %2891 = vmatprep.subr.mxu0 0.0
      %2892 = vmatpush1.xpose.msra.mxu0 0.0
      %2893 = vmatprep.subr.mxu0 0.0
      %2894 = vmatpush1.xpose.msra.mxu0 0.0
      %2895 = vmatprep.subr.mxu0 0.0
      %2896 = vmatpush1.xpose.msra.mxu0 0.0
      %2897 = vmatprep.subr.mxu0 0.0
      %2898 = vmatpush1.xpose.msra.mxu0 0.0
      %2899 = vmatprep.mubr.f32.mxu0 0.0
      %2900 = vmatmul.mubr.f32.gmra.mrb[0].mxu0 %v2830
      %v2901 = vpop.f32.mrb[0].mxu0
      %v2902 = vadd.f32 0.0, %v2901
      %v2903 = vpop.f32.mrb[0].mxu0
      %2904 = vdwg.mxu0
      %v2906 = vsel %vm1041, %v2564, 0
      %v2909 = vsel %vm1041, %v2657, 0
      %2911 = vmatprep.subr.mxu0 0.0
      %2912 = vmatpush1.xpose.msra.mxu0 %v2909
      %2913 = vmatprep.subr.mxu0 0.0
      %2914 = vmatpush1.xpose.msra.mxu0 0.0
      %2915 = vmatprep.subr.mxu0 0.0
      %2916 = vmatpush1.xpose.msra.mxu0 0.0
      %2917 = vmatprep.subr.mxu0 0.0
      %2918 = vmatpush1.xpose.msra.mxu0 0.0
      %2919 = vmatprep.subr.mxu0 0.0
      %2920 = vmatpush1.xpose.msra.mxu0 0.0
      %2921 = vmatprep.subr.mxu0 0.0
      %2922 = vmatpush1.xpose.msra.mxu0 0.0
      %2923 = vmatprep.subr.mxu0 0.0
      %2924 = vmatpush1.xpose.msra.mxu0 0.0
      %2925 = vmatprep.subr.mxu0 0.0
      %2926 = vmatpush1.xpose.msra.mxu0 0.0
      %2927 = vmatprep.subr.mxu0 0.0
      %2928 = vmatpush1.xpose.msra.mxu0 0.0
      %2929 = vmatprep.subr.mxu0 0.0
      %2930 = vmatpush1.xpose.msra.mxu0 0.0
      %2931 = vmatprep.subr.mxu0 0.0
      %2932 = vmatpush1.xpose.msra.mxu0 0.0
      %2933 = vmatprep.subr.mxu0 0.0
      %2934 = vmatpush1.xpose.msra.mxu0 0.0
      %2935 = vmatprep.subr.mxu0 0.0
      %2936 = vmatpush1.xpose.msra.mxu0 0.0
      %2937 = vmatprep.subr.mxu0 0.0
      %2938 = vmatpush1.xpose.msra.mxu0 0.0
      %2939 = vmatprep.subr.mxu0 0.0
      %2940 = vmatpush1.xpose.msra.mxu0 0.0
      %2941 = vmatprep.subr.mxu0 0.0
      %2942 = vmatpush1.xpose.msra.mxu0 0.0
      %2943 = vmatprep.subr.mxu0 0.0
      %2944 = vmatpush1.xpose.msra.mxu0 0.0
      %2945 = vmatprep.subr.mxu0 0.0
      %2946 = vmatpush1.xpose.msra.mxu0 0.0
      %2947 = vmatprep.subr.mxu0 0.0
      %2948 = vmatpush1.xpose.msra.mxu0 0.0
      %2949 = vmatprep.subr.mxu0 0.0
      %2950 = vmatpush1.xpose.msra.mxu0 0.0
      %2951 = vmatprep.subr.mxu0 0.0
      %2952 = vmatpush1.xpose.msra.mxu0 0.0
      %2953 = vmatprep.subr.mxu0 0.0
      %2954 = vmatpush1.xpose.msra.mxu0 0.0
      %2955 = vmatprep.subr.mxu0 0.0
      %2956 = vmatpush1.xpose.msra.mxu0 0.0
      %2957 = vmatprep.subr.mxu0 0.0
      %2958 = vmatpush1.xpose.msra.mxu0 0.0
      %2959 = vmatprep.subr.mxu0 0.0
      %2960 = vmatpush1.xpose.msra.mxu0 0.0
      %2961 = vmatprep.subr.mxu0 0.0
      %2962 = vmatpush1.xpose.msra.mxu0 0.0
      %2963 = vmatprep.subr.mxu0 0.0
      %2964 = vmatpush1.xpose.msra.mxu0 0.0
      %2965 = vmatprep.subr.mxu0 0.0
      %2966 = vmatpush1.xpose.msra.mxu0 0.0
      %2967 = vmatprep.subr.mxu0 0.0
      %2968 = vmatpush1.xpose.msra.mxu0 0.0
      %2969 = vmatprep.subr.mxu0 0.0
      %2970 = vmatpush1.xpose.msra.mxu0 0.0
      %2971 = vmatprep.subr.mxu0 0.0
      %2972 = vmatpush1.xpose.msra.mxu0 0.0
      %2973 = vmatprep.subr.mxu0 0.0
      %2974 = vmatpush1.xpose.msra.mxu0 0.0
      %2975 = vmatprep.mubr.f32.mxu0 0.0
      %2976 = vmatmul.mubr.f32.gmra.mrb[0].mxu0 %v2906
      %v2977 = vpop.f32.mrb[0].mxu0
      %v2978 = vadd.f32 0.0, %v2977
      %v2979 = vpop.f32.mrb[0].mxu0
      %2980 = vdwg.mxu0
      %v2981 = vmul.f32 %v2826, 0.35355338
      %v2982 = vmul.f32 %v2902, 0.35355338
      %v2983 = vmul.f32 %v2978, 0.35355338
      %v2984 = vadd.f32 %v2981, %v695
      %v2985 = vadd.f32 %v2982, %v696
      %v2986 = vadd.f32 %v2983, %v697
      %v2987 = vsel %vm1041, %v2984, -inf
      %2988 = vmax.xlane.f32.xlu0 %v2987
      %v2989 = vpop.xlane.xlu0 %2988
      %v2990 = vsel %vm1041, %v2985, -inf
      %2991 = vmax.xlane.f32.xlu0 %v2990
      %v2992 = vpop.xlane.xlu0 %2991
      %v2993 = vsel %vm1041, %v2986, -inf
      %2994 = vmax.xlane.f32.xlu0 %v2993
      %v2995 = vpop.xlane.xlu0 %2994
      %v2996 = vsub.f32 %v2984, %v2989
      %v2997 = vsub.f32 %v2985, %v2992
      %v2998 = vsub.f32 %v2986, %v2995
      %v2999 = vmul.f32 %v2996, 1.442695
      %v3000 = vpow.pop %v2999
      %v3001 = vmul.f32 %v2997, 1.442695
      %v3002 = vpow.pop %v3001
      %v3003 = vmul.f32 %v2998, 1.442695
      %v3004 = vpow.pop %v3003
      %v3005 = vsel %vm1041, %v3000, 0.0
      %3006 = vadd.xlane.f32.xlu0 %v3005
      %v3007 = vpop.xlane.xlu0 %3006
      %v3008 = vsel %vm1041, %v3002, 0.0
      %3009 = vadd.xlane.f32.xlu0 %v3008
      %v3010 = vpop.xlane.xlu0 %3009
      %v3011 = vsel %vm1041, %v3004, 0.0
      %3012 = vadd.xlane.f32.xlu0 %v3011
      %v3013 = vpop.xlane.xlu0 %3012
      %v3014 = vrcp.pop %v3007
      %v3015 = vrcp.pop %v3010
      %v3016 = vrcp.pop %v3013
      %v3017 = vmul.f32 %v3000, %v3014
      %v3018 = vmul.f32 %v3002, %v3015
      %v3019 = vmul.f32 %v3004, %v3016
      %v3021 = vsel %vm1041, %v3017, 0
      %3023 = vmatprep.subr.mxu0 0.0
      %3024 = vmatpush1.msra.mxu0 %v2740
      %3025 = vmatprep.subr.mxu0 0.0
      %3026 = vmatpush1.msra.mxu0 0.0
      %3027 = vmatprep.subr.mxu0 0.0
      %3028 = vmatpush1.msra.mxu0 0.0
      %3029 = vmatprep.subr.mxu0 0.0
      %3030 = vmatpush1.msra.mxu0 0.0
      %3031 = vmatprep.subr.mxu0 0.0
      %3032 = vmatpush1.msra.mxu0 0.0
      %3033 = vmatprep.subr.mxu0 0.0
      %3034 = vmatpush1.msra.mxu0 0.0
      %3035 = vmatprep.subr.mxu0 0.0
      %3036 = vmatpush1.msra.mxu0 0.0
      %3037 = vmatprep.subr.mxu0 0.0
      %3038 = vmatpush1.msra.mxu0 0.0
      %3039 = vmatprep.subr.mxu0 0.0
      %3040 = vmatpush1.msra.mxu0 0.0
      %3041 = vmatprep.subr.mxu0 0.0
      %3042 = vmatpush1.msra.mxu0 0.0
      %3043 = vmatprep.subr.mxu0 0.0
      %3044 = vmatpush1.msra.mxu0 0.0
      %3045 = vmatprep.subr.mxu0 0.0
      %3046 = vmatpush1.msra.mxu0 0.0
      %3047 = vmatprep.subr.mxu0 0.0
      %3048 = vmatpush1.msra.mxu0 0.0
      %3049 = vmatprep.subr.mxu0 0.0
      %3050 = vmatpush1.msra.mxu0 0.0
      %3051 = vmatprep.subr.mxu0 0.0
      %3052 = vmatpush1.msra.mxu0 0.0
      %3053 = vmatprep.subr.mxu0 0.0
      %3054 = vmatpush1.msra.mxu0 0.0
      %3055 = vmatprep.subr.mxu0 0.0
      %3056 = vmatpush1.msra.mxu0 0.0
      %3057 = vmatprep.subr.mxu0 0.0
      %3058 = vmatpush1.msra.mxu0 0.0
      %3059 = vmatprep.subr.mxu0 0.0
      %3060 = vmatpush1.msra.mxu0 0.0
      %3061 = vmatprep.subr.mxu0 0.0
      %3062 = vmatpush1.msra.mxu0 0.0
      %3063 = vmatprep.subr.mxu0 0.0
      %3064 = vmatpush1.msra.mxu0 0.0
      %3065 = vmatprep.subr.mxu0 0.0
      %3066 = vmatpush1.msra.mxu0 0.0
      %3067 = vmatprep.subr.mxu0 0.0
      %3068 = vmatpush1.msra.mxu0 0.0
      %3069 = vmatprep.subr.mxu0 0.0
      %3070 = vmatpush1.msra.mxu0 0.0
      %3071 = vmatprep.subr.mxu0 0.0
      %3072 = vmatpush1.msra.mxu0 0.0
      %3073 = vmatprep.subr.mxu0 0.0
      %3074 = vmatpush1.msra.mxu0 0.0
      %3075 = vmatprep.subr.mxu0 0.0
      %3076 = vmatpush1.msra.mxu0 0.0
      %3077 = vmatprep.subr.mxu0 0.0
      %3078 = vmatpush1.msra.mxu0 0.0
      %3079 = vmatprep.subr.mxu0 0.0
      %3080 = vmatpush1.msra.mxu0 0.0
      %3081 = vmatprep.subr.mxu0 0.0
      %3082 = vmatpush1.msra.mxu0 0.0
      %3083 = vmatprep.subr.mxu0 0.0
      %3084 = vmatpush1.msra.mxu0 0.0
      %3085 = vmatprep.subr.mxu0 0.0
      %3086 = vmatpush1.msra.mxu0 0.0
      %3087 = vmatprep.mubr.f32.mxu0 0.0
      %3088 = vmatmul.mubr.f32.gmra.mrb[0].mxu0 %v3021
      %v3089 = vpop.f32.mrb[0].mxu0
      %v3090 = vadd.f32 0.0, %v3089
      %v3091 = vpop.f32.mrb[0].mxu0
      %3092 = vdwg.mxu0
      %v3094 = vsel %vm1041, %v3018, 0
      %3096 = vmatprep.subr.mxu0 0.0
      %3097 = vmatpush1.msra.mxu0 %v2745
      %3098 = vmatprep.subr.mxu0 0.0
      %3099 = vmatpush1.msra.mxu0 0.0
      %3100 = vmatprep.subr.mxu0 0.0
      %3101 = vmatpush1.msra.mxu0 0.0
      %3102 = vmatprep.subr.mxu0 0.0
      %3103 = vmatpush1.msra.mxu0 0.0
      %3104 = vmatprep.subr.mxu0 0.0
      %3105 = vmatpush1.msra.mxu0 0.0
      %3106 = vmatprep.subr.mxu0 0.0
      %3107 = vmatpush1.msra.mxu0 0.0
      %3108 = vmatprep.subr.mxu0 0.0
      %3109 = vmatpush1.msra.mxu0 0.0
      %3110 = vmatprep.subr.mxu0 0.0
      %3111 = vmatpush1.msra.mxu0 0.0
      %3112 = vmatprep.subr.mxu0 0.0
      %3113 = vmatpush1.msra.mxu0 0.0
      %3114 = vmatprep.subr.mxu0 0.0
      %3115 = vmatpush1.msra.mxu0 0.0
      %3116 = vmatprep.subr.mxu0 0.0
      %3117 = vmatpush1.msra.mxu0 0.0
      %3118 = vmatprep.subr.mxu0 0.0
      %3119 = vmatpush1.msra.mxu0 0.0
      %3120 = vmatprep.subr.mxu0 0.0
      %3121 = vmatpush1.msra.mxu0 0.0
      %3122 = vmatprep.subr.mxu0 0.0
      %3123 = vmatpush1.msra.mxu0 0.0
      %3124 = vmatprep.subr.mxu0 0.0
      %3125 = vmatpush1.msra.mxu0 0.0
      %3126 = vmatprep.subr.mxu0 0.0
      %3127 = vmatpush1.msra.mxu0 0.0
      %3128 = vmatprep.subr.mxu0 0.0
      %3129 = vmatpush1.msra.mxu0 0.0
      %3130 = vmatprep.subr.mxu0 0.0
      %3131 = vmatpush1.msra.mxu0 0.0
      %3132 = vmatprep.subr.mxu0 0.0
      %3133 = vmatpush1.msra.mxu0 0.0
      %3134 = vmatprep.subr.mxu0 0.0
      %3135 = vmatpush1.msra.mxu0 0.0
      %3136 = vmatprep.subr.mxu0 0.0
      %3137 = vmatpush1.msra.mxu0 0.0
      %3138 = vmatprep.subr.mxu0 0.0
      %3139 = vmatpush1.msra.mxu0 0.0
      %3140 = vmatprep.subr.mxu0 0.0
      %3141 = vmatpush1.msra.mxu0 0.0
      %3142 = vmatprep.subr.mxu0 0.0
      %3143 = vmatpush1.msra.mxu0 0.0
      %3144 = vmatprep.subr.mxu0 0.0
      %3145 = vmatpush1.msra.mxu0 0.0
      %3146 = vmatprep.subr.mxu0 0.0
      %3147 = vmatpush1.msra.mxu0 0.0
      %3148 = vmatprep.subr.mxu0 0.0
      %3149 = vmatpush1.msra.mxu0 0.0
      %3150 = vmatprep.subr.mxu0 0.0
      %3151 = vmatpush1.msra.mxu0 0.0
      %3152 = vmatprep.subr.mxu0 0.0
      %3153 = vmatpush1.msra.mxu0 0.0
      %3154 = vmatprep.subr.mxu0 0.0
      %3155 = vmatpush1.msra.mxu0 0.0
      %3156 = vmatprep.subr.mxu0 0.0
      %3157 = vmatpush1.msra.mxu0 0.0
      %3158 = vmatprep.subr.mxu0 0.0
      %3159 = vmatpush1.msra.mxu0 0.0
      %3160 = vmatprep.mubr.f32.mxu0 0.0
      %3161 = vmatmul.mubr.f32.gmra.mrb[0].mxu0 %v3094
      %v3162 = vpop.f32.mrb[0].mxu0
      %v3163 = vadd.f32 0.0, %v3162
      %v3164 = vpop.f32.mrb[0].mxu0
      %3165 = vdwg.mxu0
      %v3167 = vsel %vm1041, %v3019, 0
      %3169 = vmatprep.subr.mxu0 0.0
      %3170 = vmatpush1.msra.mxu0 %v2750
      %3171 = vmatprep.subr.mxu0 0.0
      %3172 = vmatpush1.msra.mxu0 0.0
      %3173 = vmatprep.subr.mxu0 0.0
      %3174 = vmatpush1.msra.mxu0 0.0
      %3175 = vmatprep.subr.mxu0 0.0
      %3176 = vmatpush1.msra.mxu0 0.0
      %3177 = vmatprep.subr.mxu0 0.0
      %3178 = vmatpush1.msra.mxu0 0.0
      %3179 = vmatprep.subr.mxu0 0.0
      %3180 = vmatpush1.msra.mxu0 0.0
      %3181 = vmatprep.subr.mxu0 0.0
      %3182 = vmatpush1.msra.mxu0 0.0
      %3183 = vmatprep.subr.mxu0 0.0
      %3184 = vmatpush1.msra.mxu0 0.0
      %3185 = vmatprep.subr.mxu0 0.0
      %3186 = vmatpush1.msra.mxu0 0.0
      %3187 = vmatprep.subr.mxu0 0.0
      %3188 = vmatpush1.msra.mxu0 0.0
      %3189 = vmatprep.subr.mxu0 0.0
      %3190 = vmatpush1.msra.mxu0 0.0
      %3191 = vmatprep.subr.mxu0 0.0
      %3192 = vmatpush1.msra.mxu0 0.0
      %3193 = vmatprep.subr.mxu0 0.0
      %3194 = vmatpush1.msra.mxu0 0.0
      %3195 = vmatprep.subr.mxu0 0.0
      %3196 = vmatpush1.msra.mxu0 0.0
      %3197 = vmatprep.subr.mxu0 0.0
      %3198 = vmatpush1.msra.mxu0 0.0
      %3199 = vmatprep.subr.mxu0 0.0
      %3200 = vmatpush1.msra.mxu0 0.0
      %3201 = vmatprep.subr.mxu0 0.0
      %3202 = vmatpush1.msra.mxu0 0.0
      %3203 = vmatprep.subr.mxu0 0.0
      %3204 = vmatpush1.msra.mxu0 0.0
      %3205 = vmatprep.subr.mxu0 0.0
      %3206 = vmatpush1.msra.mxu0 0.0
      %3207 = vmatprep.subr.mxu0 0.0
      %3208 = vmatpush1.msra.mxu0 0.0
      %3209 = vmatprep.subr.mxu0 0.0
      %3210 = vmatpush1.msra.mxu0 0.0
      %3211 = vmatprep.subr.mxu0 0.0
      %3212 = vmatpush1.msra.mxu0 0.0
      %3213 = vmatprep.subr.mxu0 0.0
      %3214 = vmatpush1.msra.mxu0 0.0
      %3215 = vmatprep.subr.mxu0 0.0
      %3216 = vmatpush1.msra.mxu0 0.0
      %3217 = vmatprep.subr.mxu0 0.0
      %3218 = vmatpush1.msra.mxu0 0.0
      %3219 = vmatprep.subr.mxu0 0.0
      %3220 = vmatpush1.msra.mxu0 0.0
      %3221 = vmatprep.subr.mxu0 0.0
      %3222 = vmatpush1.msra.mxu0 0.0
      %3223 = vmatprep.subr.mxu0 0.0
      %3224 = vmatpush1.msra.mxu0 0.0
      %3225 = vmatprep.subr.mxu0 0.0
      %3226 = vmatpush1.msra.mxu0 0.0
      %3227 = vmatprep.subr.mxu0 0.0
      %3228 = vmatpush1.msra.mxu0 0.0
      %3229 = vmatprep.subr.mxu0 0.0
      %3230 = vmatpush1.msra.mxu0 0.0
      %3231 = vmatprep.subr.mxu0 0.0
      %3232 = vmatpush1.msra.mxu0 0.0
      %3233 = vmatprep.mubr.f32.mxu0 0.0
      %3234 = vmatmul.mubr.f32.gmra.mrb[0].mxu0 %v3167
      %v3235 = vpop.f32.mrb[0].mxu0
      %v3236 = vadd.f32 0.0, %v3235
      %v3237 = vpop.f32.mrb[0].mxu0
      %3238 = vdwg.mxu0
      %s3239 = scalar_lea.vmem %s11, 16
      %v3240 = vld [vmem:[%s3239] sm:$0xff]
      %v3242 = vsel %vm1041, %v3090, 0
      %v3245 = vsel %vm1041, %v3163, 0
      %v3248 = vsel %vm1041, %v3236, 0
      %3250 = vmatprep.subr.mxu0 0.0
      %3251 = vmatpush1.msra.mxu0 %v3240
      %3252 = vmatprep.subr.mxu0 0.0
      %3253 = vmatpush1.msra.mxu0 0.0
      %3254 = vmatprep.subr.mxu0 0.0
      %3255 = vmatpush1.msra.mxu0 0.0
      %3256 = vmatprep.subr.mxu0 0.0
      %3257 = vmatpush1.msra.mxu0 0.0
      %3258 = vmatprep.subr.mxu0 0.0
      %3259 = vmatpush1.msra.mxu0 0.0
      %3260 = vmatprep.subr.mxu0 0.0
      %3261 = vmatpush1.msra.mxu0 0.0
      %3262 = vmatprep.subr.mxu0 0.0
      %3263 = vmatpush1.msra.mxu0 0.0
      %3264 = vmatprep.subr.mxu0 0.0
      %3265 = vmatpush1.msra.mxu0 0.0
      %3266 = vmatprep.subr.mxu0 0.0
      %3267 = vmatpush1.msra.mxu0 0.0
      %3268 = vmatprep.subr.mxu0 0.0
      %3269 = vmatpush1.msra.mxu0 0.0
      %3270 = vmatprep.subr.mxu0 0.0
      %3271 = vmatpush1.msra.mxu0 0.0
      %3272 = vmatprep.subr.mxu0 0.0
      %3273 = vmatpush1.msra.mxu0 0.0
      %3274 = vmatprep.subr.mxu0 0.0
      %3275 = vmatpush1.msra.mxu0 0.0
      %3276 = vmatprep.subr.mxu0 0.0
      %3277 = vmatpush1.msra.mxu0 0.0
      %3278 = vmatprep.subr.mxu0 0.0
      %3279 = vmatpush1.msra.mxu0 0.0
      %3280 = vmatprep.subr.mxu0 0.0
      %3281 = vmatpush1.msra.mxu0 0.0
      %3282 = vmatprep.subr.mxu0 0.0
      %3283 = vmatpush1.msra.mxu0 0.0
      %3284 = vmatprep.subr.mxu0 0.0
      %3285 = vmatpush1.msra.mxu0 0.0
      %3286 = vmatprep.subr.mxu0 0.0
      %3287 = vmatpush1.msra.mxu0 0.0
      %3288 = vmatprep.subr.mxu0 0.0
      %3289 = vmatpush1.msra.mxu0 0.0
      %3290 = vmatprep.subr.mxu0 0.0
      %3291 = vmatpush1.msra.mxu0 0.0
      %3292 = vmatprep.subr.mxu0 0.0
      %3293 = vmatpush1.msra.mxu0 0.0
      %3294 = vmatprep.subr.mxu0 0.0
      %3295 = vmatpush1.msra.mxu0 0.0
      %3296 = vmatprep.subr.mxu0 0.0
      %3297 = vmatpush1.msra.mxu0 0.0
      %3298 = vmatprep.subr.mxu0 0.0
      %3299 = vmatpush1.msra.mxu0 0.0
      %3300 = vmatprep.subr.mxu0 0.0
      %3301 = vmatpush1.msra.mxu0 0.0
      %3302 = vmatprep.subr.mxu0 0.0
      %3303 = vmatpush1.msra.mxu0 0.0
      %3304 = vmatprep.subr.mxu0 0.0
      %3305 = vmatpush1.msra.mxu0 0.0
      %3306 = vmatprep.subr.mxu0 0.0
      %3307 = vmatpush1.msra.mxu0 0.0
      %3308 = vmatprep.subr.mxu0 0.0
      %3309 = vmatpush1.msra.mxu0 0.0
      %3310 = vmatprep.subr.mxu0 0.0
      %3311 = vmatpush1.msra.mxu0 0.0
      %3312 = vmatprep.subr.mxu0 0.0
      %3313 = vmatpush1.msra.mxu0 0.0
      %3314 = vmatprep.mubr.f32.mxu0 0.0
      %3315 = vmatmul.mubr.f32.gmra.mrb[0].mxu0 %v3242
      %v3316 = vpop.f32.mrb[0].mxu0
      %v3317 = vadd.f32 0.0, %v3316
      %v3318 = vpop.f32.mrb[0].mxu0
      %3319 = vmatprep.mubr.f32.mxu0 0.0
      %3320 = vmatmul.mubr.f32.gmra.mrb[0].mxu0 %v3245
      %v3321 = vpop.f32.mrb[0].mxu0
      %v3322 = vadd.f32 0.0, %v3321
      %v3323 = vpop.f32.mrb[0].mxu0
      %3324 = vmatprep.mubr.f32.mxu0 0.0
      %3325 = vmatmul.mubr.f32.gmra.mrb[0].mxu0 %v3248
      %v3326 = vpop.f32.mrb[0].mxu0
      %v3327 = vadd.f32 0.0, %v3326
      %v3328 = vpop.f32.mrb[0].mxu0
      %3329 = vdwg.mxu0
      %v3330 = vadd.f32 %v2461, %v3317
      %v3331 = vadd.f32 %v2466, %v3322
      %v3332 = vadd.f32 %v2471, %v3327
      %s3333 = scalar_lea.vmem %s5, 96
      %v3334 = vld [vmem:[%s3333] sm:$0xff]
      %v3335 = vld [vmem:[%s3333 + $0x8] sm:$0xff]
      %v3336 = vld [vmem:[%s3333 + $0x10] sm:$0xff]
      %v3337 = vld [vmem:[%s3333 + $0x18] sm:$0xff]
      %s3338 = scalar_lea.vmem %s6, 3
      %v3339 = vld [vmem:[%s3338] sm:$0x1]
      %v3341 = vlaneseq
      %v3342 = vshrl.u32 %v3341, 7
      %v3343 = vsub.s32 0, %v3342
      %v3344 = vrot.slane %v3339, %v3343
      %3346 = vmatprep.subr.mxu0 0.0
      %3347 = vmatpush1.msra.mxu0 %v3334
      %3348 = vmatprep.subr.mxu0 0.0
      %3349 = vmatpush1.msra.mxu0 %v3335
      %3350 = vmatprep.subr.mxu0 0.0
      %3351 = vmatpush1.msra.mxu0 %v3336
      %3352 = vmatprep.subr.mxu0 0.0
      %3353 = vmatpush1.msra.mxu0 %v3337
      %3354 = vmatprep.subr.mxu0 0.0
      %3355 = vmatpush1.msra.mxu0 0.0
      %3356 = vmatprep.subr.mxu0 0.0
      %3357 = vmatpush1.msra.mxu0 0.0
      %3358 = vmatprep.subr.mxu0 0.0
      %3359 = vmatpush1.msra.mxu0 0.0
      %3360 = vmatprep.subr.mxu0 0.0
      %3361 = vmatpush1.msra.mxu0 0.0
      %3362 = vmatprep.subr.mxu0 0.0
      %3363 = vmatpush1.msra.mxu0 0.0
      %3364 = vmatprep.subr.mxu0 0.0
      %3365 = vmatpush1.msra.mxu0 0.0
      %3366 = vmatprep.subr.mxu0 0.0
      %3367 = vmatpush1.msra.mxu0 0.0
      %3368 = vmatprep.subr.mxu0 0.0
      %3369 = vmatpush1.msra.mxu0 0.0
      %3370 = vmatprep.subr.mxu0 0.0
      %3371 = vmatpush1.msra.mxu0 0.0
      %3372 = vmatprep.subr.mxu0 0.0
      %3373 = vmatpush1.msra.mxu0 0.0
      %3374 = vmatprep.subr.mxu0 0.0
      %3375 = vmatpush1.msra.mxu0 0.0
      %3376 = vmatprep.subr.mxu0 0.0
      %3377 = vmatpush1.msra.mxu0 0.0
      %3378 = vmatprep.subr.mxu0 0.0
      %3379 = vmatpush1.msra.mxu0 0.0
      %3380 = vmatprep.subr.mxu0 0.0
      %3381 = vmatpush1.msra.mxu0 0.0
      %3382 = vmatprep.subr.mxu0 0.0
      %3383 = vmatpush1.msra.mxu0 0.0
      %3384 = vmatprep.subr.mxu0 0.0
      %3385 = vmatpush1.msra.mxu0 0.0
      %3386 = vmatprep.subr.mxu0 0.0
      %3387 = vmatpush1.msra.mxu0 0.0
      %3388 = vmatprep.subr.mxu0 0.0
      %3389 = vmatpush1.msra.mxu0 0.0
      %3390 = vmatprep.subr.mxu0 0.0
      %3391 = vmatpush1.msra.mxu0 0.0
      %3392 = vmatprep.subr.mxu0 0.0
      %3393 = vmatpush1.msra.mxu0 0.0
      %3394 = vmatprep.subr.mxu0 0.0
      %3395 = vmatpush1.msra.mxu0 0.0
      %3396 = vmatprep.subr.mxu0 0.0
      %3397 = vmatpush1.msra.mxu0 0.0
      %3398 = vmatprep.subr.mxu0 0.0
      %3399 = vmatpush1.msra.mxu0 0.0
      %3400 = vmatprep.subr.mxu0 0.0
      %3401 = vmatpush1.msra.mxu0 0.0
      %3402 = vmatprep.subr.mxu0 0.0
      %3403 = vmatpush1.msra.mxu0 0.0
      %3404 = vmatprep.subr.mxu0 0.0
      %3405 = vmatpush1.msra.mxu0 0.0
      %3406 = vmatprep.subr.mxu0 0.0
      %3407 = vmatpush1.msra.mxu0 0.0
      %3408 = vmatprep.subr.mxu0 0.0
      %3409 = vmatpush1.msra.mxu0 0.0
      %3410 = vmatprep.mubr.f32.mxu0 0.0
      %3411 = vmatmul.mubr.f32.gmra.mrb[0].mxu0 %v771
      %v3412 = vpop.f32.mrb[0].mxu0
      %v3413 = vadd.f32 %v3344, %v3412
      %v3414 = vpop.f32.mrb[0].mxu0
      %3415 = vmatprep.mubr.f32.mxu0 0.0
      %3416 = vmatmul.mubr.f32.gmra.mrb[0].mxu0 %v774
      %v3417 = vpop.f32.mrb[0].mxu0
      %v3418 = vadd.f32 %v3344, %v3417
      %v3419 = vpop.f32.mrb[0].mxu0
      %3420 = vmatprep.mubr.f32.mxu0 0.0
      %3421 = vmatmul.mubr.f32.gmra.mrb[0].mxu0 %v777
      %v3422 = vpop.f32.mrb[0].mxu0
      %v3423 = vadd.f32 %v3344, %v3422
      %v3424 = vpop.f32.mrb[0].mxu0
      %3425 = vdwg.mxu0
      %s3426 = scalar_lea.vmem %s7, 96
      %v3427 = vld [vmem:[%s3426] sm:$0xff]
      %v3428 = vld [vmem:[%s3426 + $0x8] sm:$0xff]
      %v3429 = vld [vmem:[%s3426 + $0x10] sm:$0xff]
      %v3430 = vld [vmem:[%s3426 + $0x18] sm:$0xff]
      %s3431 = scalar_lea.vmem %s8, 3
      %v3432 = vld [vmem:[%s3431] sm:$0x1]
      %v3434 = vlaneseq
      %v3435 = vshrl.u32 %v3434, 7
      %v3436 = vsub.s32 0, %v3435
      %v3437 = vrot.slane %v3432, %v3436
      %3439 = vmatprep.subr.mxu0 0.0
      %3440 = vmatpush1.msra.mxu0 %v3427
      %3441 = vmatprep.subr.mxu0 0.0
      %3442 = vmatpush1.msra.mxu0 %v3428
      %3443 = vmatprep.subr.mxu0 0.0
      %3444 = vmatpush1.msra.mxu0 %v3429
      %3445 = vmatprep.subr.mxu0 0.0
      %3446 = vmatpush1.msra.mxu0 %v3430
      %3447 = vmatprep.subr.mxu0 0.0
      %3448 = vmatpush1.msra.mxu0 0.0
      %3449 = vmatprep.subr.mxu0 0.0
      %3450 = vmatpush1.msra.mxu0 0.0
      %3451 = vmatprep.subr.mxu0 0.0
      %3452 = vmatpush1.msra.mxu0 0.0
      %3453 = vmatprep.subr.mxu0 0.0
      %3454 = vmatpush1.msra.mxu0 0.0
      %3455 = vmatprep.subr.mxu0 0.0
      %3456 = vmatpush1.msra.mxu0 0.0
      %3457 = vmatprep.subr.mxu0 0.0
      %3458 = vmatpush1.msra.mxu0 0.0
      %3459 = vmatprep.subr.mxu0 0.0
      %3460 = vmatpush1.msra.mxu0 0.0
      %3461 = vmatprep.subr.mxu0 0.0
      %3462 = vmatpush1.msra.mxu0 0.0
      %3463 = vmatprep.subr.mxu0 0.0
      %3464 = vmatpush1.msra.mxu0 0.0
      %3465 = vmatprep.subr.mxu0 0.0
      %3466 = vmatpush1.msra.mxu0 0.0
      %3467 = vmatprep.subr.mxu0 0.0
      %3468 = vmatpush1.msra.mxu0 0.0
      %3469 = vmatprep.subr.mxu0 0.0
      %3470 = vmatpush1.msra.mxu0 0.0
      %3471 = vmatprep.subr.mxu0 0.0
      %3472 = vmatpush1.msra.mxu0 0.0
      %3473 = vmatprep.subr.mxu0 0.0
      %3474 = vmatpush1.msra.mxu0 0.0
      %3475 = vmatprep.subr.mxu0 0.0
      %3476 = vmatpush1.msra.mxu0 0.0
      %3477 = vmatprep.subr.mxu0 0.0
      %3478 = vmatpush1.msra.mxu0 0.0
      %3479 = vmatprep.subr.mxu0 0.0
      %3480 = vmatpush1.msra.mxu0 0.0
      %3481 = vmatprep.subr.mxu0 0.0
      %3482 = vmatpush1.msra.mxu0 0.0
      %3483 = vmatprep.subr.mxu0 0.0
      %3484 = vmatpush1.msra.mxu0 0.0
      %3485 = vmatprep.subr.mxu0 0.0
      %3486 = vmatpush1.msra.mxu0 0.0
      %3487 = vmatprep.subr.mxu0 0.0
      %3488 = vmatpush1.msra.mxu0 0.0
      %3489 = vmatprep.subr.mxu0 0.0
      %3490 = vmatpush1.msra.mxu0 0.0
      %3491 = vmatprep.subr.mxu0 0.0
      %3492 = vmatpush1.msra.mxu0 0.0
      %3493 = vmatprep.subr.mxu0 0.0
      %3494 = vmatpush1.msra.mxu0 0.0
      %3495 = vmatprep.subr.mxu0 0.0
      %3496 = vmatpush1.msra.mxu0 0.0
      %3497 = vmatprep.subr.mxu0 0.0
      %3498 = vmatpush1.msra.mxu0 0.0
      %3499 = vmatprep.subr.mxu0 0.0
      %3500 = vmatpush1.msra.mxu0 0.0
      %3501 = vmatprep.subr.mxu0 0.0
      %3502 = vmatpush1.msra.mxu0 0.0
      %3503 = vmatprep.mubr.f32.mxu0 0.0
      %3504 = vmatmul.mubr.f32.gmra.mrb[0].mxu0 %v771
      %v3505 = vpop.f32.mrb[0].mxu0
      %v3506 = vadd.f32 %v3437, %v3505
      %v3507 = vpop.f32.mrb[0].mxu0
      %3508 = vmatprep.mubr.f32.mxu0 0.0
      %3509 = vmatmul.mubr.f32.gmra.mrb[0].mxu0 %v774
      %v3510 = vpop.f32.mrb[0].mxu0
      %v3511 = vadd.f32 %v3437, %v3510
      %v3512 = vpop.f32.mrb[0].mxu0
      %3513 = vmatprep.mubr.f32.mxu0 0.0
      %3514 = vmatmul.mubr.f32.gmra.mrb[0].mxu0 %v777
      %v3515 = vpop.f32.mrb[0].mxu0
      %v3516 = vadd.f32 %v3437, %v3515
      %v3517 = vpop.f32.mrb[0].mxu0
      %3518 = vdwg.mxu0
      %s3519 = scalar_lea.vmem %s9, 96
      %v3520 = vld [vmem:[%s3519] sm:$0xff]
      %v3521 = vld [vmem:[%s3519 + $0x8] sm:$0xff]
      %v3522 = vld [vmem:[%s3519 + $0x10] sm:$0xff]
      %v3523 = vld [vmem:[%s3519 + $0x18] sm:$0xff]
      %s3524 = scalar_lea.vmem %s10, 3
      %v3525 = vld [vmem:[%s3524] sm:$0x1]
      %v3527 = vlaneseq
      %v3528 = vshrl.u32 %v3527, 7
      %v3529 = vsub.s32 0, %v3528
      %v3530 = vrot.slane %v3525, %v3529
      %3532 = vmatprep.subr.mxu0 0.0
      %3533 = vmatpush1.msra.mxu0 %v3520
      %3534 = vmatprep.subr.mxu0 0.0
      %3535 = vmatpush1.msra.mxu0 %v3521
      %3536 = vmatprep.subr.mxu0 0.0
      %3537 = vmatpush1.msra.mxu0 %v3522
      %3538 = vmatprep.subr.mxu0 0.0
      %3539 = vmatpush1.msra.mxu0 %v3523
      %3540 = vmatprep.subr.mxu0 0.0
      %3541 = vmatpush1.msra.mxu0 0.0
      %3542 = vmatprep.subr.mxu0 0.0
      %3543 = vmatpush1.msra.mxu0 0.0
      %3544 = vmatprep.subr.mxu0 0.0
      %3545 = vmatpush1.msra.mxu0 0.0
      %3546 = vmatprep.subr.mxu0 0.0
      %3547 = vmatpush1.msra.mxu0 0.0
      %3548 = vmatprep.subr.mxu0 0.0
      %3549 = vmatpush1.msra.mxu0 0.0
      %3550 = vmatprep.subr.mxu0 0.0
      %3551 = vmatpush1.msra.mxu0 0.0
      %3552 = vmatprep.subr.mxu0 0.0
      %3553 = vmatpush1.msra.mxu0 0.0
      %3554 = vmatprep.subr.mxu0 0.0
      %3555 = vmatpush1.msra.mxu0 0.0
      %3556 = vmatprep.subr.mxu0 0.0
      %3557 = vmatpush1.msra.mxu0 0.0
      %3558 = vmatprep.subr.mxu0 0.0
      %3559 = vmatpush1.msra.mxu0 0.0
      %3560 = vmatprep.subr.mxu0 0.0
      %3561 = vmatpush1.msra.mxu0 0.0
      %3562 = vmatprep.subr.mxu0 0.0
      %3563 = vmatpush1.msra.mxu0 0.0
      %3564 = vmatprep.subr.mxu0 0.0
      %3565 = vmatpush1.msra.mxu0 0.0
      %3566 = vmatprep.subr.mxu0 0.0
      %3567 = vmatpush1.msra.mxu0 0.0
      %3568 = vmatprep.subr.mxu0 0.0
      %3569 = vmatpush1.msra.mxu0 0.0
      %3570 = vmatprep.subr.mxu0 0.0
      %3571 = vmatpush1.msra.mxu0 0.0
      %3572 = vmatprep.subr.mxu0 0.0
      %3573 = vmatpush1.msra.mxu0 0.0
      %3574 = vmatprep.subr.mxu0 0.0
      %3575 = vmatpush1.msra.mxu0 0.0
      %3576 = vmatprep.subr.mxu0 0.0
      %3577 = vmatpush1.msra.mxu0 0.0
      %3578 = vmatprep.subr.mxu0 0.0
      %3579 = vmatpush1.msra.mxu0 0.0
      %3580 = vmatprep.subr.mxu0 0.0
      %3581 = vmatpush1.msra.mxu0 0.0
      %3582 = vmatprep.subr.mxu0 0.0
      %3583 = vmatpush1.msra.mxu0 0.0
      %3584 = vmatprep.subr.mxu0 0.0
      %3585 = vmatpush1.msra.mxu0 0.0
      %3586 = vmatprep.subr.mxu0 0.0
      %3587 = vmatpush1.msra.mxu0 0.0
      %3588 = vmatprep.subr.mxu0 0.0
      %3589 = vmatpush1.msra.mxu0 0.0
      %3590 = vmatprep.subr.mxu0 0.0
      %3591 = vmatpush1.msra.mxu0 0.0
      %3592 = vmatprep.subr.mxu0 0.0
      %3593 = vmatpush1.msra.mxu0 0.0
      %3594 = vmatprep.subr.mxu0 0.0
      %3595 = vmatpush1.msra.mxu0 0.0
      %3596 = vmatprep.mubr.f32.mxu0 0.0
      %3597 = vmatmul.mubr.f32.gmra.mrb[0].mxu0 %v771
      %v3598 = vpop.f32.mrb[0].mxu0
      %v3599 = vadd.f32 %v3530, %v3598
      %v3600 = vpop.f32.mrb[0].mxu0
      %3601 = vmatprep.mubr.f32.mxu0 0.0
      %3602 = vmatmul.mubr.f32.gmra.mrb[0].mxu0 %v774
      %v3603 = vpop.f32.mrb[0].mxu0
      %v3604 = vadd.f32 %v3530, %v3603
      %v3605 = vpop.f32.mrb[0].mxu0
      %3606 = vmatprep.mubr.f32.mxu0 0.0
      %3607 = vmatmul.mubr.f32.gmra.mrb[0].mxu0 %v777
      %v3608 = vpop.f32.mrb[0].mxu0
      %v3609 = vadd.f32 %v3530, %v3608
      %v3610 = vpop.f32.mrb[0].mxu0
      %3611 = vdwg.mxu0
      %v3613 = vsel %vm1041, %v3413, 0
      %v3616 = vsel %vm1041, %v3506, 0
      %3618 = vmatprep.subr.mxu0 0.0
      %3619 = vmatpush1.xpose.msra.mxu0 %v3616
      %3620 = vmatprep.subr.mxu0 0.0
      %3621 = vmatpush1.xpose.msra.mxu0 0.0
      %3622 = vmatprep.subr.mxu0 0.0
      %3623 = vmatpush1.xpose.msra.mxu0 0.0
      %3624 = vmatprep.subr.mxu0 0.0
      %3625 = vmatpush1.xpose.msra.mxu0 0.0
      %3626 = vmatprep.subr.mxu0 0.0
      %3627 = vmatpush1.xpose.msra.mxu0 0.0
      %3628 = vmatprep.subr.mxu0 0.0
      %3629 = vmatpush1.xpose.msra.mxu0 0.0
      %3630 = vmatprep.subr.mxu0 0.0
      %3631 = vmatpush1.xpose.msra.mxu0 0.0
      %3632 = vmatprep.subr.mxu0 0.0
      %3633 = vmatpush1.xpose.msra.mxu0 0.0
      %3634 = vmatprep.subr.mxu0 0.0
      %3635 = vmatpush1.xpose.msra.mxu0 0.0
      %3636 = vmatprep.subr.mxu0 0.0
      %3637 = vmatpush1.xpose.msra.mxu0 0.0
      %3638 = vmatprep.subr.mxu0 0.0
      %3639 = vmatpush1.xpose.msra.mxu0 0.0
      %3640 = vmatprep.subr.mxu0 0.0
      %3641 = vmatpush1.xpose.msra.mxu0 0.0
      %3642 = vmatprep.subr.mxu0 0.0
      %3643 = vmatpush1.xpose.msra.mxu0 0.0
      %3644 = vmatprep.subr.mxu0 0.0
      %3645 = vmatpush1.xpose.msra.mxu0 0.0
      %3646 = vmatprep.subr.mxu0 0.0
      %3647 = vmatpush1.xpose.msra.mxu0 0.0
      %3648 = vmatprep.subr.mxu0 0.0
      %3649 = vmatpush1.xpose.msra.mxu0 0.0
      %3650 = vmatprep.subr.mxu0 0.0
      %3651 = vmatpush1.xpose.msra.mxu0 0.0
      %3652 = vmatprep.subr.mxu0 0.0
      %3653 = vmatpush1.xpose.msra.mxu0 0.0
      %3654 = vmatprep.subr.mxu0 0.0
      %3655 = vmatpush1.xpose.msra.mxu0 0.0
      %3656 = vmatprep.subr.mxu0 0.0
      %3657 = vmatpush1.xpose.msra.mxu0 0.0
      %3658 = vmatprep.subr.mxu0 0.0
      %3659 = vmatpush1.xpose.msra.mxu0 0.0
      %3660 = vmatprep.subr.mxu0 0.0
      %3661 = vmatpush1.xpose.msra.mxu0 0.0
      %3662 = vmatprep.subr.mxu0 0.0
      %3663 = vmatpush1.xpose.msra.mxu0 0.0
      %3664 = vmatprep.subr.mxu0 0.0
      %3665 = vmatpush1.xpose.msra.mxu0 0.0
      %3666 = vmatprep.subr.mxu0 0.0
      %3667 = vmatpush1.xpose.msra.mxu0 0.0
      %3668 = vmatprep.subr.mxu0 0.0
      %3669 = vmatpush1.xpose.msra.mxu0 0.0
      %3670 = vmatprep.subr.mxu0 0.0
      %3671 = vmatpush1.xpose.msra.mxu0 0.0
      %3672 = vmatprep.subr.mxu0 0.0
      %3673 = vmatpush1.xpose.msra.mxu0 0.0
      %3674 = vmatprep.subr.mxu0 0.0
      %3675 = vmatpush1.xpose.msra.mxu0 0.0
      %3676 = vmatprep.subr.mxu0 0.0
      %3677 = vmatpush1.xpose.msra.mxu0 0.0
      %3678 = vmatprep.subr.mxu0 0.0
      %3679 = vmatpush1.xpose.msra.mxu0 0.0
      %3680 = vmatprep.subr.mxu0 0.0
      %3681 = vmatpush1.xpose.msra.mxu0 0.0
      %3682 = vmatprep.mubr.f32.mxu0 0.0
      %3683 = vmatmul.mubr.f32.gmra.mrb[0].mxu0 %v3613
      %v3684 = vpop.f32.mrb[0].mxu0
      %v3685 = vadd.f32 0.0, %v3684
      %v3686 = vpop.f32.mrb[0].mxu0
      %3687 = vdwg.mxu0
      %v3689 = vsel %vm1041, %v3418, 0
      %v3692 = vsel %vm1041, %v3511, 0
      %3694 = vmatprep.subr.mxu0 0.0
      %3695 = vmatpush1.xpose.msra.mxu0 %v3692
      %3696 = vmatprep.subr.mxu0 0.0
      %3697 = vmatpush1.xpose.msra.mxu0 0.0
      %3698 = vmatprep.subr.mxu0 0.0
      %3699 = vmatpush1.xpose.msra.mxu0 0.0
      %3700 = vmatprep.subr.mxu0 0.0
      %3701 = vmatpush1.xpose.msra.mxu0 0.0
      %3702 = vmatprep.subr.mxu0 0.0
      %3703 = vmatpush1.xpose.msra.mxu0 0.0
      %3704 = vmatprep.subr.mxu0 0.0
      %3705 = vmatpush1.xpose.msra.mxu0 0.0
      %3706 = vmatprep.subr.mxu0 0.0
      %3707 = vmatpush1.xpose.msra.mxu0 0.0
      %3708 = vmatprep.subr.mxu0 0.0
      %3709 = vmatpush1.xpose.msra.mxu0 0.0
      %3710 = vmatprep.subr.mxu0 0.0
      %3711 = vmatpush1.xpose.msra.mxu0 0.0
      %3712 = vmatprep.subr.mxu0 0.0
      %3713 = vmatpush1.xpose.msra.mxu0 0.0
      %3714 = vmatprep.subr.mxu0 0.0
      %3715 = vmatpush1.xpose.msra.mxu0 0.0
      %3716 = vmatprep.subr.mxu0 0.0
      %3717 = vmatpush1.xpose.msra.mxu0 0.0
      %3718 = vmatprep.subr.mxu0 0.0
      %3719 = vmatpush1.xpose.msra.mxu0 0.0
      %3720 = vmatprep.subr.mxu0 0.0
      %3721 = vmatpush1.xpose.msra.mxu0 0.0
      %3722 = vmatprep.subr.mxu0 0.0
      %3723 = vmatpush1.xpose.msra.mxu0 0.0
      %3724 = vmatprep.subr.mxu0 0.0
      %3725 = vmatpush1.xpose.msra.mxu0 0.0
      %3726 = vmatprep.subr.mxu0 0.0
      %3727 = vmatpush1.xpose.msra.mxu0 0.0
      %3728 = vmatprep.subr.mxu0 0.0
      %3729 = vmatpush1.xpose.msra.mxu0 0.0
      %3730 = vmatprep.subr.mxu0 0.0
      %3731 = vmatpush1.xpose.msra.mxu0 0.0
      %3732 = vmatprep.subr.mxu0 0.0
      %3733 = vmatpush1.xpose.msra.mxu0 0.0
      %3734 = vmatprep.subr.mxu0 0.0
      %3735 = vmatpush1.xpose.msra.mxu0 0.0
      %3736 = vmatprep.subr.mxu0 0.0
      %3737 = vmatpush1.xpose.msra.mxu0 0.0
      %3738 = vmatprep.subr.mxu0 0.0
      %3739 = vmatpush1.xpose.msra.mxu0 0.0
      %3740 = vmatprep.subr.mxu0 0.0
      %3741 = vmatpush1.xpose.msra.mxu0 0.0
      %3742 = vmatprep.subr.mxu0 0.0
      %3743 = vmatpush1.xpose.msra.mxu0 0.0
      %3744 = vmatprep.subr.mxu0 0.0
      %3745 = vmatpush1.xpose.msra.mxu0 0.0
      %3746 = vmatprep.subr.mxu0 0.0
      %3747 = vmatpush1.xpose.msra.mxu0 0.0
      %3748 = vmatprep.subr.mxu0 0.0
      %3749 = vmatpush1.xpose.msra.mxu0 0.0
      %3750 = vmatprep.subr.mxu0 0.0
      %3751 = vmatpush1.xpose.msra.mxu0 0.0
      %3752 = vmatprep.subr.mxu0 0.0
      %3753 = vmatpush1.xpose.msra.mxu0 0.0
      %3754 = vmatprep.subr.mxu0 0.0
      %3755 = vmatpush1.xpose.msra.mxu0 0.0
      %3756 = vmatprep.subr.mxu0 0.0
      %3757 = vmatpush1.xpose.msra.mxu0 0.0
      %3758 = vmatprep.mubr.f32.mxu0 0.0
      %3759 = vmatmul.mubr.f32.gmra.mrb[0].mxu0 %v3689
      %v3760 = vpop.f32.mrb[0].mxu0
      %v3761 = vadd.f32 0.0, %v3760
      %v3762 = vpop.f32.mrb[0].mxu0
      %3763 = vdwg.mxu0
      %v3765 = vsel %vm1041, %v3423, 0
      %v3768 = vsel %vm1041, %v3516, 0
      %3770 = vmatprep.subr.mxu0 0.0
      %3771 = vmatpush1.xpose.msra.mxu0 %v3768
      %3772 = vmatprep.subr.mxu0 0.0
      %3773 = vmatpush1.xpose.msra.mxu0 0.0
      %3774 = vmatprep.subr.mxu0 0.0
      %3775 = vmatpush1.xpose.msra.mxu0 0.0
      %3776 = vmatprep.subr.mxu0 0.0
      %3777 = vmatpush1.xpose.msra.mxu0 0.0
      %3778 = vmatprep.subr.mxu0 0.0
      %3779 = vmatpush1.xpose.msra.mxu0 0.0
      %3780 = vmatprep.subr.mxu0 0.0
      %3781 = vmatpush1.xpose.msra.mxu0 0.0
      %3782 = vmatprep.subr.mxu0 0.0
      %3783 = vmatpush1.xpose.msra.mxu0 0.0
      %3784 = vmatprep.subr.mxu0 0.0
      %3785 = vmatpush1.xpose.msra.mxu0 0.0
      %3786 = vmatprep.subr.mxu0 0.0
      %3787 = vmatpush1.xpose.msra.mxu0 0.0
      %3788 = vmatprep.subr.mxu0 0.0
      %3789 = vmatpush1.xpose.msra.mxu0 0.0
      %3790 = vmatprep.subr.mxu0 0.0
      %3791 = vmatpush1.xpose.msra.mxu0 0.0
      %3792 = vmatprep.subr.mxu0 0.0
      %3793 = vmatpush1.xpose.msra.mxu0 0.0
      %3794 = vmatprep.subr.mxu0 0.0
      %3795 = vmatpush1.xpose.msra.mxu0 0.0
      %3796 = vmatprep.subr.mxu0 0.0
      %3797 = vmatpush1.xpose.msra.mxu0 0.0
      %3798 = vmatprep.subr.mxu0 0.0
      %3799 = vmatpush1.xpose.msra.mxu0 0.0
      %3800 = vmatprep.subr.mxu0 0.0
      %3801 = vmatpush1.xpose.msra.mxu0 0.0
      %3802 = vmatprep.subr.mxu0 0.0
      %3803 = vmatpush1.xpose.msra.mxu0 0.0
      %3804 = vmatprep.subr.mxu0 0.0
      %3805 = vmatpush1.xpose.msra.mxu0 0.0
      %3806 = vmatprep.subr.mxu0 0.0
      %3807 = vmatpush1.xpose.msra.mxu0 0.0
      %3808 = vmatprep.subr.mxu0 0.0
      %3809 = vmatpush1.xpose.msra.mxu0 0.0
      %3810 = vmatprep.subr.mxu0 0.0
      %3811 = vmatpush1.xpose.msra.mxu0 0.0
      %3812 = vmatprep.subr.mxu0 0.0
      %3813 = vmatpush1.xpose.msra.mxu0 0.0
      %3814 = vmatprep.subr.mxu0 0.0
      %3815 = vmatpush1.xpose.msra.mxu0 0.0
      %3816 = vmatprep.subr.mxu0 0.0
      %3817 = vmatpush1.xpose.msra.mxu0 0.0
      %3818 = vmatprep.subr.mxu0 0.0
      %3819 = vmatpush1.xpose.msra.mxu0 0.0
      %3820 = vmatprep.subr.mxu0 0.0
      %3821 = vmatpush1.xpose.msra.mxu0 0.0
      %3822 = vmatprep.subr.mxu0 0.0
      %3823 = vmatpush1.xpose.msra.mxu0 0.0
      %3824 = vmatprep.subr.mxu0 0.0
      %3825 = vmatpush1.xpose.msra.mxu0 0.0
      %3826 = vmatprep.subr.mxu0 0.0
      %3827 = vmatpush1.xpose.msra.mxu0 0.0
      %3828 = vmatprep.subr.mxu0 0.0
      %3829 = vmatpush1.xpose.msra.mxu0 0.0
      %3830 = vmatprep.subr.mxu0 0.0
      %3831 = vmatpush1.xpose.msra.mxu0 0.0
      %3832 = vmatprep.subr.mxu0 0.0
      %3833 = vmatpush1.xpose.msra.mxu0 0.0
      %3834 = vmatprep.mubr.f32.mxu0 0.0
      %3835 = vmatmul.mubr.f32.gmra.mrb[0].mxu0 %v3765
      %v3836 = vpop.f32.mrb[0].mxu0
      %v3837 = vadd.f32 0.0, %v3836
      %v3838 = vpop.f32.mrb[0].mxu0
      %3839 = vdwg.mxu0
      %v3840 = vmul.f32 %v3685, 0.35355338
      %v3841 = vmul.f32 %v3761, 0.35355338
      %v3842 = vmul.f32 %v3837, 0.35355338
      %v3843 = vadd.f32 %v3840, %v695
      %v3844 = vadd.f32 %v3841, %v696
      %v3845 = vadd.f32 %v3842, %v697
      %v3846 = vsel %vm1041, %v3843, -inf
      %3847 = vmax.xlane.f32.xlu0 %v3846
      %v3848 = vpop.xlane.xlu0 %3847
      %v3849 = vsel %vm1041, %v3844, -inf
      %3850 = vmax.xlane.f32.xlu0 %v3849
      %v3851 = vpop.xlane.xlu0 %3850
      %v3852 = vsel %vm1041, %v3845, -inf
      %3853 = vmax.xlane.f32.xlu0 %v3852
      %v3854 = vpop.xlane.xlu0 %3853
      %v3855 = vsub.f32 %v3843, %v3848
      %v3856 = vsub.f32 %v3844, %v3851
      %v3857 = vsub.f32 %v3845, %v3854
      %v3858 = vmul.f32 %v3855, 1.442695
      %v3859 = vpow.pop %v3858
      %v3860 = vmul.f32 %v3856, 1.442695
      %v3861 = vpow.pop %v3860
      %v3862 = vmul.f32 %v3857, 1.442695
      %v3863 = vpow.pop %v3862
      %v3864 = vsel %vm1041, %v3859, 0.0
      %3865 = vadd.xlane.f32.xlu0 %v3864
      %v3866 = vpop.xlane.xlu0 %3865
      %v3867 = vsel %vm1041, %v3861, 0.0
      %3868 = vadd.xlane.f32.xlu0 %v3867
      %v3869 = vpop.xlane.xlu0 %3868
      %v3870 = vsel %vm1041, %v3863, 0.0
      %3871 = vadd.xlane.f32.xlu0 %v3870
      %v3872 = vpop.xlane.xlu0 %3871
      %v3873 = vrcp.pop %v3866
      %v3874 = vrcp.pop %v3869
      %v3875 = vrcp.pop %v3872
      %v3876 = vmul.f32 %v3859, %v3873
      %v3877 = vmul.f32 %v3861, %v3874
      %v3878 = vmul.f32 %v3863, %v3875
      %v3880 = vsel %vm1041, %v3876, 0
      %3882 = vmatprep.subr.mxu0 0.0
      %3883 = vmatpush1.msra.mxu0 %v3599
      %3884 = vmatprep.subr.mxu0 0.0
      %3885 = vmatpush1.msra.mxu0 0.0
      %3886 = vmatprep.subr.mxu0 0.0
      %3887 = vmatpush1.msra.mxu0 0.0
      %3888 = vmatprep.subr.mxu0 0.0
      %3889 = vmatpush1.msra.mxu0 0.0
      %3890 = vmatprep.subr.mxu0 0.0
      %3891 = vmatpush1.msra.mxu0 0.0
      %3892 = vmatprep.subr.mxu0 0.0
      %3893 = vmatpush1.msra.mxu0 0.0
      %3894 = vmatprep.subr.mxu0 0.0
      %3895 = vmatpush1.msra.mxu0 0.0
      %3896 = vmatprep.subr.mxu0 0.0
      %3897 = vmatpush1.msra.mxu0 0.0
      %3898 = vmatprep.subr.mxu0 0.0
      %3899 = vmatpush1.msra.mxu0 0.0
      %3900 = vmatprep.subr.mxu0 0.0
      %3901 = vmatpush1.msra.mxu0 0.0
      %3902 = vmatprep.subr.mxu0 0.0
      %3903 = vmatpush1.msra.mxu0 0.0
      %3904 = vmatprep.subr.mxu0 0.0
      %3905 = vmatpush1.msra.mxu0 0.0
      %3906 = vmatprep.subr.mxu0 0.0
      %3907 = vmatpush1.msra.mxu0 0.0
      %3908 = vmatprep.subr.mxu0 0.0
      %3909 = vmatpush1.msra.mxu0 0.0
      %3910 = vmatprep.subr.mxu0 0.0
      %3911 = vmatpush1.msra.mxu0 0.0
      %3912 = vmatprep.subr.mxu0 0.0
      %3913 = vmatpush1.msra.mxu0 0.0
      %3914 = vmatprep.subr.mxu0 0.0
      %3915 = vmatpush1.msra.mxu0 0.0
      %3916 = vmatprep.subr.mxu0 0.0
      %3917 = vmatpush1.msra.mxu0 0.0
      %3918 = vmatprep.subr.mxu0 0.0
      %3919 = vmatpush1.msra.mxu0 0.0
      %3920 = vmatprep.subr.mxu0 0.0
      %3921 = vmatpush1.msra.mxu0 0.0
      %3922 = vmatprep.subr.mxu0 0.0
      %3923 = vmatpush1.msra.mxu0 0.0
      %3924 = vmatprep.subr.mxu0 0.0
      %3925 = vmatpush1.msra.mxu0 0.0
      %3926 = vmatprep.subr.mxu0 0.0
      %3927 = vmatpush1.msra.mxu0 0.0
      %3928 = vmatprep.subr.mxu0 0.0
      %3929 = vmatpush1.msra.mxu0 0.0
      %3930 = vmatprep.subr.mxu0 0.0
      %3931 = vmatpush1.msra.mxu0 0.0
      %3932 = vmatprep.subr.mxu0 0.0
      %3933 = vmatpush1.msra.mxu0 0.0
      %3934 = vmatprep.subr.mxu0 0.0
      %3935 = vmatpush1.msra.mxu0 0.0
      %3936 = vmatprep.subr.mxu0 0.0
      %3937 = vmatpush1.msra.mxu0 0.0
      %3938 = vmatprep.subr.mxu0 0.0
      %3939 = vmatpush1.msra.mxu0 0.0
      %3940 = vmatprep.subr.mxu0 0.0
      %3941 = vmatpush1.msra.mxu0 0.0
      %3942 = vmatprep.subr.mxu0 0.0
      %3943 = vmatpush1.msra.mxu0 0.0
      %3944 = vmatprep.subr.mxu0 0.0
      %3945 = vmatpush1.msra.mxu0 0.0
      %3946 = vmatprep.mubr.f32.mxu0 0.0
      %3947 = vmatmul.mubr.f32.gmra.mrb[0].mxu0 %v3880
      %v3948 = vpop.f32.mrb[0].mxu0
      %v3949 = vadd.f32 0.0, %v3948
      %v3950 = vpop.f32.mrb[0].mxu0
      %3951 = vdwg.mxu0
      %v3953 = vsel %vm1041, %v3877, 0
      %3955 = vmatprep.subr.mxu0 0.0
      %3956 = vmatpush1.msra.mxu0 %v3604
      %3957 = vmatprep.subr.mxu0 0.0
      %3958 = vmatpush1.msra.mxu0 0.0
      %3959 = vmatprep.subr.mxu0 0.0
      %3960 = vmatpush1.msra.mxu0 0.0
      %3961 = vmatprep.subr.mxu0 0.0
      %3962 = vmatpush1.msra.mxu0 0.0
      %3963 = vmatprep.subr.mxu0 0.0
      %3964 = vmatpush1.msra.mxu0 0.0
      %3965 = vmatprep.subr.mxu0 0.0
      %3966 = vmatpush1.msra.mxu0 0.0
      %3967 = vmatprep.subr.mxu0 0.0
      %3968 = vmatpush1.msra.mxu0 0.0
      %3969 = vmatprep.subr.mxu0 0.0
      %3970 = vmatpush1.msra.mxu0 0.0
      %3971 = vmatprep.subr.mxu0 0.0
      %3972 = vmatpush1.msra.mxu0 0.0
      %3973 = vmatprep.subr.mxu0 0.0
      %3974 = vmatpush1.msra.mxu0 0.0
      %3975 = vmatprep.subr.mxu0 0.0
      %3976 = vmatpush1.msra.mxu0 0.0
      %3977 = vmatprep.subr.mxu0 0.0
      %3978 = vmatpush1.msra.mxu0 0.0
      %3979 = vmatprep.subr.mxu0 0.0
      %3980 = vmatpush1.msra.mxu0 0.0
      %3981 = vmatprep.subr.mxu0 0.0
      %3982 = vmatpush1.msra.mxu0 0.0
      %3983 = vmatprep.subr.mxu0 0.0
      %3984 = vmatpush1.msra.mxu0 0.0
      %3985 = vmatprep.subr.mxu0 0.0
      %3986 = vmatpush1.msra.mxu0 0.0
      %3987 = vmatprep.subr.mxu0 0.0
      %3988 = vmatpush1.msra.mxu0 0.0
      %3989 = vmatprep.subr.mxu0 0.0
      %3990 = vmatpush1.msra.mxu0 0.0
      %3991 = vmatprep.subr.mxu0 0.0
      %3992 = vmatpush1.msra.mxu0 0.0
      %3993 = vmatprep.subr.mxu0 0.0
      %3994 = vmatpush1.msra.mxu0 0.0
      %3995 = vmatprep.subr.mxu0 0.0
      %3996 = vmatpush1.msra.mxu0 0.0
      %3997 = vmatprep.subr.mxu0 0.0
      %3998 = vmatpush1.msra.mxu0 0.0
      %3999 = vmatprep.subr.mxu0 0.0
      %4000 = vmatpush1.msra.mxu0 0.0
      %4001 = vmatprep.subr.mxu0 0.0
      %4002 = vmatpush1.msra.mxu0 0.0
      %4003 = vmatprep.subr.mxu0 0.0
      %4004 = vmatpush1.msra.mxu0 0.0
      %4005 = vmatprep.subr.mxu0 0.0
      %4006 = vmatpush1.msra.mxu0 0.0
      %4007 = vmatprep.subr.mxu0 0.0
      %4008 = vmatpush1.msra.mxu0 0.0
      %4009 = vmatprep.subr.mxu0 0.0
      %4010 = vmatpush1.msra.mxu0 0.0
      %4011 = vmatprep.subr.mxu0 0.0
      %4012 = vmatpush1.msra.mxu0 0.0
      %4013 = vmatprep.subr.mxu0 0.0
      %4014 = vmatpush1.msra.mxu0 0.0
      %4015 = vmatprep.subr.mxu0 0.0
      %4016 = vmatpush1.msra.mxu0 0.0
      %4017 = vmatprep.subr.mxu0 0.0
      %4018 = vmatpush1.msra.mxu0 0.0
      %4019 = vmatprep.mubr.f32.mxu0 0.0
      %4020 = vmatmul.mubr.f32.gmra.mrb[0].mxu0 %v3953
      %v4021 = vpop.f32.mrb[0].mxu0
      %v4022 = vadd.f32 0.0, %v4021
      %v4023 = vpop.f32.mrb[0].mxu0
      %4024 = vdwg.mxu0
      %v4026 = vsel %vm1041, %v3878, 0
      %4028 = vmatprep.subr.mxu0 0.0
      %4029 = vmatpush1.msra.mxu0 %v3609
      %4030 = vmatprep.subr.mxu0 0.0
      %4031 = vmatpush1.msra.mxu0 0.0
      %4032 = vmatprep.subr.mxu0 0.0
      %4033 = vmatpush1.msra.mxu0 0.0
      %4034 = vmatprep.subr.mxu0 0.0
      %4035 = vmatpush1.msra.mxu0 0.0
      %4036 = vmatprep.subr.mxu0 0.0
      %4037 = vmatpush1.msra.mxu0 0.0
      %4038 = vmatprep.subr.mxu0 0.0
      %4039 = vmatpush1.msra.mxu0 0.0
      %4040 = vmatprep.subr.mxu0 0.0
      %4041 = vmatpush1.msra.mxu0 0.0
      %4042 = vmatprep.subr.mxu0 0.0
      %4043 = vmatpush1.msra.mxu0 0.0
      %4044 = vmatprep.subr.mxu0 0.0
      %4045 = vmatpush1.msra.mxu0 0.0
      %4046 = vmatprep.subr.mxu0 0.0
      %4047 = vmatpush1.msra.mxu0 0.0
      %4048 = vmatprep.subr.mxu0 0.0
      %4049 = vmatpush1.msra.mxu0 0.0
      %4050 = vmatprep.subr.mxu0 0.0
      %4051 = vmatpush1.msra.mxu0 0.0
      %4052 = vmatprep.subr.mxu0 0.0
      %4053 = vmatpush1.msra.mxu0 0.0
      %4054 = vmatprep.subr.mxu0 0.0
      %4055 = vmatpush1.msra.mxu0 0.0
      %4056 = vmatprep.subr.mxu0 0.0
      %4057 = vmatpush1.msra.mxu0 0.0
      %4058 = vmatprep.subr.mxu0 0.0
      %4059 = vmatpush1.msra.mxu0 0.0
      %4060 = vmatprep.subr.mxu0 0.0
      %4061 = vmatpush1.msra.mxu0 0.0
      %4062 = vmatprep.subr.mxu0 0.0
      %4063 = vmatpush1.msra.mxu0 0.0
      %4064 = vmatprep.subr.mxu0 0.0
      %4065 = vmatpush1.msra.mxu0 0.0
      %4066 = vmatprep.subr.mxu0 0.0
      %4067 = vmatpush1.msra.mxu0 0.0
      %4068 = vmatprep.subr.mxu0 0.0
      %4069 = vmatpush1.msra.mxu0 0.0
      %4070 = vmatprep.subr.mxu0 0.0
      %4071 = vmatpush1.msra.mxu0 0.0
      %4072 = vmatprep.subr.mxu0 0.0
      %4073 = vmatpush1.msra.mxu0 0.0
      %4074 = vmatprep.subr.mxu0 0.0
      %4075 = vmatpush1.msra.mxu0 0.0
      %4076 = vmatprep.subr.mxu0 0.0
      %4077 = vmatpush1.msra.mxu0 0.0
      %4078 = vmatprep.subr.mxu0 0.0
      %4079 = vmatpush1.msra.mxu0 0.0
      %4080 = vmatprep.subr.mxu0 0.0
      %4081 = vmatpush1.msra.mxu0 0.0
      %4082 = vmatprep.subr.mxu0 0.0
      %4083 = vmatpush1.msra.mxu0 0.0
      %4084 = vmatprep.subr.mxu0 0.0
      %4085 = vmatpush1.msra.mxu0 0.0
      %4086 = vmatprep.subr.mxu0 0.0
      %4087 = vmatpush1.msra.mxu0 0.0
      %4088 = vmatprep.subr.mxu0 0.0
      %4089 = vmatpush1.msra.mxu0 0.0
      %4090 = vmatprep.subr.mxu0 0.0
      %4091 = vmatpush1.msra.mxu0 0.0
      %4092 = vmatprep.mubr.f32.mxu0 0.0
      %4093 = vmatmul.mubr.f32.gmra.mrb[0].mxu0 %v4026
      %v4094 = vpop.f32.mrb[0].mxu0
      %v4095 = vadd.f32 0.0, %v4094
      %v4096 = vpop.f32.mrb[0].mxu0
      %4097 = vdwg.mxu0
      %s4098 = scalar_lea.vmem %s11, 24
      %v4099 = vld [vmem:[%s4098] sm:$0xff]
      %v4101 = vsel %vm1041, %v3949, 0
      %v4104 = vsel %vm1041, %v4022, 0
      %v4107 = vsel %vm1041, %v4095, 0
      %4109 = vmatprep.subr.mxu0 0.0
      %4110 = vmatpush1.msra.mxu0 %v4099
      %4111 = vmatprep.subr.mxu0 0.0
      %4112 = vmatpush1.msra.mxu0 0.0
      %4113 = vmatprep.subr.mxu0 0.0
      %4114 = vmatpush1.msra.mxu0 0.0
      %4115 = vmatprep.subr.mxu0 0.0
      %4116 = vmatpush1.msra.mxu0 0.0
      %4117 = vmatprep.subr.mxu0 0.0
      %4118 = vmatpush1.msra.mxu0 0.0
      %4119 = vmatprep.subr.mxu0 0.0
      %4120 = vmatpush1.msra.mxu0 0.0
      %4121 = vmatprep.subr.mxu0 0.0
      %4122 = vmatpush1.msra.mxu0 0.0
      %4123 = vmatprep.subr.mxu0 0.0
      %4124 = vmatpush1.msra.mxu0 0.0
      %4125 = vmatprep.subr.mxu0 0.0
      %4126 = vmatpush1.msra.mxu0 0.0
      %4127 = vmatprep.subr.mxu0 0.0
      %4128 = vmatpush1.msra.mxu0 0.0
      %4129 = vmatprep.subr.mxu0 0.0
      %4130 = vmatpush1.msra.mxu0 0.0
      %4131 = vmatprep.subr.mxu0 0.0
      %4132 = vmatpush1.msra.mxu0 0.0
      %4133 = vmatprep.subr.mxu0 0.0
      %4134 = vmatpush1.msra.mxu0 0.0
      %4135 = vmatprep.subr.mxu0 0.0
      %4136 = vmatpush1.msra.mxu0 0.0
      %4137 = vmatprep.subr.mxu0 0.0
      %4138 = vmatpush1.msra.mxu0 0.0
      %4139 = vmatprep.subr.mxu0 0.0
      %4140 = vmatpush1.msra.mxu0 0.0
      %4141 = vmatprep.subr.mxu0 0.0
      %4142 = vmatpush1.msra.mxu0 0.0
      %4143 = vmatprep.subr.mxu0 0.0
      %4144 = vmatpush1.msra.mxu0 0.0
      %4145 = vmatprep.subr.mxu0 0.0
      %4146 = vmatpush1.msra.mxu0 0.0
      %4147 = vmatprep.subr.mxu0 0.0
      %4148 = vmatpush1.msra.mxu0 0.0
      %4149 = vmatprep.subr.mxu0 0.0
      %4150 = vmatpush1.msra.mxu0 0.0
      %4151 = vmatprep.subr.mxu0 0.0
      %4152 = vmatpush1.msra.mxu0 0.0
      %4153 = vmatprep.subr.mxu0 0.0
      %4154 = vmatpush1.msra.mxu0 0.0
      %4155 = vmatprep.subr.mxu0 0.0
      %4156 = vmatpush1.msra.mxu0 0.0
      %4157 = vmatprep.subr.mxu0 0.0
      %4158 = vmatpush1.msra.mxu0 0.0
      %4159 = vmatprep.subr.mxu0 0.0
      %4160 = vmatpush1.msra.mxu0 0.0
      %4161 = vmatprep.subr.mxu0 0.0
      %4162 = vmatpush1.msra.mxu0 0.0
      %4163 = vmatprep.subr.mxu0 0.0
      %4164 = vmatpush1.msra.mxu0 0.0
      %4165 = vmatprep.subr.mxu0 0.0
      %4166 = vmatpush1.msra.mxu0 0.0
      %4167 = vmatprep.subr.mxu0 0.0
      %4168 = vmatpush1.msra.mxu0 0.0
      %4169 = vmatprep.subr.mxu0 0.0
      %4170 = vmatpush1.msra.mxu0 0.0
      %4171 = vmatprep.subr.mxu0 0.0
      %4172 = vmatpush1.msra.mxu0 0.0
      %4173 = vmatprep.mubr.f32.mxu0 0.0
      %4174 = vmatmul.mubr.f32.gmra.mrb[0].mxu0 %v4101
      %v4175 = vpop.f32.mrb[0].mxu0
      %v4176 = vadd.f32 0.0, %v4175
      %v4177 = vpop.f32.mrb[0].mxu0
      %4178 = vmatprep.mubr.f32.mxu0 0.0
      %4179 = vmatmul.mubr.f32.gmra.mrb[0].mxu0 %v4104
      %v4180 = vpop.f32.mrb[0].mxu0
      %v4181 = vadd.f32 0.0, %v4180
      %v4182 = vpop.f32.mrb[0].mxu0
      %4183 = vmatprep.mubr.f32.mxu0 0.0
      %4184 = vmatmul.mubr.f32.gmra.mrb[0].mxu0 %v4107
      %v4185 = vpop.f32.mrb[0].mxu0
      %v4186 = vadd.f32 0.0, %v4185
      %v4187 = vpop.f32.mrb[0].mxu0
      %4188 = vdwg.mxu0
      %v4189 = vadd.f32 %v3330, %v4176
      %v4190 = vadd.f32 %v3331, %v4181
      %v4191 = vadd.f32 %v3332, %v4186
      %v4192 = vadd.f32 %v692, %v4189
      %v4193 = vadd.f32 %v693, %v4190
      %v4194 = vadd.f32 %v694, %v4191
      %v4195 = vld [vmem:[%s12] sm:$0x1]
      %v4197 = vlaneseq
      %v4198 = vshrl.u32 %v4197, 7
      %v4199 = vsub.s32 0, %v4198
      %v4200 = vrot.slane %v4195, %v4199
      %v4202 = vadd.f32 %v4192, %v4200
      %v4203 = vadd.f32 %v4193, %v4200
      %v4204 = vadd.f32 %v4194, %v4200
      %v4205 = vld [vmem:[%s13] sm:$0x1]
      %v4206 = vld [vmem:[%s14] sm:$0x1]
      %v4207 = vsel %vm700, %v4202, 0.0
      %4208 = vadd.xlane.f32.xlu0 %v4207
      %v4209 = vpop.xlane.xlu0 %4208
      %v4210 = vsel %vm700, %v4203, 0.0
      %4211 = vadd.xlane.f32.xlu0 %v4210
      %v4212 = vpop.xlane.xlu0 %4211
      %v4213 = vsel %vm700, %v4204, 0.0
      %4214 = vadd.xlane.f32.xlu0 %v4213
      %v4215 = vpop.xlane.xlu0 %4214
      %v4216 = vmul.f32 %v4209, %v710
      %v4217 = vmul.f32 %v4212, %v710
      %v4218 = vmul.f32 %v4215, %v710
      %v4219 = vsub.f32 %v4202, %v4216
      %v4220 = vsub.f32 %v4203, %v4217
      %v4221 = vsub.f32 %v4204, %v4218
      %v4222 = vmul.f32 %v4219, %v4219
      %v4223 = vmul.f32 %v4220, %v4220
      %v4224 = vmul.f32 %v4221, %v4221
      %v4225 = vsel %vm700, %v4222, 0.0
      %4226 = vadd.xlane.f32.xlu0 %v4225
      %v4227 = vpop.xlane.xlu0 %4226
      %v4228 = vsel %vm700, %v4223, 0.0
      %4229 = vadd.xlane.f32.xlu0 %v4228
      %v4230 = vpop.xlane.xlu0 %4229
      %v4231 = vsel %vm700, %v4224, 0.0
      %4232 = vadd.xlane.f32.xlu0 %v4231
      %v4233 = vpop.xlane.xlu0 %4232
      %v4234 = vmul.f32 %v4227, %v710
      %v4235 = vmul.f32 %v4230, %v710
      %v4236 = vmul.f32 %v4233, %v710
      %v4237 = vadd.f32 %v4234, 1e-05
      %v4238 = vadd.f32 %v4235, 1e-05
      %v4239 = vadd.f32 %v4236, 1e-05
      %v4240 = vrsqrt.pop %v4237
      %v4241 = vrsqrt.pop %v4238
      %v4242 = vrsqrt.pop %v4239
      %v4243 = vmul.f32 %v4219, %v4240
      %v4244 = vmul.f32 %v4220, %v4241
      %v4245 = vmul.f32 %v4221, %v4242
      %v4247 = vlaneseq
      %v4248 = vshrl.u32 %v4247, 7
      %v4249 = vsub.s32 0, %v4248
      %v4250 = vrot.slane %v4205, %v4249
      %v4252 = vmul.f32 %v4243, %v4250
      %v4253 = vmul.f32 %v4244, %v4250
      %v4254 = vmul.f32 %v4245, %v4250
      %v4256 = vlaneseq
      %v4257 = vshrl.u32 %v4256, 7
      %v4258 = vsub.s32 0, %v4257
      %v4259 = vrot.slane %v4206, %v4258
      %v4261 = vadd.f32 %v4252, %v4259
      %v4262 = vadd.f32 %v4253, %v4259
      %v4263 = vadd.f32 %v4254, %v4259
      %v4264 = vld [vmem:[%s15] sm:$0xff]
      %v4265 = vld [vmem:[%s15 + $0x8] sm:$0xff]
      %v4266 = vld [vmem:[%s15 + $0x10] sm:$0xff]
      %v4267 = vld [vmem:[%s15 + $0x18] sm:$0xff]
      %v4268 = vld [vmem:[%s16] sm:$0x1]
      %v4270 = vlaneseq
      %v4271 = vshrl.u32 %v4270, 7
      %v4272 = vsub.s32 0, %v4271
      %v4273 = vrot.slane %v4268, %v4272
      %v4276 = vsel %vm700, %v4261, 0
      %v4279 = vsel %vm700, %v4262, 0
      %v4282 = vsel %vm700, %v4263, 0
      %4284 = vmatprep.subr.mxu0 0.0
      %4285 = vmatpush1.msra.mxu0 %v4264
      %4286 = vmatprep.subr.mxu0 0.0
      %4287 = vmatpush1.msra.mxu0 %v4265
      %4288 = vmatprep.subr.mxu0 0.0
      %4289 = vmatpush1.msra.mxu0 %v4266
      %4290 = vmatprep.subr.mxu0 0.0
      %4291 = vmatpush1.msra.mxu0 %v4267
      %4292 = vmatprep.subr.mxu0 0.0
      %4293 = vmatpush1.msra.mxu0 0.0
      %4294 = vmatprep.subr.mxu0 0.0
      %4295 = vmatpush1.msra.mxu0 0.0
      %4296 = vmatprep.subr.mxu0 0.0
      %4297 = vmatpush1.msra.mxu0 0.0
      %4298 = vmatprep.subr.mxu0 0.0
      %4299 = vmatpush1.msra.mxu0 0.0
      %4300 = vmatprep.subr.mxu0 0.0
      %4301 = vmatpush1.msra.mxu0 0.0
      %4302 = vmatprep.subr.mxu0 0.0
      %4303 = vmatpush1.msra.mxu0 0.0
      %4304 = vmatprep.subr.mxu0 0.0
      %4305 = vmatpush1.msra.mxu0 0.0
      %4306 = vmatprep.subr.mxu0 0.0
      %4307 = vmatpush1.msra.mxu0 0.0
      %4308 = vmatprep.subr.mxu0 0.0
      %4309 = vmatpush1.msra.mxu0 0.0
      %4310 = vmatprep.subr.mxu0 0.0
      %4311 = vmatpush1.msra.mxu0 0.0
      %4312 = vmatprep.subr.mxu0 0.0
      %4313 = vmatpush1.msra.mxu0 0.0
      %4314 = vmatprep.subr.mxu0 0.0
      %4315 = vmatpush1.msra.mxu0 0.0
      %4316 = vmatprep.subr.mxu0 0.0
      %4317 = vmatpush1.msra.mxu0 0.0
      %4318 = vmatprep.subr.mxu0 0.0
      %4319 = vmatpush1.msra.mxu0 0.0
      %4320 = vmatprep.subr.mxu0 0.0
      %4321 = vmatpush1.msra.mxu0 0.0
      %4322 = vmatprep.subr.mxu0 0.0
      %4323 = vmatpush1.msra.mxu0 0.0
      %4324 = vmatprep.subr.mxu0 0.0
      %4325 = vmatpush1.msra.mxu0 0.0
      %4326 = vmatprep.subr.mxu0 0.0
      %4327 = vmatpush1.msra.mxu0 0.0
      %4328 = vmatprep.subr.mxu0 0.0
      %4329 = vmatpush1.msra.mxu0 0.0
      %4330 = vmatprep.subr.mxu0 0.0
      %4331 = vmatpush1.msra.mxu0 0.0
      %4332 = vmatprep.subr.mxu0 0.0
      %4333 = vmatpush1.msra.mxu0 0.0
      %4334 = vmatprep.subr.mxu0 0.0
      %4335 = vmatpush1.msra.mxu0 0.0
      %4336 = vmatprep.subr.mxu0 0.0
      %4337 = vmatpush1.msra.mxu0 0.0
      %4338 = vmatprep.subr.mxu0 0.0
      %4339 = vmatpush1.msra.mxu0 0.0
      %4340 = vmatprep.subr.mxu0 0.0
      %4341 = vmatpush1.msra.mxu0 0.0
      %4342 = vmatprep.subr.mxu0 0.0
      %4343 = vmatpush1.msra.mxu0 0.0
      %4344 = vmatprep.subr.mxu0 0.0
      %4345 = vmatpush1.msra.mxu0 0.0
      %4346 = vmatprep.subr.mxu0 0.0
      %4347 = vmatpush1.msra.mxu0 0.0
      %4348 = vmatprep.mubr.f32.mxu0 0.0
      %4349 = vmatmul.mubr.f32.gmra.mrb[0].mxu0 %v4276
      %v4350 = vpop.f32.mrb[0].mxu0
      %v4351 = vadd.f32 %v4273, %v4350
      %v4352 = vpop.f32.mrb[0].mxu0
      %4353 = vmatprep.mubr.f32.mxu0 0.0
      %4354 = vmatmul.mubr.f32.gmra.mrb[0].mxu0 %v4279
      %v4355 = vpop.f32.mrb[0].mxu0
      %v4356 = vadd.f32 %v4273, %v4355
      %v4357 = vpop.f32.mrb[0].mxu0
      %4358 = vmatprep.mubr.f32.mxu0 0.0
      %4359 = vmatmul.mubr.f32.gmra.mrb[0].mxu0 %v4282
      %v4360 = vpop.f32.mrb[0].mxu0
      %v4361 = vadd.f32 %v4273, %v4360
      %v4362 = vpop.f32.mrb[0].mxu0
      %4363 = vdwg.mxu0
      %v4364 = vmul.f32 %v4351, 0.5
      %v4365 = vmul.f32 %v4356, 0.5
      %v4366 = vmul.f32 %v4361, 0.5
      %v4367 = vmul.f32 %v4351, 0.044715
      %v4368 = vmul.f32 %v4356, 0.044715
      %v4369 = vmul.f32 %v4361, 0.044715
      %v4370 = vmul.f32 %v4367, %v4351
      %v4371 = vmul.f32 %v4368, %v4356
      %v4372 = vmul.f32 %v4369, %v4361
      %v4373 = vmul.f32 %v4370, %v4351
      %v4374 = vmul.f32 %v4371, %v4356
      %v4375 = vmul.f32 %v4372, %v4361
      %v4376 = vadd.f32 %v4351, %v4373
      %v4377 = vadd.f32 %v4356, %v4374
      %v4378 = vadd.f32 %v4361, %v4375
      %v4379 = vmul.f32 %v4376, 0.7978846
      %v4380 = vmul.f32 %v4377, 0.7978846
      %v4381 = vmul.f32 %v4378, 0.7978846
      %v4382 = vtanh.pop %v4379
      %v4383 = vtanh.pop %v4380
      %v4384 = vtanh.pop %v4381
      %v4385 = vadd.f32 %v4382, 1.0
      %v4386 = vadd.f32 %v4383, 1.0
      %v4387 = vadd.f32 %v4384, 1.0
      %v4388 = vmul.f32 %v4364, %v4385
      %v4389 = vmul.f32 %v4365, %v4386
      %v4390 = vmul.f32 %v4366, %v4387
      %v4391 = vld [vmem:[%s17] sm:$0xff]
      %v4392 = vld [vmem:[%s17 + $0x8] sm:$0xff]
      %v4393 = vld [vmem:[%s17 + $0x10] sm:$0xff]
      %v4394 = vld [vmem:[%s17 + $0x18] sm:$0xff]
      %v4395 = vld [vmem:[%s17 + $0x20] sm:$0xff]
      %v4396 = vld [vmem:[%s17 + $0x28] sm:$0xff]
      %v4397 = vld [vmem:[%s17 + $0x30] sm:$0xff]
      %v4398 = vld [vmem:[%s17 + $0x38] sm:$0xff]
      %v4399 = vld [vmem:[%s17 + $0x40] sm:$0xff]
      %v4400 = vld [vmem:[%s17 + $0x48] sm:$0xff]
      %v4401 = vld [vmem:[%s17 + $0x50] sm:$0xff]
      %v4402 = vld [vmem:[%s17 + $0x58] sm:$0xff]
      %v4403 = vld [vmem:[%s17 + $0x60] sm:$0xff]
      %v4404 = vld [vmem:[%s17 + $0x68] sm:$0xff]
      %v4405 = vld [vmem:[%s17 + $0x70] sm:$0xff]
      %v4406 = vld [vmem:[%s17 + $0x78] sm:$0xff]
      %4407 = vmatprep.subr.mxu0 0.0
      %4408 = vmatpush1.msra.mxu0 %v4391
      %4409 = vmatprep.subr.mxu0 0.0
      %4410 = vmatpush1.msra.mxu0 %v4392
      %4411 = vmatprep.subr.mxu0 0.0
      %4412 = vmatpush1.msra.mxu0 %v4393
      %4413 = vmatprep.subr.mxu0 0.0
      %4414 = vmatpush1.msra.mxu0 %v4394
      %4415 = vmatprep.subr.mxu0 0.0
      %4416 = vmatpush1.msra.mxu0 %v4395
      %4417 = vmatprep.subr.mxu0 0.0
      %4418 = vmatpush1.msra.mxu0 %v4396
      %4419 = vmatprep.subr.mxu0 0.0
      %4420 = vmatpush1.msra.mxu0 %v4397
      %4421 = vmatprep.subr.mxu0 0.0
      %4422 = vmatpush1.msra.mxu0 %v4398
      %4423 = vmatprep.subr.mxu0 0.0
      %4424 = vmatpush1.msra.mxu0 %v4399
      %4425 = vmatprep.subr.mxu0 0.0
      %4426 = vmatpush1.msra.mxu0 %v4400
      %4427 = vmatprep.subr.mxu0 0.0
      %4428 = vmatpush1.msra.mxu0 %v4401
      %4429 = vmatprep.subr.mxu0 0.0
      %4430 = vmatpush1.msra.mxu0 %v4402
      %4431 = vmatprep.subr.mxu0 0.0
      %4432 = vmatpush1.msra.mxu0 %v4403
      %4433 = vmatprep.subr.mxu0 0.0
      %4434 = vmatpush1.msra.mxu0 %v4404
      %4435 = vmatprep.subr.mxu0 0.0
      %4436 = vmatpush1.msra.mxu0 %v4405
      %4437 = vmatprep.subr.mxu0 0.0
      %4438 = vmatpush1.msra.mxu0 %v4406
      %4439 = vmatprep.subr.mxu0 0.0
      %4440 = vmatpush1.msra.mxu0 0.0
      %4441 = vmatprep.subr.mxu0 0.0
      %4442 = vmatpush1.msra.mxu0 0.0
      %4443 = vmatprep.subr.mxu0 0.0
      %4444 = vmatpush1.msra.mxu0 0.0
      %4445 = vmatprep.subr.mxu0 0.0
      %4446 = vmatpush1.msra.mxu0 0.0
      %4447 = vmatprep.subr.mxu0 0.0
      %4448 = vmatpush1.msra.mxu0 0.0
      %4449 = vmatprep.subr.mxu0 0.0
      %4450 = vmatpush1.msra.mxu0 0.0
      %4451 = vmatprep.subr.mxu0 0.0
      %4452 = vmatpush1.msra.mxu0 0.0
      %4453 = vmatprep.subr.mxu0 0.0
      %4454 = vmatpush1.msra.mxu0 0.0
      %4455 = vmatprep.subr.mxu0 0.0
      %4456 = vmatpush1.msra.mxu0 0.0
      %4457 = vmatprep.subr.mxu0 0.0
      %4458 = vmatpush1.msra.mxu0 0.0
      %4459 = vmatprep.subr.mxu0 0.0
      %4460 = vmatpush1.msra.mxu0 0.0
      %4461 = vmatprep.subr.mxu0 0.0
      %4462 = vmatpush1.msra.mxu0 0.0
      %4463 = vmatprep.subr.mxu0 0.0
      %4464 = vmatpush1.msra.mxu0 0.0
      %4465 = vmatprep.subr.mxu0 0.0
      %4466 = vmatpush1.msra.mxu0 0.0
      %4467 = vmatprep.subr.mxu0 0.0
      %4468 = vmatpush1.msra.mxu0 0.0
      %4469 = vmatprep.subr.mxu0 0.0
      %4470 = vmatpush1.msra.mxu0 0.0
      %4471 = vmatprep.mubr.f32.mxu0 0.0
      %4472 = vmatmul.mubr.f32.gmra.mrb[0].mxu0 %v4388
      %v4473 = vpop.f32.mrb[0].mxu0
      %v4474 = vadd.f32 0.0, %v4473
      %v4475 = vpop.f32.mrb[0].mxu0
      %4476 = vmatprep.mubr.f32.mxu0 0.0
      %4477 = vmatmul.mubr.f32.gmra.mrb[0].mxu0 %v4389
      %v4478 = vpop.f32.mrb[0].mxu0
      %v4479 = vadd.f32 0.0, %v4478
      %v4480 = vpop.f32.mrb[0].mxu0
      %4481 = vmatprep.mubr.f32.mxu0 0.0
      %4482 = vmatmul.mubr.f32.gmra.mrb[0].mxu0 %v4390
      %v4483 = vpop.f32.mrb[0].mxu0
      %v4484 = vadd.f32 0.0, %v4483
      %v4485 = vpop.f32.mrb[0].mxu0
      %4486 = vdwg.mxu0
      %v4487 = vadd.f32 %v4202, %v4474
      %v4488 = vadd.f32 %v4203, %v4479
      %v4489 = vadd.f32 %v4204, %v4484
      %v4490 = vld [vmem:[%s18] sm:$0x1]
      %v4492 = vlaneseq
      %v4493 = vshrl.u32 %v4492, 7
      %v4494 = vsub.s32 0, %v4493
      %v4495 = vrot.slane %v4490, %v4494
      %v4497 = vadd.f32 %v4487, %v4495
      %v4498 = vadd.f32 %v4488, %v4495
      %v4499 = vadd.f32 %v4489, %v4495
      %s4500 = scalar_lea.vmem %s3, 1
      %v4501 = vld [vmem:[%s4500] sm:$0x1]
      %s4502 = scalar_lea.vmem %s4, 1
      %v4503 = vld [vmem:[%s4502] sm:$0x1]
      %v4504 = vsel %vm700, %v4497, 0.0
      %4505 = vadd.xlane.f32.xlu0 %v4504
      %v4506 = vpop.xlane.xlu0 %4505
      %v4507 = vsel %vm700, %v4498, 0.0
      %4508 = vadd.xlane.f32.xlu0 %v4507
      %v4509 = vpop.xlane.xlu0 %4508
      %v4510 = vsel %vm700, %v4499, 0.0
      %4511 = vadd.xlane.f32.xlu0 %v4510
      %v4512 = vpop.xlane.xlu0 %4511
      %v4513 = vmul.f32 %v4506, %v710
      %v4514 = vmul.f32 %v4509, %v710
      %v4515 = vmul.f32 %v4512, %v710
      %v4516 = vsub.f32 %v4497, %v4513
      %v4517 = vsub.f32 %v4498, %v4514
      %v4518 = vsub.f32 %v4499, %v4515
      %v4519 = vmul.f32 %v4516, %v4516
      %v4520 = vmul.f32 %v4517, %v4517
      %v4521 = vmul.f32 %v4518, %v4518
      %v4522 = vsel %vm700, %v4519, 0.0
      %4523 = vadd.xlane.f32.xlu0 %v4522
      %v4524 = vpop.xlane.xlu0 %4523
      %v4525 = vsel %vm700, %v4520, 0.0
      %4526 = vadd.xlane.f32.xlu0 %v4525
      %v4527 = vpop.xlane.xlu0 %4526
      %v4528 = vsel %vm700, %v4521, 0.0
      %4529 = vadd.xlane.f32.xlu0 %v4528
      %v4530 = vpop.xlane.xlu0 %4529
      %v4531 = vmul.f32 %v4524, %v710
      %v4532 = vmul.f32 %v4527, %v710
      %v4533 = vmul.f32 %v4530, %v710
      %v4534 = vadd.f32 %v4531, 1e-05
      %v4535 = vadd.f32 %v4532, 1e-05
      %v4536 = vadd.f32 %v4533, 1e-05
      %v4537 = vrsqrt.pop %v4534
      %v4538 = vrsqrt.pop %v4535
      %v4539 = vrsqrt.pop %v4536
      %v4540 = vmul.f32 %v4516, %v4537
      %v4541 = vmul.f32 %v4517, %v4538
      %v4542 = vmul.f32 %v4518, %v4539
      %v4544 = vlaneseq
      %v4545 = vshrl.u32 %v4544, 7
      %v4546 = vsub.s32 0, %v4545
      %v4547 = vrot.slane %v4501, %v4546
      %v4549 = vmul.f32 %v4540, %v4547
      %v4550 = vmul.f32 %v4541, %v4547
      %v4551 = vmul.f32 %v4542, %v4547
      %v4553 = vlaneseq
      %v4554 = vshrl.u32 %v4553, 7
      %v4555 = vsub.s32 0, %v4554
      %v4556 = vrot.slane %v4503, %v4555
      %v4558 = vadd.f32 %v4549, %v4556
      %v4559 = vadd.f32 %v4550, %v4556
      %v4560 = vadd.f32 %v4551, %v4556
      %s4561 = scalar_lea.vmem %s5, 128
      %v4562 = vld [vmem:[%s4561] sm:$0xff]
      %v4563 = vld [vmem:[%s4561 + $0x8] sm:$0xff]
      %v4564 = vld [vmem:[%s4561 + $0x10] sm:$0xff]
      %v4565 = vld [vmem:[%s4561 + $0x18] sm:$0xff]
      %s4566 = scalar_lea.vmem %s6, 4
      %v4567 = vld [vmem:[%s4566] sm:$0x1]
      %v4569 = vlaneseq
      %v4570 = vshrl.u32 %v4569, 7
      %v4571 = vsub.s32 0, %v4570
      %v4572 = vrot.slane %v4567, %v4571
      %v4575 = vsel %vm700, %v4558, 0
      %v4578 = vsel %vm700, %v4559, 0
      %v4581 = vsel %vm700, %v4560, 0
      %4583 = vmatprep.subr.mxu0 0.0
      %4584 = vmatpush1.msra.mxu0 %v4562
      %4585 = vmatprep.subr.mxu0 0.0
      %4586 = vmatpush1.msra.mxu0 %v4563
      %4587 = vmatprep.subr.mxu0 0.0
      %4588 = vmatpush1.msra.mxu0 %v4564
      %4589 = vmatprep.subr.mxu0 0.0
      %4590 = vmatpush1.msra.mxu0 %v4565
      %4591 = vmatprep.subr.mxu0 0.0
      %4592 = vmatpush1.msra.mxu0 0.0
      %4593 = vmatprep.subr.mxu0 0.0
      %4594 = vmatpush1.msra.mxu0 0.0
      %4595 = vmatprep.subr.mxu0 0.0
      %4596 = vmatpush1.msra.mxu0 0.0
      %4597 = vmatprep.subr.mxu0 0.0
      %4598 = vmatpush1.msra.mxu0 0.0
      %4599 = vmatprep.subr.mxu0 0.0
      %4600 = vmatpush1.msra.mxu0 0.0
      %4601 = vmatprep.subr.mxu0 0.0
      %4602 = vmatpush1.msra.mxu0 0.0
      %4603 = vmatprep.subr.mxu0 0.0
      %4604 = vmatpush1.msra.mxu0 0.0
      %4605 = vmatprep.subr.mxu0 0.0
      %4606 = vmatpush1.msra.mxu0 0.0
      %4607 = vmatprep.subr.mxu0 0.0
      %4608 = vmatpush1.msra.mxu0 0.0
      %4609 = vmatprep.subr.mxu0 0.0
      %4610 = vmatpush1.msra.mxu0 0.0
      %4611 = vmatprep.subr.mxu0 0.0
      %4612 = vmatpush1.msra.mxu0 0.0
      %4613 = vmatprep.subr.mxu0 0.0
      %4614 = vmatpush1.msra.mxu0 0.0
      %4615 = vmatprep.subr.mxu0 0.0
      %4616 = vmatpush1.msra.mxu0 0.0
      %4617 = vmatprep.subr.mxu0 0.0
      %4618 = vmatpush1.msra.mxu0 0.0
      %4619 = vmatprep.subr.mxu0 0.0
      %4620 = vmatpush1.msra.mxu0 0.0
      %4621 = vmatprep.subr.mxu0 0.0
      %4622 = vmatpush1.msra.mxu0 0.0
      %4623 = vmatprep.subr.mxu0 0.0
      %4624 = vmatpush1.msra.mxu0 0.0
      %4625 = vmatprep.subr.mxu0 0.0
      %4626 = vmatpush1.msra.mxu0 0.0
      %4627 = vmatprep.subr.mxu0 0.0
      %4628 = vmatpush1.msra.mxu0 0.0
      %4629 = vmatprep.subr.mxu0 0.0
      %4630 = vmatpush1.msra.mxu0 0.0
      %4631 = vmatprep.subr.mxu0 0.0
      %4632 = vmatpush1.msra.mxu0 0.0
      %4633 = vmatprep.subr.mxu0 0.0
      %4634 = vmatpush1.msra.mxu0 0.0
      %4635 = vmatprep.subr.mxu0 0.0
      %4636 = vmatpush1.msra.mxu0 0.0
      %4637 = vmatprep.subr.mxu0 0.0
      %4638 = vmatpush1.msra.mxu0 0.0
      %4639 = vmatprep.subr.mxu0 0.0
      %4640 = vmatpush1.msra.mxu0 0.0
      %4641 = vmatprep.subr.mxu0 0.0
      %4642 = vmatpush1.msra.mxu0 0.0
      %4643 = vmatprep.subr.mxu0 0.0
      %4644 = vmatpush1.msra.mxu0 0.0
      %4645 = vmatprep.subr.mxu0 0.0
      %4646 = vmatpush1.msra.mxu0 0.0
      %4647 = vmatprep.mubr.f32.mxu0 0.0
      %4648 = vmatmul.mubr.f32.gmra.mrb[0].mxu0 %v4575
      %v4649 = vpop.f32.mrb[0].mxu0
      %v4650 = vadd.f32 %v4572, %v4649
      %v4651 = vpop.f32.mrb[0].mxu0
      %4652 = vmatprep.mubr.f32.mxu0 0.0
      %4653 = vmatmul.mubr.f32.gmra.mrb[0].mxu0 %v4578
      %v4654 = vpop.f32.mrb[0].mxu0
      %v4655 = vadd.f32 %v4572, %v4654
      %v4656 = vpop.f32.mrb[0].mxu0
      %4657 = vmatprep.mubr.f32.mxu0 0.0
      %4658 = vmatmul.mubr.f32.gmra.mrb[0].mxu0 %v4581
      %v4659 = vpop.f32.mrb[0].mxu0
      %v4660 = vadd.f32 %v4572, %v4659
      %v4661 = vpop.f32.mrb[0].mxu0
      %4662 = vdwg.mxu0
      %s4663 = scalar_lea.vmem %s7, 128
      %v4664 = vld [vmem:[%s4663] sm:$0xff]
      %v4665 = vld [vmem:[%s4663 + $0x8] sm:$0xff]
      %v4666 = vld [vmem:[%s4663 + $0x10] sm:$0xff]
      %v4667 = vld [vmem:[%s4663 + $0x18] sm:$0xff]
      %s4668 = scalar_lea.vmem %s8, 4
      %v4669 = vld [vmem:[%s4668] sm:$0x1]
      %v4671 = vlaneseq
      %v4672 = vshrl.u32 %v4671, 7
      %v4673 = vsub.s32 0, %v4672
      %v4674 = vrot.slane %v4669, %v4673
      %4676 = vmatprep.subr.mxu0 0.0
      %4677 = vmatpush1.msra.mxu0 %v4664
      %4678 = vmatprep.subr.mxu0 0.0
      %4679 = vmatpush1.msra.mxu0 %v4665
      %4680 = vmatprep.subr.mxu0 0.0
      %4681 = vmatpush1.msra.mxu0 %v4666
      %4682 = vmatprep.subr.mxu0 0.0
      %4683 = vmatpush1.msra.mxu0 %v4667
      %4684 = vmatprep.subr.mxu0 0.0
      %4685 = vmatpush1.msra.mxu0 0.0
      %4686 = vmatprep.subr.mxu0 0.0
      %4687 = vmatpush1.msra.mxu0 0.0
      %4688 = vmatprep.subr.mxu0 0.0
      %4689 = vmatpush1.msra.mxu0 0.0
      %4690 = vmatprep.subr.mxu0 0.0
      %4691 = vmatpush1.msra.mxu0 0.0
      %4692 = vmatprep.subr.mxu0 0.0
      %4693 = vmatpush1.msra.mxu0 0.0
      %4694 = vmatprep.subr.mxu0 0.0
      %4695 = vmatpush1.msra.mxu0 0.0
      %4696 = vmatprep.subr.mxu0 0.0
      %4697 = vmatpush1.msra.mxu0 0.0
      %4698 = vmatprep.subr.mxu0 0.0
      %4699 = vmatpush1.msra.mxu0 0.0
      %4700 = vmatprep.subr.mxu0 0.0
      %4701 = vmatpush1.msra.mxu0 0.0
      %4702 = vmatprep.subr.mxu0 0.0
      %4703 = vmatpush1.msra.mxu0 0.0
      %4704 = vmatprep.subr.mxu0 0.0
      %4705 = vmatpush1.msra.mxu0 0.0
      %4706 = vmatprep.subr.mxu0 0.0
      %4707 = vmatpush1.msra.mxu0 0.0
      %4708 = vmatprep.subr.mxu0 0.0
      %4709 = vmatpush1.msra.mxu0 0.0
      %4710 = vmatprep.subr.mxu0 0.0
      %4711 = vmatpush1.msra.mxu0 0.0
      %4712 = vmatprep.subr.mxu0 0.0
      %4713 = vmatpush1.msra.mxu0 0.0
      %4714 = vmatprep.subr.mxu0 0.0
      %4715 = vmatpush1.msra.mxu0 0.0
      %4716 = vmatprep.subr.mxu0 0.0
      %4717 = vmatpush1.msra.mxu0 0.0
      %4718 = vmatprep.subr.mxu0 0.0
      %4719 = vmatpush1.msra.mxu0 0.0
      %4720 = vmatprep.subr.mxu0 0.0
      %4721 = vmatpush1.msra.mxu0 0.0
      %4722 = vmatprep.subr.mxu0 0.0
      %4723 = vmatpush1.msra.mxu0 0.0
      %4724 = vmatprep.subr.mxu0 0.0
      %4725 = vmatpush1.msra.mxu0 0.0
      %4726 = vmatprep.subr.mxu0 0.0
      %4727 = vmatpush1.msra.mxu0 0.0
      %4728 = vmatprep.subr.mxu0 0.0
      %4729 = vmatpush1.msra.mxu0 0.0
      %4730 = vmatprep.subr.mxu0 0.0
      %4731 = vmatpush1.msra.mxu0 0.0
      %4732 = vmatprep.subr.mxu0 0.0
      %4733 = vmatpush1.msra.mxu0 0.0
      %4734 = vmatprep.subr.mxu0 0.0
      %4735 = vmatpush1.msra.mxu0 0.0
      %4736 = vmatprep.subr.mxu0 0.0
      %4737 = vmatpush1.msra.mxu0 0.0
      %4738 = vmatprep.subr.mxu0 0.0
      %4739 = vmatpush1.msra.mxu0 0.0
      %4740 = vmatprep.mubr.f32.mxu0 0.0
      %4741 = vmatmul.mubr.f32.gmra.mrb[0].mxu0 %v4575
      %v4742 = vpop.f32.mrb[0].mxu0
      %v4743 = vadd.f32 %v4674, %v4742
      %v4744 = vpop.f32.mrb[0].mxu0
      %4745 = vmatprep.mubr.f32.mxu0 0.0
      %4746 = vmatmul.mubr.f32.gmra.mrb[0].mxu0 %v4578
      %v4747 = vpop.f32.mrb[0].mxu0
      %v4748 = vadd.f32 %v4674, %v4747
      %v4749 = vpop.f32.mrb[0].mxu0
      %4750 = vmatprep.mubr.f32.mxu0 0.0
      %4751 = vmatmul.mubr.f32.gmra.mrb[0].mxu0 %v4581
      %v4752 = vpop.f32.mrb[0].mxu0
      %v4753 = vadd.f32 %v4674, %v4752
      %v4754 = vpop.f32.mrb[0].mxu0
      %4755 = vdwg.mxu0
      %s4756 = scalar_lea.vmem %s9, 128
      %v4757 = vld [vmem:[%s4756] sm:$0xff]
      %v4758 = vld [vmem:[%s4756 + $0x8] sm:$0xff]
      %v4759 = vld [vmem:[%s4756 + $0x10] sm:$0xff]
      %v4760 = vld [vmem:[%s4756 + $0x18] sm:$0xff]
      %s4761 = scalar_lea.vmem %s10, 4
      %v4762 = vld [vmem:[%s4761] sm:$0x1]
      %v4764 = vlaneseq
      %v4765 = vshrl.u32 %v4764, 7
      %v4766 = vsub.s32 0, %v4765
      %v4767 = vrot.slane %v4762, %v4766
      %4769 = vmatprep.subr.mxu0 0.0
      %4770 = vmatpush1.msra.mxu0 %v4757
      %4771 = vmatprep.subr.mxu0 0.0
      %4772 = vmatpush1.msra.mxu0 %v4758
      %4773 = vmatprep.subr.mxu0 0.0
      %4774 = vmatpush1.msra.mxu0 %v4759
      %4775 = vmatprep.subr.mxu0 0.0
      %4776 = vmatpush1.msra.mxu0 %v4760
      %4777 = vmatprep.subr.mxu0 0.0
      %4778 = vmatpush1.msra.mxu0 0.0
      %4779 = vmatprep.subr.mxu0 0.0
      %4780 = vmatpush1.msra.mxu0 0.0
      %4781 = vmatprep.subr.mxu0 0.0
      %4782 = vmatpush1.msra.mxu0 0.0
      %4783 = vmatprep.subr.mxu0 0.0
      %4784 = vmatpush1.msra.mxu0 0.0
      %4785 = vmatprep.subr.mxu0 0.0
      %4786 = vmatpush1.msra.mxu0 0.0
      %4787 = vmatprep.subr.mxu0 0.0
      %4788 = vmatpush1.msra.mxu0 0.0
      %4789 = vmatprep.subr.mxu0 0.0
      %4790 = vmatpush1.msra.mxu0 0.0
      %4791 = vmatprep.subr.mxu0 0.0
      %4792 = vmatpush1.msra.mxu0 0.0
      %4793 = vmatprep.subr.mxu0 0.0
      %4794 = vmatpush1.msra.mxu0 0.0
      %4795 = vmatprep.subr.mxu0 0.0
      %4796 = vmatpush1.msra.mxu0 0.0
      %4797 = vmatprep.subr.mxu0 0.0
      %4798 = vmatpush1.msra.mxu0 0.0
      %4799 = vmatprep.subr.mxu0 0.0
      %4800 = vmatpush1.msra.mxu0 0.0
      %4801 = vmatprep.subr.mxu0 0.0
      %4802 = vmatpush1.msra.mxu0 0.0
      %4803 = vmatprep.subr.mxu0 0.0
      %4804 = vmatpush1.msra.mxu0 0.0
      %4805 = vmatprep.subr.mxu0 0.0
      %4806 = vmatpush1.msra.mxu0 0.0
      %4807 = vmatprep.subr.mxu0 0.0
      %4808 = vmatpush1.msra.mxu0 0.0
      %4809 = vmatprep.subr.mxu0 0.0
      %4810 = vmatpush1.msra.mxu0 0.0
      %4811 = vmatprep.subr.mxu0 0.0
      %4812 = vmatpush1.msra.mxu0 0.0
      %4813 = vmatprep.subr.mxu0 0.0
      %4814 = vmatpush1.msra.mxu0 0.0
      %4815 = vmatprep.subr.mxu0 0.0
      %4816 = vmatpush1.msra.mxu0 0.0
      %4817 = vmatprep.subr.mxu0 0.0
      %4818 = vmatpush1.msra.mxu0 0.0
      %4819 = vmatprep.subr.mxu0 0.0
      %4820 = vmatpush1.msra.mxu0 0.0
      %4821 = vmatprep.subr.mxu0 0.0
      %4822 = vmatpush1.msra.mxu0 0.0
      %4823 = vmatprep.subr.mxu0 0.0
      %4824 = vmatpush1.msra.mxu0 0.0
      %4825 = vmatprep.subr.mxu0 0.0
      %4826 = vmatpush1.msra.mxu0 0.0
      %4827 = vmatprep.subr.mxu0 0.0
      %4828 = vmatpush1.msra.mxu0 0.0
      %4829 = vmatprep.subr.mxu0 0.0
      %4830 = vmatpush1.msra.mxu0 0.0
      %4831 = vmatprep.subr.mxu0 0.0
      %4832 = vmatpush1.msra.mxu0 0.0
      %4833 = vmatprep.mubr.f32.mxu0 0.0
      %4834 = vmatmul.mubr.f32.gmra.mrb[0].mxu0 %v4575
      %v4835 = vpop.f32.mrb[0].mxu0
      %v4836 = vadd.f32 %v4767, %v4835
      %v4837 = vpop.f32.mrb[0].mxu0
      %4838 = vmatprep.mubr.f32.mxu0 0.0
      %4839 = vmatmul.mubr.f32.gmra.mrb[0].mxu0 %v4578
      %v4840 = vpop.f32.mrb[0].mxu0
      %v4841 = vadd.f32 %v4767, %v4840
      %v4842 = vpop.f32.mrb[0].mxu0
      %4843 = vmatprep.mubr.f32.mxu0 0.0
      %4844 = vmatmul.mubr.f32.gmra.mrb[0].mxu0 %v4581
      %v4845 = vpop.f32.mrb[0].mxu0
      %v4846 = vadd.f32 %v4767, %v4845
      %v4847 = vpop.f32.mrb[0].mxu0
      %4848 = vdwg.mxu0
      %v4850 = vsel %vm1041, %v4650, 0
      %v4853 = vsel %vm1041, %v4743, 0
      %4855 = vmatprep.subr.mxu0 0.0
      %4856 = vmatpush1.xpose.msra.mxu0 %v4853
      %4857 = vmatprep.subr.mxu0 0.0
      %4858 = vmatpush1.xpose.msra.mxu0 0.0
      %4859 = vmatprep.subr.mxu0 0.0
      %4860 = vmatpush1.xpose.msra.mxu0 0.0
      %4861 = vmatprep.subr.mxu0 0.0
      %4862 = vmatpush1.xpose.msra.mxu0 0.0
      %4863 = vmatprep.subr.mxu0 0.0
      %4864 = vmatpush1.xpose.msra.mxu0 0.0
      %4865 = vmatprep.subr.mxu0 0.0
      %4866 = vmatpush1.xpose.msra.mxu0 0.0
      %4867 = vmatprep.subr.mxu0 0.0
      %4868 = vmatpush1.xpose.msra.mxu0 0.0
      %4869 = vmatprep.subr.mxu0 0.0
      %4870 = vmatpush1.xpose.msra.mxu0 0.0
      %4871 = vmatprep.subr.mxu0 0.0
      %4872 = vmatpush1.xpose.msra.mxu0 0.0
      %4873 = vmatprep.subr.mxu0 0.0
      %4874 = vmatpush1.xpose.msra.mxu0 0.0
      %4875 = vmatprep.subr.mxu0 0.0
      %4876 = vmatpush1.xpose.msra.mxu0 0.0
      %4877 = vmatprep.subr.mxu0 0.0
      %4878 = vmatpush1.xpose.msra.mxu0 0.0
      %4879 = vmatprep.subr.mxu0 0.0
      %4880 = vmatpush1.xpose.msra.mxu0 0.0
      %4881 = vmatprep.subr.mxu0 0.0
      %4882 = vmatpush1.xpose.msra.mxu0 0.0
      %4883 = vmatprep.subr.mxu0 0.0
      %4884 = vmatpush1.xpose.msra.mxu0 0.0
      %4885 = vmatprep.subr.mxu0 0.0
      %4886 = vmatpush1.xpose.msra.mxu0 0.0
      %4887 = vmatprep.subr.mxu0 0.0
      %4888 = vmatpush1.xpose.msra.mxu0 0.0
      %4889 = vmatprep.subr.mxu0 0.0
      %4890 = vmatpush1.xpose.msra.mxu0 0.0
      %4891 = vmatprep.subr.mxu0 0.0
      %4892 = vmatpush1.xpose.msra.mxu0 0.0
      %4893 = vmatprep.subr.mxu0 0.0
      %4894 = vmatpush1.xpose.msra.mxu0 0.0
      %4895 = vmatprep.subr.mxu0 0.0
      %4896 = vmatpush1.xpose.msra.mxu0 0.0
      %4897 = vmatprep.subr.mxu0 0.0
      %4898 = vmatpush1.xpose.msra.mxu0 0.0
      %4899 = vmatprep.subr.mxu0 0.0
      %4900 = vmatpush1.xpose.msra.mxu0 0.0
      %4901 = vmatprep.subr.mxu0 0.0
      %4902 = vmatpush1.xpose.msra.mxu0 0.0
      %4903 = vmatprep.subr.mxu0 0.0
      %4904 = vmatpush1.xpose.msra.mxu0 0.0
      %4905 = vmatprep.subr.mxu0 0.0
      %4906 = vmatpush1.xpose.msra.mxu0 0.0
      %4907 = vmatprep.subr.mxu0 0.0
      %4908 = vmatpush1.xpose.msra.mxu0 0.0
      %4909 = vmatprep.subr.mxu0 0.0
      %4910 = vmatpush1.xpose.msra.mxu0 0.0
      %4911 = vmatprep.subr.mxu0 0.0
      %4912 = vmatpush1.xpose.msra.mxu0 0.0
      %4913 = vmatprep.subr.mxu0 0.0
      %4914 = vmatpush1.xpose.msra.mxu0 0.0
      %4915 = vmatprep.subr.mxu0 0.0
      %4916 = vmatpush1.xpose.msra.mxu0 0.0
      %4917 = vmatprep.subr.mxu0 0.0
      %4918 = vmatpush1.xpose.msra.mxu0 0.0
      %4919 = vmatprep.mubr.f32.mxu0 0.0
      %4920 = vmatmul.mubr.f32.gmra.mrb[0].mxu0 %v4850
      %v4921 = vpop.f32.mrb[0].mxu0
      %v4922 = vadd.f32 0.0, %v4921
      %v4923 = vpop.f32.mrb[0].mxu0
      %4924 = vdwg.mxu0
      %v4926 = vsel %vm1041, %v4655, 0
      %v4929 = vsel %vm1041, %v4748, 0
      %4931 = vmatprep.subr.mxu0 0.0
      %4932 = vmatpush1.xpose.msra.mxu0 %v4929
      %4933 = vmatprep.subr.mxu0 0.0
      %4934 = vmatpush1.xpose.msra.mxu0 0.0
      %4935 = vmatprep.subr.mxu0 0.0
      %4936 = vmatpush1.xpose.msra.mxu0 0.0
      %4937 = vmatprep.subr.mxu0 0.0
      %4938 = vmatpush1.xpose.msra.mxu0 0.0
      %4939 = vmatprep.subr.mxu0 0.0
      %4940 = vmatpush1.xpose.msra.mxu0 0.0
      %4941 = vmatprep.subr.mxu0 0.0
      %4942 = vmatpush1.xpose.msra.mxu0 0.0
      %4943 = vmatprep.subr.mxu0 0.0
      %4944 = vmatpush1.xpose.msra.mxu0 0.0
      %4945 = vmatprep.subr.mxu0 0.0
      %4946 = vmatpush1.xpose.msra.mxu0 0.0
      %4947 = vmatprep.subr.mxu0 0.0
      %4948 = vmatpush1.xpose.msra.mxu0 0.0
      %4949 = vmatprep.subr.mxu0 0.0
      %4950 = vmatpush1.xpose.msra.mxu0 0.0
      %4951 = vmatprep.subr.mxu0 0.0
      %4952 = vmatpush1.xpose.msra.mxu0 0.0
      %4953 = vmatprep.subr.mxu0 0.0
      %4954 = vmatpush1.xpose.msra.mxu0 0.0
      %4955 = vmatprep.subr.mxu0 0.0
      %4956 = vmatpush1.xpose.msra.mxu0 0.0
      %4957 = vmatprep.subr.mxu0 0.0
      %4958 = vmatpush1.xpose.msra.mxu0 0.0
      %4959 = vmatprep.subr.mxu0 0.0
      %4960 = vmatpush1.xpose.msra.mxu0 0.0
      %4961 = vmatprep.subr.mxu0 0.0
      %4962 = vmatpush1.xpose.msra.mxu0 0.0
      %4963 = vmatprep.subr.mxu0 0.0
      %4964 = vmatpush1.xpose.msra.mxu0 0.0
      %4965 = vmatprep.subr.mxu0 0.0
      %4966 = vmatpush1.xpose.msra.mxu0 0.0
      %4967 = vmatprep.subr.mxu0 0.0
      %4968 = vmatpush1.xpose.msra.mxu0 0.0
      %4969 = vmatprep.subr.mxu0 0.0
      %4970 = vmatpush1.xpose.msra.mxu0 0.0
      %4971 = vmatprep.subr.mxu0 0.0
      %4972 = vmatpush1.xpose.msra.mxu0 0.0
      %4973 = vmatprep.subr.mxu0 0.0
      %4974 = vmatpush1.xpose.msra.mxu0 0.0
      %4975 = vmatprep.subr.mxu0 0.0
      %4976 = vmatpush1.xpose.msra.mxu0 0.0
      %4977 = vmatprep.subr.mxu0 0.0
      %4978 = vmatpush1.xpose.msra.mxu0 0.0
      %4979 = vmatprep.subr.mxu0 0.0
      %4980 = vmatpush1.xpose.msra.mxu0 0.0
      %4981 = vmatprep.subr.mxu0 0.0
      %4982 = vmatpush1.xpose.msra.mxu0 0.0
      %4983 = vmatprep.subr.mxu0 0.0
      %4984 = vmatpush1.xpose.msra.mxu0 0.0
      %4985 = vmatprep.subr.mxu0 0.0
      %4986 = vmatpush1.xpose.msra.mxu0 0.0
      %4987 = vmatprep.subr.mxu0 0.0
      %4988 = vmatpush1.xpose.msra.mxu0 0.0
      %4989 = vmatprep.subr.mxu0 0.0
      %4990 = vmatpush1.xpose.msra.mxu0 0.0
      %4991 = vmatprep.subr.mxu0 0.0
      %4992 = vmatpush1.xpose.msra.mxu0 0.0
      %4993 = vmatprep.subr.mxu0 0.0
      %4994 = vmatpush1.xpose.msra.mxu0 0.0
      %4995 = vmatprep.mubr.f32.mxu0 0.0
      %4996 = vmatmul.mubr.f32.gmra.mrb[0].mxu0 %v4926
      %v4997 = vpop.f32.mrb[0].mxu0
      %v4998 = vadd.f32 0.0, %v4997
      %v4999 = vpop.f32.mrb[0].mxu0
      %5000 = vdwg.mxu0
      %v5002 = vsel %vm1041, %v4660, 0
      %v5005 = vsel %vm1041, %v4753, 0
      %5007 = vmatprep.subr.mxu0 0.0
      %5008 = vmatpush1.xpose.msra.mxu0 %v5005
      %5009 = vmatprep.subr.mxu0 0.0
      %5010 = vmatpush1.xpose.msra.mxu0 0.0
      %5011 = vmatprep.subr.mxu0 0.0
      %5012 = vmatpush1.xpose.msra.mxu0 0.0
      %5013 = vmatprep.subr.mxu0 0.0
      %5014 = vmatpush1.xpose.msra.mxu0 0.0
      %5015 = vmatprep.subr.mxu0 0.0
      %5016 = vmatpush1.xpose.msra.mxu0 0.0
      %5017 = vmatprep.subr.mxu0 0.0
      %5018 = vmatpush1.xpose.msra.mxu0 0.0
      %5019 = vmatprep.subr.mxu0 0.0
      %5020 = vmatpush1.xpose.msra.mxu0 0.0
      %5021 = vmatprep.subr.mxu0 0.0
      %5022 = vmatpush1.xpose.msra.mxu0 0.0
      %5023 = vmatprep.subr.mxu0 0.0
      %5024 = vmatpush1.xpose.msra.mxu0 0.0
      %5025 = vmatprep.subr.mxu0 0.0
      %5026 = vmatpush1.xpose.msra.mxu0 0.0
      %5027 = vmatprep.subr.mxu0 0.0
      %5028 = vmatpush1.xpose.msra.mxu0 0.0
      %5029 = vmatprep.subr.mxu0 0.0
      %5030 = vmatpush1.xpose.msra.mxu0 0.0
      %5031 = vmatprep.subr.mxu0 0.0
      %5032 = vmatpush1.xpose.msra.mxu0 0.0
      %5033 = vmatprep.subr.mxu0 0.0
      %5034 = vmatpush1.xpose.msra.mxu0 0.0
      %5035 = vmatprep.subr.mxu0 0.0
      %5036 = vmatpush1.xpose.msra.mxu0 0.0
      %5037 = vmatprep.subr.mxu0 0.0
      %5038 = vmatpush1.xpose.msra.mxu0 0.0
      %5039 = vmatprep.subr.mxu0 0.0
      %5040 = vmatpush1.xpose.msra.mxu0 0.0
      %5041 = vmatprep.subr.mxu0 0.0
      %5042 = vmatpush1.xpose.msra.mxu0 0.0
      %5043 = vmatprep.subr.mxu0 0.0
      %5044 = vmatpush1.xpose.msra.mxu0 0.0
      %5045 = vmatprep.subr.mxu0 0.0
      %5046 = vmatpush1.xpose.msra.mxu0 0.0
      %5047 = vmatprep.subr.mxu0 0.0
      %5048 = vmatpush1.xpose.msra.mxu0 0.0
      %5049 = vmatprep.subr.mxu0 0.0
      %5050 = vmatpush1.xpose.msra.mxu0 0.0
      %5051 = vmatprep.subr.mxu0 0.0
      %5052 = vmatpush1.xpose.msra.mxu0 0.0
      %5053 = vmatprep.subr.mxu0 0.0
      %5054 = vmatpush1.xpose.msra.mxu0 0.0
      %5055 = vmatprep.subr.mxu0 0.0
      %5056 = vmatpush1.xpose.msra.mxu0 0.0
      %5057 = vmatprep.subr.mxu0 0.0
      %5058 = vmatpush1.xpose.msra.mxu0 0.0
      %5059 = vmatprep.subr.mxu0 0.0
      %5060 = vmatpush1.xpose.msra.mxu0 0.0
      %5061 = vmatprep.subr.mxu0 0.0
      %5062 = vmatpush1.xpose.msra.mxu0 0.0
      %5063 = vmatprep.subr.mxu0 0.0
      %5064 = vmatpush1.xpose.msra.mxu0 0.0
      %5065 = vmatprep.subr.mxu0 0.0
      %5066 = vmatpush1.xpose.msra.mxu0 0.0
      %5067 = vmatprep.subr.mxu0 0.0
      %5068 = vmatpush1.xpose.msra.mxu0 0.0
      %5069 = vmatprep.subr.mxu0 0.0
      %5070 = vmatpush1.xpose.msra.mxu0 0.0
      %5071 = vmatprep.mubr.f32.mxu0 0.0
      %5072 = vmatmul.mubr.f32.gmra.mrb[0].mxu0 %v5002
      %v5073 = vpop.f32.mrb[0].mxu0
      %v5074 = vadd.f32 0.0, %v5073
      %v5075 = vpop.f32.mrb[0].mxu0
      %5076 = vdwg.mxu0
      %v5077 = vmul.f32 %v4922, 0.35355338
      %v5078 = vmul.f32 %v4998, 0.35355338
      %v5079 = vmul.f32 %v5074, 0.35355338
      %v5080 = vadd.f32 %v5077, %v695
      %v5081 = vadd.f32 %v5078, %v696
      %v5082 = vadd.f32 %v5079, %v697
      %v5083 = vsel %vm1041, %v5080, -inf
      %5084 = vmax.xlane.f32.xlu0 %v5083
      %v5085 = vpop.xlane.xlu0 %5084
      %v5086 = vsel %vm1041, %v5081, -inf
      %5087 = vmax.xlane.f32.xlu0 %v5086
      %v5088 = vpop.xlane.xlu0 %5087
      %v5089 = vsel %vm1041, %v5082, -inf
      %5090 = vmax.xlane.f32.xlu0 %v5089
      %v5091 = vpop.xlane.xlu0 %5090
      %v5092 = vsub.f32 %v5080, %v5085
      %v5093 = vsub.f32 %v5081, %v5088
      %v5094 = vsub.f32 %v5082, %v5091
      %v5095 = vmul.f32 %v5092, 1.442695
      %v5096 = vpow.pop %v5095
      %v5097 = vmul.f32 %v5093, 1.442695
      %v5098 = vpow.pop %v5097
      %v5099 = vmul.f32 %v5094, 1.442695
      %v5100 = vpow.pop %v5099
      %v5101 = vsel %vm1041, %v5096, 0.0
      %5102 = vadd.xlane.f32.xlu0 %v5101
      %v5103 = vpop.xlane.xlu0 %5102
      %v5104 = vsel %vm1041, %v5098, 0.0
      %5105 = vadd.xlane.f32.xlu0 %v5104
      %v5106 = vpop.xlane.xlu0 %5105
      %v5107 = vsel %vm1041, %v5100, 0.0
      %5108 = vadd.xlane.f32.xlu0 %v5107
      %v5109 = vpop.xlane.xlu0 %5108
      %v5110 = vrcp.pop %v5103
      %v5111 = vrcp.pop %v5106
      %v5112 = vrcp.pop %v5109
      %v5113 = vmul.f32 %v5096, %v5110
      %v5114 = vmul.f32 %v5098, %v5111
      %v5115 = vmul.f32 %v5100, %v5112
      %v5117 = vsel %vm1041, %v5113, 0
      %5119 = vmatprep.subr.mxu0 0.0
      %5120 = vmatpush1.msra.mxu0 %v4836
      %5121 = vmatprep.subr.mxu0 0.0
      %5122 = vmatpush1.msra.mxu0 0.0
      %5123 = vmatprep.subr.mxu0 0.0
      %5124 = vmatpush1.msra.mxu0 0.0
      %5125 = vmatprep.subr.mxu0 0.0
      %5126 = vmatpush1.msra.mxu0 0.0
      %5127 = vmatprep.subr.mxu0 0.0
      %5128 = vmatpush1.msra.mxu0 0.0
      %5129 = vmatprep.subr.mxu0 0.0
      %5130 = vmatpush1.msra.mxu0 0.0
      %5131 = vmatprep.subr.mxu0 0.0
      %5132 = vmatpush1.msra.mxu0 0.0
      %5133 = vmatprep.subr.mxu0 0.0
      %5134 = vmatpush1.msra.mxu0 0.0
      %5135 = vmatprep.subr.mxu0 0.0
      %5136 = vmatpush1.msra.mxu0 0.0
      %5137 = vmatprep.subr.mxu0 0.0
      %5138 = vmatpush1.msra.mxu0 0.0
      %5139 = vmatprep.subr.mxu0 0.0
      %5140 = vmatpush1.msra.mxu0 0.0
      %5141 = vmatprep.subr.mxu0 0.0
      %5142 = vmatpush1.msra.mxu0 0.0
      %5143 = vmatprep.subr.mxu0 0.0
      %5144 = vmatpush1.msra.mxu0 0.0
      %5145 = vmatprep.subr.mxu0 0.0
      %5146 = vmatpush1.msra.mxu0 0.0
      %5147 = vmatprep.subr.mxu0 0.0
      %5148 = vmatpush1.msra.mxu0 0.0
      %5149 = vmatprep.subr.mxu0 0.0
      %5150 = vmatpush1.msra.mxu0 0.0
      %5151 = vmatprep.subr.mxu0 0.0
      %5152 = vmatpush1.msra.mxu0 0.0
      %5153 = vmatprep.subr.mxu0 0.0
      %5154 = vmatpush1.msra.mxu0 0.0
      %5155 = vmatprep.subr.mxu0 0.0
      %5156 = vmatpush1.msra.mxu0 0.0
      %5157 = vmatprep.subr.mxu0 0.0
      %5158 = vmatpush1.msra.mxu0 0.0
      %5159 = vmatprep.subr.mxu0 0.0
      %5160 = vmatpush1.msra.mxu0 0.0
      %5161 = vmatprep.subr.mxu0 0.0
      %5162 = vmatpush1.msra.mxu0 0.0
      %5163 = vmatprep.subr.mxu0 0.0
      %5164 = vmatpush1.msra.mxu0 0.0
      %5165 = vmatprep.subr.mxu0 0.0
      %5166 = vmatpush1.msra.mxu0 0.0
      %5167 = vmatprep.subr.mxu0 0.0
      %5168 = vmatpush1.msra.mxu0 0.0
      %5169 = vmatprep.subr.mxu0 0.0
      %5170 = vmatpush1.msra.mxu0 0.0
      %5171 = vmatprep.subr.mxu0 0.0
      %5172 = vmatpush1.msra.mxu0 0.0
      %5173 = vmatprep.subr.mxu0 0.0
      %5174 = vmatpush1.msra.mxu0 0.0
      %5175 = vmatprep.subr.mxu0 0.0
      %5176 = vmatpush1.msra.mxu0 0.0
      %5177 = vmatprep.subr.mxu0 0.0
      %5178 = vmatpush1.msra.mxu0 0.0
      %5179 = vmatprep.subr.mxu0 0.0
      %5180 = vmatpush1.msra.mxu0 0.0
      %5181 = vmatprep.subr.mxu0 0.0
      %5182 = vmatpush1.msra.mxu0 0.0
      %5183 = vmatprep.mubr.f32.mxu0 0.0
      %5184 = vmatmul.mubr.f32.gmra.mrb[0].mxu0 %v5117
      %v5185 = vpop.f32.mrb[0].mxu0
      %v5186 = vadd.f32 0.0, %v5185
      %v5187 = vpop.f32.mrb[0].mxu0
      %5188 = vdwg.mxu0
      %v5190 = vsel %vm1041, %v5114, 0
      %5192 = vmatprep.subr.mxu0 0.0
      %5193 = vmatpush1.msra.mxu0 %v4841
      %5194 = vmatprep.subr.mxu0 0.0
      %5195 = vmatpush1.msra.mxu0 0.0
      %5196 = vmatprep.subr.mxu0 0.0
      %5197 = vmatpush1.msra.mxu0 0.0
      %5198 = vmatprep.subr.mxu0 0.0
      %5199 = vmatpush1.msra.mxu0 0.0
      %5200 = vmatprep.subr.mxu0 0.0
      %5201 = vmatpush1.msra.mxu0 0.0
      %5202 = vmatprep.subr.mxu0 0.0
      %5203 = vmatpush1.msra.mxu0 0.0
      %5204 = vmatprep.subr.mxu0 0.0
      %5205 = vmatpush1.msra.mxu0 0.0
      %5206 = vmatprep.subr.mxu0 0.0
      %5207 = vmatpush1.msra.mxu0 0.0
      %5208 = vmatprep.subr.mxu0 0.0
      %5209 = vmatpush1.msra.mxu0 0.0
      %5210 = vmatprep.subr.mxu0 0.0
      %5211 = vmatpush1.msra.mxu0 0.0
      %5212 = vmatprep.subr.mxu0 0.0
      %5213 = vmatpush1.msra.mxu0 0.0
      %5214 = vmatprep.subr.mxu0 0.0
      %5215 = vmatpush1.msra.mxu0 0.0
      %5216 = vmatprep.subr.mxu0 0.0
      %5217 = vmatpush1.msra.mxu0 0.0
      %5218 = vmatprep.subr.mxu0 0.0
      %5219 = vmatpush1.msra.mxu0 0.0
      %5220 = vmatprep.subr.mxu0 0.0
      %5221 = vmatpush1.msra.mxu0 0.0
      %5222 = vmatprep.subr.mxu0 0.0
      %5223 = vmatpush1.msra.mxu0 0.0
      %5224 = vmatprep.subr.mxu0 0.0
      %5225 = vmatpush1.msra.mxu0 0.0
      %5226 = vmatprep.subr.mxu0 0.0
      %5227 = vmatpush1.msra.mxu0 0.0
      %5228 = vmatprep.subr.mxu0 0.0
      %5229 = vmatpush1.msra.mxu0 0.0
      %5230 = vmatprep.subr.mxu0 0.0
      %5231 = vmatpush1.msra.mxu0 0.0
      %5232 = vmatprep.subr.mxu0 0.0
      %5233 = vmatpush1.msra.mxu0 0.0
      %5234 = vmatprep.subr.mxu0 0.0
      %5235 = vmatpush1.msra.mxu0 0.0
      %5236 = vmatprep.subr.mxu0 0.0
      %5237 = vmatpush1.msra.mxu0 0.0
      %5238 = vmatprep.subr.mxu0 0.0
      %5239 = vmatpush1.msra.mxu0 0.0
      %5240 = vmatprep.subr.mxu0 0.0
      %5241 = vmatpush1.msra.mxu0 0.0
      %5242 = vmatprep.subr.mxu0 0.0
      %5243 = vmatpush1.msra.mxu0 0.0
      %5244 = vmatprep.subr.mxu0 0.0
      %5245 = vmatpush1.msra.mxu0 0.0
      %5246 = vmatprep.subr.mxu0 0.0
      %5247 = vmatpush1.msra.mxu0 0.0
      %5248 = vmatprep.subr.mxu0 0.0
      %5249 = vmatpush1.msra.mxu0 0.0
      %5250 = vmatprep.subr.mxu0 0.0
      %5251 = vmatpush1.msra.mxu0 0.0
      %5252 = vmatprep.subr.mxu0 0.0
      %5253 = vmatpush1.msra.mxu0 0.0
      %5254 = vmatprep.subr.mxu0 0.0
      %5255 = vmatpush1.msra.mxu0 0.0
      %5256 = vmatprep.mubr.f32.mxu0 0.0
      %5257 = vmatmul.mubr.f32.gmra.mrb[0].mxu0 %v5190
      %v5258 = vpop.f32.mrb[0].mxu0
      %v5259 = vadd.f32 0.0, %v5258
      %v5260 = vpop.f32.mrb[0].mxu0
      %5261 = vdwg.mxu0
      %v5263 = vsel %vm1041, %v5115, 0
      %5265 = vmatprep.subr.mxu0 0.0
      %5266 = vmatpush1.msra.mxu0 %v4846
      %5267 = vmatprep.subr.mxu0 0.0
      %5268 = vmatpush1.msra.mxu0 0.0
      %5269 = vmatprep.subr.mxu0 0.0
      %5270 = vmatpush1.msra.mxu0 0.0
      %5271 = vmatprep.subr.mxu0 0.0
      %5272 = vmatpush1.msra.mxu0 0.0
      %5273 = vmatprep.subr.mxu0 0.0
      %5274 = vmatpush1.msra.mxu0 0.0
      %5275 = vmatprep.subr.mxu0 0.0
      %5276 = vmatpush1.msra.mxu0 0.0
      %5277 = vmatprep.subr.mxu0 0.0
      %5278 = vmatpush1.msra.mxu0 0.0
      %5279 = vmatprep.subr.mxu0 0.0
      %5280 = vmatpush1.msra.mxu0 0.0
      %5281 = vmatprep.subr.mxu0 0.0
      %5282 = vmatpush1.msra.mxu0 0.0
      %5283 = vmatprep.subr.mxu0 0.0
      %5284 = vmatpush1.msra.mxu0 0.0
      %5285 = vmatprep.subr.mxu0 0.0
      %5286 = vmatpush1.msra.mxu0 0.0
      %5287 = vmatprep.subr.mxu0 0.0
      %5288 = vmatpush1.msra.mxu0 0.0
      %5289 = vmatprep.subr.mxu0 0.0
      %5290 = vmatpush1.msra.mxu0 0.0
      %5291 = vmatprep.subr.mxu0 0.0
      %5292 = vmatpush1.msra.mxu0 0.0
      %5293 = vmatprep.subr.mxu0 0.0
      %5294 = vmatpush1.msra.mxu0 0.0
      %5295 = vmatprep.subr.mxu0 0.0
      %5296 = vmatpush1.msra.mxu0 0.0
      %5297 = vmatprep.subr.mxu0 0.0
      %5298 = vmatpush1.msra.mxu0 0.0
      %5299 = vmatprep.subr.mxu0 0.0
      %5300 = vmatpush1.msra.mxu0 0.0
      %5301 = vmatprep.subr.mxu0 0.0
      %5302 = vmatpush1.msra.mxu0 0.0
      %5303 = vmatprep.subr.mxu0 0.0
      %5304 = vmatpush1.msra.mxu0 0.0
      %5305 = vmatprep.subr.mxu0 0.0
      %5306 = vmatpush1.msra.mxu0 0.0
      %5307 = vmatprep.subr.mxu0 0.0
      %5308 = vmatpush1.msra.mxu0 0.0
      %5309 = vmatprep.subr.mxu0 0.0
      %5310 = vmatpush1.msra.mxu0 0.0
      %5311 = vmatprep.subr.mxu0 0.0
      %5312 = vmatpush1.msra.mxu0 0.0
      %5313 = vmatprep.subr.mxu0 0.0
      %5314 = vmatpush1.msra.mxu0 0.0
      %5315 = vmatprep.subr.mxu0 0.0
      %5316 = vmatpush1.msra.mxu0 0.0
      %5317 = vmatprep.subr.mxu0 0.0
      %5318 = vmatpush1.msra.mxu0 0.0
      %5319 = vmatprep.subr.mxu0 0.0
      %5320 = vmatpush1.msra.mxu0 0.0
      %5321 = vmatprep.subr.mxu0 0.0
      %5322 = vmatpush1.msra.mxu0 0.0
      %5323 = vmatprep.subr.mxu0 0.0
      %5324 = vmatpush1.msra.mxu0 0.0
      %5325 = vmatprep.subr.mxu0 0.0
      %5326 = vmatpush1.msra.mxu0 0.0
      %5327 = vmatprep.subr.mxu0 0.0
      %5328 = vmatpush1.msra.mxu0 0.0
      %5329 = vmatprep.mubr.f32.mxu0 0.0
      %5330 = vmatmul.mubr.f32.gmra.mrb[0].mxu0 %v5263
      %v5331 = vpop.f32.mrb[0].mxu0
      %v5332 = vadd.f32 0.0, %v5331
      %v5333 = vpop.f32.mrb[0].mxu0
      %5334 = vdwg.mxu0
      %s5335 = scalar_lea.vmem %s11, 32
      %v5336 = vld [vmem:[%s5335] sm:$0xff]
      %s5337 = scalar_lea.vmem %s5, 160
      %v5338 = vld [vmem:[%s5337] sm:$0xff]
      %v5339 = vld [vmem:[%s5337 + $0x8] sm:$0xff]
      %v5340 = vld [vmem:[%s5337 + $0x10] sm:$0xff]
      %v5341 = vld [vmem:[%s5337 + $0x18] sm:$0xff]
      %s5342 = scalar_lea.vmem %s6, 5
      %v5343 = vld [vmem:[%s5342] sm:$0x1]
      %v5345 = vlaneseq
      %v5346 = vshrl.u32 %v5345, 7
      %v5347 = vsub.s32 0, %v5346
      %v5348 = vrot.slane %v5343, %v5347
      %5350 = vmatprep.subr.mxu0 0.0
      %5351 = vmatpush1.msra.mxu0 %v5338
      %5352 = vmatprep.subr.mxu0 0.0
      %5353 = vmatpush1.msra.mxu0 %v5339
      %5354 = vmatprep.subr.mxu0 0.0
      %5355 = vmatpush1.msra.mxu0 %v5340
      %5356 = vmatprep.subr.mxu0 0.0
      %5357 = vmatpush1.msra.mxu0 %v5341
      %5358 = vmatprep.subr.mxu0 0.0
      %5359 = vmatpush1.msra.mxu0 0.0
      %5360 = vmatprep.subr.mxu0 0.0
      %5361 = vmatpush1.msra.mxu0 0.0
      %5362 = vmatprep.subr.mxu0 0.0
      %5363 = vmatpush1.msra.mxu0 0.0
      %5364 = vmatprep.subr.mxu0 0.0
      %5365 = vmatpush1.msra.mxu0 0.0
      %5366 = vmatprep.subr.mxu0 0.0
      %5367 = vmatpush1.msra.mxu0 0.0
      %5368 = vmatprep.subr.mxu0 0.0
      %5369 = vmatpush1.msra.mxu0 0.0
      %5370 = vmatprep.subr.mxu0 0.0
      %5371 = vmatpush1.msra.mxu0 0.0
      %5372 = vmatprep.subr.mxu0 0.0
      %5373 = vmatpush1.msra.mxu0 0.0
      %5374 = vmatprep.subr.mxu0 0.0
      %5375 = vmatpush1.msra.mxu0 0.0
      %5376 = vmatprep.subr.mxu0 0.0
      %5377 = vmatpush1.msra.mxu0 0.0
      %5378 = vmatprep.subr.mxu0 0.0
      %5379 = vmatpush1.msra.mxu0 0.0
      %5380 = vmatprep.subr.mxu0 0.0
      %5381 = vmatpush1.msra.mxu0 0.0
      %5382 = vmatprep.subr.mxu0 0.0
      %5383 = vmatpush1.msra.mxu0 0.0
      %5384 = vmatprep.subr.mxu0 0.0
      %5385 = vmatpush1.msra.mxu0 0.0
      %5386 = vmatprep.subr.mxu0 0.0
      %5387 = vmatpush1.msra.mxu0 0.0
      %5388 = vmatprep.subr.mxu0 0.0
      %5389 = vmatpush1.msra.mxu0 0.0
      %5390 = vmatprep.subr.mxu0 0.0
      %5391 = vmatpush1.msra.mxu0 0.0
      %5392 = vmatprep.subr.mxu0 0.0
      %5393 = vmatpush1.msra.mxu0 0.0
      %5394 = vmatprep.subr.mxu0 0.0
      %5395 = vmatpush1.msra.mxu0 0.0
      %5396 = vmatprep.subr.mxu0 0.0
      %5397 = vmatpush1.msra.mxu0 0.0
      %5398 = vmatprep.subr.mxu0 0.0
      %5399 = vmatpush1.msra.mxu0 0.0
      %5400 = vmatprep.subr.mxu0 0.0
      %5401 = vmatpush1.msra.mxu0 0.0
      %5402 = vmatprep.subr.mxu0 0.0
      %5403 = vmatpush1.msra.mxu0 0.0
      %5404 = vmatprep.subr.mxu0 0.0
      %5405 = vmatpush1.msra.mxu0 0.0
      %5406 = vmatprep.subr.mxu0 0.0
      %5407 = vmatpush1.msra.mxu0 0.0
      %5408 = vmatprep.subr.mxu0 0.0
      %5409 = vmatpush1.msra.mxu0 0.0
      %5410 = vmatprep.subr.mxu0 0.0
      %5411 = vmatpush1.msra.mxu0 0.0
      %5412 = vmatprep.subr.mxu0 0.0
      %5413 = vmatpush1.msra.mxu0 0.0
      %5414 = vmatprep.mubr.f32.mxu0 0.0
      %5415 = vmatmul.mubr.f32.gmra.mrb[0].mxu0 %v4575
      %v5416 = vpop.f32.mrb[0].mxu0
      %v5417 = vadd.f32 %v5348, %v5416
      %v5418 = vpop.f32.mrb[0].mxu0
      %5419 = vmatprep.mubr.f32.mxu0 0.0
      %5420 = vmatmul.mubr.f32.gmra.mrb[0].mxu0 %v4578
      %v5421 = vpop.f32.mrb[0].mxu0
      %v5422 = vadd.f32 %v5348, %v5421
      %v5423 = vpop.f32.mrb[0].mxu0
      %5424 = vmatprep.mubr.f32.mxu0 0.0
      %5425 = vmatmul.mubr.f32.gmra.mrb[0].mxu0 %v4581
      %v5426 = vpop.f32.mrb[0].mxu0
      %v5427 = vadd.f32 %v5348, %v5426
      %v5428 = vpop.f32.mrb[0].mxu0
      %5429 = vdwg.mxu0
      %s5430 = scalar_lea.vmem %s7, 160
      %v5431 = vld [vmem:[%s5430] sm:$0xff]
      %v5432 = vld [vmem:[%s5430 + $0x8] sm:$0xff]
      %v5433 = vld [vmem:[%s5430 + $0x10] sm:$0xff]
      %v5434 = vld [vmem:[%s5430 + $0x18] sm:$0xff]
      %s5435 = scalar_lea.vmem %s8, 5
      %v5436 = vld [vmem:[%s5435] sm:$0x1]
      %v5438 = vlaneseq
      %v5439 = vshrl.u32 %v5438, 7
      %v5440 = vsub.s32 0, %v5439
      %v5441 = vrot.slane %v5436, %v5440
      %5443 = vmatprep.subr.mxu0 0.0
      %5444 = vmatpush1.msra.mxu0 %v5431
      %5445 = vmatprep.subr.mxu0 0.0
      %5446 = vmatpush1.msra.mxu0 %v5432
      %5447 = vmatprep.subr.mxu0 0.0
      %5448 = vmatpush1.msra.mxu0 %v5433
      %5449 = vmatprep.subr.mxu0 0.0
      %5450 = vmatpush1.msra.mxu0 %v5434
      %5451 = vmatprep.subr.mxu0 0.0
      %5452 = vmatpush1.msra.mxu0 0.0
      %5453 = vmatprep.subr.mxu0 0.0
      %5454 = vmatpush1.msra.mxu0 0.0
      %5455 = vmatprep.subr.mxu0 0.0
      %5456 = vmatpush1.msra.mxu0 0.0
      %5457 = vmatprep.subr.mxu0 0.0
      %5458 = vmatpush1.msra.mxu0 0.0
      %5459 = vmatprep.subr.mxu0 0.0
      %5460 = vmatpush1.msra.mxu0 0.0
      %5461 = vmatprep.subr.mxu0 0.0
      %5462 = vmatpush1.msra.mxu0 0.0
      %5463 = vmatprep.subr.mxu0 0.0
      %5464 = vmatpush1.msra.mxu0 0.0
      %5465 = vmatprep.subr.mxu0 0.0
      %5466 = vmatpush1.msra.mxu0 0.0
      %5467 = vmatprep.subr.mxu0 0.0
      %5468 = vmatpush1.msra.mxu0 0.0
      %5469 = vmatprep.subr.mxu0 0.0
      %5470 = vmatpush1.msra.mxu0 0.0
      %5471 = vmatprep.subr.mxu0 0.0
      %5472 = vmatpush1.msra.mxu0 0.0
      %5473 = vmatprep.subr.mxu0 0.0
      %5474 = vmatpush1.msra.mxu0 0.0
      %5475 = vmatprep.subr.mxu0 0.0
      %5476 = vmatpush1.msra.mxu0 0.0
      %5477 = vmatprep.subr.mxu0 0.0
      %5478 = vmatpush1.msra.mxu0 0.0
      %5479 = vmatprep.subr.mxu0 0.0
      %5480 = vmatpush1.msra.mxu0 0.0
      %5481 = vmatprep.subr.mxu0 0.0
      %5482 = vmatpush1.msra.mxu0 0.0
      %5483 = vmatprep.subr.mxu0 0.0
      %5484 = vmatpush1.msra.mxu0 0.0
      %5485 = vmatprep.subr.mxu0 0.0
      %5486 = vmatpush1.msra.mxu0 0.0
      %5487 = vmatprep.subr.mxu0 0.0
      %5488 = vmatpush1.msra.mxu0 0.0
      %5489 = vmatprep.subr.mxu0 0.0
      %5490 = vmatpush1.msra.mxu0 0.0
      %5491 = vmatprep.subr.mxu0 0.0
      %5492 = vmatpush1.msra.mxu0 0.0
      %5493 = vmatprep.subr.mxu0 0.0
      %5494 = vmatpush1.msra.mxu0 0.0
      %5495 = vmatprep.subr.mxu0 0.0
      %5496 = vmatpush1.msra.mxu0 0.0
      %5497 = vmatprep.subr.mxu0 0.0
      %5498 = vmatpush1.msra.mxu0 0.0
      %5499 = vmatprep.subr.mxu0 0.0
      %5500 = vmatpush1.msra.mxu0 0.0
      %5501 = vmatprep.subr.mxu0 0.0
      %5502 = vmatpush1.msra.mxu0 0.0
      %5503 = vmatprep.subr.mxu0 0.0
      %5504 = vmatpush1.msra.mxu0 0.0
      %5505 = vmatprep.subr.mxu0 0.0
      %5506 = vmatpush1.msra.mxu0 0.0
      %5507 = vmatprep.mubr.f32.mxu0 0.0
      %5508 = vmatmul.mubr.f32.gmra.mrb[0].mxu0 %v4575
      %v5509 = vpop.f32.mrb[0].mxu0
      %v5510 = vadd.f32 %v5441, %v5509
      %v5511 = vpop.f32.mrb[0].mxu0
      %5512 = vmatprep.mubr.f32.mxu0 0.0
      %5513 = vmatmul.mubr.f32.gmra.mrb[0].mxu0 %v4578
      %v5514 = vpop.f32.mrb[0].mxu0
      %v5515 = vadd.f32 %v5441, %v5514
      %v5516 = vpop.f32.mrb[0].mxu0
      %5517 = vmatprep.mubr.f32.mxu0 0.0
      %5518 = vmatmul.mubr.f32.gmra.mrb[0].mxu0 %v4581
      %v5519 = vpop.f32.mrb[0].mxu0
      %v5520 = vadd.f32 %v5441, %v5519
      %v5521 = vpop.f32.mrb[0].mxu0
      %5522 = vdwg.mxu0
      %s5523 = scalar_lea.vmem %s9, 160
      %v5524 = vld [vmem:[%s5523] sm:$0xff]
      %v5525 = vld [vmem:[%s5523 + $0x8] sm:$0xff]
      %v5526 = vld [vmem:[%s5523 + $0x10] sm:$0xff]
      %v5527 = vld [vmem:[%s5523 + $0x18] sm:$0xff]
      %s5528 = scalar_lea.vmem %s10, 5
      %v5529 = vld [vmem:[%s5528] sm:$0x1]
      %v5531 = vlaneseq
      %v5532 = vshrl.u32 %v5531, 7
      %v5533 = vsub.s32 0, %v5532
      %v5534 = vrot.slane %v5529, %v5533
      %5536 = vmatprep.subr.mxu0 0.0
      %5537 = vmatpush1.msra.mxu0 %v5524
      %5538 = vmatprep.subr.mxu0 0.0
      %5539 = vmatpush1.msra.mxu0 %v5525
      %5540 = vmatprep.subr.mxu0 0.0
      %5541 = vmatpush1.msra.mxu0 %v5526
      %5542 = vmatprep.subr.mxu0 0.0
      %5543 = vmatpush1.msra.mxu0 %v5527
      %5544 = vmatprep.subr.mxu0 0.0
      %5545 = vmatpush1.msra.mxu0 0.0
      %5546 = vmatprep.subr.mxu0 0.0
      %5547 = vmatpush1.msra.mxu0 0.0
      %5548 = vmatprep.subr.mxu0 0.0
      %5549 = vmatpush1.msra.mxu0 0.0
      %5550 = vmatprep.subr.mxu0 0.0
      %5551 = vmatpush1.msra.mxu0 0.0
      %5552 = vmatprep.subr.mxu0 0.0
      %5553 = vmatpush1.msra.mxu0 0.0
      %5554 = vmatprep.subr.mxu0 0.0
      %5555 = vmatpush1.msra.mxu0 0.0
      %5556 = vmatprep.subr.mxu0 0.0
      %5557 = vmatpush1.msra.mxu0 0.0
      %5558 = vmatprep.subr.mxu0 0.0
      %5559 = vmatpush1.msra.mxu0 0.0
      %5560 = vmatprep.subr.mxu0 0.0
      %5561 = vmatpush1.msra.mxu0 0.0
      %5562 = vmatprep.subr.mxu0 0.0
      %5563 = vmatpush1.msra.mxu0 0.0
      %5564 = vmatprep.subr.mxu0 0.0
      %5565 = vmatpush1.msra.mxu0 0.0
      %5566 = vmatprep.subr.mxu0 0.0
      %5567 = vmatpush1.msra.mxu0 0.0
      %5568 = vmatprep.subr.mxu0 0.0
      %5569 = vmatpush1.msra.mxu0 0.0
      %5570 = vmatprep.subr.mxu0 0.0
      %5571 = vmatpush1.msra.mxu0 0.0
      %5572 = vmatprep.subr.mxu0 0.0
      %5573 = vmatpush1.msra.mxu0 0.0
      %5574 = vmatprep.subr.mxu0 0.0
      %5575 = vmatpush1.msra.mxu0 0.0
      %5576 = vmatprep.subr.mxu0 0.0
      %5577 = vmatpush1.msra.mxu0 0.0
      %5578 = vmatprep.subr.mxu0 0.0
      %5579 = vmatpush1.msra.mxu0 0.0
      %5580 = vmatprep.subr.mxu0 0.0
      %5581 = vmatpush1.msra.mxu0 0.0
      %5582 = vmatprep.subr.mxu0 0.0
      %5583 = vmatpush1.msra.mxu0 0.0
      %5584 = vmatprep.subr.mxu0 0.0
      %5585 = vmatpush1.msra.mxu0 0.0
      %5586 = vmatprep.subr.mxu0 0.0
      %5587 = vmatpush1.msra.mxu0 0.0
      %5588 = vmatprep.subr.mxu0 0.0
      %5589 = vmatpush1.msra.mxu0 0.0
      %5590 = vmatprep.subr.mxu0 0.0
      %5591 = vmatpush1.msra.mxu0 0.0
      %5592 = vmatprep.subr.mxu0 0.0
      %5593 = vmatpush1.msra.mxu0 0.0
      %5594 = vmatprep.subr.mxu0 0.0
      %5595 = vmatpush1.msra.mxu0 0.0
      %5596 = vmatprep.subr.mxu0 0.0
      %5597 = vmatpush1.msra.mxu0 0.0
      %5598 = vmatprep.subr.mxu0 0.0
      %5599 = vmatpush1.msra.mxu0 0.0
      %5600 = vmatprep.mubr.f32.mxu0 0.0
      %5601 = vmatmul.mubr.f32.gmra.mrb[0].mxu0 %v4575
      %v5602 = vpop.f32.mrb[0].mxu0
      %v5603 = vadd.f32 %v5534, %v5602
      %v5604 = vpop.f32.mrb[0].mxu0
      %5605 = vmatprep.mubr.f32.mxu0 0.0
      %5606 = vmatmul.mubr.f32.gmra.mrb[0].mxu0 %v4578
      %v5607 = vpop.f32.mrb[0].mxu0
      %v5608 = vadd.f32 %v5534, %v5607
      %v5609 = vpop.f32.mrb[0].mxu0
      %5610 = vmatprep.mubr.f32.mxu0 0.0
      %5611 = vmatmul.mubr.f32.gmra.mrb[0].mxu0 %v4581
      %v5612 = vpop.f32.mrb[0].mxu0
      %v5613 = vadd.f32 %v5534, %v5612
      %v5614 = vpop.f32.mrb[0].mxu0
      %5615 = vdwg.mxu0
      %v5617 = vsel %vm1041, %v5417, 0
      %v5620 = vsel %vm1041, %v5510, 0
      %5622 = vmatprep.subr.mxu0 0.0
      %5623 = vmatpush1.xpose.msra.mxu0 %v5620
      %5624 = vmatprep.subr.mxu0 0.0
      %5625 = vmatpush1.xpose.msra.mxu0 0.0
      %5626 = vmatprep.subr.mxu0 0.0
      %5627 = vmatpush1.xpose.msra.mxu0 0.0
      %5628 = vmatprep.subr.mxu0 0.0
      %5629 = vmatpush1.xpose.msra.mxu0 0.0
      %5630 = vmatprep.subr.mxu0 0.0
      %5631 = vmatpush1.xpose.msra.mxu0 0.0
      %5632 = vmatprep.subr.mxu0 0.0
      %5633 = vmatpush1.xpose.msra.mxu0 0.0
      %5634 = vmatprep.subr.mxu0 0.0
      %5635 = vmatpush1.xpose.msra.mxu0 0.0
      %5636 = vmatprep.subr.mxu0 0.0
      %5637 = vmatpush1.xpose.msra.mxu0 0.0
      %5638 = vmatprep.subr.mxu0 0.0
      %5639 = vmatpush1.xpose.msra.mxu0 0.0
      %5640 = vmatprep.subr.mxu0 0.0
      %5641 = vmatpush1.xpose.msra.mxu0 0.0
      %5642 = vmatprep.subr.mxu0 0.0
      %5643 = vmatpush1.xpose.msra.mxu0 0.0
      %5644 = vmatprep.subr.mxu0 0.0
      %5645 = vmatpush1.xpose.msra.mxu0 0.0
      %5646 = vmatprep.subr.mxu0 0.0
      %5647 = vmatpush1.xpose.msra.mxu0 0.0
      %5648 = vmatprep.subr.mxu0 0.0
      %5649 = vmatpush1.xpose.msra.mxu0 0.0
      %5650 = vmatprep.subr.mxu0 0.0
      %5651 = vmatpush1.xpose.msra.mxu0 0.0
      %5652 = vmatprep.subr.mxu0 0.0
      %5653 = vmatpush1.xpose.msra.mxu0 0.0
      %5654 = vmatprep.subr.mxu0 0.0
      %5655 = vmatpush1.xpose.msra.mxu0 0.0
      %5656 = vmatprep.subr.mxu0 0.0
      %5657 = vmatpush1.xpose.msra.mxu0 0.0
      %5658 = vmatprep.subr.mxu0 0.0
      %5659 = vmatpush1.xpose.msra.mxu0 0.0
      %5660 = vmatprep.subr.mxu0 0.0
      %5661 = vmatpush1.xpose.msra.mxu0 0.0
      %5662 = vmatprep.subr.mxu0 0.0
      %5663 = vmatpush1.xpose.msra.mxu0 0.0
      %5664 = vmatprep.subr.mxu0 0.0
      %5665 = vmatpush1.xpose.msra.mxu0 0.0
      %5666 = vmatprep.subr.mxu0 0.0
      %5667 = vmatpush1.xpose.msra.mxu0 0.0
      %5668 = vmatprep.subr.mxu0 0.0
      %5669 = vmatpush1.xpose.msra.mxu0 0.0
      %5670 = vmatprep.subr.mxu0 0.0
      %5671 = vmatpush1.xpose.msra.mxu0 0.0
      %5672 = vmatprep.subr.mxu0 0.0
      %5673 = vmatpush1.xpose.msra.mxu0 0.0
      %5674 = vmatprep.subr.mxu0 0.0
      %5675 = vmatpush1.xpose.msra.mxu0 0.0
      %5676 = vmatprep.subr.mxu0 0.0
      %5677 = vmatpush1.xpose.msra.mxu0 0.0
      %5678 = vmatprep.subr.mxu0 0.0
      %5679 = vmatpush1.xpose.msra.mxu0 0.0
      %5680 = vmatprep.subr.mxu0 0.0
      %5681 = vmatpush1.xpose.msra.mxu0 0.0
      %5682 = vmatprep.subr.mxu0 0.0
      %5683 = vmatpush1.xpose.msra.mxu0 0.0
      %5684 = vmatprep.subr.mxu0 0.0
      %5685 = vmatpush1.xpose.msra.mxu0 0.0
      %5686 = vmatprep.mubr.f32.mxu0 0.0
      %5687 = vmatmul.mubr.f32.gmra.mrb[0].mxu0 %v5617
      %v5688 = vpop.f32.mrb[0].mxu0
      %v5689 = vadd.f32 0.0, %v5688
      %v5690 = vpop.f32.mrb[0].mxu0
      %5691 = vdwg.mxu0
      %v5693 = vsel %vm1041, %v5422, 0
      %v5696 = vsel %vm1041, %v5515, 0
      %5698 = vmatprep.subr.mxu0 0.0
      %5699 = vmatpush1.xpose.msra.mxu0 %v5696
      %5700 = vmatprep.subr.mxu0 0.0
      %5701 = vmatpush1.xpose.msra.mxu0 0.0
      %5702 = vmatprep.subr.mxu0 0.0
      %5703 = vmatpush1.xpose.msra.mxu0 0.0
      %5704 = vmatprep.subr.mxu0 0.0
      %5705 = vmatpush1.xpose.msra.mxu0 0.0
      %5706 = vmatprep.subr.mxu0 0.0
      %5707 = vmatpush1.xpose.msra.mxu0 0.0
      %5708 = vmatprep.subr.mxu0 0.0
      %5709 = vmatpush1.xpose.msra.mxu0 0.0
      %5710 = vmatprep.subr.mxu0 0.0
      %5711 = vmatpush1.xpose.msra.mxu0 0.0
      %5712 = vmatprep.subr.mxu0 0.0
      %5713 = vmatpush1.xpose.msra.mxu0 0.0
      %5714 = vmatprep.subr.mxu0 0.0
      %5715 = vmatpush1.xpose.msra.mxu0 0.0
      %5716 = vmatprep.subr.mxu0 0.0
      %5717 = vmatpush1.xpose.msra.mxu0 0.0
      %5718 = vmatprep.subr.mxu0 0.0
      %5719 = vmatpush1.xpose.msra.mxu0 0.0
      %5720 = vmatprep.subr.mxu0 0.0
      %5721 = vmatpush1.xpose.msra.mxu0 0.0
      %5722 = vmatprep.subr.mxu0 0.0
      %5723 = vmatpush1.xpose.msra.mxu0 0.0
      %5724 = vmatprep.subr.mxu0 0.0
      %5725 = vmatpush1.xpose.msra.mxu0 0.0
      %5726 = vmatprep.subr.mxu0 0.0
      %5727 = vmatpush1.xpose.msra.mxu0 0.0
      %5728 = vmatprep.subr.mxu0 0.0
      %5729 = vmatpush1.xpose.msra.mxu0 0.0
      %5730 = vmatprep.subr.mxu0 0.0
      %5731 = vmatpush1.xpose.msra.mxu0 0.0
      %5732 = vmatprep.subr.mxu0 0.0
      %5733 = vmatpush1.xpose.msra.mxu0 0.0
      %5734 = vmatprep.subr.mxu0 0.0
      %5735 = vmatpush1.xpose.msra.mxu0 0.0
      %5736 = vmatprep.subr.mxu0 0.0
      %5737 = vmatpush1.xpose.msra.mxu0 0.0
      %5738 = vmatprep.subr.mxu0 0.0
      %5739 = vmatpush1.xpose.msra.mxu0 0.0
      %5740 = vmatprep.subr.mxu0 0.0
      %5741 = vmatpush1.xpose.msra.mxu0 0.0
      %5742 = vmatprep.subr.mxu0 0.0
      %5743 = vmatpush1.xpose.msra.mxu0 0.0
      %5744 = vmatprep.subr.mxu0 0.0
      %5745 = vmatpush1.xpose.msra.mxu0 0.0
      %5746 = vmatprep.subr.mxu0 0.0
      %5747 = vmatpush1.xpose.msra.mxu0 0.0
      %5748 = vmatprep.subr.mxu0 0.0
      %5749 = vmatpush1.xpose.msra.mxu0 0.0
      %5750 = vmatprep.subr.mxu0 0.0
      %5751 = vmatpush1.xpose.msra.mxu0 0.0
      %5752 = vmatprep.subr.mxu0 0.0
      %5753 = vmatpush1.xpose.msra.mxu0 0.0
      %5754 = vmatprep.subr.mxu0 0.0
      %5755 = vmatpush1.xpose.msra.mxu0 0.0
      %5756 = vmatprep.subr.mxu0 0.0
      %5757 = vmatpush1.xpose.msra.mxu0 0.0
      %5758 = vmatprep.subr.mxu0 0.0
      %5759 = vmatpush1.xpose.msra.mxu0 0.0
      %5760 = vmatprep.subr.mxu0 0.0
      %5761 = vmatpush1.xpose.msra.mxu0 0.0
      %5762 = vmatprep.mubr.f32.mxu0 0.0
      %5763 = vmatmul.mubr.f32.gmra.mrb[0].mxu0 %v5693
      %v5764 = vpop.f32.mrb[0].mxu0
      %v5765 = vadd.f32 0.0, %v5764
      %v5766 = vpop.f32.mrb[0].mxu0
      %5767 = vdwg.mxu0
      %v5769 = vsel %vm1041, %v5427, 0
      %v5772 = vsel %vm1041, %v5520, 0
      %5774 = vmatprep.subr.mxu0 0.0
      %5775 = vmatpush1.xpose.msra.mxu0 %v5772
      %5776 = vmatprep.subr.mxu0 0.0
      %5777 = vmatpush1.xpose.msra.mxu0 0.0
      %5778 = vmatprep.subr.mxu0 0.0
      %5779 = vmatpush1.xpose.msra.mxu0 0.0
      %5780 = vmatprep.subr.mxu0 0.0
      %5781 = vmatpush1.xpose.msra.mxu0 0.0
      %5782 = vmatprep.subr.mxu0 0.0
      %5783 = vmatpush1.xpose.msra.mxu0 0.0
      %5784 = vmatprep.subr.mxu0 0.0
      %5785 = vmatpush1.xpose.msra.mxu0 0.0
      %5786 = vmatprep.subr.mxu0 0.0
      %5787 = vmatpush1.xpose.msra.mxu0 0.0
      %5788 = vmatprep.subr.mxu0 0.0
      %5789 = vmatpush1.xpose.msra.mxu0 0.0
      %5790 = vmatprep.subr.mxu0 0.0
      %5791 = vmatpush1.xpose.msra.mxu0 0.0
      %5792 = vmatprep.subr.mxu0 0.0
      %5793 = vmatpush1.xpose.msra.mxu0 0.0
      %5794 = vmatprep.subr.mxu0 0.0
      %5795 = vmatpush1.xpose.msra.mxu0 0.0
      %5796 = vmatprep.subr.mxu0 0.0
      %5797 = vmatpush1.xpose.msra.mxu0 0.0
      %5798 = vmatprep.subr.mxu0 0.0
      %5799 = vmatpush1.xpose.msra.mxu0 0.0
      %5800 = vmatprep.subr.mxu0 0.0
      %5801 = vmatpush1.xpose.msra.mxu0 0.0
      %5802 = vmatprep.subr.mxu0 0.0
      %5803 = vmatpush1.xpose.msra.mxu0 0.0
      %5804 = vmatprep.subr.mxu0 0.0
      %5805 = vmatpush1.xpose.msra.mxu0 0.0
      %5806 = vmatprep.subr.mxu0 0.0
      %5807 = vmatpush1.xpose.msra.mxu0 0.0
      %5808 = vmatprep.subr.mxu0 0.0
      %5809 = vmatpush1.xpose.msra.mxu0 0.0
      %5810 = vmatprep.subr.mxu0 0.0
      %5811 = vmatpush1.xpose.msra.mxu0 0.0
      %5812 = vmatprep.subr.mxu0 0.0
      %5813 = vmatpush1.xpose.msra.mxu0 0.0
      %5814 = vmatprep.subr.mxu0 0.0
      %5815 = vmatpush1.xpose.msra.mxu0 0.0
      %5816 = vmatprep.subr.mxu0 0.0
      %5817 = vmatpush1.xpose.msra.mxu0 0.0
      %5818 = vmatprep.subr.mxu0 0.0
      %5819 = vmatpush1.xpose.msra.mxu0 0.0
      %5820 = vmatprep.subr.mxu0 0.0
      %5821 = vmatpush1.xpose.msra.mxu0 0.0
      %5822 = vmatprep.subr.mxu0 0.0
      %5823 = vmatpush1.xpose.msra.mxu0 0.0
      %5824 = vmatprep.subr.mxu0 0.0
      %5825 = vmatpush1.xpose.msra.mxu0 0.0
      %5826 = vmatprep.subr.mxu0 0.0
      %5827 = vmatpush1.xpose.msra.mxu0 0.0
      %5828 = vmatprep.subr.mxu0 0.0
      %5829 = vmatpush1.xpose.msra.mxu0 0.0
      %5830 = vmatprep.subr.mxu0 0.0
      %5831 = vmatpush1.xpose.msra.mxu0 0.0
      %5832 = vmatprep.subr.mxu0 0.0
      %5833 = vmatpush1.xpose.msra.mxu0 0.0
      %5834 = vmatprep.subr.mxu0 0.0
      %5835 = vmatpush1.xpose.msra.mxu0 0.0
      %5836 = vmatprep.subr.mxu0 0.0
      %5837 = vmatpush1.xpose.msra.mxu0 0.0
      %5838 = vmatprep.mubr.f32.mxu0 0.0
      %5839 = vmatmul.mubr.f32.gmra.mrb[0].mxu0 %v5769
      %v5840 = vpop.f32.mrb[0].mxu0
      %v5841 = vadd.f32 0.0, %v5840
      %v5842 = vpop.f32.mrb[0].mxu0
      %5843 = vdwg.mxu0
      %v5844 = vmul.f32 %v5689, 0.35355338
      %v5845 = vmul.f32 %v5765, 0.35355338
      %v5846 = vmul.f32 %v5841, 0.35355338
      %v5847 = vadd.f32 %v5844, %v695
      %v5848 = vadd.f32 %v5845, %v696
      %v5849 = vadd.f32 %v5846, %v697
      %v5850 = vsel %vm1041, %v5847, -inf
      %5851 = vmax.xlane.f32.xlu0 %v5850
      %v5852 = vpop.xlane.xlu0 %5851
      %v5853 = vsel %vm1041, %v5848, -inf
      %5854 = vmax.xlane.f32.xlu0 %v5853
      %v5855 = vpop.xlane.xlu0 %5854
      %v5856 = vsel %vm1041, %v5849, -inf
      %5857 = vmax.xlane.f32.xlu0 %v5856
      %v5858 = vpop.xlane.xlu0 %5857
      %v5859 = vsub.f32 %v5847, %v5852
      %v5860 = vsub.f32 %v5848, %v5855
      %v5861 = vsub.f32 %v5849, %v5858
      %v5862 = vmul.f32 %v5859, 1.442695
      %v5863 = vpow.pop %v5862
      %v5864 = vmul.f32 %v5860, 1.442695
      %v5865 = vpow.pop %v5864
      %v5866 = vmul.f32 %v5861, 1.442695
      %v5867 = vpow.pop %v5866
      %v5868 = vsel %vm1041, %v5863, 0.0
      %5869 = vadd.xlane.f32.xlu0 %v5868
      %v5870 = vpop.xlane.xlu0 %5869
      %v5871 = vsel %vm1041, %v5865, 0.0
      %5872 = vadd.xlane.f32.xlu0 %v5871
      %v5873 = vpop.xlane.xlu0 %5872
      %v5874 = vsel %vm1041, %v5867, 0.0
      %5875 = vadd.xlane.f32.xlu0 %v5874
      %v5876 = vpop.xlane.xlu0 %5875
      %v5877 = vrcp.pop %v5870
      %v5878 = vrcp.pop %v5873
      %v5879 = vrcp.pop %v5876
      %v5880 = vmul.f32 %v5863, %v5877
      %v5881 = vmul.f32 %v5865, %v5878
      %v5882 = vmul.f32 %v5867, %v5879
      %v5884 = vsel %vm1041, %v5880, 0
      %5886 = vmatprep.subr.mxu0 0.0
      %5887 = vmatpush1.msra.mxu0 %v5603
      %5888 = vmatprep.subr.mxu0 0.0
      %5889 = vmatpush1.msra.mxu0 0.0
      %5890 = vmatprep.subr.mxu0 0.0
      %5891 = vmatpush1.msra.mxu0 0.0
      %5892 = vmatprep.subr.mxu0 0.0
      %5893 = vmatpush1.msra.mxu0 0.0
      %5894 = vmatprep.subr.mxu0 0.0
      %5895 = vmatpush1.msra.mxu0 0.0
      %5896 = vmatprep.subr.mxu0 0.0
      %5897 = vmatpush1.msra.mxu0 0.0
      %5898 = vmatprep.subr.mxu0 0.0
      %5899 = vmatpush1.msra.mxu0 0.0
      %5900 = vmatprep.subr.mxu0 0.0
      %5901 = vmatpush1.msra.mxu0 0.0
      %5902 = vmatprep.subr.mxu0 0.0
      %5903 = vmatpush1.msra.mxu0 0.0
      %5904 = vmatprep.subr.mxu0 0.0
      %5905 = vmatpush1.msra.mxu0 0.0
      %5906 = vmatprep.subr.mxu0 0.0
      %5907 = vmatpush1.msra.mxu0 0.0
      %5908 = vmatprep.subr.mxu0 0.0
      %5909 = vmatpush1.msra.mxu0 0.0
      %5910 = vmatprep.subr.mxu0 0.0
      %5911 = vmatpush1.msra.mxu0 0.0
      %5912 = vmatprep.subr.mxu0 0.0
      %5913 = vmatpush1.msra.mxu0 0.0
      %5914 = vmatprep.subr.mxu0 0.0
      %5915 = vmatpush1.msra.mxu0 0.0
      %5916 = vmatprep.subr.mxu0 0.0
      %5917 = vmatpush1.msra.mxu0 0.0
      %5918 = vmatprep.subr.mxu0 0.0
      %5919 = vmatpush1.msra.mxu0 0.0
      %5920 = vmatprep.subr.mxu0 0.0
      %5921 = vmatpush1.msra.mxu0 0.0
      %5922 = vmatprep.subr.mxu0 0.0
      %5923 = vmatpush1.msra.mxu0 0.0
      %5924 = vmatprep.subr.mxu0 0.0
      %5925 = vmatpush1.msra.mxu0 0.0
      %5926 = vmatprep.subr.mxu0 0.0
      %5927 = vmatpush1.msra.mxu0 0.0
      %5928 = vmatprep.subr.mxu0 0.0
      %5929 = vmatpush1.msra.mxu0 0.0
      %5930 = vmatprep.subr.mxu0 0.0
      %5931 = vmatpush1.msra.mxu0 0.0
      %5932 = vmatprep.subr.mxu0 0.0
      %5933 = vmatpush1.msra.mxu0 0.0
      %5934 = vmatprep.subr.mxu0 0.0
      %5935 = vmatpush1.msra.mxu0 0.0
      %5936 = vmatprep.subr.mxu0 0.0
      %5937 = vmatpush1.msra.mxu0 0.0
      %5938 = vmatprep.subr.mxu0 0.0
      %5939 = vmatpush1.msra.mxu0 0.0
      %5940 = vmatprep.subr.mxu0 0.0
      %5941 = vmatpush1.msra.mxu0 0.0
      %5942 = vmatprep.subr.mxu0 0.0
      %5943 = vmatpush1.msra.mxu0 0.0
      %5944 = vmatprep.subr.mxu0 0.0
      %5945 = vmatpush1.msra.mxu0 0.0
      %5946 = vmatprep.subr.mxu0 0.0
      %5947 = vmatpush1.msra.mxu0 0.0
      %5948 = vmatprep.subr.mxu0 0.0
      %5949 = vmatpush1.msra.mxu0 0.0
      %5950 = vmatprep.mubr.f32.mxu0 0.0
      %5951 = vmatmul.mubr.f32.gmra.mrb[0].mxu0 %v5884
      %v5952 = vpop.f32.mrb[0].mxu0
      %v5953 = vadd.f32 0.0, %v5952
      %v5954 = vpop.f32.mrb[0].mxu0
      %5955 = vdwg.mxu0
      %v5957 = vsel %vm1041, %v5881, 0
      %5959 = vmatprep.subr.mxu0 0.0
      %5960 = vmatpush1.msra.mxu0 %v5608
      %5961 = vmatprep.subr.mxu0 0.0
      %5962 = vmatpush1.msra.mxu0 0.0
      %5963 = vmatprep.subr.mxu0 0.0
      %5964 = vmatpush1.msra.mxu0 0.0
      %5965 = vmatprep.subr.mxu0 0.0
      %5966 = vmatpush1.msra.mxu0 0.0
      %5967 = vmatprep.subr.mxu0 0.0
      %5968 = vmatpush1.msra.mxu0 0.0
      %5969 = vmatprep.subr.mxu0 0.0
      %5970 = vmatpush1.msra.mxu0 0.0
      %5971 = vmatprep.subr.mxu0 0.0
      %5972 = vmatpush1.msra.mxu0 0.0
      %5973 = vmatprep.subr.mxu0 0.0
      %5974 = vmatpush1.msra.mxu0 0.0
      %5975 = vmatprep.subr.mxu0 0.0
      %5976 = vmatpush1.msra.mxu0 0.0
      %5977 = vmatprep.subr.mxu0 0.0
      %5978 = vmatpush1.msra.mxu0 0.0
      %5979 = vmatprep.subr.mxu0 0.0
      %5980 = vmatpush1.msra.mxu0 0.0
      %5981 = vmatprep.subr.mxu0 0.0
      %5982 = vmatpush1.msra.mxu0 0.0
      %5983 = vmatprep.subr.mxu0 0.0
      %5984 = vmatpush1.msra.mxu0 0.0
      %5985 = vmatprep.subr.mxu0 0.0
      %5986 = vmatpush1.msra.mxu0 0.0
      %5987 = vmatprep.subr.mxu0 0.0
      %5988 = vmatpush1.msra.mxu0 0.0
      %5989 = vmatprep.subr.mxu0 0.0
      %5990 = vmatpush1.msra.mxu0 0.0
      %5991 = vmatprep.subr.mxu0 0.0
      %5992 = vmatpush1.msra.mxu0 0.0
      %5993 = vmatprep.subr.mxu0 0.0
      %5994 = vmatpush1.msra.mxu0 0.0
      %5995 = vmatprep.subr.mxu0 0.0
      %5996 = vmatpush1.msra.mxu0 0.0
      %5997 = vmatprep.subr.mxu0 0.0
      %5998 = vmatpush1.msra.mxu0 0.0
      %5999 = vmatprep.subr.mxu0 0.0
      %6000 = vmatpush1.msra.mxu0 0.0
      %6001 = vmatprep.subr.mxu0 0.0
      %6002 = vmatpush1.msra.mxu0 0.0
      %6003 = vmatprep.subr.mxu0 0.0
      %6004 = vmatpush1.msra.mxu0 0.0
      %6005 = vmatprep.subr.mxu0 0.0
      %6006 = vmatpush1.msra.mxu0 0.0
      %6007 = vmatprep.subr.mxu0 0.0
      %6008 = vmatpush1.msra.mxu0 0.0
      %6009 = vmatprep.subr.mxu0 0.0
      %6010 = vmatpush1.msra.mxu0 0.0
      %6011 = vmatprep.subr.mxu0 0.0
      %6012 = vmatpush1.msra.mxu0 0.0
      %6013 = vmatprep.subr.mxu0 0.0
      %6014 = vmatpush1.msra.mxu0 0.0
      %6015 = vmatprep.subr.mxu0 0.0
      %6016 = vmatpush1.msra.mxu0 0.0
      %6017 = vmatprep.subr.mxu0 0.0
      %6018 = vmatpush1.msra.mxu0 0.0
      %6019 = vmatprep.subr.mxu0 0.0
      %6020 = vmatpush1.msra.mxu0 0.0
      %6021 = vmatprep.subr.mxu0 0.0
      %6022 = vmatpush1.msra.mxu0 0.0
      %6023 = vmatprep.mubr.f32.mxu0 0.0
      %6024 = vmatmul.mubr.f32.gmra.mrb[0].mxu0 %v5957
      %v6025 = vpop.f32.mrb[0].mxu0
      %v6026 = vadd.f32 0.0, %v6025
      %v6027 = vpop.f32.mrb[0].mxu0
      %6028 = vdwg.mxu0
      %v6030 = vsel %vm1041, %v5882, 0
      %6032 = vmatprep.subr.mxu0 0.0
      %6033 = vmatpush1.msra.mxu0 %v5613
      %6034 = vmatprep.subr.mxu0 0.0
      %6035 = vmatpush1.msra.mxu0 0.0
      %6036 = vmatprep.subr.mxu0 0.0
      %6037 = vmatpush1.msra.mxu0 0.0
      %6038 = vmatprep.subr.mxu0 0.0
      %6039 = vmatpush1.msra.mxu0 0.0
      %6040 = vmatprep.subr.mxu0 0.0
      %6041 = vmatpush1.msra.mxu0 0.0
      %6042 = vmatprep.subr.mxu0 0.0
      %6043 = vmatpush1.msra.mxu0 0.0
      %6044 = vmatprep.subr.mxu0 0.0
      %6045 = vmatpush1.msra.mxu0 0.0
      %6046 = vmatprep.subr.mxu0 0.0
      %6047 = vmatpush1.msra.mxu0 0.0
      %6048 = vmatprep.subr.mxu0 0.0
      %6049 = vmatpush1.msra.mxu0 0.0
      %6050 = vmatprep.subr.mxu0 0.0
      %6051 = vmatpush1.msra.mxu0 0.0
      %6052 = vmatprep.subr.mxu0 0.0
      %6053 = vmatpush1.msra.mxu0 0.0
      %6054 = vmatprep.subr.mxu0 0.0
      %6055 = vmatpush1.msra.mxu0 0.0
      %6056 = vmatprep.subr.mxu0 0.0
      %6057 = vmatpush1.msra.mxu0 0.0
      %6058 = vmatprep.subr.mxu0 0.0
      %6059 = vmatpush1.msra.mxu0 0.0
      %6060 = vmatprep.subr.mxu0 0.0
      %6061 = vmatpush1.msra.mxu0 0.0
      %6062 = vmatprep.subr.mxu0 0.0
      %6063 = vmatpush1.msra.mxu0 0.0
      %6064 = vmatprep.subr.mxu0 0.0
      %6065 = vmatpush1.msra.mxu0 0.0
      %6066 = vmatprep.subr.mxu0 0.0
      %6067 = vmatpush1.msra.mxu0 0.0
      %6068 = vmatprep.subr.mxu0 0.0
      %6069 = vmatpush1.msra.mxu0 0.0
      %6070 = vmatprep.subr.mxu0 0.0
      %6071 = vmatpush1.msra.mxu0 0.0
      %6072 = vmatprep.subr.mxu0 0.0
      %6073 = vmatpush1.msra.mxu0 0.0
      %6074 = vmatprep.subr.mxu0 0.0
      %6075 = vmatpush1.msra.mxu0 0.0
      %6076 = vmatprep.subr.mxu0 0.0
      %6077 = vmatpush1.msra.mxu0 0.0
      %6078 = vmatprep.subr.mxu0 0.0
      %6079 = vmatpush1.msra.mxu0 0.0
      %6080 = vmatprep.subr.mxu0 0.0
      %6081 = vmatpush1.msra.mxu0 0.0
      %6082 = vmatprep.subr.mxu0 0.0
      %6083 = vmatpush1.msra.mxu0 0.0
      %6084 = vmatprep.subr.mxu0 0.0
      %6085 = vmatpush1.msra.mxu0 0.0
      %6086 = vmatprep.subr.mxu0 0.0
      %6087 = vmatpush1.msra.mxu0 0.0
      %6088 = vmatprep.subr.mxu0 0.0
      %6089 = vmatpush1.msra.mxu0 0.0
      %6090 = vmatprep.subr.mxu0 0.0
      %6091 = vmatpush1.msra.mxu0 0.0
      %6092 = vmatprep.subr.mxu0 0.0
      %6093 = vmatpush1.msra.mxu0 0.0
      %6094 = vmatprep.subr.mxu0 0.0
      %6095 = vmatpush1.msra.mxu0 0.0
      %6096 = vmatprep.mubr.f32.mxu0 0.0
      %6097 = vmatmul.mubr.f32.gmra.mrb[0].mxu0 %v6030
      %v6098 = vpop.f32.mrb[0].mxu0
      %v6099 = vadd.f32 0.0, %v6098
      %v6100 = vpop.f32.mrb[0].mxu0
      %6101 = vdwg.mxu0
      %s6102 = scalar_lea.vmem %s11, 40
      %v6103 = vld [vmem:[%s6102] sm:$0xff]
      %v6105 = vsel %vm1041, %v5953, 0
      %v6108 = vsel %vm1041, %v6026, 0
      %v6111 = vsel %vm1041, %v6099, 0
      %6113 = vmatprep.subr.mxu0 0.0
      %6114 = vmatpush1.msra.mxu0 %v6103
      %6115 = vmatprep.subr.mxu0 0.0
      %6116 = vmatpush1.msra.mxu0 0.0
      %6117 = vmatprep.subr.mxu0 0.0
      %6118 = vmatpush1.msra.mxu0 0.0
      %6119 = vmatprep.subr.mxu0 0.0
      %6120 = vmatpush1.msra.mxu0 0.0
      %6121 = vmatprep.subr.mxu0 0.0
      %6122 = vmatpush1.msra.mxu0 0.0
      %6123 = vmatprep.subr.mxu0 0.0
      %6124 = vmatpush1.msra.mxu0 0.0
      %6125 = vmatprep.subr.mxu0 0.0
      %6126 = vmatpush1.msra.mxu0 0.0
      %6127 = vmatprep.subr.mxu0 0.0
      %6128 = vmatpush1.msra.mxu0 0.0
      %6129 = vmatprep.subr.mxu0 0.0
      %6130 = vmatpush1.msra.mxu0 0.0
      %6131 = vmatprep.subr.mxu0 0.0
      %6132 = vmatpush1.msra.mxu0 0.0
      %6133 = vmatprep.subr.mxu0 0.0
      %6134 = vmatpush1.msra.mxu0 0.0
      %6135 = vmatprep.subr.mxu0 0.0
      %6136 = vmatpush1.msra.mxu0 0.0
      %6137 = vmatprep.subr.mxu0 0.0
      %6138 = vmatpush1.msra.mxu0 0.0
      %6139 = vmatprep.subr.mxu0 0.0
      %6140 = vmatpush1.msra.mxu0 0.0
      %6141 = vmatprep.subr.mxu0 0.0
      %6142 = vmatpush1.msra.mxu0 0.0
      %6143 = vmatprep.subr.mxu0 0.0
      %6144 = vmatpush1.msra.mxu0 0.0
      %6145 = vmatprep.subr.mxu0 0.0
      %6146 = vmatpush1.msra.mxu0 0.0
      %6147 = vmatprep.subr.mxu0 0.0
      %6148 = vmatpush1.msra.mxu0 0.0
      %6149 = vmatprep.subr.mxu0 0.0
      %6150 = vmatpush1.msra.mxu0 0.0
      %6151 = vmatprep.subr.mxu0 0.0
      %6152 = vmatpush1.msra.mxu0 0.0
      %6153 = vmatprep.subr.mxu0 0.0
      %6154 = vmatpush1.msra.mxu0 0.0
      %6155 = vmatprep.subr.mxu0 0.0
      %6156 = vmatpush1.msra.mxu0 0.0
      %6157 = vmatprep.subr.mxu0 0.0
      %6158 = vmatpush1.msra.mxu0 0.0
      %6159 = vmatprep.subr.mxu0 0.0
      %6160 = vmatpush1.msra.mxu0 0.0
      %6161 = vmatprep.subr.mxu0 0.0
      %6162 = vmatpush1.msra.mxu0 0.0
      %6163 = vmatprep.subr.mxu0 0.0
      %6164 = vmatpush1.msra.mxu0 0.0
      %6165 = vmatprep.subr.mxu0 0.0
      %6166 = vmatpush1.msra.mxu0 0.0
      %6167 = vmatprep.subr.mxu0 0.0
      %6168 = vmatpush1.msra.mxu0 0.0
      %6169 = vmatprep.subr.mxu0 0.0
      %6170 = vmatpush1.msra.mxu0 0.0
      %6171 = vmatprep.subr.mxu0 0.0
      %6172 = vmatpush1.msra.mxu0 0.0
      %6173 = vmatprep.subr.mxu0 0.0
      %6174 = vmatpush1.msra.mxu0 0.0
      %6175 = vmatprep.subr.mxu0 0.0
      %6176 = vmatpush1.msra.mxu0 0.0
      %6177 = vmatprep.mubr.f32.mxu0 0.0
      %6178 = vmatmul.mubr.f32.gmra.mrb[0].mxu0 %v6105
      %v6179 = vpop.f32.mrb[0].mxu0
      %v6180 = vadd.f32 0.0, %v6179
      %v6181 = vpop.f32.mrb[0].mxu0
      %6182 = vmatprep.mubr.f32.mxu0 0.0
      %6183 = vmatmul.mubr.f32.gmra.mrb[0].mxu0 %v6108
      %v6184 = vpop.f32.mrb[0].mxu0
      %v6185 = vadd.f32 0.0, %v6184
      %v6186 = vpop.f32.mrb[0].mxu0
      %6187 = vmatprep.mubr.f32.mxu0 0.0
      %6188 = vmatmul.mubr.f32.gmra.mrb[0].mxu0 %v6111
      %v6189 = vpop.f32.mrb[0].mxu0
      %v6190 = vadd.f32 0.0, %v6189
      %v6191 = vpop.f32.mrb[0].mxu0
      %6192 = vdwg.mxu0
      %v6194 = vsel %vm1041, %v5186, 0
      %v6197 = vsel %vm1041, %v5259, 0
      %v6200 = vsel %vm1041, %v5332, 0
      %6202 = vmatprep.subr.mxu0 0.0
      %6203 = vmatpush1.msra.mxu0 %v5336
      %6204 = vmatprep.subr.mxu0 0.0
      %6205 = vmatpush1.msra.mxu0 0.0
      %6206 = vmatprep.subr.mxu0 0.0
      %6207 = vmatpush1.msra.mxu0 0.0
      %6208 = vmatprep.subr.mxu0 0.0
      %6209 = vmatpush1.msra.mxu0 0.0
      %6210 = vmatprep.subr.mxu0 0.0
      %6211 = vmatpush1.msra.mxu0 0.0
      %6212 = vmatprep.subr.mxu0 0.0
      %6213 = vmatpush1.msra.mxu0 0.0
      %6214 = vmatprep.subr.mxu0 0.0
      %6215 = vmatpush1.msra.mxu0 0.0
      %6216 = vmatprep.subr.mxu0 0.0
      %6217 = vmatpush1.msra.mxu0 0.0
      %6218 = vmatprep.subr.mxu0 0.0
      %6219 = vmatpush1.msra.mxu0 0.0
      %6220 = vmatprep.subr.mxu0 0.0
      %6221 = vmatpush1.msra.mxu0 0.0
      %6222 = vmatprep.subr.mxu0 0.0
      %6223 = vmatpush1.msra.mxu0 0.0
      %6224 = vmatprep.subr.mxu0 0.0
      %6225 = vmatpush1.msra.mxu0 0.0
      %6226 = vmatprep.subr.mxu0 0.0
      %6227 = vmatpush1.msra.mxu0 0.0
      %6228 = vmatprep.subr.mxu0 0.0
      %6229 = vmatpush1.msra.mxu0 0.0
      %6230 = vmatprep.subr.mxu0 0.0
      %6231 = vmatpush1.msra.mxu0 0.0
      %6232 = vmatprep.subr.mxu0 0.0
      %6233 = vmatpush1.msra.mxu0 0.0
      %6234 = vmatprep.subr.mxu0 0.0
      %6235 = vmatpush1.msra.mxu0 0.0
      %6236 = vmatprep.subr.mxu0 0.0
      %6237 = vmatpush1.msra.mxu0 0.0
      %6238 = vmatprep.subr.mxu0 0.0
      %6239 = vmatpush1.msra.mxu0 0.0
      %6240 = vmatprep.subr.mxu0 0.0
      %6241 = vmatpush1.msra.mxu0 0.0
      %6242 = vmatprep.subr.mxu0 0.0
      %6243 = vmatpush1.msra.mxu0 0.0
      %6244 = vmatprep.subr.mxu0 0.0
      %6245 = vmatpush1.msra.mxu0 0.0
      %6246 = vmatprep.subr.mxu0 0.0
      %6247 = vmatpush1.msra.mxu0 0.0
      %6248 = vmatprep.subr.mxu0 0.0
      %6249 = vmatpush1.msra.mxu0 0.0
      %6250 = vmatprep.subr.mxu0 0.0
      %6251 = vmatpush1.msra.mxu0 0.0
      %6252 = vmatprep.subr.mxu0 0.0
      %6253 = vmatpush1.msra.mxu0 0.0
      %6254 = vmatprep.subr.mxu0 0.0
      %6255 = vmatpush1.msra.mxu0 0.0
      %6256 = vmatprep.subr.mxu0 0.0
      %6257 = vmatpush1.msra.mxu0 0.0
      %6258 = vmatprep.subr.mxu0 0.0
      %6259 = vmatpush1.msra.mxu0 0.0
      %6260 = vmatprep.subr.mxu0 0.0
      %6261 = vmatpush1.msra.mxu0 0.0
      %6262 = vmatprep.subr.mxu0 0.0
      %6263 = vmatpush1.msra.mxu0 0.0
      %6264 = vmatprep.subr.mxu0 0.0
      %6265 = vmatpush1.msra.mxu0 0.0
      %6266 = vmatprep.mubr.f32.mxu0 0.0
      %6267 = vmatmul.mubr.f32.gmra.mrb[0].mxu0 %v6194
      %v6268 = vpop.f32.mrb[0].mxu0
      %v6269 = vadd.f32 %v6180, %v6268
      %v6270 = vpop.f32.mrb[0].mxu0
      %6271 = vmatprep.mubr.f32.mxu0 0.0
      %6272 = vmatmul.mubr.f32.gmra.mrb[0].mxu0 %v6197
      %v6273 = vpop.f32.mrb[0].mxu0
      %v6274 = vadd.f32 %v6185, %v6273
      %v6275 = vpop.f32.mrb[0].mxu0
      %6276 = vmatprep.mubr.f32.mxu0 0.0
      %6277 = vmatmul.mubr.f32.gmra.mrb[0].mxu0 %v6200
      %v6278 = vpop.f32.mrb[0].mxu0
      %v6279 = vadd.f32 %v6190, %v6278
      %v6280 = vpop.f32.mrb[0].mxu0
      %6281 = vdwg.mxu0
      %s6282 = scalar_lea.vmem %s5, 192
      %v6283 = vld [vmem:[%s6282] sm:$0xff]
      %v6284 = vld [vmem:[%s6282 + $0x8] sm:$0xff]
      %v6285 = vld [vmem:[%s6282 + $0x10] sm:$0xff]
      %v6286 = vld [vmem:[%s6282 + $0x18] sm:$0xff]
      %s6287 = scalar_lea.vmem %s6, 6
      %v6288 = vld [vmem:[%s6287] sm:$0x1]
      %v6290 = vlaneseq
      %v6291 = vshrl.u32 %v6290, 7
      %v6292 = vsub.s32 0, %v6291
      %v6293 = vrot.slane %v6288, %v6292
      %6295 = vmatprep.subr.mxu0 0.0
      %6296 = vmatpush1.msra.mxu0 %v6283
      %6297 = vmatprep.subr.mxu0 0.0
      %6298 = vmatpush1.msra.mxu0 %v6284
      %6299 = vmatprep.subr.mxu0 0.0
      %6300 = vmatpush1.msra.mxu0 %v6285
      %6301 = vmatprep.subr.mxu0 0.0
      %6302 = vmatpush1.msra.mxu0 %v6286
      %6303 = vmatprep.subr.mxu0 0.0
      %6304 = vmatpush1.msra.mxu0 0.0
      %6305 = vmatprep.subr.mxu0 0.0
      %6306 = vmatpush1.msra.mxu0 0.0
      %6307 = vmatprep.subr.mxu0 0.0
      %6308 = vmatpush1.msra.mxu0 0.0
      %6309 = vmatprep.subr.mxu0 0.0
      %6310 = vmatpush1.msra.mxu0 0.0
      %6311 = vmatprep.subr.mxu0 0.0
      %6312 = vmatpush1.msra.mxu0 0.0
      %6313 = vmatprep.subr.mxu0 0.0
      %6314 = vmatpush1.msra.mxu0 0.0
      %6315 = vmatprep.subr.mxu0 0.0
      %6316 = vmatpush1.msra.mxu0 0.0
      %6317 = vmatprep.subr.mxu0 0.0
      %6318 = vmatpush1.msra.mxu0 0.0
      %6319 = vmatprep.subr.mxu0 0.0
      %6320 = vmatpush1.msra.mxu0 0.0
      %6321 = vmatprep.subr.mxu0 0.0
      %6322 = vmatpush1.msra.mxu0 0.0
      %6323 = vmatprep.subr.mxu0 0.0
      %6324 = vmatpush1.msra.mxu0 0.0
      %6325 = vmatprep.subr.mxu0 0.0
      %6326 = vmatpush1.msra.mxu0 0.0
      %6327 = vmatprep.subr.mxu0 0.0
      %6328 = vmatpush1.msra.mxu0 0.0
      %6329 = vmatprep.subr.mxu0 0.0
      %6330 = vmatpush1.msra.mxu0 0.0
      %6331 = vmatprep.subr.mxu0 0.0
      %6332 = vmatpush1.msra.mxu0 0.0
      %6333 = vmatprep.subr.mxu0 0.0
      %6334 = vmatpush1.msra.mxu0 0.0
      %6335 = vmatprep.subr.mxu0 0.0
      %6336 = vmatpush1.msra.mxu0 0.0
      %6337 = vmatprep.subr.mxu0 0.0
      %6338 = vmatpush1.msra.mxu0 0.0
      %6339 = vmatprep.subr.mxu0 0.0
      %6340 = vmatpush1.msra.mxu0 0.0
      %6341 = vmatprep.subr.mxu0 0.0
      %6342 = vmatpush1.msra.mxu0 0.0
      %6343 = vmatprep.subr.mxu0 0.0
      %6344 = vmatpush1.msra.mxu0 0.0
      %6345 = vmatprep.subr.mxu0 0.0
      %6346 = vmatpush1.msra.mxu0 0.0
      %6347 = vmatprep.subr.mxu0 0.0
      %6348 = vmatpush1.msra.mxu0 0.0
      %6349 = vmatprep.subr.mxu0 0.0
      %6350 = vmatpush1.msra.mxu0 0.0
      %6351 = vmatprep.subr.mxu0 0.0
      %6352 = vmatpush1.msra.mxu0 0.0
      %6353 = vmatprep.subr.mxu0 0.0
      %6354 = vmatpush1.msra.mxu0 0.0
      %6355 = vmatprep.subr.mxu0 0.0
      %6356 = vmatpush1.msra.mxu0 0.0
      %6357 = vmatprep.subr.mxu0 0.0
      %6358 = vmatpush1.msra.mxu0 0.0
      %6359 = vmatprep.mubr.f32.mxu0 0.0
      %6360 = vmatmul.mubr.f32.gmra.mrb[0].mxu0 %v4575
      %v6361 = vpop.f32.mrb[0].mxu0
      %v6362 = vadd.f32 %v6293, %v6361
      %v6363 = vpop.f32.mrb[0].mxu0
      %6364 = vmatprep.mubr.f32.mxu0 0.0
      %6365 = vmatmul.mubr.f32.gmra.mrb[0].mxu0 %v4578
      %v6366 = vpop.f32.mrb[0].mxu0
      %v6367 = vadd.f32 %v6293, %v6366
      %v6368 = vpop.f32.mrb[0].mxu0
      %6369 = vmatprep.mubr.f32.mxu0 0.0
      %6370 = vmatmul.mubr.f32.gmra.mrb[0].mxu0 %v4581
      %v6371 = vpop.f32.mrb[0].mxu0
      %v6372 = vadd.f32 %v6293, %v6371
      %v6373 = vpop.f32.mrb[0].mxu0
      %6374 = vdwg.mxu0
      %s6375 = scalar_lea.vmem %s7, 192
      %v6376 = vld [vmem:[%s6375] sm:$0xff]
      %v6377 = vld [vmem:[%s6375 + $0x8] sm:$0xff]
      %v6378 = vld [vmem:[%s6375 + $0x10] sm:$0xff]
      %v6379 = vld [vmem:[%s6375 + $0x18] sm:$0xff]
      %s6380 = scalar_lea.vmem %s8, 6
      %v6381 = vld [vmem:[%s6380] sm:$0x1]
      %v6383 = vlaneseq
      %v6384 = vshrl.u32 %v6383, 7
      %v6385 = vsub.s32 0, %v6384
      %v6386 = vrot.slane %v6381, %v6385
      %6388 = vmatprep.subr.mxu0 0.0
      %6389 = vmatpush1.msra.mxu0 %v6376
      %6390 = vmatprep.subr.mxu0 0.0
      %6391 = vmatpush1.msra.mxu0 %v6377
      %6392 = vmatprep.subr.mxu0 0.0
      %6393 = vmatpush1.msra.mxu0 %v6378
      %6394 = vmatprep.subr.mxu0 0.0
      %6395 = vmatpush1.msra.mxu0 %v6379
      %6396 = vmatprep.subr.mxu0 0.0
      %6397 = vmatpush1.msra.mxu0 0.0
      %6398 = vmatprep.subr.mxu0 0.0
      %6399 = vmatpush1.msra.mxu0 0.0
      %6400 = vmatprep.subr.mxu0 0.0
      %6401 = vmatpush1.msra.mxu0 0.0
      %6402 = vmatprep.subr.mxu0 0.0
      %6403 = vmatpush1.msra.mxu0 0.0
      %6404 = vmatprep.subr.mxu0 0.0
      %6405 = vmatpush1.msra.mxu0 0.0
      %6406 = vmatprep.subr.mxu0 0.0
      %6407 = vmatpush1.msra.mxu0 0.0
      %6408 = vmatprep.subr.mxu0 0.0
      %6409 = vmatpush1.msra.mxu0 0.0
      %6410 = vmatprep.subr.mxu0 0.0
      %6411 = vmatpush1.msra.mxu0 0.0
      %6412 = vmatprep.subr.mxu0 0.0
      %6413 = vmatpush1.msra.mxu0 0.0
      %6414 = vmatprep.subr.mxu0 0.0
      %6415 = vmatpush1.msra.mxu0 0.0
      %6416 = vmatprep.subr.mxu0 0.0
      %6417 = vmatpush1.msra.mxu0 0.0
      %6418 = vmatprep.subr.mxu0 0.0
      %6419 = vmatpush1.msra.mxu0 0.0
      %6420 = vmatprep.subr.mxu0 0.0
      %6421 = vmatpush1.msra.mxu0 0.0
      %6422 = vmatprep.subr.mxu0 0.0
      %6423 = vmatpush1.msra.mxu0 0.0
      %6424 = vmatprep.subr.mxu0 0.0
      %6425 = vmatpush1.msra.mxu0 0.0
      %6426 = vmatprep.subr.mxu0 0.0
      %6427 = vmatpush1.msra.mxu0 0.0
      %6428 = vmatprep.subr.mxu0 0.0
      %6429 = vmatpush1.msra.mxu0 0.0
      %6430 = vmatprep.subr.mxu0 0.0
      %6431 = vmatpush1.msra.mxu0 0.0
      %6432 = vmatprep.subr.mxu0 0.0
      %6433 = vmatpush1.msra.mxu0 0.0
      %6434 = vmatprep.subr.mxu0 0.0
      %6435 = vmatpush1.msra.mxu0 0.0
      %6436 = vmatprep.subr.mxu0 0.0
      %6437 = vmatpush1.msra.mxu0 0.0
      %6438 = vmatprep.subr.mxu0 0.0
      %6439 = vmatpush1.msra.mxu0 0.0
      %6440 = vmatprep.subr.mxu0 0.0
      %6441 = vmatpush1.msra.mxu0 0.0
      %6442 = vmatprep.subr.mxu0 0.0
      %6443 = vmatpush1.msra.mxu0 0.0
      %6444 = vmatprep.subr.mxu0 0.0
      %6445 = vmatpush1.msra.mxu0 0.0
      %6446 = vmatprep.subr.mxu0 0.0
      %6447 = vmatpush1.msra.mxu0 0.0
      %6448 = vmatprep.subr.mxu0 0.0
      %6449 = vmatpush1.msra.mxu0 0.0
      %6450 = vmatprep.subr.mxu0 0.0
      %6451 = vmatpush1.msra.mxu0 0.0
      %6452 = vmatprep.mubr.f32.mxu0 0.0
      %6453 = vmatmul.mubr.f32.gmra.mrb[0].mxu0 %v4575
      %v6454 = vpop.f32.mrb[0].mxu0
      %v6455 = vadd.f32 %v6386, %v6454
      %v6456 = vpop.f32.mrb[0].mxu0
      %6457 = vmatprep.mubr.f32.mxu0 0.0
      %6458 = vmatmul.mubr.f32.gmra.mrb[0].mxu0 %v4578
      %v6459 = vpop.f32.mrb[0].mxu0
      %v6460 = vadd.f32 %v6386, %v6459
      %v6461 = vpop.f32.mrb[0].mxu0
      %6462 = vmatprep.mubr.f32.mxu0 0.0
      %6463 = vmatmul.mubr.f32.gmra.mrb[0].mxu0 %v4581
      %v6464 = vpop.f32.mrb[0].mxu0
      %v6465 = vadd.f32 %v6386, %v6464
      %v6466 = vpop.f32.mrb[0].mxu0
      %6467 = vdwg.mxu0
      %s6468 = scalar_lea.vmem %s9, 192
      %v6469 = vld [vmem:[%s6468] sm:$0xff]
      %v6470 = vld [vmem:[%s6468 + $0x8] sm:$0xff]
      %v6471 = vld [vmem:[%s6468 + $0x10] sm:$0xff]
      %v6472 = vld [vmem:[%s6468 + $0x18] sm:$0xff]
      %s6473 = scalar_lea.vmem %s10, 6
      %v6474 = vld [vmem:[%s6473] sm:$0x1]
      %v6476 = vlaneseq
      %v6477 = vshrl.u32 %v6476, 7
      %v6478 = vsub.s32 0, %v6477
      %v6479 = vrot.slane %v6474, %v6478
      %6481 = vmatprep.subr.mxu0 0.0
      %6482 = vmatpush1.msra.mxu0 %v6469
      %6483 = vmatprep.subr.mxu0 0.0
      %6484 = vmatpush1.msra.mxu0 %v6470
      %6485 = vmatprep.subr.mxu0 0.0
      %6486 = vmatpush1.msra.mxu0 %v6471
      %6487 = vmatprep.subr.mxu0 0.0
      %6488 = vmatpush1.msra.mxu0 %v6472
      %6489 = vmatprep.subr.mxu0 0.0
      %6490 = vmatpush1.msra.mxu0 0.0
      %6491 = vmatprep.subr.mxu0 0.0
      %6492 = vmatpush1.msra.mxu0 0.0
      %6493 = vmatprep.subr.mxu0 0.0
      %6494 = vmatpush1.msra.mxu0 0.0
      %6495 = vmatprep.subr.mxu0 0.0
      %6496 = vmatpush1.msra.mxu0 0.0
      %6497 = vmatprep.subr.mxu0 0.0
      %6498 = vmatpush1.msra.mxu0 0.0
      %6499 = vmatprep.subr.mxu0 0.0
      %6500 = vmatpush1.msra.mxu0 0.0
      %6501 = vmatprep.subr.mxu0 0.0
      %6502 = vmatpush1.msra.mxu0 0.0
      %6503 = vmatprep.subr.mxu0 0.0
      %6504 = vmatpush1.msra.mxu0 0.0
      %6505 = vmatprep.subr.mxu0 0.0
      %6506 = vmatpush1.msra.mxu0 0.0
      %6507 = vmatprep.subr.mxu0 0.0
      %6508 = vmatpush1.msra.mxu0 0.0
      %6509 = vmatprep.subr.mxu0 0.0
      %6510 = vmatpush1.msra.mxu0 0.0
      %6511 = vmatprep.subr.mxu0 0.0
      %6512 = vmatpush1.msra.mxu0 0.0
      %6513 = vmatprep.subr.mxu0 0.0
      %6514 = vmatpush1.msra.mxu0 0.0
      %6515 = vmatprep.subr.mxu0 0.0
      %6516 = vmatpush1.msra.mxu0 0.0
      %6517 = vmatprep.subr.mxu0 0.0
      %6518 = vmatpush1.msra.mxu0 0.0
      %6519 = vmatprep.subr.mxu0 0.0
      %6520 = vmatpush1.msra.mxu0 0.0
      %6521 = vmatprep.subr.mxu0 0.0
      %6522 = vmatpush1.msra.mxu0 0.0
      %6523 = vmatprep.subr.mxu0 0.0
      %6524 = vmatpush1.msra.mxu0 0.0
      %6525 = vmatprep.subr.mxu0 0.0
      %6526 = vmatpush1.msra.mxu0 0.0
      %6527 = vmatprep.subr.mxu0 0.0
      %6528 = vmatpush1.msra.mxu0 0.0
      %6529 = vmatprep.subr.mxu0 0.0
      %6530 = vmatpush1.msra.mxu0 0.0
      %6531 = vmatprep.subr.mxu0 0.0
      %6532 = vmatpush1.msra.mxu0 0.0
      %6533 = vmatprep.subr.mxu0 0.0
      %6534 = vmatpush1.msra.mxu0 0.0
      %6535 = vmatprep.subr.mxu0 0.0
      %6536 = vmatpush1.msra.mxu0 0.0
      %6537 = vmatprep.subr.mxu0 0.0
      %6538 = vmatpush1.msra.mxu0 0.0
      %6539 = vmatprep.subr.mxu0 0.0
      %6540 = vmatpush1.msra.mxu0 0.0
      %6541 = vmatprep.subr.mxu0 0.0
      %6542 = vmatpush1.msra.mxu0 0.0
      %6543 = vmatprep.subr.mxu0 0.0
      %6544 = vmatpush1.msra.mxu0 0.0
      %6545 = vmatprep.mubr.f32.mxu0 0.0
      %6546 = vmatmul.mubr.f32.gmra.mrb[0].mxu0 %v4575
      %v6547 = vpop.f32.mrb[0].mxu0
      %v6548 = vadd.f32 %v6479, %v6547
      %v6549 = vpop.f32.mrb[0].mxu0
      %6550 = vmatprep.mubr.f32.mxu0 0.0
      %6551 = vmatmul.mubr.f32.gmra.mrb[0].mxu0 %v4578
      %v6552 = vpop.f32.mrb[0].mxu0
      %v6553 = vadd.f32 %v6479, %v6552
      %v6554 = vpop.f32.mrb[0].mxu0
      %6555 = vmatprep.mubr.f32.mxu0 0.0
      %6556 = vmatmul.mubr.f32.gmra.mrb[0].mxu0 %v4581
      %v6557 = vpop.f32.mrb[0].mxu0
      %v6558 = vadd.f32 %v6479, %v6557
      %v6559 = vpop.f32.mrb[0].mxu0
      %6560 = vdwg.mxu0
      %v6562 = vsel %vm1041, %v6362, 0
      %v6565 = vsel %vm1041, %v6455, 0
      %6567 = vmatprep.subr.mxu0 0.0
      %6568 = vmatpush1.xpose.msra.mxu0 %v6565
      %6569 = vmatprep.subr.mxu0 0.0
      %6570 = vmatpush1.xpose.msra.mxu0 0.0
      %6571 = vmatprep.subr.mxu0 0.0
      %6572 = vmatpush1.xpose.msra.mxu0 0.0
      %6573 = vmatprep.subr.mxu0 0.0
      %6574 = vmatpush1.xpose.msra.mxu0 0.0
      %6575 = vmatprep.subr.mxu0 0.0
      %6576 = vmatpush1.xpose.msra.mxu0 0.0
      %6577 = vmatprep.subr.mxu0 0.0
      %6578 = vmatpush1.xpose.msra.mxu0 0.0
      %6579 = vmatprep.subr.mxu0 0.0
      %6580 = vmatpush1.xpose.msra.mxu0 0.0
      %6581 = vmatprep.subr.mxu0 0.0
      %6582 = vmatpush1.xpose.msra.mxu0 0.0
      %6583 = vmatprep.subr.mxu0 0.0
      %6584 = vmatpush1.xpose.msra.mxu0 0.0
      %6585 = vmatprep.subr.mxu0 0.0
      %6586 = vmatpush1.xpose.msra.mxu0 0.0
      %6587 = vmatprep.subr.mxu0 0.0
      %6588 = vmatpush1.xpose.msra.mxu0 0.0
      %6589 = vmatprep.subr.mxu0 0.0
      %6590 = vmatpush1.xpose.msra.mxu0 0.0
      %6591 = vmatprep.subr.mxu0 0.0
      %6592 = vmatpush1.xpose.msra.mxu0 0.0
      %6593 = vmatprep.subr.mxu0 0.0
      %6594 = vmatpush1.xpose.msra.mxu0 0.0
      %6595 = vmatprep.subr.mxu0 0.0
      %6596 = vmatpush1.xpose.msra.mxu0 0.0
      %6597 = vmatprep.subr.mxu0 0.0
      %6598 = vmatpush1.xpose.msra.mxu0 0.0
      %6599 = vmatprep.subr.mxu0 0.0
      %6600 = vmatpush1.xpose.msra.mxu0 0.0
      %6601 = vmatprep.subr.mxu0 0.0
      %6602 = vmatpush1.xpose.msra.mxu0 0.0
      %6603 = vmatprep.subr.mxu0 0.0
      %6604 = vmatpush1.xpose.msra.mxu0 0.0
      %6605 = vmatprep.subr.mxu0 0.0
      %6606 = vmatpush1.xpose.msra.mxu0 0.0
      %6607 = vmatprep.subr.mxu0 0.0
      %6608 = vmatpush1.xpose.msra.mxu0 0.0
      %6609 = vmatprep.subr.mxu0 0.0
      %6610 = vmatpush1.xpose.msra.mxu0 0.0
      %6611 = vmatprep.subr.mxu0 0.0
      %6612 = vmatpush1.xpose.msra.mxu0 0.0
      %6613 = vmatprep.subr.mxu0 0.0
      %6614 = vmatpush1.xpose.msra.mxu0 0.0
      %6615 = vmatprep.subr.mxu0 0.0
      %6616 = vmatpush1.xpose.msra.mxu0 0.0
      %6617 = vmatprep.subr.mxu0 0.0
      %6618 = vmatpush1.xpose.msra.mxu0 0.0
      %6619 = vmatprep.subr.mxu0 0.0
      %6620 = vmatpush1.xpose.msra.mxu0 0.0
      %6621 = vmatprep.subr.mxu0 0.0
      %6622 = vmatpush1.xpose.msra.mxu0 0.0
      %6623 = vmatprep.subr.mxu0 0.0
      %6624 = vmatpush1.xpose.msra.mxu0 0.0
      %6625 = vmatprep.subr.mxu0 0.0
      %6626 = vmatpush1.xpose.msra.mxu0 0.0
      %6627 = vmatprep.subr.mxu0 0.0
      %6628 = vmatpush1.xpose.msra.mxu0 0.0
      %6629 = vmatprep.subr.mxu0 0.0
      %6630 = vmatpush1.xpose.msra.mxu0 0.0
      %6631 = vmatprep.mubr.f32.mxu0 0.0
      %6632 = vmatmul.mubr.f32.gmra.mrb[0].mxu0 %v6562
      %v6633 = vpop.f32.mrb[0].mxu0
      %v6634 = vadd.f32 0.0, %v6633
      %v6635 = vpop.f32.mrb[0].mxu0
      %6636 = vdwg.mxu0
      %v6638 = vsel %vm1041, %v6367, 0
      %v6641 = vsel %vm1041, %v6460, 0
      %6643 = vmatprep.subr.mxu0 0.0
      %6644 = vmatpush1.xpose.msra.mxu0 %v6641
      %6645 = vmatprep.subr.mxu0 0.0
      %6646 = vmatpush1.xpose.msra.mxu0 0.0
      %6647 = vmatprep.subr.mxu0 0.0
      %6648 = vmatpush1.xpose.msra.mxu0 0.0
      %6649 = vmatprep.subr.mxu0 0.0
      %6650 = vmatpush1.xpose.msra.mxu0 0.0
      %6651 = vmatprep.subr.mxu0 0.0
      %6652 = vmatpush1.xpose.msra.mxu0 0.0
      %6653 = vmatprep.subr.mxu0 0.0
      %6654 = vmatpush1.xpose.msra.mxu0 0.0
      %6655 = vmatprep.subr.mxu0 0.0
      %6656 = vmatpush1.xpose.msra.mxu0 0.0
      %6657 = vmatprep.subr.mxu0 0.0
      %6658 = vmatpush1.xpose.msra.mxu0 0.0
      %6659 = vmatprep.subr.mxu0 0.0
      %6660 = vmatpush1.xpose.msra.mxu0 0.0
      %6661 = vmatprep.subr.mxu0 0.0
      %6662 = vmatpush1.xpose.msra.mxu0 0.0
      %6663 = vmatprep.subr.mxu0 0.0
      %6664 = vmatpush1.xpose.msra.mxu0 0.0
      %6665 = vmatprep.subr.mxu0 0.0
      %6666 = vmatpush1.xpose.msra.mxu0 0.0
      %6667 = vmatprep.subr.mxu0 0.0
      %6668 = vmatpush1.xpose.msra.mxu0 0.0
      %6669 = vmatprep.subr.mxu0 0.0
      %6670 = vmatpush1.xpose.msra.mxu0 0.0
      %6671 = vmatprep.subr.mxu0 0.0
      %6672 = vmatpush1.xpose.msra.mxu0 0.0
      %6673 = vmatprep.subr.mxu0 0.0
      %6674 = vmatpush1.xpose.msra.mxu0 0.0
      %6675 = vmatprep.subr.mxu0 0.0
      %6676 = vmatpush1.xpose.msra.mxu0 0.0
      %6677 = vmatprep.subr.mxu0 0.0
      %6678 = vmatpush1.xpose.msra.mxu0 0.0
      %6679 = vmatprep.subr.mxu0 0.0
      %6680 = vmatpush1.xpose.msra.mxu0 0.0
      %6681 = vmatprep.subr.mxu0 0.0
      %6682 = vmatpush1.xpose.msra.mxu0 0.0
      %6683 = vmatprep.subr.mxu0 0.0
      %6684 = vmatpush1.xpose.msra.mxu0 0.0
      %6685 = vmatprep.subr.mxu0 0.0
      %6686 = vmatpush1.xpose.msra.mxu0 0.0
      %6687 = vmatprep.subr.mxu0 0.0
      %6688 = vmatpush1.xpose.msra.mxu0 0.0
      %6689 = vmatprep.subr.mxu0 0.0
      %6690 = vmatpush1.xpose.msra.mxu0 0.0
      %6691 = vmatprep.subr.mxu0 0.0
      %6692 = vmatpush1.xpose.msra.mxu0 0.0
      %6693 = vmatprep.subr.mxu0 0.0
      %6694 = vmatpush1.xpose.msra.mxu0 0.0
      %6695 = vmatprep.subr.mxu0 0.0
      %6696 = vmatpush1.xpose.msra.mxu0 0.0
      %6697 = vmatprep.subr.mxu0 0.0
      %6698 = vmatpush1.xpose.msra.mxu0 0.0
      %6699 = vmatprep.subr.mxu0 0.0
      %6700 = vmatpush1.xpose.msra.mxu0 0.0
      %6701 = vmatprep.subr.mxu0 0.0
      %6702 = vmatpush1.xpose.msra.mxu0 0.0
      %6703 = vmatprep.subr.mxu0 0.0
      %6704 = vmatpush1.xpose.msra.mxu0 0.0
      %6705 = vmatprep.subr.mxu0 0.0
      %6706 = vmatpush1.xpose.msra.mxu0 0.0
      %6707 = vmatprep.mubr.f32.mxu0 0.0
      %6708 = vmatmul.mubr.f32.gmra.mrb[0].mxu0 %v6638
      %v6709 = vpop.f32.mrb[0].mxu0
      %v6710 = vadd.f32 0.0, %v6709
      %v6711 = vpop.f32.mrb[0].mxu0
      %6712 = vdwg.mxu0
      %v6714 = vsel %vm1041, %v6372, 0
      %v6717 = vsel %vm1041, %v6465, 0
      %6719 = vmatprep.subr.mxu0 0.0
      %6720 = vmatpush1.xpose.msra.mxu0 %v6717
      %6721 = vmatprep.subr.mxu0 0.0
      %6722 = vmatpush1.xpose.msra.mxu0 0.0
      %6723 = vmatprep.subr.mxu0 0.0
      %6724 = vmatpush1.xpose.msra.mxu0 0.0
      %6725 = vmatprep.subr.mxu0 0.0
      %6726 = vmatpush1.xpose.msra.mxu0 0.0
      %6727 = vmatprep.subr.mxu0 0.0
      %6728 = vmatpush1.xpose.msra.mxu0 0.0
      %6729 = vmatprep.subr.mxu0 0.0
      %6730 = vmatpush1.xpose.msra.mxu0 0.0
      %6731 = vmatprep.subr.mxu0 0.0
      %6732 = vmatpush1.xpose.msra.mxu0 0.0
      %6733 = vmatprep.subr.mxu0 0.0
      %6734 = vmatpush1.xpose.msra.mxu0 0.0
      %6735 = vmatprep.subr.mxu0 0.0
      %6736 = vmatpush1.xpose.msra.mxu0 0.0
      %6737 = vmatprep.subr.mxu0 0.0
      %6738 = vmatpush1.xpose.msra.mxu0 0.0
      %6739 = vmatprep.subr.mxu0 0.0
      %6740 = vmatpush1.xpose.msra.mxu0 0.0
      %6741 = vmatprep.subr.mxu0 0.0
      %6742 = vmatpush1.xpose.msra.mxu0 0.0
      %6743 = vmatprep.subr.mxu0 0.0
      %6744 = vmatpush1.xpose.msra.mxu0 0.0
      %6745 = vmatprep.subr.mxu0 0.0
      %6746 = vmatpush1.xpose.msra.mxu0 0.0
      %6747 = vmatprep.subr.mxu0 0.0
      %6748 = vmatpush1.xpose.msra.mxu0 0.0
      %6749 = vmatprep.subr.mxu0 0.0
      %6750 = vmatpush1.xpose.msra.mxu0 0.0
      %6751 = vmatprep.subr.mxu0 0.0
      %6752 = vmatpush1.xpose.msra.mxu0 0.0
      %6753 = vmatprep.subr.mxu0 0.0
      %6754 = vmatpush1.xpose.msra.mxu0 0.0
      %6755 = vmatprep.subr.mxu0 0.0
      %6756 = vmatpush1.xpose.msra.mxu0 0.0
      %6757 = vmatprep.subr.mxu0 0.0
      %6758 = vmatpush1.xpose.msra.mxu0 0.0
      %6759 = vmatprep.subr.mxu0 0.0
      %6760 = vmatpush1.xpose.msra.mxu0 0.0
      %6761 = vmatprep.subr.mxu0 0.0
      %6762 = vmatpush1.xpose.msra.mxu0 0.0
      %6763 = vmatprep.subr.mxu0 0.0
      %6764 = vmatpush1.xpose.msra.mxu0 0.0
      %6765 = vmatprep.subr.mxu0 0.0
      %6766 = vmatpush1.xpose.msra.mxu0 0.0
      %6767 = vmatprep.subr.mxu0 0.0
      %6768 = vmatpush1.xpose.msra.mxu0 0.0
      %6769 = vmatprep.subr.mxu0 0.0
      %6770 = vmatpush1.xpose.msra.mxu0 0.0
      %6771 = vmatprep.subr.mxu0 0.0
      %6772 = vmatpush1.xpose.msra.mxu0 0.0
      %6773 = vmatprep.subr.mxu0 0.0
      %6774 = vmatpush1.xpose.msra.mxu0 0.0
      %6775 = vmatprep.subr.mxu0 0.0
      %6776 = vmatpush1.xpose.msra.mxu0 0.0
      %6777 = vmatprep.subr.mxu0 0.0
      %6778 = vmatpush1.xpose.msra.mxu0 0.0
      %6779 = vmatprep.subr.mxu0 0.0
      %6780 = vmatpush1.xpose.msra.mxu0 0.0
      %6781 = vmatprep.subr.mxu0 0.0
      %6782 = vmatpush1.xpose.msra.mxu0 0.0
      %6783 = vmatprep.mubr.f32.mxu0 0.0
      %6784 = vmatmul.mubr.f32.gmra.mrb[0].mxu0 %v6714
      %v6785 = vpop.f32.mrb[0].mxu0
      %v6786 = vadd.f32 0.0, %v6785
      %v6787 = vpop.f32.mrb[0].mxu0
      %6788 = vdwg.mxu0
      %v6789 = vmul.f32 %v6634, 0.35355338
      %v6790 = vmul.f32 %v6710, 0.35355338
      %v6791 = vmul.f32 %v6786, 0.35355338
      %v6792 = vadd.f32 %v6789, %v695
      %v6793 = vadd.f32 %v6790, %v696
      %v6794 = vadd.f32 %v6791, %v697
      %v6795 = vsel %vm1041, %v6792, -inf
      %6796 = vmax.xlane.f32.xlu0 %v6795
      %v6797 = vpop.xlane.xlu0 %6796
      %v6798 = vsel %vm1041, %v6793, -inf
      %6799 = vmax.xlane.f32.xlu0 %v6798
      %v6800 = vpop.xlane.xlu0 %6799
      %v6801 = vsel %vm1041, %v6794, -inf
      %6802 = vmax.xlane.f32.xlu0 %v6801
      %v6803 = vpop.xlane.xlu0 %6802
      %v6804 = vsub.f32 %v6792, %v6797
      %v6805 = vsub.f32 %v6793, %v6800
      %v6806 = vsub.f32 %v6794, %v6803
      %v6807 = vmul.f32 %v6804, 1.442695
      %v6808 = vpow.pop %v6807
      %v6809 = vmul.f32 %v6805, 1.442695
      %v6810 = vpow.pop %v6809
      %v6811 = vmul.f32 %v6806, 1.442695
      %v6812 = vpow.pop %v6811
      %v6813 = vsel %vm1041, %v6808, 0.0
      %6814 = vadd.xlane.f32.xlu0 %v6813
      %v6815 = vpop.xlane.xlu0 %6814
      %v6816 = vsel %vm1041, %v6810, 0.0
      %6817 = vadd.xlane.f32.xlu0 %v6816
      %v6818 = vpop.xlane.xlu0 %6817
      %v6819 = vsel %vm1041, %v6812, 0.0
      %6820 = vadd.xlane.f32.xlu0 %v6819
      %v6821 = vpop.xlane.xlu0 %6820
      %v6822 = vrcp.pop %v6815
      %v6823 = vrcp.pop %v6818
      %v6824 = vrcp.pop %v6821
      %v6825 = vmul.f32 %v6808, %v6822
      %v6826 = vmul.f32 %v6810, %v6823
      %v6827 = vmul.f32 %v6812, %v6824
      %v6829 = vsel %vm1041, %v6825, 0
      %6831 = vmatprep.subr.mxu0 0.0
      %6832 = vmatpush1.msra.mxu0 %v6548
      %6833 = vmatprep.subr.mxu0 0.0
      %6834 = vmatpush1.msra.mxu0 0.0
      %6835 = vmatprep.subr.mxu0 0.0
      %6836 = vmatpush1.msra.mxu0 0.0
      %6837 = vmatprep.subr.mxu0 0.0
      %6838 = vmatpush1.msra.mxu0 0.0
      %6839 = vmatprep.subr.mxu0 0.0
      %6840 = vmatpush1.msra.mxu0 0.0
      %6841 = vmatprep.subr.mxu0 0.0
      %6842 = vmatpush1.msra.mxu0 0.0
      %6843 = vmatprep.subr.mxu0 0.0
      %6844 = vmatpush1.msra.mxu0 0.0
      %6845 = vmatprep.subr.mxu0 0.0
      %6846 = vmatpush1.msra.mxu0 0.0
      %6847 = vmatprep.subr.mxu0 0.0
      %6848 = vmatpush1.msra.mxu0 0.0
      %6849 = vmatprep.subr.mxu0 0.0
      %6850 = vmatpush1.msra.mxu0 0.0
      %6851 = vmatprep.subr.mxu0 0.0
      %6852 = vmatpush1.msra.mxu0 0.0
      %6853 = vmatprep.subr.mxu0 0.0
      %6854 = vmatpush1.msra.mxu0 0.0
      %6855 = vmatprep.subr.mxu0 0.0
      %6856 = vmatpush1.msra.mxu0 0.0
      %6857 = vmatprep.subr.mxu0 0.0
      %6858 = vmatpush1.msra.mxu0 0.0
      %6859 = vmatprep.subr.mxu0 0.0
      %6860 = vmatpush1.msra.mxu0 0.0
      %6861 = vmatprep.subr.mxu0 0.0
      %6862 = vmatpush1.msra.mxu0 0.0
      %6863 = vmatprep.subr.mxu0 0.0
      %6864 = vmatpush1.msra.mxu0 0.0
      %6865 = vmatprep.subr.mxu0 0.0
      %6866 = vmatpush1.msra.mxu0 0.0
      %6867 = vmatprep.subr.mxu0 0.0
      %6868 = vmatpush1.msra.mxu0 0.0
      %6869 = vmatprep.subr.mxu0 0.0
      %6870 = vmatpush1.msra.mxu0 0.0
      %6871 = vmatprep.subr.mxu0 0.0
      %6872 = vmatpush1.msra.mxu0 0.0
      %6873 = vmatprep.subr.mxu0 0.0
      %6874 = vmatpush1.msra.mxu0 0.0
      %6875 = vmatprep.subr.mxu0 0.0
      %6876 = vmatpush1.msra.mxu0 0.0
      %6877 = vmatprep.subr.mxu0 0.0
      %6878 = vmatpush1.msra.mxu0 0.0
      %6879 = vmatprep.subr.mxu0 0.0
      %6880 = vmatpush1.msra.mxu0 0.0
      %6881 = vmatprep.subr.mxu0 0.0
      %6882 = vmatpush1.msra.mxu0 0.0
      %6883 = vmatprep.subr.mxu0 0.0
      %6884 = vmatpush1.msra.mxu0 0.0
      %6885 = vmatprep.subr.mxu0 0.0
      %6886 = vmatpush1.msra.mxu0 0.0
      %6887 = vmatprep.subr.mxu0 0.0
      %6888 = vmatpush1.msra.mxu0 0.0
      %6889 = vmatprep.subr.mxu0 0.0
      %6890 = vmatpush1.msra.mxu0 0.0
      %6891 = vmatprep.subr.mxu0 0.0
      %6892 = vmatpush1.msra.mxu0 0.0
      %6893 = vmatprep.subr.mxu0 0.0
      %6894 = vmatpush1.msra.mxu0 0.0
      %6895 = vmatprep.mubr.f32.mxu0 0.0
      %6896 = vmatmul.mubr.f32.gmra.mrb[0].mxu0 %v6829
      %v6897 = vpop.f32.mrb[0].mxu0
      %v6898 = vadd.f32 0.0, %v6897
      %v6899 = vpop.f32.mrb[0].mxu0
      %6900 = vdwg.mxu0
      %v6902 = vsel %vm1041, %v6826, 0
      %6904 = vmatprep.subr.mxu0 0.0
      %6905 = vmatpush1.msra.mxu0 %v6553
      %6906 = vmatprep.subr.mxu0 0.0
      %6907 = vmatpush1.msra.mxu0 0.0
      %6908 = vmatprep.subr.mxu0 0.0
      %6909 = vmatpush1.msra.mxu0 0.0
      %6910 = vmatprep.subr.mxu0 0.0
      %6911 = vmatpush1.msra.mxu0 0.0
      %6912 = vmatprep.subr.mxu0 0.0
      %6913 = vmatpush1.msra.mxu0 0.0
      %6914 = vmatprep.subr.mxu0 0.0
      %6915 = vmatpush1.msra.mxu0 0.0
      %6916 = vmatprep.subr.mxu0 0.0
      %6917 = vmatpush1.msra.mxu0 0.0
      %6918 = vmatprep.subr.mxu0 0.0
      %6919 = vmatpush1.msra.mxu0 0.0
      %6920 = vmatprep.subr.mxu0 0.0
      %6921 = vmatpush1.msra.mxu0 0.0
      %6922 = vmatprep.subr.mxu0 0.0
      %6923 = vmatpush1.msra.mxu0 0.0
      %6924 = vmatprep.subr.mxu0 0.0
      %6925 = vmatpush1.msra.mxu0 0.0
      %6926 = vmatprep.subr.mxu0 0.0
      %6927 = vmatpush1.msra.mxu0 0.0
      %6928 = vmatprep.subr.mxu0 0.0
      %6929 = vmatpush1.msra.mxu0 0.0
      %6930 = vmatprep.subr.mxu0 0.0
      %6931 = vmatpush1.msra.mxu0 0.0
      %6932 = vmatprep.subr.mxu0 0.0
      %6933 = vmatpush1.msra.mxu0 0.0
      %6934 = vmatprep.subr.mxu0 0.0
      %6935 = vmatpush1.msra.mxu0 0.0
      %6936 = vmatprep.subr.mxu0 0.0
      %6937 = vmatpush1.msra.mxu0 0.0
      %6938 = vmatprep.subr.mxu0 0.0
      %6939 = vmatpush1.msra.mxu0 0.0
      %6940 = vmatprep.subr.mxu0 0.0
      %6941 = vmatpush1.msra.mxu0 0.0
      %6942 = vmatprep.subr.mxu0 0.0
      %6943 = vmatpush1.msra.mxu0 0.0
      %6944 = vmatprep.subr.mxu0 0.0
      %6945 = vmatpush1.msra.mxu0 0.0
      %6946 = vmatprep.subr.mxu0 0.0
      %6947 = vmatpush1.msra.mxu0 0.0
      %6948 = vmatprep.subr.mxu0 0.0
      %6949 = vmatpush1.msra.mxu0 0.0
      %6950 = vmatprep.subr.mxu0 0.0
      %6951 = vmatpush1.msra.mxu0 0.0
      %6952 = vmatprep.subr.mxu0 0.0
      %6953 = vmatpush1.msra.mxu0 0.0
      %6954 = vmatprep.subr.mxu0 0.0
      %6955 = vmatpush1.msra.mxu0 0.0
      %6956 = vmatprep.subr.mxu0 0.0
      %6957 = vmatpush1.msra.mxu0 0.0
      %6958 = vmatprep.subr.mxu0 0.0
      %6959 = vmatpush1.msra.mxu0 0.0
      %6960 = vmatprep.subr.mxu0 0.0
      %6961 = vmatpush1.msra.mxu0 0.0
      %6962 = vmatprep.subr.mxu0 0.0
      %6963 = vmatpush1.msra.mxu0 0.0
      %6964 = vmatprep.subr.mxu0 0.0
      %6965 = vmatpush1.msra.mxu0 0.0
      %6966 = vmatprep.subr.mxu0 0.0
      %6967 = vmatpush1.msra.mxu0 0.0
      %6968 = vmatprep.mubr.f32.mxu0 0.0
      %6969 = vmatmul.mubr.f32.gmra.mrb[0].mxu0 %v6902
      %v6970 = vpop.f32.mrb[0].mxu0
      %v6971 = vadd.f32 0.0, %v6970
      %v6972 = vpop.f32.mrb[0].mxu0
      %6973 = vdwg.mxu0
      %v6975 = vsel %vm1041, %v6827, 0
      %6977 = vmatprep.subr.mxu0 0.0
      %6978 = vmatpush1.msra.mxu0 %v6558
      %6979 = vmatprep.subr.mxu0 0.0
      %6980 = vmatpush1.msra.mxu0 0.0
      %6981 = vmatprep.subr.mxu0 0.0
      %6982 = vmatpush1.msra.mxu0 0.0
      %6983 = vmatprep.subr.mxu0 0.0
      %6984 = vmatpush1.msra.mxu0 0.0
      %6985 = vmatprep.subr.mxu0 0.0
      %6986 = vmatpush1.msra.mxu0 0.0
      %6987 = vmatprep.subr.mxu0 0.0
      %6988 = vmatpush1.msra.mxu0 0.0
      %6989 = vmatprep.subr.mxu0 0.0
      %6990 = vmatpush1.msra.mxu0 0.0
      %6991 = vmatprep.subr.mxu0 0.0
      %6992 = vmatpush1.msra.mxu0 0.0
      %6993 = vmatprep.subr.mxu0 0.0
      %6994 = vmatpush1.msra.mxu0 0.0
      %6995 = vmatprep.subr.mxu0 0.0
      %6996 = vmatpush1.msra.mxu0 0.0
      %6997 = vmatprep.subr.mxu0 0.0
      %6998 = vmatpush1.msra.mxu0 0.0
      %6999 = vmatprep.subr.mxu0 0.0
      %7000 = vmatpush1.msra.mxu0 0.0
      %7001 = vmatprep.subr.mxu0 0.0
      %7002 = vmatpush1.msra.mxu0 0.0
      %7003 = vmatprep.subr.mxu0 0.0
      %7004 = vmatpush1.msra.mxu0 0.0
      %7005 = vmatprep.subr.mxu0 0.0
      %7006 = vmatpush1.msra.mxu0 0.0
      %7007 = vmatprep.subr.mxu0 0.0
      %7008 = vmatpush1.msra.mxu0 0.0
      %7009 = vmatprep.subr.mxu0 0.0
      %7010 = vmatpush1.msra.mxu0 0.0
      %7011 = vmatprep.subr.mxu0 0.0
      %7012 = vmatpush1.msra.mxu0 0.0
      %7013 = vmatprep.subr.mxu0 0.0
      %7014 = vmatpush1.msra.mxu0 0.0
      %7015 = vmatprep.subr.mxu0 0.0
      %7016 = vmatpush1.msra.mxu0 0.0
      %7017 = vmatprep.subr.mxu0 0.0
      %7018 = vmatpush1.msra.mxu0 0.0
      %7019 = vmatprep.subr.mxu0 0.0
      %7020 = vmatpush1.msra.mxu0 0.0
      %7021 = vmatprep.subr.mxu0 0.0
      %7022 = vmatpush1.msra.mxu0 0.0
      %7023 = vmatprep.subr.mxu0 0.0
      %7024 = vmatpush1.msra.mxu0 0.0
      %7025 = vmatprep.subr.mxu0 0.0
      %7026 = vmatpush1.msra.mxu0 0.0
      %7027 = vmatprep.subr.mxu0 0.0
      %7028 = vmatpush1.msra.mxu0 0.0
      %7029 = vmatprep.subr.mxu0 0.0
      %7030 = vmatpush1.msra.mxu0 0.0
      %7031 = vmatprep.subr.mxu0 0.0
      %7032 = vmatpush1.msra.mxu0 0.0
      %7033 = vmatprep.subr.mxu0 0.0
      %7034 = vmatpush1.msra.mxu0 0.0
      %7035 = vmatprep.subr.mxu0 0.0
      %7036 = vmatpush1.msra.mxu0 0.0
      %7037 = vmatprep.subr.mxu0 0.0
      %7038 = vmatpush1.msra.mxu0 0.0
      %7039 = vmatprep.subr.mxu0 0.0
      %7040 = vmatpush1.msra.mxu0 0.0
      %7041 = vmatprep.mubr.f32.mxu0 0.0
      %7042 = vmatmul.mubr.f32.gmra.mrb[0].mxu0 %v6975
      %v7043 = vpop.f32.mrb[0].mxu0
      %v7044 = vadd.f32 0.0, %v7043
      %v7045 = vpop.f32.mrb[0].mxu0
      %7046 = vdwg.mxu0
      %s7047 = scalar_lea.vmem %s11, 48
      %v7048 = vld [vmem:[%s7047] sm:$0xff]
      %v7050 = vsel %vm1041, %v6898, 0
      %v7053 = vsel %vm1041, %v6971, 0
      %v7056 = vsel %vm1041, %v7044, 0
      %7058 = vmatprep.subr.mxu0 0.0
      %7059 = vmatpush1.msra.mxu0 %v7048
      %7060 = vmatprep.subr.mxu0 0.0
      %7061 = vmatpush1.msra.mxu0 0.0
      %7062 = vmatprep.subr.mxu0 0.0
      %7063 = vmatpush1.msra.mxu0 0.0
      %7064 = vmatprep.subr.mxu0 0.0
      %7065 = vmatpush1.msra.mxu0 0.0
      %7066 = vmatprep.subr.mxu0 0.0
      %7067 = vmatpush1.msra.mxu0 0.0
      %7068 = vmatprep.subr.mxu0 0.0
      %7069 = vmatpush1.msra.mxu0 0.0
      %7070 = vmatprep.subr.mxu0 0.0
      %7071 = vmatpush1.msra.mxu0 0.0
      %7072 = vmatprep.subr.mxu0 0.0
      %7073 = vmatpush1.msra.mxu0 0.0
      %7074 = vmatprep.subr.mxu0 0.0
      %7075 = vmatpush1.msra.mxu0 0.0
      %7076 = vmatprep.subr.mxu0 0.0
      %7077 = vmatpush1.msra.mxu0 0.0
      %7078 = vmatprep.subr.mxu0 0.0
      %7079 = vmatpush1.msra.mxu0 0.0
      %7080 = vmatprep.subr.mxu0 0.0
      %7081 = vmatpush1.msra.mxu0 0.0
      %7082 = vmatprep.subr.mxu0 0.0
      %7083 = vmatpush1.msra.mxu0 0.0
      %7084 = vmatprep.subr.mxu0 0.0
      %7085 = vmatpush1.msra.mxu0 0.0
      %7086 = vmatprep.subr.mxu0 0.0
      %7087 = vmatpush1.msra.mxu0 0.0
      %7088 = vmatprep.subr.mxu0 0.0
      %7089 = vmatpush1.msra.mxu0 0.0
      %7090 = vmatprep.subr.mxu0 0.0
      %7091 = vmatpush1.msra.mxu0 0.0
      %7092 = vmatprep.subr.mxu0 0.0
      %7093 = vmatpush1.msra.mxu0 0.0
      %7094 = vmatprep.subr.mxu0 0.0
      %7095 = vmatpush1.msra.mxu0 0.0
      %7096 = vmatprep.subr.mxu0 0.0
      %7097 = vmatpush1.msra.mxu0 0.0
      %7098 = vmatprep.subr.mxu0 0.0
      %7099 = vmatpush1.msra.mxu0 0.0
      %7100 = vmatprep.subr.mxu0 0.0
      %7101 = vmatpush1.msra.mxu0 0.0
      %7102 = vmatprep.subr.mxu0 0.0
      %7103 = vmatpush1.msra.mxu0 0.0
      %7104 = vmatprep.subr.mxu0 0.0
      %7105 = vmatpush1.msra.mxu0 0.0
      %7106 = vmatprep.subr.mxu0 0.0
      %7107 = vmatpush1.msra.mxu0 0.0
      %7108 = vmatprep.subr.mxu0 0.0
      %7109 = vmatpush1.msra.mxu0 0.0
      %7110 = vmatprep.subr.mxu0 0.0
      %7111 = vmatpush1.msra.mxu0 0.0
      %7112 = vmatprep.subr.mxu0 0.0
      %7113 = vmatpush1.msra.mxu0 0.0
      %7114 = vmatprep.subr.mxu0 0.0
      %7115 = vmatpush1.msra.mxu0 0.0
      %7116 = vmatprep.subr.mxu0 0.0
      %7117 = vmatpush1.msra.mxu0 0.0
      %7118 = vmatprep.subr.mxu0 0.0
      %7119 = vmatpush1.msra.mxu0 0.0
      %7120 = vmatprep.subr.mxu0 0.0
      %7121 = vmatpush1.msra.mxu0 0.0
      %7122 = vmatprep.mubr.f32.mxu0 0.0
      %7123 = vmatmul.mubr.f32.gmra.mrb[0].mxu0 %v7050
      %v7124 = vpop.f32.mrb[0].mxu0
      %v7125 = vadd.f32 0.0, %v7124
      %v7126 = vpop.f32.mrb[0].mxu0
      %7127 = vmatprep.mubr.f32.mxu0 0.0
      %7128 = vmatmul.mubr.f32.gmra.mrb[0].mxu0 %v7053
      %v7129 = vpop.f32.mrb[0].mxu0
      %v7130 = vadd.f32 0.0, %v7129
      %v7131 = vpop.f32.mrb[0].mxu0
      %7132 = vmatprep.mubr.f32.mxu0 0.0
      %7133 = vmatmul.mubr.f32.gmra.mrb[0].mxu0 %v7056
      %v7134 = vpop.f32.mrb[0].mxu0
      %v7135 = vadd.f32 0.0, %v7134
      %v7136 = vpop.f32.mrb[0].mxu0
      %7137 = vdwg.mxu0
      %v7138 = vadd.f32 %v6269, %v7125
      %v7139 = vadd.f32 %v6274, %v7130
      %v7140 = vadd.f32 %v6279, %v7135
      %s7141 = scalar_lea.vmem %s5, 224
      %v7142 = vld [vmem:[%s7141] sm:$0xff]
      %v7143 = vld [vmem:[%s7141 + $0x8] sm:$0xff]
      %v7144 = vld [vmem:[%s7141 + $0x10] sm:$0xff]
      %v7145 = vld [vmem:[%s7141 + $0x18] sm:$0xff]
      %s7146 = scalar_lea.vmem %s6, 7
      %v7147 = vld [vmem:[%s7146] sm:$0x1]
      %v7149 = vlaneseq
      %v7150 = vshrl.u32 %v7149, 7
      %v7151 = vsub.s32 0, %v7150
      %v7152 = vrot.slane %v7147, %v7151
      %7154 = vmatprep.subr.mxu0 0.0
      %7155 = vmatpush1.msra.mxu0 %v7142
      %7156 = vmatprep.subr.mxu0 0.0
      %7157 = vmatpush1.msra.mxu0 %v7143
      %7158 = vmatprep.subr.mxu0 0.0
      %7159 = vmatpush1.msra.mxu0 %v7144
      %7160 = vmatprep.subr.mxu0 0.0
      %7161 = vmatpush1.msra.mxu0 %v7145
      %7162 = vmatprep.subr.mxu0 0.0
      %7163 = vmatpush1.msra.mxu0 0.0
      %7164 = vmatprep.subr.mxu0 0.0
      %7165 = vmatpush1.msra.mxu0 0.0
      %7166 = vmatprep.subr.mxu0 0.0
      %7167 = vmatpush1.msra.mxu0 0.0
      %7168 = vmatprep.subr.mxu0 0.0
      %7169 = vmatpush1.msra.mxu0 0.0
      %7170 = vmatprep.subr.mxu0 0.0
      %7171 = vmatpush1.msra.mxu0 0.0
      %7172 = vmatprep.subr.mxu0 0.0
      %7173 = vmatpush1.msra.mxu0 0.0
      %7174 = vmatprep.subr.mxu0 0.0
      %7175 = vmatpush1.msra.mxu0 0.0
      %7176 = vmatprep.subr.mxu0 0.0
      %7177 = vmatpush1.msra.mxu0 0.0
      %7178 = vmatprep.subr.mxu0 0.0
      %7179 = vmatpush1.msra.mxu0 0.0
      %7180 = vmatprep.subr.mxu0 0.0
      %7181 = vmatpush1.msra.mxu0 0.0
      %7182 = vmatprep.subr.mxu0 0.0
      %7183 = vmatpush1.msra.mxu0 0.0
      %7184 = vmatprep.subr.mxu0 0.0
      %7185 = vmatpush1.msra.mxu0 0.0
      %7186 = vmatprep.subr.mxu0 0.0
      %7187 = vmatpush1.msra.mxu0 0.0
      %7188 = vmatprep.subr.mxu0 0.0
      %7189 = vmatpush1.msra.mxu0 0.0
      %7190 = vmatprep.subr.mxu0 0.0
      %7191 = vmatpush1.msra.mxu0 0.0
      %7192 = vmatprep.subr.mxu0 0.0
      %7193 = vmatpush1.msra.mxu0 0.0
      %7194 = vmatprep.subr.mxu0 0.0
      %7195 = vmatpush1.msra.mxu0 0.0
      %7196 = vmatprep.subr.mxu0 0.0
      %7197 = vmatpush1.msra.mxu0 0.0
      %7198 = vmatprep.subr.mxu0 0.0
      %7199 = vmatpush1.msra.mxu0 0.0
      %7200 = vmatprep.subr.mxu0 0.0
      %7201 = vmatpush1.msra.mxu0 0.0
      %7202 = vmatprep.subr.mxu0 0.0
      %7203 = vmatpush1.msra.mxu0 0.0
      %7204 = vmatprep.subr.mxu0 0.0
      %7205 = vmatpush1.msra.mxu0 0.0
      %7206 = vmatprep.subr.mxu0 0.0
      %7207 = vmatpush1.msra.mxu0 0.0
      %7208 = vmatprep.subr.mxu0 0.0
      %7209 = vmatpush1.msra.mxu0 0.0
      %7210 = vmatprep.subr.mxu0 0.0
      %7211 = vmatpush1.msra.mxu0 0.0
      %7212 = vmatprep.subr.mxu0 0.0
      %7213 = vmatpush1.msra.mxu0 0.0
      %7214 = vmatprep.subr.mxu0 0.0
      %7215 = vmatpush1.msra.mxu0 0.0
      %7216 = vmatprep.subr.mxu0 0.0
      %7217 = vmatpush1.msra.mxu0 0.0
      %7218 = vmatprep.mubr.f32.mxu0 0.0
      %7219 = vmatmul.mubr.f32.gmra.mrb[0].mxu0 %v4575
      %v7220 = vpop.f32.mrb[0].mxu0
      %v7221 = vadd.f32 %v7152, %v7220
      %v7222 = vpop.f32.mrb[0].mxu0
      %7223 = vmatprep.mubr.f32.mxu0 0.0
      %7224 = vmatmul.mubr.f32.gmra.mrb[0].mxu0 %v4578
      %v7225 = vpop.f32.mrb[0].mxu0
      %v7226 = vadd.f32 %v7152, %v7225
      %v7227 = vpop.f32.mrb[0].mxu0
      %7228 = vmatprep.mubr.f32.mxu0 0.0
      %7229 = vmatmul.mubr.f32.gmra.mrb[0].mxu0 %v4581
      %v7230 = vpop.f32.mrb[0].mxu0
      %v7231 = vadd.f32 %v7152, %v7230
      %v7232 = vpop.f32.mrb[0].mxu0
      %7233 = vdwg.mxu0
      %s7234 = scalar_lea.vmem %s7, 224
      %v7235 = vld [vmem:[%s7234] sm:$0xff]
      %v7236 = vld [vmem:[%s7234 + $0x8] sm:$0xff]
      %v7237 = vld [vmem:[%s7234 + $0x10] sm:$0xff]
      %v7238 = vld [vmem:[%s7234 + $0x18] sm:$0xff]
      %s7239 = scalar_lea.vmem %s8, 7
      %v7240 = vld [vmem:[%s7239] sm:$0x1]
      %v7242 = vlaneseq
      %v7243 = vshrl.u32 %v7242, 7
      %v7244 = vsub.s32 0, %v7243
      %v7245 = vrot.slane %v7240, %v7244
      %7247 = vmatprep.subr.mxu0 0.0
      %7248 = vmatpush1.msra.mxu0 %v7235
      %7249 = vmatprep.subr.mxu0 0.0
      %7250 = vmatpush1.msra.mxu0 %v7236
      %7251 = vmatprep.subr.mxu0 0.0
      %7252 = vmatpush1.msra.mxu0 %v7237
      %7253 = vmatprep.subr.mxu0 0.0
      %7254 = vmatpush1.msra.mxu0 %v7238
      %7255 = vmatprep.subr.mxu0 0.0
      %7256 = vmatpush1.msra.mxu0 0.0
      %7257 = vmatprep.subr.mxu0 0.0
      %7258 = vmatpush1.msra.mxu0 0.0
      %7259 = vmatprep.subr.mxu0 0.0
      %7260 = vmatpush1.msra.mxu0 0.0
      %7261 = vmatprep.subr.mxu0 0.0
      %7262 = vmatpush1.msra.mxu0 0.0
      %7263 = vmatprep.subr.mxu0 0.0
      %7264 = vmatpush1.msra.mxu0 0.0
      %7265 = vmatprep.subr.mxu0 0.0
      %7266 = vmatpush1.msra.mxu0 0.0
      %7267 = vmatprep.subr.mxu0 0.0
      %7268 = vmatpush1.msra.mxu0 0.0
      %7269 = vmatprep.subr.mxu0 0.0
      %7270 = vmatpush1.msra.mxu0 0.0
      %7271 = vmatprep.subr.mxu0 0.0
      %7272 = vmatpush1.msra.mxu0 0.0
      %7273 = vmatprep.subr.mxu0 0.0
      %7274 = vmatpush1.msra.mxu0 0.0
      %7275 = vmatprep.subr.mxu0 0.0
      %7276 = vmatpush1.msra.mxu0 0.0
      %7277 = vmatprep.subr.mxu0 0.0
      %7278 = vmatpush1.msra.mxu0 0.0
      %7279 = vmatprep.subr.mxu0 0.0
      %7280 = vmatpush1.msra.mxu0 0.0
      %7281 = vmatprep.subr.mxu0 0.0
      %7282 = vmatpush1.msra.mxu0 0.0
      %7283 = vmatprep.subr.mxu0 0.0
      %7284 = vmatpush1.msra.mxu0 0.0
      %7285 = vmatprep.subr.mxu0 0.0
      %7286 = vmatpush1.msra.mxu0 0.0
      %7287 = vmatprep.subr.mxu0 0.0
      %7288 = vmatpush1.msra.mxu0 0.0
      %7289 = vmatprep.subr.mxu0 0.0
      %7290 = vmatpush1.msra.mxu0 0.0
      %7291 = vmatprep.subr.mxu0 0.0
      %7292 = vmatpush1.msra.mxu0 0.0
      %7293 = vmatprep.subr.mxu0 0.0
      %7294 = vmatpush1.msra.mxu0 0.0
      %7295 = vmatprep.subr.mxu0 0.0
      %7296 = vmatpush1.msra.mxu0 0.0
      %7297 = vmatprep.subr.mxu0 0.0
      %7298 = vmatpush1.msra.mxu0 0.0
      %7299 = vmatprep.subr.mxu0 0.0
      %7300 = vmatpush1.msra.mxu0 0.0
      %7301 = vmatprep.subr.mxu0 0.0
      %7302 = vmatpush1.msra.mxu0 0.0
      %7303 = vmatprep.subr.mxu0 0.0
      %7304 = vmatpush1.msra.mxu0 0.0
      %7305 = vmatprep.subr.mxu0 0.0
      %7306 = vmatpush1.msra.mxu0 0.0
      %7307 = vmatprep.subr.mxu0 0.0
      %7308 = vmatpush1.msra.mxu0 0.0
      %7309 = vmatprep.subr.mxu0 0.0
      %7310 = vmatpush1.msra.mxu0 0.0
      %7311 = vmatprep.mubr.f32.mxu0 0.0
      %7312 = vmatmul.mubr.f32.gmra.mrb[0].mxu0 %v4575
      %v7313 = vpop.f32.mrb[0].mxu0
      %v7314 = vadd.f32 %v7245, %v7313
      %v7315 = vpop.f32.mrb[0].mxu0
      %7316 = vmatprep.mubr.f32.mxu0 0.0
      %7317 = vmatmul.mubr.f32.gmra.mrb[0].mxu0 %v4578
      %v7318 = vpop.f32.mrb[0].mxu0
      %v7319 = vadd.f32 %v7245, %v7318
      %v7320 = vpop.f32.mrb[0].mxu0
      %7321 = vmatprep.mubr.f32.mxu0 0.0
      %7322 = vmatmul.mubr.f32.gmra.mrb[0].mxu0 %v4581
      %v7323 = vpop.f32.mrb[0].mxu0
      %v7324 = vadd.f32 %v7245, %v7323
      %v7325 = vpop.f32.mrb[0].mxu0
      %7326 = vdwg.mxu0
      %s7327 = scalar_lea.vmem %s9, 224
      %v7328 = vld [vmem:[%s7327] sm:$0xff]
      %v7329 = vld [vmem:[%s7327 + $0x8] sm:$0xff]
      %v7330 = vld [vmem:[%s7327 + $0x10] sm:$0xff]
      %v7331 = vld [vmem:[%s7327 + $0x18] sm:$0xff]
      %s7332 = scalar_lea.vmem %s10, 7
      %v7333 = vld [vmem:[%s7332] sm:$0x1]
      %v7335 = vlaneseq
      %v7336 = vshrl.u32 %v7335, 7
      %v7337 = vsub.s32 0, %v7336
      %v7338 = vrot.slane %v7333, %v7337
      %7340 = vmatprep.subr.mxu0 0.0
      %7341 = vmatpush1.msra.mxu0 %v7328
      %7342 = vmatprep.subr.mxu0 0.0
      %7343 = vmatpush1.msra.mxu0 %v7329
      %7344 = vmatprep.subr.mxu0 0.0
      %7345 = vmatpush1.msra.mxu0 %v7330
      %7346 = vmatprep.subr.mxu0 0.0
      %7347 = vmatpush1.msra.mxu0 %v7331
      %7348 = vmatprep.subr.mxu0 0.0
      %7349 = vmatpush1.msra.mxu0 0.0
      %7350 = vmatprep.subr.mxu0 0.0
      %7351 = vmatpush1.msra.mxu0 0.0
      %7352 = vmatprep.subr.mxu0 0.0
      %7353 = vmatpush1.msra.mxu0 0.0
      %7354 = vmatprep.subr.mxu0 0.0
      %7355 = vmatpush1.msra.mxu0 0.0
      %7356 = vmatprep.subr.mxu0 0.0
      %7357 = vmatpush1.msra.mxu0 0.0
      %7358 = vmatprep.subr.mxu0 0.0
      %7359 = vmatpush1.msra.mxu0 0.0
      %7360 = vmatprep.subr.mxu0 0.0
      %7361 = vmatpush1.msra.mxu0 0.0
      %7362 = vmatprep.subr.mxu0 0.0
      %7363 = vmatpush1.msra.mxu0 0.0
      %7364 = vmatprep.subr.mxu0 0.0
      %7365 = vmatpush1.msra.mxu0 0.0
      %7366 = vmatprep.subr.mxu0 0.0
      %7367 = vmatpush1.msra.mxu0 0.0
      %7368 = vmatprep.subr.mxu0 0.0
      %7369 = vmatpush1.msra.mxu0 0.0
      %7370 = vmatprep.subr.mxu0 0.0
      %7371 = vmatpush1.msra.mxu0 0.0
      %7372 = vmatprep.subr.mxu0 0.0
      %7373 = vmatpush1.msra.mxu0 0.0
      %7374 = vmatprep.subr.mxu0 0.0
      %7375 = vmatpush1.msra.mxu0 0.0
      %7376 = vmatprep.subr.mxu0 0.0
      %7377 = vmatpush1.msra.mxu0 0.0
      %7378 = vmatprep.subr.mxu0 0.0
      %7379 = vmatpush1.msra.mxu0 0.0
      %7380 = vmatprep.subr.mxu0 0.0
      %7381 = vmatpush1.msra.mxu0 0.0
      %7382 = vmatprep.subr.mxu0 0.0
      %7383 = vmatpush1.msra.mxu0 0.0
      %7384 = vmatprep.subr.mxu0 0.0
      %7385 = vmatpush1.msra.mxu0 0.0
      %7386 = vmatprep.subr.mxu0 0.0
      %7387 = vmatpush1.msra.mxu0 0.0
      %7388 = vmatprep.subr.mxu0 0.0
      %7389 = vmatpush1.msra.mxu0 0.0
      %7390 = vmatprep.subr.mxu0 0.0
      %7391 = vmatpush1.msra.mxu0 0.0
      %7392 = vmatprep.subr.mxu0 0.0
      %7393 = vmatpush1.msra.mxu0 0.0
      %7394 = vmatprep.subr.mxu0 0.0
      %7395 = vmatpush1.msra.mxu0 0.0
      %7396 = vmatprep.subr.mxu0 0.0
      %7397 = vmatpush1.msra.mxu0 0.0
      %7398 = vmatprep.subr.mxu0 0.0
      %7399 = vmatpush1.msra.mxu0 0.0
      %7400 = vmatprep.subr.mxu0 0.0
      %7401 = vmatpush1.msra.mxu0 0.0
      %7402 = vmatprep.subr.mxu0 0.0
      %7403 = vmatpush1.msra.mxu0 0.0
      %7404 = vmatprep.mubr.f32.mxu0 0.0
      %7405 = vmatmul.mubr.f32.gmra.mrb[0].mxu0 %v4575
      %v7406 = vpop.f32.mrb[0].mxu0
      %v7407 = vadd.f32 %v7338, %v7406
      %v7408 = vpop.f32.mrb[0].mxu0
      %7409 = vmatprep.mubr.f32.mxu0 0.0
      %7410 = vmatmul.mubr.f32.gmra.mrb[0].mxu0 %v4578
      %v7411 = vpop.f32.mrb[0].mxu0
      %v7412 = vadd.f32 %v7338, %v7411
      %v7413 = vpop.f32.mrb[0].mxu0
      %7414 = vmatprep.mubr.f32.mxu0 0.0
      %7415 = vmatmul.mubr.f32.gmra.mrb[0].mxu0 %v4581
      %v7416 = vpop.f32.mrb[0].mxu0
      %v7417 = vadd.f32 %v7338, %v7416
      %v7418 = vpop.f32.mrb[0].mxu0
      %7419 = vdwg.mxu0
      %v7421 = vsel %vm1041, %v7221, 0
      %v7424 = vsel %vm1041, %v7314, 0
      %7426 = vmatprep.subr.mxu0 0.0
      %7427 = vmatpush1.xpose.msra.mxu0 %v7424
      %7428 = vmatprep.subr.mxu0 0.0
      %7429 = vmatpush1.xpose.msra.mxu0 0.0
      %7430 = vmatprep.subr.mxu0 0.0
      %7431 = vmatpush1.xpose.msra.mxu0 0.0
      %7432 = vmatprep.subr.mxu0 0.0
      %7433 = vmatpush1.xpose.msra.mxu0 0.0
      %7434 = vmatprep.subr.mxu0 0.0
      %7435 = vmatpush1.xpose.msra.mxu0 0.0
      %7436 = vmatprep.subr.mxu0 0.0
      %7437 = vmatpush1.xpose.msra.mxu0 0.0
      %7438 = vmatprep.subr.mxu0 0.0
      %7439 = vmatpush1.xpose.msra.mxu0 0.0
      %7440 = vmatprep.subr.mxu0 0.0
      %7441 = vmatpush1.xpose.msra.mxu0 0.0
      %7442 = vmatprep.subr.mxu0 0.0
      %7443 = vmatpush1.xpose.msra.mxu0 0.0
      %7444 = vmatprep.subr.mxu0 0.0
      %7445 = vmatpush1.xpose.msra.mxu0 0.0
      %7446 = vmatprep.subr.mxu0 0.0
      %7447 = vmatpush1.xpose.msra.mxu0 0.0
      %7448 = vmatprep.subr.mxu0 0.0
      %7449 = vmatpush1.xpose.msra.mxu0 0.0
      %7450 = vmatprep.subr.mxu0 0.0
      %7451 = vmatpush1.xpose.msra.mxu0 0.0
      %7452 = vmatprep.subr.mxu0 0.0
      %7453 = vmatpush1.xpose.msra.mxu0 0.0
      %7454 = vmatprep.subr.mxu0 0.0
      %7455 = vmatpush1.xpose.msra.mxu0 0.0
      %7456 = vmatprep.subr.mxu0 0.0
      %7457 = vmatpush1.xpose.msra.mxu0 0.0
      %7458 = vmatprep.subr.mxu0 0.0
      %7459 = vmatpush1.xpose.msra.mxu0 0.0
      %7460 = vmatprep.subr.mxu0 0.0
      %7461 = vmatpush1.xpose.msra.mxu0 0.0
      %7462 = vmatprep.subr.mxu0 0.0
      %7463 = vmatpush1.xpose.msra.mxu0 0.0
      %7464 = vmatprep.subr.mxu0 0.0
      %7465 = vmatpush1.xpose.msra.mxu0 0.0
      %7466 = vmatprep.subr.mxu0 0.0
      %7467 = vmatpush1.xpose.msra.mxu0 0.0
      %7468 = vmatprep.subr.mxu0 0.0
      %7469 = vmatpush1.xpose.msra.mxu0 0.0
      %7470 = vmatprep.subr.mxu0 0.0
      %7471 = vmatpush1.xpose.msra.mxu0 0.0
      %7472 = vmatprep.subr.mxu0 0.0
      %7473 = vmatpush1.xpose.msra.mxu0 0.0
      %7474 = vmatprep.subr.mxu0 0.0
      %7475 = vmatpush1.xpose.msra.mxu0 0.0
      %7476 = vmatprep.subr.mxu0 0.0
      %7477 = vmatpush1.xpose.msra.mxu0 0.0
      %7478 = vmatprep.subr.mxu0 0.0
      %7479 = vmatpush1.xpose.msra.mxu0 0.0
      %7480 = vmatprep.subr.mxu0 0.0
      %7481 = vmatpush1.xpose.msra.mxu0 0.0
      %7482 = vmatprep.subr.mxu0 0.0
      %7483 = vmatpush1.xpose.msra.mxu0 0.0
      %7484 = vmatprep.subr.mxu0 0.0
      %7485 = vmatpush1.xpose.msra.mxu0 0.0
      %7486 = vmatprep.subr.mxu0 0.0
      %7487 = vmatpush1.xpose.msra.mxu0 0.0
      %7488 = vmatprep.subr.mxu0 0.0
      %7489 = vmatpush1.xpose.msra.mxu0 0.0
      %7490 = vmatprep.mubr.f32.mxu0 0.0
      %7491 = vmatmul.mubr.f32.gmra.mrb[0].mxu0 %v7421
      %v7492 = vpop.f32.mrb[0].mxu0
      %v7493 = vadd.f32 0.0, %v7492
      %v7494 = vpop.f32.mrb[0].mxu0
      %7495 = vdwg.mxu0
      %v7497 = vsel %vm1041, %v7226, 0
      %v7500 = vsel %vm1041, %v7319, 0
      %7502 = vmatprep.subr.mxu0 0.0
      %7503 = vmatpush1.xpose.msra.mxu0 %v7500
      %7504 = vmatprep.subr.mxu0 0.0
      %7505 = vmatpush1.xpose.msra.mxu0 0.0
      %7506 = vmatprep.subr.mxu0 0.0
      %7507 = vmatpush1.xpose.msra.mxu0 0.0
      %7508 = vmatprep.subr.mxu0 0.0
      %7509 = vmatpush1.xpose.msra.mxu0 0.0
      %7510 = vmatprep.subr.mxu0 0.0
      %7511 = vmatpush1.xpose.msra.mxu0 0.0
      %7512 = vmatprep.subr.mxu0 0.0
      %7513 = vmatpush1.xpose.msra.mxu0 0.0
      %7514 = vmatprep.subr.mxu0 0.0
      %7515 = vmatpush1.xpose.msra.mxu0 0.0
      %7516 = vmatprep.subr.mxu0 0.0
      %7517 = vmatpush1.xpose.msra.mxu0 0.0
      %7518 = vmatprep.subr.mxu0 0.0
      %7519 = vmatpush1.xpose.msra.mxu0 0.0
      %7520 = vmatprep.subr.mxu0 0.0
      %7521 = vmatpush1.xpose.msra.mxu0 0.0
      %7522 = vmatprep.subr.mxu0 0.0
      %7523 = vmatpush1.xpose.msra.mxu0 0.0
      %7524 = vmatprep.subr.mxu0 0.0
      %7525 = vmatpush1.xpose.msra.mxu0 0.0
      %7526 = vmatprep.subr.mxu0 0.0
      %7527 = vmatpush1.xpose.msra.mxu0 0.0
      %7528 = vmatprep.subr.mxu0 0.0
      %7529 = vmatpush1.xpose.msra.mxu0 0.0
      %7530 = vmatprep.subr.mxu0 0.0
      %7531 = vmatpush1.xpose.msra.mxu0 0.0
      %7532 = vmatprep.subr.mxu0 0.0
      %7533 = vmatpush1.xpose.msra.mxu0 0.0
      %7534 = vmatprep.subr.mxu0 0.0
      %7535 = vmatpush1.xpose.msra.mxu0 0.0
      %7536 = vmatprep.subr.mxu0 0.0
      %7537 = vmatpush1.xpose.msra.mxu0 0.0
      %7538 = vmatprep.subr.mxu0 0.0
      %7539 = vmatpush1.xpose.msra.mxu0 0.0
      %7540 = vmatprep.subr.mxu0 0.0
      %7541 = vmatpush1.xpose.msra.mxu0 0.0
      %7542 = vmatprep.subr.mxu0 0.0
      %7543 = vmatpush1.xpose.msra.mxu0 0.0
      %7544 = vmatprep.subr.mxu0 0.0
      %7545 = vmatpush1.xpose.msra.mxu0 0.0
      %7546 = vmatprep.subr.mxu0 0.0
      %7547 = vmatpush1.xpose.msra.mxu0 0.0
      %7548 = vmatprep.subr.mxu0 0.0
      %7549 = vmatpush1.xpose.msra.mxu0 0.0
      %7550 = vmatprep.subr.mxu0 0.0
      %7551 = vmatpush1.xpose.msra.mxu0 0.0
      %7552 = vmatprep.subr.mxu0 0.0
      %7553 = vmatpush1.xpose.msra.mxu0 0.0
      %7554 = vmatprep.subr.mxu0 0.0
      %7555 = vmatpush1.xpose.msra.mxu0 0.0
      %7556 = vmatprep.subr.mxu0 0.0
      %7557 = vmatpush1.xpose.msra.mxu0 0.0
      %7558 = vmatprep.subr.mxu0 0.0
      %7559 = vmatpush1.xpose.msra.mxu0 0.0
      %7560 = vmatprep.subr.mxu0 0.0
      %7561 = vmatpush1.xpose.msra.mxu0 0.0
      %7562 = vmatprep.subr.mxu0 0.0
      %7563 = vmatpush1.xpose.msra.mxu0 0.0
      %7564 = vmatprep.subr.mxu0 0.0
      %7565 = vmatpush1.xpose.msra.mxu0 0.0
      %7566 = vmatprep.mubr.f32.mxu0 0.0
      %7567 = vmatmul.mubr.f32.gmra.mrb[0].mxu0 %v7497
      %v7568 = vpop.f32.mrb[0].mxu0
      %v7569 = vadd.f32 0.0, %v7568
      %v7570 = vpop.f32.mrb[0].mxu0
      %7571 = vdwg.mxu0
      %v7573 = vsel %vm1041, %v7231, 0
      %v7576 = vsel %vm1041, %v7324, 0
      %7578 = vmatprep.subr.mxu0 0.0
      %7579 = vmatpush1.xpose.msra.mxu0 %v7576
      %7580 = vmatprep.subr.mxu0 0.0
      %7581 = vmatpush1.xpose.msra.mxu0 0.0
      %7582 = vmatprep.subr.mxu0 0.0
      %7583 = vmatpush1.xpose.msra.mxu0 0.0
      %7584 = vmatprep.subr.mxu0 0.0
      %7585 = vmatpush1.xpose.msra.mxu0 0.0
      %7586 = vmatprep.subr.mxu0 0.0
      %7587 = vmatpush1.xpose.msra.mxu0 0.0
      %7588 = vmatprep.subr.mxu0 0.0
      %7589 = vmatpush1.xpose.msra.mxu0 0.0
      %7590 = vmatprep.subr.mxu0 0.0
      %7591 = vmatpush1.xpose.msra.mxu0 0.0
      %7592 = vmatprep.subr.mxu0 0.0
      %7593 = vmatpush1.xpose.msra.mxu0 0.0
      %7594 = vmatprep.subr.mxu0 0.0
      %7595 = vmatpush1.xpose.msra.mxu0 0.0
      %7596 = vmatprep.subr.mxu0 0.0
      %7597 = vmatpush1.xpose.msra.mxu0 0.0
      %7598 = vmatprep.subr.mxu0 0.0
      %7599 = vmatpush1.xpose.msra.mxu0 0.0
      %7600 = vmatprep.subr.mxu0 0.0
      %7601 = vmatpush1.xpose.msra.mxu0 0.0
      %7602 = vmatprep.subr.mxu0 0.0
      %7603 = vmatpush1.xpose.msra.mxu0 0.0
      %7604 = vmatprep.subr.mxu0 0.0
      %7605 = vmatpush1.xpose.msra.mxu0 0.0
      %7606 = vmatprep.subr.mxu0 0.0
      %7607 = vmatpush1.xpose.msra.mxu0 0.0
      %7608 = vmatprep.subr.mxu0 0.0
      %7609 = vmatpush1.xpose.msra.mxu0 0.0
      %7610 = vmatprep.subr.mxu0 0.0
      %7611 = vmatpush1.xpose.msra.mxu0 0.0
      %7612 = vmatprep.subr.mxu0 0.0
      %7613 = vmatpush1.xpose.msra.mxu0 0.0
      %7614 = vmatprep.subr.mxu0 0.0
      %7615 = vmatpush1.xpose.msra.mxu0 0.0
      %7616 = vmatprep.subr.mxu0 0.0
      %7617 = vmatpush1.xpose.msra.mxu0 0.0
      %7618 = vmatprep.subr.mxu0 0.0
      %7619 = vmatpush1.xpose.msra.mxu0 0.0
      %7620 = vmatprep.subr.mxu0 0.0
      %7621 = vmatpush1.xpose.msra.mxu0 0.0
      %7622 = vmatprep.subr.mxu0 0.0
      %7623 = vmatpush1.xpose.msra.mxu0 0.0
      %7624 = vmatprep.subr.mxu0 0.0
      %7625 = vmatpush1.xpose.msra.mxu0 0.0
      %7626 = vmatprep.subr.mxu0 0.0
      %7627 = vmatpush1.xpose.msra.mxu0 0.0
      %7628 = vmatprep.subr.mxu0 0.0
      %7629 = vmatpush1.xpose.msra.mxu0 0.0
      %7630 = vmatprep.subr.mxu0 0.0
      %7631 = vmatpush1.xpose.msra.mxu0 0.0
      %7632 = vmatprep.subr.mxu0 0.0
      %7633 = vmatpush1.xpose.msra.mxu0 0.0
      %7634 = vmatprep.subr.mxu0 0.0
      %7635 = vmatpush1.xpose.msra.mxu0 0.0
      %7636 = vmatprep.subr.mxu0 0.0
      %7637 = vmatpush1.xpose.msra.mxu0 0.0
      %7638 = vmatprep.subr.mxu0 0.0
      %7639 = vmatpush1.xpose.msra.mxu0 0.0
      %7640 = vmatprep.subr.mxu0 0.0
      %7641 = vmatpush1.xpose.msra.mxu0 0.0
      %7642 = vmatprep.mubr.f32.mxu0 0.0
      %7643 = vmatmul.mubr.f32.gmra.mrb[0].mxu0 %v7573
      %v7644 = vpop.f32.mrb[0].mxu0
      %v7645 = vadd.f32 0.0, %v7644
      %v7646 = vpop.f32.mrb[0].mxu0
      %7647 = vdwg.mxu0
      %v7648 = vmul.f32 %v7493, 0.35355338
      %v7649 = vmul.f32 %v7569, 0.35355338
      %v7650 = vmul.f32 %v7645, 0.35355338
      %v7651 = vadd.f32 %v7648, %v695
      %v7652 = vadd.f32 %v7649, %v696
      %v7653 = vadd.f32 %v7650, %v697
      %v7654 = vsel %vm1041, %v7651, -inf
      %7655 = vmax.xlane.f32.xlu0 %v7654
      %v7656 = vpop.xlane.xlu0 %7655
      %v7657 = vsel %vm1041, %v7652, -inf
      %7658 = vmax.xlane.f32.xlu0 %v7657
      %v7659 = vpop.xlane.xlu0 %7658
      %v7660 = vsel %vm1041, %v7653, -inf
      %7661 = vmax.xlane.f32.xlu0 %v7660
      %v7662 = vpop.xlane.xlu0 %7661
      %v7663 = vsub.f32 %v7651, %v7656
      %v7664 = vsub.f32 %v7652, %v7659
      %v7665 = vsub.f32 %v7653, %v7662
      %v7666 = vmul.f32 %v7663, 1.442695
      %v7667 = vpow.pop %v7666
      %v7668 = vmul.f32 %v7664, 1.442695
      %v7669 = vpow.pop %v7668
      %v7670 = vmul.f32 %v7665, 1.442695
      %v7671 = vpow.pop %v7670
      %v7672 = vsel %vm1041, %v7667, 0.0
      %7673 = vadd.xlane.f32.xlu0 %v7672
      %v7674 = vpop.xlane.xlu0 %7673
      %v7675 = vsel %vm1041, %v7669, 0.0
      %7676 = vadd.xlane.f32.xlu0 %v7675
      %v7677 = vpop.xlane.xlu0 %7676
      %v7678 = vsel %vm1041, %v7671, 0.0
      %7679 = vadd.xlane.f32.xlu0 %v7678
      %v7680 = vpop.xlane.xlu0 %7679
      %v7681 = vrcp.pop %v7674
      %v7682 = vrcp.pop %v7677
      %v7683 = vrcp.pop %v7680
      %v7684 = vmul.f32 %v7667, %v7681
      %v7685 = vmul.f32 %v7669, %v7682
      %v7686 = vmul.f32 %v7671, %v7683
      %v7688 = vsel %vm1041, %v7684, 0
      %7690 = vmatprep.subr.mxu0 0.0
      %7691 = vmatpush1.msra.mxu0 %v7407
      %7692 = vmatprep.subr.mxu0 0.0
      %7693 = vmatpush1.msra.mxu0 0.0
      %7694 = vmatprep.subr.mxu0 0.0
      %7695 = vmatpush1.msra.mxu0 0.0
      %7696 = vmatprep.subr.mxu0 0.0
      %7697 = vmatpush1.msra.mxu0 0.0
      %7698 = vmatprep.subr.mxu0 0.0
      %7699 = vmatpush1.msra.mxu0 0.0
      %7700 = vmatprep.subr.mxu0 0.0
      %7701 = vmatpush1.msra.mxu0 0.0
      %7702 = vmatprep.subr.mxu0 0.0
      %7703 = vmatpush1.msra.mxu0 0.0
      %7704 = vmatprep.subr.mxu0 0.0
      %7705 = vmatpush1.msra.mxu0 0.0
      %7706 = vmatprep.subr.mxu0 0.0
      %7707 = vmatpush1.msra.mxu0 0.0
      %7708 = vmatprep.subr.mxu0 0.0
      %7709 = vmatpush1.msra.mxu0 0.0
      %7710 = vmatprep.subr.mxu0 0.0
      %7711 = vmatpush1.msra.mxu0 0.0
      %7712 = vmatprep.subr.mxu0 0.0
      %7713 = vmatpush1.msra.mxu0 0.0
      %7714 = vmatprep.subr.mxu0 0.0
      %7715 = vmatpush1.msra.mxu0 0.0
      %7716 = vmatprep.subr.mxu0 0.0
      %7717 = vmatpush1.msra.mxu0 0.0
      %7718 = vmatprep.subr.mxu0 0.0
      %7719 = vmatpush1.msra.mxu0 0.0
      %7720 = vmatprep.subr.mxu0 0.0
      %7721 = vmatpush1.msra.mxu0 0.0
      %7722 = vmatprep.subr.mxu0 0.0
      %7723 = vmatpush1.msra.mxu0 0.0
      %7724 = vmatprep.subr.mxu0 0.0
      %7725 = vmatpush1.msra.mxu0 0.0
      %7726 = vmatprep.subr.mxu0 0.0
      %7727 = vmatpush1.msra.mxu0 0.0
      %7728 = vmatprep.subr.mxu0 0.0
      %7729 = vmatpush1.msra.mxu0 0.0
      %7730 = vmatprep.subr.mxu0 0.0
      %7731 = vmatpush1.msra.mxu0 0.0
      %7732 = vmatprep.subr.mxu0 0.0
      %7733 = vmatpush1.msra.mxu0 0.0
      %7734 = vmatprep.subr.mxu0 0.0
      %7735 = vmatpush1.msra.mxu0 0.0
      %7736 = vmatprep.subr.mxu0 0.0
      %7737 = vmatpush1.msra.mxu0 0.0
      %7738 = vmatprep.subr.mxu0 0.0
      %7739 = vmatpush1.msra.mxu0 0.0
      %7740 = vmatprep.subr.mxu0 0.0
      %7741 = vmatpush1.msra.mxu0 0.0
      %7742 = vmatprep.subr.mxu0 0.0
      %7743 = vmatpush1.msra.mxu0 0.0
      %7744 = vmatprep.subr.mxu0 0.0
      %7745 = vmatpush1.msra.mxu0 0.0
      %7746 = vmatprep.subr.mxu0 0.0
      %7747 = vmatpush1.msra.mxu0 0.0
      %7748 = vmatprep.subr.mxu0 0.0
      %7749 = vmatpush1.msra.mxu0 0.0
      %7750 = vmatprep.subr.mxu0 0.0
      %7751 = vmatpush1.msra.mxu0 0.0
      %7752 = vmatprep.subr.mxu0 0.0
      %7753 = vmatpush1.msra.mxu0 0.0
      %7754 = vmatprep.mubr.f32.mxu0 0.0
      %7755 = vmatmul.mubr.f32.gmra.mrb[0].mxu0 %v7688
      %v7756 = vpop.f32.mrb[0].mxu0
      %v7757 = vadd.f32 0.0, %v7756
      %v7758 = vpop.f32.mrb[0].mxu0
      %7759 = vdwg.mxu0
      %v7761 = vsel %vm1041, %v7685, 0
      %7763 = vmatprep.subr.mxu0 0.0
      %7764 = vmatpush1.msra.mxu0 %v7412
      %7765 = vmatprep.subr.mxu0 0.0
      %7766 = vmatpush1.msra.mxu0 0.0
      %7767 = vmatprep.subr.mxu0 0.0
      %7768 = vmatpush1.msra.mxu0 0.0
      %7769 = vmatprep.subr.mxu0 0.0
      %7770 = vmatpush1.msra.mxu0 0.0
      %7771 = vmatprep.subr.mxu0 0.0
      %7772 = vmatpush1.msra.mxu0 0.0
      %7773 = vmatprep.subr.mxu0 0.0
      %7774 = vmatpush1.msra.mxu0 0.0
      %7775 = vmatprep.subr.mxu0 0.0
      %7776 = vmatpush1.msra.mxu0 0.0
      %7777 = vmatprep.subr.mxu0 0.0
      %7778 = vmatpush1.msra.mxu0 0.0
      %7779 = vmatprep.subr.mxu0 0.0
      %7780 = vmatpush1.msra.mxu0 0.0
      %7781 = vmatprep.subr.mxu0 0.0
      %7782 = vmatpush1.msra.mxu0 0.0
      %7783 = vmatprep.subr.mxu0 0.0
      %7784 = vmatpush1.msra.mxu0 0.0
      %7785 = vmatprep.subr.mxu0 0.0
      %7786 = vmatpush1.msra.mxu0 0.0
      %7787 = vmatprep.subr.mxu0 0.0
      %7788 = vmatpush1.msra.mxu0 0.0
      %7789 = vmatprep.subr.mxu0 0.0
      %7790 = vmatpush1.msra.mxu0 0.0
      %7791 = vmatprep.subr.mxu0 0.0
      %7792 = vmatpush1.msra.mxu0 0.0
      %7793 = vmatprep.subr.mxu0 0.0
      %7794 = vmatpush1.msra.mxu0 0.0
      %7795 = vmatprep.subr.mxu0 0.0
      %7796 = vmatpush1.msra.mxu0 0.0
      %7797 = vmatprep.subr.mxu0 0.0
      %7798 = vmatpush1.msra.mxu0 0.0
      %7799 = vmatprep.subr.mxu0 0.0
      %7800 = vmatpush1.msra.mxu0 0.0
      %7801 = vmatprep.subr.mxu0 0.0
      %7802 = vmatpush1.msra.mxu0 0.0
      %7803 = vmatprep.subr.mxu0 0.0
      %7804 = vmatpush1.msra.mxu0 0.0
      %7805 = vmatprep.subr.mxu0 0.0
      %7806 = vmatpush1.msra.mxu0 0.0
      %7807 = vmatprep.subr.mxu0 0.0
      %7808 = vmatpush1.msra.mxu0 0.0
      %7809 = vmatprep.subr.mxu0 0.0
      %7810 = vmatpush1.msra.mxu0 0.0
      %7811 = vmatprep.subr.mxu0 0.0
      %7812 = vmatpush1.msra.mxu0 0.0
      %7813 = vmatprep.subr.mxu0 0.0
      %7814 = vmatpush1.msra.mxu0 0.0
      %7815 = vmatprep.subr.mxu0 0.0
      %7816 = vmatpush1.msra.mxu0 0.0
      %7817 = vmatprep.subr.mxu0 0.0
      %7818 = vmatpush1.msra.mxu0 0.0
      %7819 = vmatprep.subr.mxu0 0.0
      %7820 = vmatpush1.msra.mxu0 0.0
      %7821 = vmatprep.subr.mxu0 0.0
      %7822 = vmatpush1.msra.mxu0 0.0
      %7823 = vmatprep.subr.mxu0 0.0
      %7824 = vmatpush1.msra.mxu0 0.0
      %7825 = vmatprep.subr.mxu0 0.0
      %7826 = vmatpush1.msra.mxu0 0.0
      %7827 = vmatprep.mubr.f32.mxu0 0.0
      %7828 = vmatmul.mubr.f32.gmra.mrb[0].mxu0 %v7761
      %v7829 = vpop.f32.mrb[0].mxu0
      %v7830 = vadd.f32 0.0, %v7829
      %v7831 = vpop.f32.mrb[0].mxu0
      %7832 = vdwg.mxu0
      %v7834 = vsel %vm1041, %v7686, 0
      %7836 = vmatprep.subr.mxu0 0.0
      %7837 = vmatpush1.msra.mxu0 %v7417
      %7838 = vmatprep.subr.mxu0 0.0
      %7839 = vmatpush1.msra.mxu0 0.0
      %7840 = vmatprep.subr.mxu0 0.0
      %7841 = vmatpush1.msra.mxu0 0.0
      %7842 = vmatprep.subr.mxu0 0.0
      %7843 = vmatpush1.msra.mxu0 0.0
      %7844 = vmatprep.subr.mxu0 0.0
      %7845 = vmatpush1.msra.mxu0 0.0
      %7846 = vmatprep.subr.mxu0 0.0
      %7847 = vmatpush1.msra.mxu0 0.0
      %7848 = vmatprep.subr.mxu0 0.0
      %7849 = vmatpush1.msra.mxu0 0.0
      %7850 = vmatprep.subr.mxu0 0.0
      %7851 = vmatpush1.msra.mxu0 0.0
      %7852 = vmatprep.subr.mxu0 0.0
      %7853 = vmatpush1.msra.mxu0 0.0
      %7854 = vmatprep.subr.mxu0 0.0
      %7855 = vmatpush1.msra.mxu0 0.0
      %7856 = vmatprep.subr.mxu0 0.0
      %7857 = vmatpush1.msra.mxu0 0.0
      %7858 = vmatprep.subr.mxu0 0.0
      %7859 = vmatpush1.msra.mxu0 0.0
      %7860 = vmatprep.subr.mxu0 0.0
      %7861 = vmatpush1.msra.mxu0 0.0
      %7862 = vmatprep.subr.mxu0 0.0
      %7863 = vmatpush1.msra.mxu0 0.0
      %7864 = vmatprep.subr.mxu0 0.0
      %7865 = vmatpush1.msra.mxu0 0.0
      %7866 = vmatprep.subr.mxu0 0.0
      %7867 = vmatpush1.msra.mxu0 0.0
      %7868 = vmatprep.subr.mxu0 0.0
      %7869 = vmatpush1.msra.mxu0 0.0
      %7870 = vmatprep.subr.mxu0 0.0
      %7871 = vmatpush1.msra.mxu0 0.0
      %7872 = vmatprep.subr.mxu0 0.0
      %7873 = vmatpush1.msra.mxu0 0.0
      %7874 = vmatprep.subr.mxu0 0.0
      %7875 = vmatpush1.msra.mxu0 0.0
      %7876 = vmatprep.subr.mxu0 0.0
      %7877 = vmatpush1.msra.mxu0 0.0
      %7878 = vmatprep.subr.mxu0 0.0
      %7879 = vmatpush1.msra.mxu0 0.0
      %7880 = vmatprep.subr.mxu0 0.0
      %7881 = vmatpush1.msra.mxu0 0.0
      %7882 = vmatprep.subr.mxu0 0.0
      %7883 = vmatpush1.msra.mxu0 0.0
      %7884 = vmatprep.subr.mxu0 0.0
      %7885 = vmatpush1.msra.mxu0 0.0
      %7886 = vmatprep.subr.mxu0 0.0
      %7887 = vmatpush1.msra.mxu0 0.0
      %7888 = vmatprep.subr.mxu0 0.0
      %7889 = vmatpush1.msra.mxu0 0.0
      %7890 = vmatprep.subr.mxu0 0.0
      %7891 = vmatpush1.msra.mxu0 0.0
      %7892 = vmatprep.subr.mxu0 0.0
      %7893 = vmatpush1.msra.mxu0 0.0
      %7894 = vmatprep.subr.mxu0 0.0
      %7895 = vmatpush1.msra.mxu0 0.0
      %7896 = vmatprep.subr.mxu0 0.0
      %7897 = vmatpush1.msra.mxu0 0.0
      %7898 = vmatprep.subr.mxu0 0.0
      %7899 = vmatpush1.msra.mxu0 0.0
      %7900 = vmatprep.mubr.f32.mxu0 0.0
      %7901 = vmatmul.mubr.f32.gmra.mrb[0].mxu0 %v7834
      %v7902 = vpop.f32.mrb[0].mxu0
      %v7903 = vadd.f32 0.0, %v7902
      %v7904 = vpop.f32.mrb[0].mxu0
      %7905 = vdwg.mxu0
      %s7906 = scalar_lea.vmem %s11, 56
      %v7907 = vld [vmem:[%s7906] sm:$0xff]
      %v7909 = vsel %vm1041, %v7757, 0
      %v7912 = vsel %vm1041, %v7830, 0
      %v7915 = vsel %vm1041, %v7903, 0
      %7917 = vmatprep.subr.mxu0 0.0
      %7918 = vmatpush1.msra.mxu0 %v7907
      %7919 = vmatprep.subr.mxu0 0.0
      %7920 = vmatpush1.msra.mxu0 0.0
      %7921 = vmatprep.subr.mxu0 0.0
      %7922 = vmatpush1.msra.mxu0 0.0
      %7923 = vmatprep.subr.mxu0 0.0
      %7924 = vmatpush1.msra.mxu0 0.0
      %7925 = vmatprep.subr.mxu0 0.0
      %7926 = vmatpush1.msra.mxu0 0.0
      %7927 = vmatprep.subr.mxu0 0.0
      %7928 = vmatpush1.msra.mxu0 0.0
      %7929 = vmatprep.subr.mxu0 0.0
      %7930 = vmatpush1.msra.mxu0 0.0
      %7931 = vmatprep.subr.mxu0 0.0
      %7932 = vmatpush1.msra.mxu0 0.0
      %7933 = vmatprep.subr.mxu0 0.0
      %7934 = vmatpush1.msra.mxu0 0.0
      %7935 = vmatprep.subr.mxu0 0.0
      %7936 = vmatpush1.msra.mxu0 0.0
      %7937 = vmatprep.subr.mxu0 0.0
      %7938 = vmatpush1.msra.mxu0 0.0
      %7939 = vmatprep.subr.mxu0 0.0
      %7940 = vmatpush1.msra.mxu0 0.0
      %7941 = vmatprep.subr.mxu0 0.0
      %7942 = vmatpush1.msra.mxu0 0.0
      %7943 = vmatprep.subr.mxu0 0.0
      %7944 = vmatpush1.msra.mxu0 0.0
      %7945 = vmatprep.subr.mxu0 0.0
      %7946 = vmatpush1.msra.mxu0 0.0
      %7947 = vmatprep.subr.mxu0 0.0
      %7948 = vmatpush1.msra.mxu0 0.0
      %7949 = vmatprep.subr.mxu0 0.0
      %7950 = vmatpush1.msra.mxu0 0.0
      %7951 = vmatprep.subr.mxu0 0.0
      %7952 = vmatpush1.msra.mxu0 0.0
      %7953 = vmatprep.subr.mxu0 0.0
      %7954 = vmatpush1.msra.mxu0 0.0
      %7955 = vmatprep.subr.mxu0 0.0
      %7956 = vmatpush1.msra.mxu0 0.0
      %7957 = vmatprep.subr.mxu0 0.0
      %7958 = vmatpush1.msra.mxu0 0.0
      %7959 = vmatprep.subr.mxu0 0.0
      %7960 = vmatpush1.msra.mxu0 0.0
      %7961 = vmatprep.subr.mxu0 0.0
      %7962 = vmatpush1.msra.mxu0 0.0
      %7963 = vmatprep.subr.mxu0 0.0
      %7964 = vmatpush1.msra.mxu0 0.0
      %7965 = vmatprep.subr.mxu0 0.0
      %7966 = vmatpush1.msra.mxu0 0.0
      %7967 = vmatprep.subr.mxu0 0.0
      %7968 = vmatpush1.msra.mxu0 0.0
      %7969 = vmatprep.subr.mxu0 0.0
      %7970 = vmatpush1.msra.mxu0 0.0
      %7971 = vmatprep.subr.mxu0 0.0
      %7972 = vmatpush1.msra.mxu0 0.0
      %7973 = vmatprep.subr.mxu0 0.0
      %7974 = vmatpush1.msra.mxu0 0.0
      %7975 = vmatprep.subr.mxu0 0.0
      %7976 = vmatpush1.msra.mxu0 0.0
      %7977 = vmatprep.subr.mxu0 0.0
      %7978 = vmatpush1.msra.mxu0 0.0
      %7979 = vmatprep.subr.mxu0 0.0
      %7980 = vmatpush1.msra.mxu0 0.0
      %7981 = vmatprep.mubr.f32.mxu0 0.0
      %7982 = vmatmul.mubr.f32.gmra.mrb[0].mxu0 %v7909
      %v7983 = vpop.f32.mrb[0].mxu0
      %v7984 = vadd.f32 0.0, %v7983
      %v7985 = vpop.f32.mrb[0].mxu0
      %7986 = vmatprep.mubr.f32.mxu0 0.0
      %7987 = vmatmul.mubr.f32.gmra.mrb[0].mxu0 %v7912
      %v7988 = vpop.f32.mrb[0].mxu0
      %v7989 = vadd.f32 0.0, %v7988
      %v7990 = vpop.f32.mrb[0].mxu0
      %7991 = vmatprep.mubr.f32.mxu0 0.0
      %7992 = vmatmul.mubr.f32.gmra.mrb[0].mxu0 %v7915
      %v7993 = vpop.f32.mrb[0].mxu0
      %v7994 = vadd.f32 0.0, %v7993
      %v7995 = vpop.f32.mrb[0].mxu0
      %7996 = vdwg.mxu0
      %v7997 = vadd.f32 %v7138, %v7984
      %v7998 = vadd.f32 %v7139, %v7989
      %v7999 = vadd.f32 %v7140, %v7994
      %v8000 = vadd.f32 %v4497, %v7997
      %v8001 = vadd.f32 %v4498, %v7998
      %v8002 = vadd.f32 %v4499, %v7999
      %s8003 = scalar_lea.vmem %s12, 1
      %v8004 = vld [vmem:[%s8003] sm:$0x1]
      %v8006 = vlaneseq
      %v8007 = vshrl.u32 %v8006, 7
      %v8008 = vsub.s32 0, %v8007
      %v8009 = vrot.slane %v8004, %v8008
      %v8011 = vadd.f32 %v8000, %v8009
      %v8012 = vadd.f32 %v8001, %v8009
      %v8013 = vadd.f32 %v8002, %v8009
      %s8014 = scalar_lea.vmem %s13, 1
      %v8015 = vld [vmem:[%s8014] sm:$0x1]
      %s8016 = scalar_lea.vmem %s14, 1
      %v8017 = vld [vmem:[%s8016] sm:$0x1]
      %v8018 = vsel %vm700, %v8011, 0.0
      %8019 = vadd.xlane.f32.xlu0 %v8018
      %v8020 = vpop.xlane.xlu0 %8019
      %v8021 = vsel %vm700, %v8012, 0.0
      %8022 = vadd.xlane.f32.xlu0 %v8021
      %v8023 = vpop.xlane.xlu0 %8022
      %v8024 = vsel %vm700, %v8013, 0.0
      %8025 = vadd.xlane.f32.xlu0 %v8024
      %v8026 = vpop.xlane.xlu0 %8025
      %v8027 = vmul.f32 %v8020, %v710
      %v8028 = vmul.f32 %v8023, %v710
      %v8029 = vmul.f32 %v8026, %v710
      %v8030 = vsub.f32 %v8011, %v8027
      %v8031 = vsub.f32 %v8012, %v8028
      %v8032 = vsub.f32 %v8013, %v8029
      %v8033 = vmul.f32 %v8030, %v8030
      %v8034 = vmul.f32 %v8031, %v8031
      %v8035 = vmul.f32 %v8032, %v8032
      %v8036 = vsel %vm700, %v8033, 0.0
      %8037 = vadd.xlane.f32.xlu0 %v8036
      %v8038 = vpop.xlane.xlu0 %8037
      %v8039 = vsel %vm700, %v8034, 0.0
      %8040 = vadd.xlane.f32.xlu0 %v8039
      %v8041 = vpop.xlane.xlu0 %8040
      %v8042 = vsel %vm700, %v8035, 0.0
      %8043 = vadd.xlane.f32.xlu0 %v8042
      %v8044 = vpop.xlane.xlu0 %8043
      %v8045 = vmul.f32 %v8038, %v710
      %v8046 = vmul.f32 %v8041, %v710
      %v8047 = vmul.f32 %v8044, %v710
      %v8048 = vadd.f32 %v8045, 1e-05
      %v8049 = vadd.f32 %v8046, 1e-05
      %v8050 = vadd.f32 %v8047, 1e-05
      %v8051 = vrsqrt.pop %v8048
      %v8052 = vrsqrt.pop %v8049
      %v8053 = vrsqrt.pop %v8050
      %v8054 = vmul.f32 %v8030, %v8051
      %v8055 = vmul.f32 %v8031, %v8052
      %v8056 = vmul.f32 %v8032, %v8053
      %v8058 = vlaneseq
      %v8059 = vshrl.u32 %v8058, 7
      %v8060 = vsub.s32 0, %v8059
      %v8061 = vrot.slane %v8015, %v8060
      %v8063 = vmul.f32 %v8054, %v8061
      %v8064 = vmul.f32 %v8055, %v8061
      %v8065 = vmul.f32 %v8056, %v8061
      %v8067 = vlaneseq
      %v8068 = vshrl.u32 %v8067, 7
      %v8069 = vsub.s32 0, %v8068
      %v8070 = vrot.slane %v8017, %v8069
      %v8072 = vadd.f32 %v8063, %v8070
      %v8073 = vadd.f32 %v8064, %v8070
      %v8074 = vadd.f32 %v8065, %v8070
      %s8075 = scalar_lea.vmem %s15, 32
      %v8076 = vld [vmem:[%s8075] sm:$0xff]
      %v8077 = vld [vmem:[%s8075 + $0x8] sm:$0xff]
      %v8078 = vld [vmem:[%s8075 + $0x10] sm:$0xff]
      %v8079 = vld [vmem:[%s8075 + $0x18] sm:$0xff]
      %s8080 = scalar_lea.vmem %s16, 1
      %v8081 = vld [vmem:[%s8080] sm:$0x1]
      %v8083 = vlaneseq
      %v8084 = vshrl.u32 %v8083, 7
      %v8085 = vsub.s32 0, %v8084
      %v8086 = vrot.slane %v8081, %v8085
      %v8089 = vsel %vm700, %v8072, 0
      %v8092 = vsel %vm700, %v8073, 0
      %v8095 = vsel %vm700, %v8074, 0
      %8097 = vmatprep.subr.mxu0 0.0
      %8098 = vmatpush1.msra.mxu0 %v8076
      %8099 = vmatprep.subr.mxu0 0.0
      %8100 = vmatpush1.msra.mxu0 %v8077
      %8101 = vmatprep.subr.mxu0 0.0
      %8102 = vmatpush1.msra.mxu0 %v8078
      %8103 = vmatprep.subr.mxu0 0.0
      %8104 = vmatpush1.msra.mxu0 %v8079
      %8105 = vmatprep.subr.mxu0 0.0
      %8106 = vmatpush1.msra.mxu0 0.0
      %8107 = vmatprep.subr.mxu0 0.0
      %8108 = vmatpush1.msra.mxu0 0.0
      %8109 = vmatprep.subr.mxu0 0.0
      %8110 = vmatpush1.msra.mxu0 0.0
      %8111 = vmatprep.subr.mxu0 0.0
      %8112 = vmatpush1.msra.mxu0 0.0
      %8113 = vmatprep.subr.mxu0 0.0
      %8114 = vmatpush1.msra.mxu0 0.0
      %8115 = vmatprep.subr.mxu0 0.0
      %8116 = vmatpush1.msra.mxu0 0.0
      %8117 = vmatprep.subr.mxu0 0.0
      %8118 = vmatpush1.msra.mxu0 0.0
      %8119 = vmatprep.subr.mxu0 0.0
      %8120 = vmatpush1.msra.mxu0 0.0
      %8121 = vmatprep.subr.mxu0 0.0
      %8122 = vmatpush1.msra.mxu0 0.0
      %8123 = vmatprep.subr.mxu0 0.0
      %8124 = vmatpush1.msra.mxu0 0.0
      %8125 = vmatprep.subr.mxu0 0.0
      %8126 = vmatpush1.msra.mxu0 0.0
      %8127 = vmatprep.subr.mxu0 0.0
      %8128 = vmatpush1.msra.mxu0 0.0
      %8129 = vmatprep.subr.mxu0 0.0
      %8130 = vmatpush1.msra.mxu0 0.0
      %8131 = vmatprep.subr.mxu0 0.0
      %8132 = vmatpush1.msra.mxu0 0.0
      %8133 = vmatprep.subr.mxu0 0.0
      %8134 = vmatpush1.msra.mxu0 0.0
      %8135 = vmatprep.subr.mxu0 0.0
      %8136 = vmatpush1.msra.mxu0 0.0
      %8137 = vmatprep.subr.mxu0 0.0
      %8138 = vmatpush1.msra.mxu0 0.0
      %8139 = vmatprep.subr.mxu0 0.0
      %8140 = vmatpush1.msra.mxu0 0.0
      %8141 = vmatprep.subr.mxu0 0.0
      %8142 = vmatpush1.msra.mxu0 0.0
      %8143 = vmatprep.subr.mxu0 0.0
      %8144 = vmatpush1.msra.mxu0 0.0
      %8145 = vmatprep.subr.mxu0 0.0
      %8146 = vmatpush1.msra.mxu0 0.0
      %8147 = vmatprep.subr.mxu0 0.0
      %8148 = vmatpush1.msra.mxu0 0.0
      %8149 = vmatprep.subr.mxu0 0.0
      %8150 = vmatpush1.msra.mxu0 0.0
      %8151 = vmatprep.subr.mxu0 0.0
      %8152 = vmatpush1.msra.mxu0 0.0
      %8153 = vmatprep.subr.mxu0 0.0
      %8154 = vmatpush1.msra.mxu0 0.0
      %8155 = vmatprep.subr.mxu0 0.0
      %8156 = vmatpush1.msra.mxu0 0.0
      %8157 = vmatprep.subr.mxu0 0.0
      %8158 = vmatpush1.msra.mxu0 0.0
      %8159 = vmatprep.subr.mxu0 0.0
      %8160 = vmatpush1.msra.mxu0 0.0
      %8161 = vmatprep.mubr.f32.mxu0 0.0
      %8162 = vmatmul.mubr.f32.gmra.mrb[0].mxu0 %v8089
      %v8163 = vpop.f32.mrb[0].mxu0
      %v8164 = vadd.f32 %v8086, %v8163
      %v8165 = vpop.f32.mrb[0].mxu0
      %8166 = vmatprep.mubr.f32.mxu0 0.0
      %8167 = vmatmul.mubr.f32.gmra.mrb[0].mxu0 %v8092
      %v8168 = vpop.f32.mrb[0].mxu0
      %v8169 = vadd.f32 %v8086, %v8168
      %v8170 = vpop.f32.mrb[0].mxu0
      %8171 = vmatprep.mubr.f32.mxu0 0.0
      %8172 = vmatmul.mubr.f32.gmra.mrb[0].mxu0 %v8095
      %v8173 = vpop.f32.mrb[0].mxu0
      %v8174 = vadd.f32 %v8086, %v8173
      %v8175 = vpop.f32.mrb[0].mxu0
      %8176 = vdwg.mxu0
      %v8177 = vmul.f32 %v8164, 0.5
      %v8178 = vmul.f32 %v8169, 0.5
      %v8179 = vmul.f32 %v8174, 0.5
      %v8180 = vmul.f32 %v8164, 0.044715
      %v8181 = vmul.f32 %v8169, 0.044715
      %v8182 = vmul.f32 %v8174, 0.044715
      %v8183 = vmul.f32 %v8180, %v8164
      %v8184 = vmul.f32 %v8181, %v8169
      %v8185 = vmul.f32 %v8182, %v8174
      %v8186 = vmul.f32 %v8183, %v8164
      %v8187 = vmul.f32 %v8184, %v8169
      %v8188 = vmul.f32 %v8185, %v8174
      %v8189 = vadd.f32 %v8164, %v8186
      %v8190 = vadd.f32 %v8169, %v8187
      %v8191 = vadd.f32 %v8174, %v8188
      %v8192 = vmul.f32 %v8189, 0.7978846
      %v8193 = vmul.f32 %v8190, 0.7978846
      %v8194 = vmul.f32 %v8191, 0.7978846
      %v8195 = vtanh.pop %v8192
      %v8196 = vtanh.pop %v8193
      %v8197 = vtanh.pop %v8194
      %v8198 = vadd.f32 %v8195, 1.0
      %v8199 = vadd.f32 %v8196, 1.0
      %v8200 = vadd.f32 %v8197, 1.0
      %v8201 = vmul.f32 %v8177, %v8198
      %v8202 = vmul.f32 %v8178, %v8199
      %v8203 = vmul.f32 %v8179, %v8200
      %s8204 = scalar_lea.vmem %s17, 128
      %v8205 = vld [vmem:[%s8204] sm:$0xff]
      %v8206 = vld [vmem:[%s8204 + $0x8] sm:$0xff]
      %v8207 = vld [vmem:[%s8204 + $0x10] sm:$0xff]
      %v8208 = vld [vmem:[%s8204 + $0x18] sm:$0xff]
      %v8209 = vld [vmem:[%s8204 + $0x20] sm:$0xff]
      %v8210 = vld [vmem:[%s8204 + $0x28] sm:$0xff]
      %v8211 = vld [vmem:[%s8204 + $0x30] sm:$0xff]
      %v8212 = vld [vmem:[%s8204 + $0x38] sm:$0xff]
      %v8213 = vld [vmem:[%s8204 + $0x40] sm:$0xff]
      %v8214 = vld [vmem:[%s8204 + $0x48] sm:$0xff]
      %v8215 = vld [vmem:[%s8204 + $0x50] sm:$0xff]
      %v8216 = vld [vmem:[%s8204 + $0x58] sm:$0xff]
      %v8217 = vld [vmem:[%s8204 + $0x60] sm:$0xff]
      %v8218 = vld [vmem:[%s8204 + $0x68] sm:$0xff]
      %v8219 = vld [vmem:[%s8204 + $0x70] sm:$0xff]
      %v8220 = vld [vmem:[%s8204 + $0x78] sm:$0xff]
      %8221 = vmatprep.subr.mxu0 0.0
      %8222 = vmatpush1.msra.mxu0 %v8205
      %8223 = vmatprep.subr.mxu0 0.0
      %8224 = vmatpush1.msra.mxu0 %v8206
      %8225 = vmatprep.subr.mxu0 0.0
      %8226 = vmatpush1.msra.mxu0 %v8207
      %8227 = vmatprep.subr.mxu0 0.0
      %8228 = vmatpush1.msra.mxu0 %v8208
      %8229 = vmatprep.subr.mxu0 0.0
      %8230 = vmatpush1.msra.mxu0 %v8209
      %8231 = vmatprep.subr.mxu0 0.0
      %8232 = vmatpush1.msra.mxu0 %v8210
      %8233 = vmatprep.subr.mxu0 0.0
      %8234 = vmatpush1.msra.mxu0 %v8211
      %8235 = vmatprep.subr.mxu0 0.0
      %8236 = vmatpush1.msra.mxu0 %v8212
      %8237 = vmatprep.subr.mxu0 0.0
      %8238 = vmatpush1.msra.mxu0 %v8213
      %8239 = vmatprep.subr.mxu0 0.0
      %8240 = vmatpush1.msra.mxu0 %v8214
      %8241 = vmatprep.subr.mxu0 0.0
      %8242 = vmatpush1.msra.mxu0 %v8215
      %8243 = vmatprep.subr.mxu0 0.0
      %8244 = vmatpush1.msra.mxu0 %v8216
      %8245 = vmatprep.subr.mxu0 0.0
      %8246 = vmatpush1.msra.mxu0 %v8217
      %8247 = vmatprep.subr.mxu0 0.0
      %8248 = vmatpush1.msra.mxu0 %v8218
      %8249 = vmatprep.subr.mxu0 0.0
      %8250 = vmatpush1.msra.mxu0 %v8219
      %8251 = vmatprep.subr.mxu0 0.0
      %8252 = vmatpush1.msra.mxu0 %v8220
      %8253 = vmatprep.subr.mxu0 0.0
      %8254 = vmatpush1.msra.mxu0 0.0
      %8255 = vmatprep.subr.mxu0 0.0
      %8256 = vmatpush1.msra.mxu0 0.0
      %8257 = vmatprep.subr.mxu0 0.0
      %8258 = vmatpush1.msra.mxu0 0.0
      %8259 = vmatprep.subr.mxu0 0.0
      %8260 = vmatpush1.msra.mxu0 0.0
      %8261 = vmatprep.subr.mxu0 0.0
      %8262 = vmatpush1.msra.mxu0 0.0
      %8263 = vmatprep.subr.mxu0 0.0
      %8264 = vmatpush1.msra.mxu0 0.0
      %8265 = vmatprep.subr.mxu0 0.0
      %8266 = vmatpush1.msra.mxu0 0.0
      %8267 = vmatprep.subr.mxu0 0.0
      %8268 = vmatpush1.msra.mxu0 0.0
      %8269 = vmatprep.subr.mxu0 0.0
      %8270 = vmatpush1.msra.mxu0 0.0
      %8271 = vmatprep.subr.mxu0 0.0
      %8272 = vmatpush1.msra.mxu0 0.0
      %8273 = vmatprep.subr.mxu0 0.0
      %8274 = vmatpush1.msra.mxu0 0.0
      %8275 = vmatprep.subr.mxu0 0.0
      %8276 = vmatpush1.msra.mxu0 0.0
      %8277 = vmatprep.subr.mxu0 0.0
      %8278 = vmatpush1.msra.mxu0 0.0
      %8279 = vmatprep.subr.mxu0 0.0
      %8280 = vmatpush1.msra.mxu0 0.0
      %8281 = vmatprep.subr.mxu0 0.0
      %8282 = vmatpush1.msra.mxu0 0.0
      %8283 = vmatprep.subr.mxu0 0.0
      %8284 = vmatpush1.msra.mxu0 0.0
      %8285 = vmatprep.mubr.f32.mxu0 0.0
      %8286 = vmatmul.mubr.f32.gmra.mrb[0].mxu0 %v8201
      %v8287 = vpop.f32.mrb[0].mxu0
      %v8288 = vadd.f32 0.0, %v8287
      %v8289 = vpop.f32.mrb[0].mxu0
      %8290 = vmatprep.mubr.f32.mxu0 0.0
      %8291 = vmatmul.mubr.f32.gmra.mrb[0].mxu0 %v8202
      %v8292 = vpop.f32.mrb[0].mxu0
      %v8293 = vadd.f32 0.0, %v8292
      %v8294 = vpop.f32.mrb[0].mxu0
      %8295 = vmatprep.mubr.f32.mxu0 0.0
      %8296 = vmatmul.mubr.f32.gmra.mrb[0].mxu0 %v8203
      %v8297 = vpop.f32.mrb[0].mxu0
      %v8298 = vadd.f32 0.0, %v8297
      %v8299 = vpop.f32.mrb[0].mxu0
      %8300 = vdwg.mxu0
      %v8301 = vadd.f32 %v8011, %v8288
      %v8302 = vadd.f32 %v8012, %v8293
      %v8303 = vadd.f32 %v8013, %v8298
      %s8304 = scalar_lea.vmem %s18, 1
      %v8305 = vld [vmem:[%s8304] sm:$0x1]
      %v8307 = vlaneseq
      %v8308 = vshrl.u32 %v8307, 7
      %v8309 = vsub.s32 0, %v8308
      %v8310 = vrot.slane %v8305, %v8309
      %v8312 = vadd.f32 %v8301, %v8310
      %v8313 = vadd.f32 %v8302, %v8310
      %v8314 = vadd.f32 %v8303, %v8310
      %v8315 = vld [vmem:[%s687] sm:$0x7]
      %vm8316 = vcmask 195584
      %v8318 = vsel %vm8316, %v8315, 0
      %8320 = vmatprep.subr.mxu0 0.0
      %8321 = vmatpush1.msra.mxu0 %v8312
      %8322 = vmatprep.subr.mxu0 0.0
      %8323 = vmatpush1.msra.mxu0 %v8313
      %8324 = vmatprep.subr.mxu0 0.0
      %8325 = vmatpush1.msra.mxu0 %v8314
      %8326 = vmatprep.subr.mxu0 0.0
      %8327 = vmatpush1.msra.mxu0 0.0
      %8328 = vmatprep.subr.mxu0 0.0
      %8329 = vmatpush1.msra.mxu0 0.0
      %8330 = vmatprep.subr.mxu0 0.0
      %8331 = vmatpush1.msra.mxu0 0.0
      %8332 = vmatprep.subr.mxu0 0.0
      %8333 = vmatpush1.msra.mxu0 0.0
      %8334 = vmatprep.subr.mxu0 0.0
      %8335 = vmatpush1.msra.mxu0 0.0
      %8336 = vmatprep.subr.mxu0 0.0
      %8337 = vmatpush1.msra.mxu0 0.0
      %8338 = vmatprep.subr.mxu0 0.0
      %8339 = vmatpush1.msra.mxu0 0.0
      %8340 = vmatprep.subr.mxu0 0.0
      %8341 = vmatpush1.msra.mxu0 0.0
      %8342 = vmatprep.subr.mxu0 0.0
      %8343 = vmatpush1.msra.mxu0 0.0
      %8344 = vmatprep.subr.mxu0 0.0
      %8345 = vmatpush1.msra.mxu0 0.0
      %8346 = vmatprep.subr.mxu0 0.0
      %8347 = vmatpush1.msra.mxu0 0.0
      %8348 = vmatprep.subr.mxu0 0.0
      %8349 = vmatpush1.msra.mxu0 0.0
      %8350 = vmatprep.subr.mxu0 0.0
      %8351 = vmatpush1.msra.mxu0 0.0
      %8352 = vmatprep.subr.mxu0 0.0
      %8353 = vmatpush1.msra.mxu0 0.0
      %8354 = vmatprep.subr.mxu0 0.0
      %8355 = vmatpush1.msra.mxu0 0.0
      %8356 = vmatprep.subr.mxu0 0.0
      %8357 = vmatpush1.msra.mxu0 0.0
      %8358 = vmatprep.subr.mxu0 0.0
      %8359 = vmatpush1.msra.mxu0 0.0
      %8360 = vmatprep.subr.mxu0 0.0
      %8361 = vmatpush1.msra.mxu0 0.0
      %8362 = vmatprep.subr.mxu0 0.0
      %8363 = vmatpush1.msra.mxu0 0.0
      %8364 = vmatprep.subr.mxu0 0.0
      %8365 = vmatpush1.msra.mxu0 0.0
      %8366 = vmatprep.subr.mxu0 0.0
      %8367 = vmatpush1.msra.mxu0 0.0
      %8368 = vmatprep.subr.mxu0 0.0
      %8369 = vmatpush1.msra.mxu0 0.0
      %8370 = vmatprep.subr.mxu0 0.0
      %8371 = vmatpush1.msra.mxu0 0.0
      %8372 = vmatprep.subr.mxu0 0.0
      %8373 = vmatpush1.msra.mxu0 0.0
      %8374 = vmatprep.subr.mxu0 0.0
      %8375 = vmatpush1.msra.mxu0 0.0
      %8376 = vmatprep.subr.mxu0 0.0
      %8377 = vmatpush1.msra.mxu0 0.0
      %8378 = vmatprep.subr.mxu0 0.0
      %8379 = vmatpush1.msra.mxu0 0.0
      %8380 = vmatprep.subr.mxu0 0.0
      %8381 = vmatpush1.msra.mxu0 0.0
      %8382 = vmatprep.subr.mxu0 0.0
      %8383 = vmatpush1.msra.mxu0 0.0
      %8384 = vmatprep.mubr.f32.mxu0 0.0
      %8385 = vmatmul.mubr.f32.gmra.mrb[0].mxu0 %v8318
      %v8386 = vpop.f32.mrb[0].mxu0
      %v8387 = vadd.f32 0.0, %v8386
      %v8388 = vpop.f32.mrb[0].mxu0
      %8389 = vdwg.mxu0
      %v8390 = vld [vmem:[%s19] sm:$0x1]
      %v8391 = vld [vmem:[%s20] sm:$0x1]
      %vm8392 = vcmask 256000
      %v8393 = vsel %vm8392, %v8387, 0.0
      %8394 = vadd.xlane.f32.xlu0 %v8393
      %v8395 = vpop.xlane.xlu0 %8394
      %v8396 = vmul.f32 %v8395, %v710
      %v8397 = vsub.f32 %v8387, %v8396
      %v8398 = vmul.f32 %v8397, %v8397
      %v8399 = vsel %vm8392, %v8398, 0.0
      %8400 = vadd.xlane.f32.xlu0 %v8399
      %v8401 = vpop.xlane.xlu0 %8400
      %v8402 = vmul.f32 %v8401, %v710
      %v8403 = vadd.f32 %v8402, 1e-05
      %v8404 = vrsqrt.pop %v8403
      %v8405 = vmul.f32 %v8397, %v8404
      %v8407 = vlaneseq
      %v8408 = vshrl.u32 %v8407, 7
      %v8409 = vsub.s32 0, %v8408
      %v8410 = vrot.slane %v8390, %v8409
      %v8412 = vmul.f32 %v8405, %v8410
      %v8414 = vlaneseq
      %v8415 = vshrl.u32 %v8414, 7
      %v8416 = vsub.s32 0, %v8415
      %v8417 = vrot.slane %v8391, %v8416
      %v8419 = vadd.f32 %v8412, %v8417
      %8420 = vst.msk [vmem:[%s691] sm:$0x7] %vm8392, %v8419
      %p8421 = scmp.lt.s32.totalorder %s32, 1
      %s8422 = scalar_select %p8421, %s32, 1
      %s8423 = smul.addr %s8422, 4
      %s8424 = scalar_lea.vmem %s21, %s8423
      // Predicated region
      $region105: #{hfllm_forward.1} parent=103 // pred_check
        %p8425 = pneg %p506
      $region106: #{hfllm_forward.1} parent=103 // pred_check_branch
        %8427 = sbr.rel (%p8425) target = $region108
      $region107: #{hfllm_forward.1} parent=103 // pred_region
        _
      $region108: #{hfllm_forward.1} parent=103 // pred_fallthru
        _
    $region104: #{hfllm_forward.1} parent=5 // pred_fallthru
      _
    %p8428 = scmp.le.s32.totalorder 2, %s27
    // Predicated region
    $region109: #{hfllm_forward.1} parent=5 // pred_check
      %p8429 = pneg %p8428
    $region110: #{hfllm_forward.1} parent=5 // pred_check_branch
      %8431 = sbr.rel (%p8429) target = $region112
    $region111: #{hfllm_forward.1} parent=5 // pred_region
      %s8432 = ssub.s32 %s27, 2
      // Predicated region
      $region113: #{hfllm_forward.1} parent=111 // pred_check
        %p8433 = pneg %p512
      $region114: #{hfllm_forward.1} parent=111 // pred_check_branch
        %8435 = sbr.rel (%p8433) target = $region116
      $region115: #{hfllm_forward.1} parent=111 // pred_region
        %p8436 = scmp.lt.s32.totalorder %s33, 1
        %s8437 = scalar_select %p8436, %s33, 1
        %s8438 = smul.addr %s8437, 4
        %s8439 = scalar_lea.vmem %s21, %s8438
      $region116: #{hfllm_forward.1} parent=111 // pred_fallthru
        _
    $region112: #{hfllm_forward.1} parent=5 // pred_fallthru
      _
  $region6: #{hfllm_forward.1} parent=0 // loop_footer
    %s31 = sadd.s32 1, %s27
  $region7: #{hfllm_forward.1} parent=0 // loop_footer_branch
    %26 = sbr.rel target = $region3
  $region8: #{hfllm_forward.1} parent=0 // loop_exit
    _

</llo_original>
